<compile_context>
chip_gen: v7x
topology: tpu7x:2x2x1
jax: 0.10.0
libtpu: 0.0.40
codegen_flags: <defaults>
</compile_context>

<pallas_src>
import jax
import jax.numpy as jnp
from jax.experimental import pallas as pl
from jax.experimental.pallas import tpu as pltpu


def cnn_fused_kernel(x_ref, w1_ref, b1_ref, w2_ref, b2_ref,
                     wfc1_ref, bfc1_ref, wfc2_ref, bfc2_ref,
                     out_ref,
                     y1_ref, h1_ref, y2_ref):
    """Fused conv1+pool1 -> conv2 -> (pool2 + flatten + fc1) -> fc2.

    Per batch tile of TB samples:
      x_ref    : (TB*L, C)            length-major rows (row = b*L + l)
      w1_ref   : (K, C, O1)           conv1 weights per tap
      w2_ref   : (K, O1, O2)          conv2 weights per tap
      wfc1_ref : (O2*Lp2, H)          fc1 weights, permuted to length-major flatten
      out_ref  : (TB, OUT)
      y1_ref   : (TB*L - K + 1, O1)   conv1 pre-pool (batch-folded, has seam rows)
      h1_ref   : (TB*Lp1, O1)         conv1 pooled   (dense, per-batch valid)
      y2_ref   : (TB*Lp1 - K + 1, O2) conv2 pre-pool (batch-folded, has seam rows)
    """
    TB = out_ref.shape[0]
    K, _, O1 = w1_ref.shape
    O2 = w2_ref.shape[2]
    H = wfc1_ref.shape[1]
    L = x_ref.shape[0] // TB
    Lout1 = L - K + 1
    Lp1 = Lout1 // 2
    Lout2 = Lp1 - K + 1
    Lp2 = Lout2 // 2
    R1 = y1_ref.shape[0]          # = TB*L  - (K-1)
    R2 = y2_ref.shape[0]          # = TB*Lp1 - (K-1)

    # ---- conv1: K tap-shifted matmuls, one full batch-folded slab each, ----
    #      accumulated straight into VMEM scratch (no concat, no vreg spill).
    #      The K-1 rows straddling each batch boundary are garbage and are
    #      simply never read by the pooling below.
    y1_ref[...] = jnp.dot(x_ref[pl.ds(0, R1), :], w1_ref[0],
                          preferred_element_type=jnp.float32)
    for k in range(1, K):
        y1_ref[...] += jnp.dot(x_ref[pl.ds(k, R1), :], w1_ref[k],
                               preferred_element_type=jnp.float32)
    y1_ref[...] = jnp.maximum(y1_ref[...] + b1_ref[...], 0.0)

    # ---- maxpool1d(2): per-batch max of two stride-2 sublane views ---------
    for b in range(TB):
        h1_ref[pl.ds(b * Lp1, Lp1), :] = jnp.maximum(
            y1_ref[pl.ds(b * L, Lp1, 2), :],
            y1_ref[pl.ds(b * L + 1, Lp1, 2), :])

    # ---- conv2: same accumulated-tap scheme on the pooled maps -------------
    y2_ref[...] = jnp.dot(h1_ref[pl.ds(0, R2), :], w2_ref[0],
                          preferred_element_type=jnp.float32)
    for k in range(1, K):
        y2_ref[...] += jnp.dot(h1_ref[pl.ds(k, R2), :], w2_ref[k],
                               preferred_element_type=jnp.float32)
    y2_ref[...] = jnp.maximum(y2_ref[...] + b2_ref[...], 0.0)

    # ---- maxpool1d(2) + flatten + fc1, fused --------------------------------
    #      fc1 = sum_j pooled[:, j, :] @ wfc1[j*O2:(j+1)*O2, :]   (length-major
    #      wfc1), so no flatten buffer and no masked narrow-lane stores.
    acc = jnp.zeros((TB, H), jnp.float32)
    for j in range(Lp2):
        pooled_j = jnp.maximum(y2_ref[pl.ds(2 * j, TB, Lp1), :],
                               y2_ref[pl.ds(2 * j + 1, TB, Lp1), :])    # (TB, O2)
        acc = acc + jnp.dot(pooled_j, wfc1_ref[pl.ds(j * O2, O2), :],
                            preferred_element_type=jnp.float32)
    h = jnp.maximum(acc + bfc1_ref[...], 0.0)

    # ---- fc2 -----------------------------------------------------------------
    out_ref[...] = (jnp.dot(h, wfc2_ref[...], preferred_element_type=jnp.float32)
                    + bfc2_ref[...]).astype(out_ref.dtype)


def cnn_forward(x, params, *, batch_tile=None):
    """x: (B, num_channels, L) float32, NCL layout like the PyTorch module."""
    B, C, L = x.shape
    O1, _, K = params["w_conv1"].shape           # (16, C, 3)
    O2 = params["w_conv2"].shape[0]              # 32
    H = params["w_fc1"].shape[1]                 # 100
    OUT = params["w_fc2"].shape[1]
    Lout1 = L - K + 1
    Lp1 = Lout1 // 2
    Lout2 = Lp1 - K + 1
    Lp2 = Lout2 // 2
    # Batch-folded stride-2 pooling assumes even conv output lengths.
    assert Lout1 % 2 == 0 and Lout2 % 2 == 0, (Lout1, Lout2)
    assert params["w_fc1"].shape[0] == O2 * Lp2

    # Batch tile: whole batch unless it is large and 8-divisible, in which
    # case tile it so the 1-D batch grid can be sharded across TensorCores.
    if batch_tile is None:
        batch_tile = 8 if (B % 8 == 0 and B > 8) else B
    TB = batch_tile
    assert B % TB == 0
    if TB != B:
        # (8,128) BlockSpec rule: sublane dims of partial blocks are 8-aligned.
        assert TB % 8 == 0 and (TB * L) % 8 == 0

    # --- one-time layout glue on raw input / weights only ---
    x2d = x.transpose(0, 2, 1).reshape(B * L, C).astype(jnp.float32)    # (B*L, C)
    w1 = params["w_conv1"].transpose(2, 1, 0).astype(jnp.float32)       # (K, C, O1)
    b1 = params["b_conv1"].reshape(1, O1).astype(jnp.float32)
    w2 = params["w_conv2"].transpose(2, 1, 0).astype(jnp.float32)       # (K, O1, O2)
    b2 = params["b_conv2"].reshape(1, O2).astype(jnp.float32)
    # fc1 weight stored (in = c*Lp2 + j channel-major, H); permute to
    # length-major (j*O2 + c) so fc1 is an accumulation over pooled positions.
    wfc1 = (params["w_fc1"].reshape(O2, Lp2, H).transpose(1, 0, 2)
            .reshape(O2 * Lp2, H).astype(jnp.float32))
    bfc1 = params["b_fc1"].reshape(1, H).astype(jnp.float32)
    wfc2 = params["w_fc2"].astype(jnp.float32)                          # (H, OUT)
    bfc2 = params["b_fc2"].reshape(1, OUT).astype(jnp.float32)

    R1 = TB * L - (K - 1)
    R2 = TB * Lp1 - (K - 1)

    def replicated(arr):
        nd = arr.ndim
        return pl.BlockSpec(arr.shape, lambda i, nd=nd: (0,) * nd)

    in_specs = [
        pl.BlockSpec((TB * L, C), lambda i: (i, 0)),
        replicated(w1), replicated(b1), replicated(w2), replicated(b2),
        replicated(wfc1), replicated(bfc1), replicated(wfc2), replicated(bfc2),
    ]
    out_specs = pl.BlockSpec((TB, OUT), lambda i: (i, 0))

    flops = 2 * B * (Lout1 * C * K * O1 + Lout2 * O1 * K * O2
                     + Lp2 * O2 * H + H * OUT)
    bytes_accessed = 4 * (x2d.size + w1.size + b1.size + w2.size + b2.size
                          + wfc1.size + bfc1.size + wfc2.size + bfc2.size
                          + B * OUT)

    return pl.pallas_call(
        cnn_fused_kernel,
        out_shape=jax.ShapeDtypeStruct((B, OUT), jnp.float32),
        grid=(B // TB,),
        in_specs=in_specs,
        out_specs=out_specs,
        scratch_shapes=[
            pltpu.VMEM((R1, O1), jnp.float32),        # conv1 pre-pool (+ seam rows)
            pltpu.VMEM((TB * Lp1, O1), jnp.float32),  # conv1 pooled
            pltpu.VMEM((R2, O2), jnp.float32),        # conv2 pre-pool (+ seam rows)
        ],
        compiler_params=pltpu.CompilerParams(
            dimension_semantics=("parallel",)),
        cost_estimate=pl.CostEstimate(flops=flops, transcendentals=0,
                                      bytes_accessed=bytes_accessed),
    )(x2d, w1, b1, w2, b2, wfc1, bfc1, wfc2, bfc2)


def cnn_reference(x, params):
    """Pure-JAX reference mirroring the PyTorch forward (for self-check)."""
    def conv1d(h, w, b):
        K = w.shape[2]
        Lout = h.shape[-1] - K + 1
        cols = jnp.stack([h[:, :, k:k + Lout] for k in range(K)], axis=-1)  # (B,C,Lout,K)
        return jnp.einsum("bclk,ock->bol", cols, w,
                          precision=jax.lax.Precision.HIGHEST) + b[None, :, None]

    def pool(h):
        Lp = h.shape[-1] // 2
        return jnp.maximum(h[:, :, 0:2 * Lp:2], h[:, :, 1:2 * Lp:2])

    h = pool(jnp.maximum(conv1d(x, params["w_conv1"], params["b_conv1"]), 0.0))
    h = pool(jnp.maximum(conv1d(h, params["w_conv2"], params["b_conv2"]), 0.0))
    flat = h.reshape(h.shape[0], -1)                      # channel-major flatten
    h = jnp.maximum(
        jnp.dot(flat, params["w_fc1"], precision=jax.lax.Precision.HIGHEST)
        + params["b_fc1"], 0.0)
    return (jnp.dot(h, params["w_fc2"], precision=jax.lax.Precision.HIGHEST)
            + params["b_fc2"])


if __name__ == "__main__":
    num_channels = 4
    output_dim = 10
    B = 16    # batched so the folded matmul rows approach the MXU sweet spot
    L = 102   # ((102 - 2)//2 - 2)//2 == 24, matching fc1's 32*24 input

    key = jax.random.PRNGKey(0)
    ks = jax.random.split(key, 9)

    def uinit(k, shape, fan_in):
        bound = 1.0 / float(fan_in) ** 0.5
        return jax.random.uniform(k, shape, jnp.float32, -bound, bound)

    params = {
        # conv weights kept in PyTorch layout (out_ch, in_ch, kernel)
        "w_conv1": uinit(ks[0], (16, num_channels, 3), num_channels * 3),
        "b_conv1": uinit(ks[1], (16,), num_channels * 3),
        "w_conv2": uinit(ks[2], (32, 16, 3), 16 * 3),
        "b_conv2": uinit(ks[3], (32,), 16 * 3),
        # fc weights stored matmul-ready as (in_features, out_features)
        "w_fc1": uinit(ks[4], (32 * 24, 100), 32 * 24),
        "b_fc1": uinit(ks[5], (100,), 32 * 24),
        "w_fc2": uinit(ks[6], (100, output_dim), 100),
        "b_fc2": uinit(ks[7], (output_dim,), 100),
    }

    x = jax.random.normal(ks[8], (B, num_channels, L), jnp.float32)

    out = jax.block_until_ready(jax.jit(cnn_forward)(x, params))
    assert out.shape == (B, output_dim), out.shape
    assert bool(jnp.all(jnp.isfinite(out)))

    ref = cnn_reference(x, params)
    max_err = float(jnp.max(jnp.abs(out - ref)))
    assert bool(jnp.allclose(out, ref, rtol=2e-2, atol=2e-2)), max_err
    print("KERNEL_OK")
</pallas_src>

<mosaic_0001>
module attributes {stable_mosaic.version = 11 : i64} {
  func.func @cnn_fused_kernel(%arg0: i32, %arg1: memref<816x4xf32, #tpu.memory_space<vmem>>, %arg2: memref<3x4x16xf32, #tpu.memory_space<vmem>>, %arg3: memref<1x16xf32, #tpu.memory_space<vmem>>, %arg4: memref<3x16x32xf32, #tpu.memory_space<vmem>>, %arg5: memref<1x32xf32, #tpu.memory_space<vmem>>, %arg6: memref<768x100xf32, #tpu.memory_space<vmem>>, %arg7: memref<1x100xf32, #tpu.memory_space<vmem>>, %arg8: memref<100x10xf32, #tpu.memory_space<vmem>>, %arg9: memref<1x10xf32, #tpu.memory_space<vmem>>, %arg10: memref<8x10xf32, #tpu.memory_space<vmem>>, %arg11: memref<814x16xf32, #tpu.memory_space<vmem>>, %arg12: memref<400x16xf32, #tpu.memory_space<vmem>>, %arg13: memref<398x32xf32, #tpu.memory_space<vmem>>) attributes {dimension_semantics = [#tpu.dimension_semantics<parallel>], iteration_bounds = array<i64: 2>, scalar_prefetch = 0 : i64, scratch_operands = 3 : i64, tpu.core_type = #tpu.core_type<tc>, window_params = [{transform_indices = @transform_0, window_bounds = array<i64: 816, 4>}, {pipeline_mode = #tpu.pipeline_mode<synchronous>, transform_indices = @transform_1, window_bounds = array<i64: 3, 4, 16>}, {pipeline_mode = #tpu.pipeline_mode<synchronous>, transform_indices = @transform_2, window_bounds = array<i64: 1, 16>}, {pipeline_mode = #tpu.pipeline_mode<synchronous>, transform_indices = @transform_3, window_bounds = array<i64: 3, 16, 32>}, {pipeline_mode = #tpu.pipeline_mode<synchronous>, transform_indices = @transform_4, window_bounds = array<i64: 1, 32>}, {pipeline_mode = #tpu.pipeline_mode<synchronous>, transform_indices = @transform_5, window_bounds = array<i64: 768, 100>}, {pipeline_mode = #tpu.pipeline_mode<synchronous>, transform_indices = @transform_6, window_bounds = array<i64: 1, 100>}, {pipeline_mode = #tpu.pipeline_mode<synchronous>, transform_indices = @transform_7, window_bounds = array<i64: 100, 10>}, {pipeline_mode = #tpu.pipeline_mode<synchronous>, transform_indices = @transform_8, window_bounds = array<i64: 1, 10>}, {transform_indices = @transform_9, window_bounds = array<i64: 8, 10>}]} {
    %c0 = arith.constant 0 : index
    %c0_0 = arith.constant 0 : index
    %0 = vector.load %arg1[%c0, %c0_0] : memref<816x4xf32, #tpu.memory_space<vmem>>, vector<814x4xf32>
    %c0_1 = arith.constant 0 : index
    %c0_2 = arith.constant 0 : index
    %c0_3 = arith.constant 0 : index
    %1 = vector.load %arg2[%c0_1, %c0_2, %c0_3] : memref<3x4x16xf32, #tpu.memory_space<vmem>>, vector<1x4x16xf32>
    %2 = vector.shape_cast %1 : vector<1x4x16xf32> to vector<4x16xf32>
    %cst = arith.constant dense<0.000000e+00> : vector<814x16xf32>
    %3 = tpu.matmul %0, %2, %cst {dimension_numbers = #tpu.dot_dimension_numbers<[1], [0], [0], [1], [0, 0, 1, 1], [], []>} : vector<814x4xf32>, vector<4x16xf32>, vector<814x16xf32> -> vector<814x16xf32>
    %c0_4 = arith.constant 0 : index
    %c0_5 = arith.constant 0 : index
    %4 = vector.load %arg11[%c0_4, %c0_5] : memref<814x16xf32, #tpu.memory_space<vmem>>, vector<814x16xf32>
    tpu.vector_store %arg11[%c0_4, %c0_5], %3 {strides = array<i32>} : memref<814x16xf32, #tpu.memory_space<vmem>>, vector<814x16xf32>,
    %c0_6 = arith.constant 0 : index
    %c0_7 = arith.constant 0 : index
    %5 = vector.load %arg11[%c0_6, %c0_7] : memref<814x16xf32, #tpu.memory_space<vmem>>, vector<814x16xf32>
    %c1 = arith.constant 1 : index
    %c0_8 = arith.constant 0 : index
    %6 = vector.load %arg1[%c1, %c0_8] : memref<816x4xf32, #tpu.memory_space<vmem>>, vector<814x4xf32>
    %c1_9 = arith.constant 1 : index
    %c0_10 = arith.constant 0 : index
    %c0_11 = arith.constant 0 : index
    %7 = vector.load %arg2[%c1_9, %c0_10, %c0_11] : memref<3x4x16xf32, #tpu.memory_space<vmem>>, vector<1x4x16xf32>
    %8 = vector.shape_cast %7 : vector<1x4x16xf32> to vector<4x16xf32>
    %cst_12 = arith.constant dense<0.000000e+00> : vector<814x16xf32>
    %9 = tpu.matmul %6, %8, %cst_12 {dimension_numbers = #tpu.dot_dimension_numbers<[1], [0], [0], [1], [0, 0, 1, 1], [], []>} : vector<814x4xf32>, vector<4x16xf32>, vector<814x16xf32> -> vector<814x16xf32>
    %10 = arith.addf %5, %9 : vector<814x16xf32>
    %c0_13 = arith.constant 0 : index
    %c0_14 = arith.constant 0 : index
    %11 = vector.load %arg11[%c0_13, %c0_14] : memref<814x16xf32, #tpu.memory_space<vmem>>, vector<814x16xf32>
    tpu.vector_store %arg11[%c0_13, %c0_14], %10 {strides = array<i32>} : memref<814x16xf32, #tpu.memory_space<vmem>>, vector<814x16xf32>,
    %c0_15 = arith.constant 0 : index
    %c0_16 = arith.constant 0 : index
    %12 = vector.load %arg11[%c0_15, %c0_16] : memref<814x16xf32, #tpu.memory_space<vmem>>, vector<814x16xf32>
    %c2 = arith.constant 2 : index
    %c0_17 = arith.constant 0 : index
    %13 = vector.load %arg1[%c2, %c0_17] : memref<816x4xf32, #tpu.memory_space<vmem>>, vector<814x4xf32>
    %c2_18 = arith.constant 2 : index
    %c0_19 = arith.constant 0 : index
    %c0_20 = arith.constant 0 : index
    %14 = vector.load %arg2[%c2_18, %c0_19, %c0_20] : memref<3x4x16xf32, #tpu.memory_space<vmem>>, vector<1x4x16xf32>
    %15 = vector.shape_cast %14 : vector<1x4x16xf32> to vector<4x16xf32>
    %cst_21 = arith.constant dense<0.000000e+00> : vector<814x16xf32>
    %16 = tpu.matmul %13, %15, %cst_21 {dimension_numbers = #tpu.dot_dimension_numbers<[1], [0], [0], [1], [0, 0, 1, 1], [], []>} : vector<814x4xf32>, vector<4x16xf32>, vector<814x16xf32> -> vector<814x16xf32>
    %17 = arith.addf %12, %16 : vector<814x16xf32>
    %c0_22 = arith.constant 0 : index
    %c0_23 = arith.constant 0 : index
    %18 = vector.load %arg11[%c0_22, %c0_23] : memref<814x16xf32, #tpu.memory_space<vmem>>, vector<814x16xf32>
    tpu.vector_store %arg11[%c0_22, %c0_23], %17 {strides = array<i32>} : memref<814x16xf32, #tpu.memory_space<vmem>>, vector<814x16xf32>,
    %c0_24 = arith.constant 0 : index
    %c0_25 = arith.constant 0 : index
    %19 = vector.load %arg11[%c0_24, %c0_25] : memref<814x16xf32, #tpu.memory_space<vmem>>, vector<814x16xf32>
    %c0_26 = arith.constant 0 : index
    %c0_27 = arith.constant 0 : index
    %20 = vector.load %arg3[%c0_26, %c0_27] : memref<1x16xf32, #tpu.memory_space<vmem>>, vector<1x16xf32>
    %21 = vector.broadcast %20 : vector<1x16xf32> to vector<814x16xf32>
    %22 = arith.addf %19, %21 : vector<814x16xf32>
    %cst_28 = arith.constant 0.000000e+00 : f32
    %23 = vector.broadcast %cst_28 : f32 to vector<814x16xf32>
    %24 = arith.maximumf %22, %23 : vector<814x16xf32>
    %c0_29 = arith.constant 0 : index
    %c0_30 = arith.constant 0 : index
    %25 = vector.load %arg11[%c0_29, %c0_30] : memref<814x16xf32, #tpu.memory_space<vmem>>, vector<814x16xf32>
    tpu.vector_store %arg11[%c0_29, %c0_30], %24 {strides = array<i32>} : memref<814x16xf32, #tpu.memory_space<vmem>>, vector<814x16xf32>,
    %c0_31 = arith.constant 0 : index
    %c0_32 = arith.constant 0 : index
    %26 = tpu.strided_load %arg11[%c0_31, %c0_32] {strides = array<i32: 2, 1>} : memref<814x16xf32, #tpu.memory_space<vmem>>, vector<50x16xf32>
    %c1_33 = arith.constant 1 : index
    %c0_34 = arith.constant 0 : index
    %27 = tpu.strided_load %arg11[%c1_33, %c0_34] {strides = array<i32: 2, 1>} : memref<814x16xf32, #tpu.memory_space<vmem>>, vector<50x16xf32>
    %28 = arith.maximumf %26, %27 : vector<50x16xf32>
    %c0_35 = arith.constant 0 : index
    %c0_36 = arith.constant 0 : index
    %29 = vector.load %arg12[%c0_35, %c0_36] : memref<400x16xf32, #tpu.memory_space<vmem>>, vector<50x16xf32>
    tpu.vector_store %arg12[%c0_35, %c0_36], %28 {strides = array<i32>} : memref<400x16xf32, #tpu.memory_space<vmem>>, vector<50x16xf32>,
    %c102 = arith.constant 102 : index
    %c0_37 = arith.constant 0 : index
    %30 = tpu.strided_load %arg11[%c102, %c0_37] {strides = array<i32: 2, 1>} : memref<814x16xf32, #tpu.memory_space<vmem>>, vector<50x16xf32>
    %c103 = arith.constant 103 : index
    %c0_38 = arith.constant 0 : index
    %31 = tpu.strided_load %arg11[%c103, %c0_38] {strides = array<i32: 2, 1>} : memref<814x16xf32, #tpu.memory_space<vmem>>, vector<50x16xf32>
    %32 = arith.maximumf %30, %31 : vector<50x16xf32>
    %c50 = arith.constant 50 : index
    %c0_39 = arith.constant 0 : index
    %33 = vector.load %arg12[%c50, %c0_39] : memref<400x16xf32, #tpu.memory_space<vmem>>, vector<50x16xf32>
    tpu.vector_store %arg12[%c50, %c0_39], %32 {strides = array<i32>} : memref<400x16xf32, #tpu.memory_space<vmem>>, vector<50x16xf32>,
    %c204 = arith.constant 204 : index
    %c0_40 = arith.constant 0 : index
    %34 = tpu.strided_load %arg11[%c204, %c0_40] {strides = array<i32: 2, 1>} : memref<814x16xf32, #tpu.memory_space<vmem>>, vector<50x16xf32>
    %c205 = arith.constant 205 : index
    %c0_41 = arith.constant 0 : index
    %35 = tpu.strided_load %arg11[%c205, %c0_41] {strides = array<i32: 2, 1>} : memref<814x16xf32, #tpu.memory_space<vmem>>, vector<50x16xf32>
    %36 = arith.maximumf %34, %35 : vector<50x16xf32>
    %c100 = arith.constant 100 : index
    %c0_42 = arith.constant 0 : index
    %37 = vector.load %arg12[%c100, %c0_42] : memref<400x16xf32, #tpu.memory_space<vmem>>, vector<50x16xf32>
    tpu.vector_store %arg12[%c100, %c0_42], %36 {strides = array<i32>} : memref<400x16xf32, #tpu.memory_space<vmem>>, vector<50x16xf32>,
    %c306 = arith.constant 306 : index
    %c0_43 = arith.constant 0 : index
    %38 = tpu.strided_load %arg11[%c306, %c0_43] {strides = array<i32: 2, 1>} : memref<814x16xf32, #tpu.memory_space<vmem>>, vector<50x16xf32>
    %c307 = arith.constant 307 : index
    %c0_44 = arith.constant 0 : index
    %39 = tpu.strided_load %arg11[%c307, %c0_44] {strides = array<i32: 2, 1>} : memref<814x16xf32, #tpu.memory_space<vmem>>, vector<50x16xf32>
    %40 = arith.maximumf %38, %39 : vector<50x16xf32>
    %c150 = arith.constant 150 : index
    %c0_45 = arith.constant 0 : index
    %41 = vector.load %arg12[%c150, %c0_45] : memref<400x16xf32, #tpu.memory_space<vmem>>, vector<50x16xf32>
    tpu.vector_store %arg12[%c150, %c0_45], %40 {strides = array<i32>} : memref<400x16xf32, #tpu.memory_space<vmem>>, vector<50x16xf32>,
    %c408 = arith.constant 408 : index
    %c0_46 = arith.constant 0 : index
    %42 = tpu.strided_load %arg11[%c408, %c0_46] {strides = array<i32: 2, 1>} : memref<814x16xf32, #tpu.memory_space<vmem>>, vector<50x16xf32>
    %c409 = arith.constant 409 : index
    %c0_47 = arith.constant 0 : index
    %43 = tpu.strided_load %arg11[%c409, %c0_47] {strides = array<i32: 2, 1>} : memref<814x16xf32, #tpu.memory_space<vmem>>, vector<50x16xf32>
    %44 = arith.maximumf %42, %43 : vector<50x16xf32>
    %c200 = arith.constant 200 : index
    %c0_48 = arith.constant 0 : index
    %45 = vector.load %arg12[%c200, %c0_48] : memref<400x16xf32, #tpu.memory_space<vmem>>, vector<50x16xf32>
    tpu.vector_store %arg12[%c200, %c0_48], %44 {strides = array<i32>} : memref<400x16xf32, #tpu.memory_space<vmem>>, vector<50x16xf32>,
    %c510 = arith.constant 510 : index
    %c0_49 = arith.constant 0 : index
    %46 = tpu.strided_load %arg11[%c510, %c0_49] {strides = array<i32: 2, 1>} : memref<814x16xf32, #tpu.memory_space<vmem>>, vector<50x16xf32>
    %c511 = arith.constant 511 : index
    %c0_50 = arith.constant 0 : index
    %47 = tpu.strided_load %arg11[%c511, %c0_50] {strides = array<i32: 2, 1>} : memref<814x16xf32, #tpu.memory_space<vmem>>, vector<50x16xf32>
    %48 = arith.maximumf %46, %47 : vector<50x16xf32>
    %c250 = arith.constant 250 : index
    %c0_51 = arith.constant 0 : index
    %49 = vector.load %arg12[%c250, %c0_51] : memref<400x16xf32, #tpu.memory_space<vmem>>, vector<50x16xf32>
    tpu.vector_store %arg12[%c250, %c0_51], %48 {strides = array<i32>} : memref<400x16xf32, #tpu.memory_space<vmem>>, vector<50x16xf32>,
    %c612 = arith.constant 612 : index
    %c0_52 = arith.constant 0 : index
    %50 = tpu.strided_load %arg11[%c612, %c0_52] {strides = array<i32: 2, 1>} : memref<814x16xf32, #tpu.memory_space<vmem>>, vector<50x16xf32>
    %c613 = arith.constant 613 : index
    %c0_53 = arith.constant 0 : index
    %51 = tpu.strided_load %arg11[%c613, %c0_53] {strides = array<i32: 2, 1>} : memref<814x16xf32, #tpu.memory_space<vmem>>, vector<50x16xf32>
    %52 = arith.maximumf %50, %51 : vector<50x16xf32>
    %c300 = arith.constant 300 : index
    %c0_54 = arith.constant 0 : index
    %53 = vector.load %arg12[%c300, %c0_54] : memref<400x16xf32, #tpu.memory_space<vmem>>, vector<50x16xf32>
    tpu.vector_store %arg12[%c300, %c0_54], %52 {strides = array<i32>} : memref<400x16xf32, #tpu.memory_space<vmem>>, vector<50x16xf32>,
    %c714 = arith.constant 714 : index
    %c0_55 = arith.constant 0 : index
    %54 = tpu.strided_load %arg11[%c714, %c0_55] {strides = array<i32: 2, 1>} : memref<814x16xf32, #tpu.memory_space<vmem>>, vector<50x16xf32>
    %c715 = arith.constant 715 : index
    %c0_56 = arith.constant 0 : index
    %55 = tpu.strided_load %arg11[%c715, %c0_56] {strides = array<i32: 2, 1>} : memref<814x16xf32, #tpu.memory_space<vmem>>, vector<50x16xf32>
    %56 = arith.maximumf %54, %55 : vector<50x16xf32>
    %c350 = arith.constant 350 : index
    %c0_57 = arith.constant 0 : index
    %57 = vector.load %arg12[%c350, %c0_57] : memref<400x16xf32, #tpu.memory_space<vmem>>, vector<50x16xf32>
    tpu.vector_store %arg12[%c350, %c0_57], %56 {strides = array<i32>} : memref<400x16xf32, #tpu.memory_space<vmem>>, vector<50x16xf32>,
    %c0_58 = arith.constant 0 : index
    %c0_59 = arith.constant 0 : index
    %58 = vector.load %arg12[%c0_58, %c0_59] : memref<400x16xf32, #tpu.memory_space<vmem>>, vector<398x16xf32>
    %c0_60 = arith.constant 0 : index
    %c0_61 = arith.constant 0 : index
    %c0_62 = arith.constant 0 : index
    %59 = vector.load %arg4[%c0_60, %c0_61, %c0_62] : memref<3x16x32xf32, #tpu.memory_space<vmem>>, vector<1x16x32xf32>
    %60 = vector.shape_cast %59 : vector<1x16x32xf32> to vector<16x32xf32>
    %cst_63 = arith.constant dense<0.000000e+00> : vector<398x32xf32>
    %61 = tpu.matmul %58, %60, %cst_63 {dimension_numbers = #tpu.dot_dimension_numbers<[1], [0], [0], [1], [0, 0, 1, 1], [], []>} : vector<398x16xf32>, vector<16x32xf32>, vector<398x32xf32> -> vector<398x32xf32>
    %c0_64 = arith.constant 0 : index
    %c0_65 = arith.constant 0 : index
    %62 = vector.load %arg13[%c0_64, %c0_65] : memref<398x32xf32, #tpu.memory_space<vmem>>, vector<398x32xf32>
    tpu.vector_store %arg13[%c0_64, %c0_65], %61 {strides = array<i32>} : memref<398x32xf32, #tpu.memory_space<vmem>>, vector<398x32xf32>,
    %c0_66 = arith.constant 0 : index
    %c0_67 = arith.constant 0 : index
    %63 = vector.load %arg13[%c0_66, %c0_67] : memref<398x32xf32, #tpu.memory_space<vmem>>, vector<398x32xf32>
    %c1_68 = arith.constant 1 : index
    %c0_69 = arith.constant 0 : index
    %64 = vector.load %arg12[%c1_68, %c0_69] : memref<400x16xf32, #tpu.memory_space<vmem>>, vector<398x16xf32>
    %c1_70 = arith.constant 1 : index
    %c0_71 = arith.constant 0 : index
    %c0_72 = arith.constant 0 : index
    %65 = vector.load %arg4[%c1_70, %c0_71, %c0_72] : memref<3x16x32xf32, #tpu.memory_space<vmem>>, vector<1x16x32xf32>
    %66 = vector.shape_cast %65 : vector<1x16x32xf32> to vector<16x32xf32>
    %cst_73 = arith.constant dense<0.000000e+00> : vector<398x32xf32>
    %67 = tpu.matmul %64, %66, %cst_73 {dimension_numbers = #tpu.dot_dimension_numbers<[1], [0], [0], [1], [0, 0, 1, 1], [], []>} : vector<398x16xf32>, vector<16x32xf32>, vector<398x32xf32> -> vector<398x32xf32>
    %68 = arith.addf %63, %67 : vector<398x32xf32>
    %c0_74 = arith.constant 0 : index
    %c0_75 = arith.constant 0 : index
    %69 = vector.load %arg13[%c0_74, %c0_75] : memref<398x32xf32, #tpu.memory_space<vmem>>, vector<398x32xf32>
    tpu.vector_store %arg13[%c0_74, %c0_75], %68 {strides = array<i32>} : memref<398x32xf32, #tpu.memory_space<vmem>>, vector<398x32xf32>,
    %c0_76 = arith.constant 0 : index
    %c0_77 = arith.constant 0 : index
    %70 = vector.load %arg13[%c0_76, %c0_77] : memref<398x32xf32, #tpu.memory_space<vmem>>, vector<398x32xf32>
    %c2_78 = arith.constant 2 : index
    %c0_79 = arith.constant 0 : index
    %71 = vector.load %arg12[%c2_78, %c0_79] : memref<400x16xf32, #tpu.memory_space<vmem>>, vector<398x16xf32>
    %c2_80 = arith.constant 2 : index
    %c0_81 = arith.constant 0 : index
    %c0_82 = arith.constant 0 : index
    %72 = vector.load %arg4[%c2_80, %c0_81, %c0_82] : memref<3x16x32xf32, #tpu.memory_space<vmem>>, vector<1x16x32xf32>
    %73 = vector.shape_cast %72 : vector<1x16x32xf32> to vector<16x32xf32>
    %cst_83 = arith.constant dense<0.000000e+00> : vector<398x32xf32>
    %74 = tpu.matmul %71, %73, %cst_83 {dimension_numbers = #tpu.dot_dimension_numbers<[1], [0], [0], [1], [0, 0, 1, 1], [], []>} : vector<398x16xf32>, vector<16x32xf32>, vector<398x32xf32> -> vector<398x32xf32>
    %75 = arith.addf %70, %74 : vector<398x32xf32>
    %c0_84 = arith.constant 0 : index
    %c0_85 = arith.constant 0 : index
    %76 = vector.load %arg13[%c0_84, %c0_85] : memref<398x32xf32, #tpu.memory_space<vmem>>, vector<398x32xf32>
    tpu.vector_store %arg13[%c0_84, %c0_85], %75 {strides = array<i32>} : memref<398x32xf32, #tpu.memory_space<vmem>>, vector<398x32xf32>,
    %c0_86 = arith.constant 0 : index
    %c0_87 = arith.constant 0 : index
    %77 = vector.load %arg13[%c0_86, %c0_87] : memref<398x32xf32, #tpu.memory_space<vmem>>, vector<398x32xf32>
    %c0_88 = arith.constant 0 : index
    %c0_89 = arith.constant 0 : index
    %78 = vector.load %arg5[%c0_88, %c0_89] : memref<1x32xf32, #tpu.memory_space<vmem>>, vector<1x32xf32>
    %79 = vector.broadcast %78 : vector<1x32xf32> to vector<398x32xf32>
    %80 = arith.addf %77, %79 : vector<398x32xf32>
    %cst_90 = arith.constant 0.000000e+00 : f32
    %81 = vector.broadcast %cst_90 : f32 to vector<398x32xf32>
    %82 = arith.maximumf %80, %81 : vector<398x32xf32>
    %c0_91 = arith.constant 0 : index
    %c0_92 = arith.constant 0 : index
    %83 = vector.load %arg13[%c0_91, %c0_92] : memref<398x32xf32, #tpu.memory_space<vmem>>, vector<398x32xf32>
    tpu.vector_store %arg13[%c0_91, %c0_92], %82 {strides = array<i32>} : memref<398x32xf32, #tpu.memory_space<vmem>>, vector<398x32xf32>,
    %cst_93 = arith.constant 0.000000e+00 : f32
    %84 = vector.broadcast %cst_93 : f32 to vector<8x100xf32>
    %c0_94 = arith.constant 0 : index
    %c0_95 = arith.constant 0 : index
    %85 = tpu.strided_load %arg13[%c0_94, %c0_95] {strides = array<i32: 50, 1>} : memref<398x32xf32, #tpu.memory_space<vmem>>, vector<8x32xf32>
    %c1_96 = arith.constant 1 : index
    %c0_97 = arith.constant 0 : index
    %86 = tpu.strided_load %arg13[%c1_96, %c0_97] {strides = array<i32: 50, 1>} : memref<398x32xf32, #tpu.memory_space<vmem>>, vector<8x32xf32>
    %87 = arith.maximumf %85, %86 : vector<8x32xf32>
    %c0_98 = arith.constant 0 : index
    %c0_99 = arith.constant 0 : index
    %88 = vector.load %arg6[%c0_98, %c0_99] : memref<768x100xf32, #tpu.memory_space<vmem>>, vector<32x100xf32>
    %cst_100 = arith.constant dense<0.000000e+00> : vector<8x100xf32>
    %89 = tpu.matmul %87, %88, %cst_100 {dimension_numbers = #tpu.dot_dimension_numbers<[1], [0], [0], [1], [0, 0, 1, 1], [], []>} : vector<8x32xf32>, vector<32x100xf32>, vector<8x100xf32> -> vector<8x100xf32>
    %90 = arith.addf %84, %89 : vector<8x100xf32>
    %c2_101 = arith.constant 2 : index
    %c0_102 = arith.constant 0 : index
    %91 = tpu.strided_load %arg13[%c2_101, %c0_102] {strides = array<i32: 50, 1>} : memref<398x32xf32, #tpu.memory_space<vmem>>, vector<8x32xf32>
    %c3 = arith.constant 3 : index
    %c0_103 = arith.constant 0 : index
    %92 = tpu.strided_load %arg13[%c3, %c0_103] {strides = array<i32: 50, 1>} : memref<398x32xf32, #tpu.memory_space<vmem>>, vector<8x32xf32>
    %93 = arith.maximumf %91, %92 : vector<8x32xf32>
    %c32 = arith.constant 32 : index
    %c0_104 = arith.constant 0 : index
    %94 = vector.load %arg6[%c32, %c0_104] : memref<768x100xf32, #tpu.memory_space<vmem>>, vector<32x100xf32>
    %cst_105 = arith.constant dense<0.000000e+00> : vector<8x100xf32>
    %95 = tpu.matmul %93, %94, %cst_105 {dimension_numbers = #tpu.dot_dimension_numbers<[1], [0], [0], [1], [0, 0, 1, 1], [], []>} : vector<8x32xf32>, vector<32x100xf32>, vector<8x100xf32> -> vector<8x100xf32>
    %96 = arith.addf %90, %95 : vector<8x100xf32>
    %c4 = arith.constant 4 : index
    %c0_106 = arith.constant 0 : index
    %97 = tpu.strided_load %arg13[%c4, %c0_106] {strides = array<i32: 50, 1>} : memref<398x32xf32, #tpu.memory_space<vmem>>, vector<8x32xf32>
    %c5 = arith.constant 5 : index
    %c0_107 = arith.constant 0 : index
    %98 = tpu.strided_load %arg13[%c5, %c0_107] {strides = array<i32: 50, 1>} : memref<398x32xf32, #tpu.memory_space<vmem>>, vector<8x32xf32>
    %99 = arith.maximumf %97, %98 : vector<8x32xf32>
    %c64 = arith.constant 64 : index
    %c0_108 = arith.constant 0 : index
    %100 = vector.load %arg6[%c64, %c0_108] : memref<768x100xf32, #tpu.memory_space<vmem>>, vector<32x100xf32>
    %cst_109 = arith.constant dense<0.000000e+00> : vector<8x100xf32>
    %101 = tpu.matmul %99, %100, %cst_109 {dimension_numbers = #tpu.dot_dimension_numbers<[1], [0], [0], [1], [0, 0, 1, 1], [], []>} : vector<8x32xf32>, vector<32x100xf32>, vector<8x100xf32> -> vector<8x100xf32>
    %102 = arith.addf %96, %101 : vector<8x100xf32>
    %c6 = arith.constant 6 : index
    %c0_110 = arith.constant 0 : index
    %103 = tpu.strided_load %arg13[%c6, %c0_110] {strides = array<i32: 50, 1>} : memref<398x32xf32, #tpu.memory_space<vmem>>, vector<8x32xf32>
    %c7 = arith.constant 7 : index
    %c0_111 = arith.constant 0 : index
    %104 = tpu.strided_load %arg13[%c7, %c0_111] {strides = array<i32: 50, 1>} : memref<398x32xf32, #tpu.memory_space<vmem>>, vector<8x32xf32>
    %105 = arith.maximumf %103, %104 : vector<8x32xf32>
    %c96 = arith.constant 96 : index
    %c0_112 = arith.constant 0 : index
    %106 = vector.load %arg6[%c96, %c0_112] : memref<768x100xf32, #tpu.memory_space<vmem>>, vector<32x100xf32>
    %cst_113 = arith.constant dense<0.000000e+00> : vector<8x100xf32>
    %107 = tpu.matmul %105, %106, %cst_113 {dimension_numbers = #tpu.dot_dimension_numbers<[1], [0], [0], [1], [0, 0, 1, 1], [], []>} : vector<8x32xf32>, vector<32x100xf32>, vector<8x100xf32> -> vector<8x100xf32>
    %108 = arith.addf %102, %107 : vector<8x100xf32>
    %c8 = arith.constant 8 : index
    %c0_114 = arith.constant 0 : index
    %109 = tpu.strided_load %arg13[%c8, %c0_114] {strides = array<i32: 50, 1>} : memref<398x32xf32, #tpu.memory_space<vmem>>, vector<8x32xf32>
    %c9 = arith.constant 9 : index
    %c0_115 = arith.constant 0 : index
    %110 = tpu.strided_load %arg13[%c9, %c0_115] {strides = array<i32: 50, 1>} : memref<398x32xf32, #tpu.memory_space<vmem>>, vector<8x32xf32>
    %111 = arith.maximumf %109, %110 : vector<8x32xf32>
    %c128 = arith.constant 128 : index
    %c0_116 = arith.constant 0 : index
    %112 = vector.load %arg6[%c128, %c0_116] : memref<768x100xf32, #tpu.memory_space<vmem>>, vector<32x100xf32>
    %cst_117 = arith.constant dense<0.000000e+00> : vector<8x100xf32>
    %113 = tpu.matmul %111, %112, %cst_117 {dimension_numbers = #tpu.dot_dimension_numbers<[1], [0], [0], [1], [0, 0, 1, 1], [], []>} : vector<8x32xf32>, vector<32x100xf32>, vector<8x100xf32> -> vector<8x100xf32>
    %114 = arith.addf %108, %113 : vector<8x100xf32>
    %c10 = arith.constant 10 : index
    %c0_118 = arith.constant 0 : index
    %115 = tpu.strided_load %arg13[%c10, %c0_118] {strides = array<i32: 50, 1>} : memref<398x32xf32, #tpu.memory_space<vmem>>, vector<8x32xf32>
    %c11 = arith.constant 11 : index
    %c0_119 = arith.constant 0 : index
    %116 = tpu.strided_load %arg13[%c11, %c0_119] {strides = array<i32: 50, 1>} : memref<398x32xf32, #tpu.memory_space<vmem>>, vector<8x32xf32>
    %117 = arith.maximumf %115, %116 : vector<8x32xf32>
    %c160 = arith.constant 160 : index
    %c0_120 = arith.constant 0 : index
    %118 = vector.load %arg6[%c160, %c0_120] : memref<768x100xf32, #tpu.memory_space<vmem>>, vector<32x100xf32>
    %cst_121 = arith.constant dense<0.000000e+00> : vector<8x100xf32>
    %119 = tpu.matmul %117, %118, %cst_121 {dimension_numbers = #tpu.dot_dimension_numbers<[1], [0], [0], [1], [0, 0, 1, 1], [], []>} : vector<8x32xf32>, vector<32x100xf32>, vector<8x100xf32> -> vector<8x100xf32>
    %120 = arith.addf %114, %119 : vector<8x100xf32>
    %c12 = arith.constant 12 : index
    %c0_122 = arith.constant 0 : index
    %121 = tpu.strided_load %arg13[%c12, %c0_122] {strides = array<i32: 50, 1>} : memref<398x32xf32, #tpu.memory_space<vmem>>, vector<8x32xf32>
    %c13 = arith.constant 13 : index
    %c0_123 = arith.constant 0 : index
    %122 = tpu.strided_load %arg13[%c13, %c0_123] {strides = array<i32: 50, 1>} : memref<398x32xf32, #tpu.memory_space<vmem>>, vector<8x32xf32>
    %123 = arith.maximumf %121, %122 : vector<8x32xf32>
    %c192 = arith.constant 192 : index
    %c0_124 = arith.constant 0 : index
    %124 = vector.load %arg6[%c192, %c0_124] : memref<768x100xf32, #tpu.memory_space<vmem>>, vector<32x100xf32>
    %cst_125 = arith.constant dense<0.000000e+00> : vector<8x100xf32>
    %125 = tpu.matmul %123, %124, %cst_125 {dimension_numbers = #tpu.dot_dimension_numbers<[1], [0], [0], [1], [0, 0, 1, 1], [], []>} : vector<8x32xf32>, vector<32x100xf32>, vector<8x100xf32> -> vector<8x100xf32>
    %126 = arith.addf %120, %125 : vector<8x100xf32>
    %c14 = arith.constant 14 : index
    %c0_126 = arith.constant 0 : index
    %127 = tpu.strided_load %arg13[%c14, %c0_126] {strides = array<i32: 50, 1>} : memref<398x32xf32, #tpu.memory_space<vmem>>, vector<8x32xf32>
    %c15 = arith.constant 15 : index
    %c0_127 = arith.constant 0 : index
    %128 = tpu.strided_load %arg13[%c15, %c0_127] {strides = array<i32: 50, 1>} : memref<398x32xf32, #tpu.memory_space<vmem>>, vector<8x32xf32>
    %129 = arith.maximumf %127, %128 : vector<8x32xf32>
    %c224 = arith.constant 224 : index
    %c0_128 = arith.constant 0 : index
    %130 = vector.load %arg6[%c224, %c0_128] : memref<768x100xf32, #tpu.memory_space<vmem>>, vector<32x100xf32>
    %cst_129 = arith.constant dense<0.000000e+00> : vector<8x100xf32>
    %131 = tpu.matmul %129, %130, %cst_129 {dimension_numbers = #tpu.dot_dimension_numbers<[1], [0], [0], [1], [0, 0, 1, 1], [], []>} : vector<8x32xf32>, vector<32x100xf32>, vector<8x100xf32> -> vector<8x100xf32>
    %132 = arith.addf %126, %131 : vector<8x100xf32>
    %c16 = arith.constant 16 : index
    %c0_130 = arith.constant 0 : index
    %133 = tpu.strided_load %arg13[%c16, %c0_130] {strides = array<i32: 50, 1>} : memref<398x32xf32, #tpu.memory_space<vmem>>, vector<8x32xf32>
    %c17 = arith.constant 17 : index
    %c0_131 = arith.constant 0 : index
    %134 = tpu.strided_load %arg13[%c17, %c0_131] {strides = array<i32: 50, 1>} : memref<398x32xf32, #tpu.memory_space<vmem>>, vector<8x32xf32>
    %135 = arith.maximumf %133, %134 : vector<8x32xf32>
    %c256 = arith.constant 256 : index
    %c0_132 = arith.constant 0 : index
    %136 = vector.load %arg6[%c256, %c0_132] : memref<768x100xf32, #tpu.memory_space<vmem>>, vector<32x100xf32>
    %cst_133 = arith.constant dense<0.000000e+00> : vector<8x100xf32>
    %137 = tpu.matmul %135, %136, %cst_133 {dimension_numbers = #tpu.dot_dimension_numbers<[1], [0], [0], [1], [0, 0, 1, 1], [], []>} : vector<8x32xf32>, vector<32x100xf32>, vector<8x100xf32> -> vector<8x100xf32>
    %138 = arith.addf %132, %137 : vector<8x100xf32>
    %c18 = arith.constant 18 : index
    %c0_134 = arith.constant 0 : index
    %139 = tpu.strided_load %arg13[%c18, %c0_134] {strides = array<i32: 50, 1>} : memref<398x32xf32, #tpu.memory_space<vmem>>, vector<8x32xf32>
    %c19 = arith.constant 19 : index
    %c0_135 = arith.constant 0 : index
    %140 = tpu.strided_load %arg13[%c19, %c0_135] {strides = array<i32: 50, 1>} : memref<398x32xf32, #tpu.memory_space<vmem>>, vector<8x32xf32>
    %141 = arith.maximumf %139, %140 : vector<8x32xf32>
    %c288 = arith.constant 288 : index
    %c0_136 = arith.constant 0 : index
    %142 = vector.load %arg6[%c288, %c0_136] : memref<768x100xf32, #tpu.memory_space<vmem>>, vector<32x100xf32>
    %cst_137 = arith.constant dense<0.000000e+00> : vector<8x100xf32>
    %143 = tpu.matmul %141, %142, %cst_137 {dimension_numbers = #tpu.dot_dimension_numbers<[1], [0], [0], [1], [0, 0, 1, 1], [], []>} : vector<8x32xf32>, vector<32x100xf32>, vector<8x100xf32> -> vector<8x100xf32>
    %144 = arith.addf %138, %143 : vector<8x100xf32>
    %c20 = arith.constant 20 : index
    %c0_138 = arith.constant 0 : index
    %145 = tpu.strided_load %arg13[%c20, %c0_138] {strides = array<i32: 50, 1>} : memref<398x32xf32, #tpu.memory_space<vmem>>, vector<8x32xf32>
    %c21 = arith.constant 21 : index
    %c0_139 = arith.constant 0 : index
    %146 = tpu.strided_load %arg13[%c21, %c0_139] {strides = array<i32: 50, 1>} : memref<398x32xf32, #tpu.memory_space<vmem>>, vector<8x32xf32>
    %147 = arith.maximumf %145, %146 : vector<8x32xf32>
    %c320 = arith.constant 320 : index
    %c0_140 = arith.constant 0 : index
    %148 = vector.load %arg6[%c320, %c0_140] : memref<768x100xf32, #tpu.memory_space<vmem>>, vector<32x100xf32>
    %cst_141 = arith.constant dense<0.000000e+00> : vector<8x100xf32>
    %149 = tpu.matmul %147, %148, %cst_141 {dimension_numbers = #tpu.dot_dimension_numbers<[1], [0], [0], [1], [0, 0, 1, 1], [], []>} : vector<8x32xf32>, vector<32x100xf32>, vector<8x100xf32> -> vector<8x100xf32>
    %150 = arith.addf %144, %149 : vector<8x100xf32>
    %c22 = arith.constant 22 : index
    %c0_142 = arith.constant 0 : index
    %151 = tpu.strided_load %arg13[%c22, %c0_142] {strides = array<i32: 50, 1>} : memref<398x32xf32, #tpu.memory_space<vmem>>, vector<8x32xf32>
    %c23 = arith.constant 23 : index
    %c0_143 = arith.constant 0 : index
    %152 = tpu.strided_load %arg13[%c23, %c0_143] {strides = array<i32: 50, 1>} : memref<398x32xf32, #tpu.memory_space<vmem>>, vector<8x32xf32>
    %153 = arith.maximumf %151, %152 : vector<8x32xf32>
    %c352 = arith.constant 352 : index
    %c0_144 = arith.constant 0 : index
    %154 = vector.load %arg6[%c352, %c0_144] : memref<768x100xf32, #tpu.memory_space<vmem>>, vector<32x100xf32>
    %cst_145 = arith.constant dense<0.000000e+00> : vector<8x100xf32>
    %155 = tpu.matmul %153, %154, %cst_145 {dimension_numbers = #tpu.dot_dimension_numbers<[1], [0], [0], [1], [0, 0, 1, 1], [], []>} : vector<8x32xf32>, vector<32x100xf32>, vector<8x100xf32> -> vector<8x100xf32>
    %156 = arith.addf %150, %155 : vector<8x100xf32>
    %c24 = arith.constant 24 : index
    %c0_146 = arith.constant 0 : index
    %157 = tpu.strided_load %arg13[%c24, %c0_146] {strides = array<i32: 50, 1>} : memref<398x32xf32, #tpu.memory_space<vmem>>, vector<8x32xf32>
    %c25 = arith.constant 25 : index
    %c0_147 = arith.constant 0 : index
    %158 = tpu.strided_load %arg13[%c25, %c0_147] {strides = array<i32: 50, 1>} : memref<398x32xf32, #tpu.memory_space<vmem>>, vector<8x32xf32>
    %159 = arith.maximumf %157, %158 : vector<8x32xf32>
    %c384 = arith.constant 384 : index
    %c0_148 = arith.constant 0 : index
    %160 = vector.load %arg6[%c384, %c0_148] : memref<768x100xf32, #tpu.memory_space<vmem>>, vector<32x100xf32>
    %cst_149 = arith.constant dense<0.000000e+00> : vector<8x100xf32>
    %161 = tpu.matmul %159, %160, %cst_149 {dimension_numbers = #tpu.dot_dimension_numbers<[1], [0], [0], [1], [0, 0, 1, 1], [], []>} : vector<8x32xf32>, vector<32x100xf32>, vector<8x100xf32> -> vector<8x100xf32>
    %162 = arith.addf %156, %161 : vector<8x100xf32>
    %c26 = arith.constant 26 : index
    %c0_150 = arith.constant 0 : index
    %163 = tpu.strided_load %arg13[%c26, %c0_150] {strides = array<i32: 50, 1>} : memref<398x32xf32, #tpu.memory_space<vmem>>, vector<8x32xf32>
    %c27 = arith.constant 27 : index
    %c0_151 = arith.constant 0 : index
    %164 = tpu.strided_load %arg13[%c27, %c0_151] {strides = array<i32: 50, 1>} : memref<398x32xf32, #tpu.memory_space<vmem>>, vector<8x32xf32>
    %165 = arith.maximumf %163, %164 : vector<8x32xf32>
    %c416 = arith.constant 416 : index
    %c0_152 = arith.constant 0 : index
    %166 = vector.load %arg6[%c416, %c0_152] : memref<768x100xf32, #tpu.memory_space<vmem>>, vector<32x100xf32>
    %cst_153 = arith.constant dense<0.000000e+00> : vector<8x100xf32>
    %167 = tpu.matmul %165, %166, %cst_153 {dimension_numbers = #tpu.dot_dimension_numbers<[1], [0], [0], [1], [0, 0, 1, 1], [], []>} : vector<8x32xf32>, vector<32x100xf32>, vector<8x100xf32> -> vector<8x100xf32>
    %168 = arith.addf %162, %167 : vector<8x100xf32>
    %c28 = arith.constant 28 : index
    %c0_154 = arith.constant 0 : index
    %169 = tpu.strided_load %arg13[%c28, %c0_154] {strides = array<i32: 50, 1>} : memref<398x32xf32, #tpu.memory_space<vmem>>, vector<8x32xf32>
    %c29 = arith.constant 29 : index
    %c0_155 = arith.constant 0 : index
    %170 = tpu.strided_load %arg13[%c29, %c0_155] {strides = array<i32: 50, 1>} : memref<398x32xf32, #tpu.memory_space<vmem>>, vector<8x32xf32>
    %171 = arith.maximumf %169, %170 : vector<8x32xf32>
    %c448 = arith.constant 448 : index
    %c0_156 = arith.constant 0 : index
    %172 = vector.load %arg6[%c448, %c0_156] : memref<768x100xf32, #tpu.memory_space<vmem>>, vector<32x100xf32>
    %cst_157 = arith.constant dense<0.000000e+00> : vector<8x100xf32>
    %173 = tpu.matmul %171, %172, %cst_157 {dimension_numbers = #tpu.dot_dimension_numbers<[1], [0], [0], [1], [0, 0, 1, 1], [], []>} : vector<8x32xf32>, vector<32x100xf32>, vector<8x100xf32> -> vector<8x100xf32>
    %174 = arith.addf %168, %173 : vector<8x100xf32>
    %c30 = arith.constant 30 : index
    %c0_158 = arith.constant 0 : index
    %175 = tpu.strided_load %arg13[%c30, %c0_158] {strides = array<i32: 50, 1>} : memref<398x32xf32, #tpu.memory_space<vmem>>, vector<8x32xf32>
    %c31 = arith.constant 31 : index
    %c0_159 = arith.constant 0 : index
    %176 = tpu.strided_load %arg13[%c31, %c0_159] {strides = array<i32: 50, 1>} : memref<398x32xf32, #tpu.memory_space<vmem>>, vector<8x32xf32>
    %177 = arith.maximumf %175, %176 : vector<8x32xf32>
    %c480 = arith.constant 480 : index
    %c0_160 = arith.constant 0 : index
    %178 = vector.load %arg6[%c480, %c0_160] : memref<768x100xf32, #tpu.memory_space<vmem>>, vector<32x100xf32>
    %cst_161 = arith.constant dense<0.000000e+00> : vector<8x100xf32>
    %179 = tpu.matmul %177, %178, %cst_161 {dimension_numbers = #tpu.dot_dimension_numbers<[1], [0], [0], [1], [0, 0, 1, 1], [], []>} : vector<8x32xf32>, vector<32x100xf32>, vector<8x100xf32> -> vector<8x100xf32>
    %180 = arith.addf %174, %179 : vector<8x100xf32>
    %c32_162 = arith.constant 32 : index
    %c0_163 = arith.constant 0 : index
    %181 = tpu.strided_load %arg13[%c32_162, %c0_163] {strides = array<i32: 50, 1>} : memref<398x32xf32, #tpu.memory_space<vmem>>, vector<8x32xf32>
    %c33 = arith.constant 33 : index
    %c0_164 = arith.constant 0 : index
    %182 = tpu.strided_load %arg13[%c33, %c0_164] {strides = array<i32: 50, 1>} : memref<398x32xf32, #tpu.memory_space<vmem>>, vector<8x32xf32>
    %183 = arith.maximumf %181, %182 : vector<8x32xf32>
    %c512 = arith.constant 512 : index
    %c0_165 = arith.constant 0 : index
    %184 = vector.load %arg6[%c512, %c0_165] : memref<768x100xf32, #tpu.memory_space<vmem>>, vector<32x100xf32>
    %cst_166 = arith.constant dense<0.000000e+00> : vector<8x100xf32>
    %185 = tpu.matmul %183, %184, %cst_166 {dimension_numbers = #tpu.dot_dimension_numbers<[1], [0], [0], [1], [0, 0, 1, 1], [], []>} : vector<8x32xf32>, vector<32x100xf32>, vector<8x100xf32> -> vector<8x100xf32>
    %186 = arith.addf %180, %185 : vector<8x100xf32>
    %c34 = arith.constant 34 : index
    %c0_167 = arith.constant 0 : index
    %187 = tpu.strided_load %arg13[%c34, %c0_167] {strides = array<i32: 50, 1>} : memref<398x32xf32, #tpu.memory_space<vmem>>, vector<8x32xf32>
    %c35 = arith.constant 35 : index
    %c0_168 = arith.constant 0 : index
    %188 = tpu.strided_load %arg13[%c35, %c0_168] {strides = array<i32: 50, 1>} : memref<398x32xf32, #tpu.memory_space<vmem>>, vector<8x32xf32>
    %189 = arith.maximumf %187, %188 : vector<8x32xf32>
    %c544 = arith.constant 544 : index
    %c0_169 = arith.constant 0 : index
    %190 = vector.load %arg6[%c544, %c0_169] : memref<768x100xf32, #tpu.memory_space<vmem>>, vector<32x100xf32>
    %cst_170 = arith.constant dense<0.000000e+00> : vector<8x100xf32>
    %191 = tpu.matmul %189, %190, %cst_170 {dimension_numbers = #tpu.dot_dimension_numbers<[1], [0], [0], [1], [0, 0, 1, 1], [], []>} : vector<8x32xf32>, vector<32x100xf32>, vector<8x100xf32> -> vector<8x100xf32>
    %192 = arith.addf %186, %191 : vector<8x100xf32>
    %c36 = arith.constant 36 : index
    %c0_171 = arith.constant 0 : index
    %193 = tpu.strided_load %arg13[%c36, %c0_171] {strides = array<i32: 50, 1>} : memref<398x32xf32, #tpu.memory_space<vmem>>, vector<8x32xf32>
    %c37 = arith.constant 37 : index
    %c0_172 = arith.constant 0 : index
    %194 = tpu.strided_load %arg13[%c37, %c0_172] {strides = array<i32: 50, 1>} : memref<398x32xf32, #tpu.memory_space<vmem>>, vector<8x32xf32>
    %195 = arith.maximumf %193, %194 : vector<8x32xf32>
    %c576 = arith.constant 576 : index
    %c0_173 = arith.constant 0 : index
    %196 = vector.load %arg6[%c576, %c0_173] : memref<768x100xf32, #tpu.memory_space<vmem>>, vector<32x100xf32>
    %cst_174 = arith.constant dense<0.000000e+00> : vector<8x100xf32>
    %197 = tpu.matmul %195, %196, %cst_174 {dimension_numbers = #tpu.dot_dimension_numbers<[1], [0], [0], [1], [0, 0, 1, 1], [], []>} : vector<8x32xf32>, vector<32x100xf32>, vector<8x100xf32> -> vector<8x100xf32>
    %198 = arith.addf %192, %197 : vector<8x100xf32>
    %c38 = arith.constant 38 : index
    %c0_175 = arith.constant 0 : index
    %199 = tpu.strided_load %arg13[%c38, %c0_175] {strides = array<i32: 50, 1>} : memref<398x32xf32, #tpu.memory_space<vmem>>, vector<8x32xf32>
    %c39 = arith.constant 39 : index
    %c0_176 = arith.constant 0 : index
    %200 = tpu.strided_load %arg13[%c39, %c0_176] {strides = array<i32: 50, 1>} : memref<398x32xf32, #tpu.memory_space<vmem>>, vector<8x32xf32>
    %201 = arith.maximumf %199, %200 : vector<8x32xf32>
    %c608 = arith.constant 608 : index
    %c0_177 = arith.constant 0 : index
    %202 = vector.load %arg6[%c608, %c0_177] : memref<768x100xf32, #tpu.memory_space<vmem>>, vector<32x100xf32>
    %cst_178 = arith.constant dense<0.000000e+00> : vector<8x100xf32>
    %203 = tpu.matmul %201, %202, %cst_178 {dimension_numbers = #tpu.dot_dimension_numbers<[1], [0], [0], [1], [0, 0, 1, 1], [], []>} : vector<8x32xf32>, vector<32x100xf32>, vector<8x100xf32> -> vector<8x100xf32>
    %204 = arith.addf %198, %203 : vector<8x100xf32>
    %c40 = arith.constant 40 : index
    %c0_179 = arith.constant 0 : index
    %205 = tpu.strided_load %arg13[%c40, %c0_179] {strides = array<i32: 50, 1>} : memref<398x32xf32, #tpu.memory_space<vmem>>, vector<8x32xf32>
    %c41 = arith.constant 41 : index
    %c0_180 = arith.constant 0 : index
    %206 = tpu.strided_load %arg13[%c41, %c0_180] {strides = array<i32: 50, 1>} : memref<398x32xf32, #tpu.memory_space<vmem>>, vector<8x32xf32>
    %207 = arith.maximumf %205, %206 : vector<8x32xf32>
    %c640 = arith.constant 640 : index
    %c0_181 = arith.constant 0 : index
    %208 = vector.load %arg6[%c640, %c0_181] : memref<768x100xf32, #tpu.memory_space<vmem>>, vector<32x100xf32>
    %cst_182 = arith.constant dense<0.000000e+00> : vector<8x100xf32>
    %209 = tpu.matmul %207, %208, %cst_182 {dimension_numbers = #tpu.dot_dimension_numbers<[1], [0], [0], [1], [0, 0, 1, 1], [], []>} : vector<8x32xf32>, vector<32x100xf32>, vector<8x100xf32> -> vector<8x100xf32>
    %210 = arith.addf %204, %209 : vector<8x100xf32>
    %c42 = arith.constant 42 : index
    %c0_183 = arith.constant 0 : index
    %211 = tpu.strided_load %arg13[%c42, %c0_183] {strides = array<i32: 50, 1>} : memref<398x32xf32, #tpu.memory_space<vmem>>, vector<8x32xf32>
    %c43 = arith.constant 43 : index
    %c0_184 = arith.constant 0 : index
    %212 = tpu.strided_load %arg13[%c43, %c0_184] {strides = array<i32: 50, 1>} : memref<398x32xf32, #tpu.memory_space<vmem>>, vector<8x32xf32>
    %213 = arith.maximumf %211, %212 : vector<8x32xf32>
    %c672 = arith.constant 672 : index
    %c0_185 = arith.constant 0 : index
    %214 = vector.load %arg6[%c672, %c0_185] : memref<768x100xf32, #tpu.memory_space<vmem>>, vector<32x100xf32>
    %cst_186 = arith.constant dense<0.000000e+00> : vector<8x100xf32>
    %215 = tpu.matmul %213, %214, %cst_186 {dimension_numbers = #tpu.dot_dimension_numbers<[1], [0], [0], [1], [0, 0, 1, 1], [], []>} : vector<8x32xf32>, vector<32x100xf32>, vector<8x100xf32> -> vector<8x100xf32>
    %216 = arith.addf %210, %215 : vector<8x100xf32>
    %c44 = arith.constant 44 : index
    %c0_187 = arith.constant 0 : index
    %217 = tpu.strided_load %arg13[%c44, %c0_187] {strides = array<i32: 50, 1>} : memref<398x32xf32, #tpu.memory_space<vmem>>, vector<8x32xf32>
    %c45 = arith.constant 45 : index
    %c0_188 = arith.constant 0 : index
    %218 = tpu.strided_load %arg13[%c45, %c0_188] {strides = array<i32: 50, 1>} : memref<398x32xf32, #tpu.memory_space<vmem>>, vector<8x32xf32>
    %219 = arith.maximumf %217, %218 : vector<8x32xf32>
    %c704 = arith.constant 704 : index
    %c0_189 = arith.constant 0 : index
    %220 = vector.load %arg6[%c704, %c0_189] : memref<768x100xf32, #tpu.memory_space<vmem>>, vector<32x100xf32>
    %cst_190 = arith.constant dense<0.000000e+00> : vector<8x100xf32>
    %221 = tpu.matmul %219, %220, %cst_190 {dimension_numbers = #tpu.dot_dimension_numbers<[1], [0], [0], [1], [0, 0, 1, 1], [], []>} : vector<8x32xf32>, vector<32x100xf32>, vector<8x100xf32> -> vector<8x100xf32>
    %222 = arith.addf %216, %221 : vector<8x100xf32>
    %c46 = arith.constant 46 : index
    %c0_191 = arith.constant 0 : index
    %223 = tpu.strided_load %arg13[%c46, %c0_191] {strides = array<i32: 50, 1>} : memref<398x32xf32, #tpu.memory_space<vmem>>, vector<8x32xf32>
    %c47 = arith.constant 47 : index
    %c0_192 = arith.constant 0 : index
    %224 = tpu.strided_load %arg13[%c47, %c0_192] {strides = array<i32: 50, 1>} : memref<398x32xf32, #tpu.memory_space<vmem>>, vector<8x32xf32>
    %225 = arith.maximumf %223, %224 : vector<8x32xf32>
    %c736 = arith.constant 736 : index
    %c0_193 = arith.constant 0 : index
    %226 = vector.load %arg6[%c736, %c0_193] : memref<768x100xf32, #tpu.memory_space<vmem>>, vector<32x100xf32>
    %cst_194 = arith.constant dense<0.000000e+00> : vector<8x100xf32>
    %227 = tpu.matmul %225, %226, %cst_194 {dimension_numbers = #tpu.dot_dimension_numbers<[1], [0], [0], [1], [0, 0, 1, 1], [], []>} : vector<8x32xf32>, vector<32x100xf32>, vector<8x100xf32> -> vector<8x100xf32>
    %228 = arith.addf %222, %227 : vector<8x100xf32>
    %c0_195 = arith.constant 0 : index
    %c0_196 = arith.constant 0 : index
    %229 = vector.load %arg7[%c0_195, %c0_196] : memref<1x100xf32, #tpu.memory_space<vmem>>, vector<1x100xf32>
    %230 = vector.broadcast %229 : vector<1x100xf32> to vector<8x100xf32>
    %231 = arith.addf %228, %230 : vector<8x100xf32>
    %cst_197 = arith.constant 0.000000e+00 : f32
    %232 = vector.broadcast %cst_197 : f32 to vector<8x100xf32>
    %233 = arith.maximumf %231, %232 : vector<8x100xf32>
    %c0_198 = arith.constant 0 : index
    %c0_199 = arith.constant 0 : index
    %234 = vector.load %arg8[%c0_198, %c0_199] : memref<100x10xf32, #tpu.memory_space<vmem>>, vector<100x10xf32>
    %cst_200 = arith.constant dense<0.000000e+00> : vector<8x10xf32>
    %235 = tpu.matmul %233, %234, %cst_200 {dimension_numbers = #tpu.dot_dimension_numbers<[1], [0], [0], [1], [0, 0, 1, 1], [], []>} : vector<8x100xf32>, vector<100x10xf32>, vector<8x10xf32> -> vector<8x10xf32>
    %c0_201 = arith.constant 0 : index
    %c0_202 = arith.constant 0 : index
    %236 = vector.load %arg9[%c0_201, %c0_202] : memref<1x10xf32, #tpu.memory_space<vmem>>, vector<1x10xf32>
    %237 = vector.broadcast %236 : vector<1x10xf32> to vector<8x10xf32>
    %238 = arith.addf %235, %237 : vector<8x10xf32>
    %c0_203 = arith.constant 0 : index
    %c0_204 = arith.constant 0 : index
    %239 = vector.load %arg10[%c0_203, %c0_204] : memref<8x10xf32, #tpu.memory_space<vmem>>, vector<8x10xf32>
    tpu.vector_store %arg10[%c0_203, %c0_204], %238 {strides = array<i32>} : memref<8x10xf32, #tpu.memory_space<vmem>>, vector<8x10xf32>,
    return
  }
  func.func @transform_0(%arg0: i32) -> (i32, i32) {
    %c0_i32 = arith.constant 0 : i32
    %c0_i32_0 = arith.constant 0 : i32
    return %arg0, %c0_i32 : i32, i32
  }
  func.func @transform_1(%arg0: i32) -> (i32, i32, i32) {
    %c0_i32 = arith.constant 0 : i32
    %c0_i32_0 = arith.constant 0 : i32
    %c0_i32_1 = arith.constant 0 : i32
    %c0_i32_2 = arith.constant 0 : i32
    return %c0_i32, %c0_i32_0, %c0_i32_1 : i32, i32, i32
  }
  func.func @transform_2(%arg0: i32) -> (i32, i32) {
    %c0_i32 = arith.constant 0 : i32
    %c0_i32_0 = arith.constant 0 : i32
    %c0_i32_1 = arith.constant 0 : i32
    return %c0_i32, %c0_i32_0 : i32, i32
  }
  func.func @transform_3(%arg0: i32) -> (i32, i32, i32) {
    %c0_i32 = arith.constant 0 : i32
    %c0_i32_0 = arith.constant 0 : i32
    %c0_i32_1 = arith.constant 0 : i32
    %c0_i32_2 = arith.constant 0 : i32
    return %c0_i32, %c0_i32_0, %c0_i32_1 : i32, i32, i32
  }
  func.func @transform_4(%arg0: i32) -> (i32, i32) {
    %c0_i32 = arith.constant 0 : i32
    %c0_i32_0 = arith.constant 0 : i32
    %c0_i32_1 = arith.constant 0 : i32
    return %c0_i32, %c0_i32_0 : i32, i32
  }
  func.func @transform_5(%arg0: i32) -> (i32, i32) {
    %c0_i32 = arith.constant 0 : i32
    %c0_i32_0 = arith.constant 0 : i32
    %c0_i32_1 = arith.constant 0 : i32
    return %c0_i32, %c0_i32_0 : i32, i32
  }
  func.func @transform_6(%arg0: i32) -> (i32, i32) {
    %c0_i32 = arith.constant 0 : i32
    %c0_i32_0 = arith.constant 0 : i32
    %c0_i32_1 = arith.constant 0 : i32
    return %c0_i32, %c0_i32_0 : i32, i32
  }
  func.func @transform_7(%arg0: i32) -> (i32, i32) {
    %c0_i32 = arith.constant 0 : i32
    %c0_i32_0 = arith.constant 0 : i32
    %c0_i32_1 = arith.constant 0 : i32
    return %c0_i32, %c0_i32_0 : i32, i32
  }
  func.func @transform_8(%arg0: i32) -> (i32, i32) {
    %c0_i32 = arith.constant 0 : i32
    %c0_i32_0 = arith.constant 0 : i32
    %c0_i32_1 = arith.constant 0 : i32
    return %c0_i32, %c0_i32_0 : i32, i32
  }
  func.func @transform_9(%arg0: i32) -> (i32, i32) {
    %c0_i32 = arith.constant 0 : i32
    %c0_i32_0 = arith.constant 0 : i32
    return %arg0, %c0_i32 : i32, i32
  }
}

</mosaic_0001>

<llo_original>
// kernel: cnn_forward.1
$region0: #{cnn_forward.1}
  #allocation0 [shape = 'u32[]', space=smem, size = 0x4, offset = 0x4, fixed_abs, tag = 'smem constant byte address 0x4 - core index']
  #allocation1 [shape = 'u32[144,128]{1,0:T(1,128)}', space=vmem, size = 0x12000, scoped, tag = 'internal scratch']
  #allocation2 [shape = 'f32[814,16]{1,0:T(8,128)}', space=vmem, size = 0x66000, scoped, tag = 'scratch operand']
  #allocation3 [shape = 'f32[400,16]{1,0:T(8,128)}', space=vmem, size = 0x32000, scoped, tag = 'scratch operand']
  #allocation4 [shape = 'f32[398,32]{1,0:T(8,128)}', space=vmem, size = 0x32000, scoped, tag = 'scratch operand']
  %s0 = inlined_call_operand.vmem [shape: f32[1632,4], index: 0, kind: input, shape index: {}]
  %s1 = inlined_call_operand.vmem [shape: f32[3,4,16], index: 1, kind: input, shape index: {}]
  %s2 = inlined_call_operand.vmem [shape: f32[1,16], index: 2, kind: input, shape index: {}]
  %s3 = inlined_call_operand.vmem [shape: f32[3,16,32], index: 3, kind: input, shape index: {}]
  %s4 = inlined_call_operand.vmem [shape: f32[1,32], index: 4, kind: input, shape index: {}]
  %s5 = inlined_call_operand.vmem [shape: f32[768,100], index: 5, kind: input, shape index: {}]
  %s6 = inlined_call_operand.vmem [shape: f32[1,100], index: 6, kind: input, shape index: {}]
  %s7 = inlined_call_operand.vmem [shape: f32[100,10], index: 7, kind: input, shape index: {}]
  %s8 = inlined_call_operand.vmem [shape: f32[1,10], index: 8, kind: input, shape index: {}]
  %s9 = inlined_call_operand.hbm [shape: f32[16,10], index: 9, kind: output, shape index: {}]
  %s10 = sld [smem:[#allocation0]]
  $region69: #{cnn_forward.1} parent=0
    _
  %s12 = ssub.s32 1, %s10
  %s13 = scalar_select 0, %s12, %s10
  $region1: #{cnn_forward.1} parent=0
    #allocation5 [shape = 'u8[8192]{0}', space=vmem, size = 0x2000, scoped, tag = 'output window, operand 0']
    #allocation6 [shape = 's32[2]{0}', space=sflag, size = 0x8, scoped, tag = 'scoped memory for cnn_forward.1']
    %14 = vsyncpa [#allocation6], 0
    %s15 = scalar_lea.sflag [#allocation6], 1
    %16 = vsyncpa %s15, 0
    loop: start=0, step=1, limit=4
    $region2: #{cnn_forward.1} parent=1 // loop_pre_header
      _
    $region3: #{cnn_forward.1} parent=1 // loop_header
      %s18 = sphi 0, %s22
      %p19 = scmp.ge.s32.totalorder %s18, 4
      %s28 = sphi 0, %s30
      %s31 = sphi 0, %s28
      %s32 = sphi 0, %s31
      %s48 = sphi 0, %s32
      %s52 = sphi 0, %s52
      %s54 = sphi 0, %s52
      %s55 = sphi 0, %s54
      %s69 = sphi 0, %s55
      %s73 = sphi 0, %s73
      %s75 = sphi 0, %s73
      %s76 = sphi 0, %s75
      %s90 = sphi 0, %s76
      %s94 = sphi 0, %s94
      %s96 = sphi 0, %s94
      %s97 = sphi 0, %s96
      %s111 = sphi 0, %s97
      %s115 = sphi 0, %s115
      %s117 = sphi 0, %s115
      %s118 = sphi 0, %s117
      %s132 = sphi 0, %s118
      %s136 = sphi 0, %s136
      %s138 = sphi 0, %s136
      %s139 = sphi 0, %s138
      %s153 = sphi 0, %s139
      %s157 = sphi 0, %s157
      %s159 = sphi 0, %s157
      %s160 = sphi 0, %s159
      %s174 = sphi 0, %s160
      %s178 = sphi 0, %s178
      %s180 = sphi 0, %s178
      %s181 = sphi 0, %s180
      %s195 = sphi 0, %s181
      %s199 = sphi 0, %s199
      %s201 = sphi 0, %s199
      %s202 = sphi 0, %s201
      %s216 = sphi 0, %s202
      %s222 = sphi 0, %s224
      %s225 = sphi 0, %s222
      %s226 = sphi 0, %s225
      %s242 = sphi 0, %s226
    $region4: #{cnn_forward.1} parent=1 // loop_header_branch
      %21 = sbr.rel (%p19) target = $region8
    $region5: #{cnn_forward.1} parent=1 // loop_body
      %s23 = ssub.s32 %s18, 1
      %s24 = ssub.s32 %s18, 2
      %s25 = sadd.s32 %s18, 1
      %s26 = ssub.s32 %s18, %s25
      %p27 = scmp.eq.s32.totalorder %s26, 0
      %s29 = sadd.s32 %s28, 1
      %s30 = scalar_select %p27, %s28, %s29
      %p33 = pneg %p27
      %p34 = scmp.eq.s32.totalorder %s18, 1
      %p35 = por %p33, %p34
      %p36 = scmp.ne.s32.totalorder %s28, %s31
      %p37 = scmp.eq.s32.totalorder %s18, 0
      %p38 = por %p36, %p37
      %p39 = scmp.ne.s32.totalorder %s28, %s31
      %p40 = scmp.eq.s32.totalorder %s23, 1
      %p41 = por %p39, %p40
      %p42 = scmp.ne.s32.totalorder %s31, %s32
      %p43 = scmp.eq.s32.totalorder %s23, 0
      %p44 = por %p42, %p43
      %p45 = scmp.ne.s32.totalorder %s31, %s32
      %p46 = scmp.eq.s32.totalorder %s24, 1
      %p47 = por %p45, %p46
      %p49 = scmp.ne.s32.totalorder %s32, %s48
      %p50 = scmp.eq.s32.totalorder %s24, 0
      %p51 = por %p49, %p50
      %s53 = sadd.s32 %s52, 1
      %p56 = scmp.eq.s32.totalorder %s18, 1
      %p57 = scmp.ne.s32.totalorder %s52, %s54
      %p58 = scmp.eq.s32.totalorder %s18, 0
      %p59 = por %p57, %p58
      %p60 = scmp.ne.s32.totalorder %s52, %s54
      %p61 = scmp.eq.s32.totalorder %s23, 1
      %p62 = por %p60, %p61
      %p63 = scmp.ne.s32.totalorder %s54, %s55
      %p64 = scmp.eq.s32.totalorder %s23, 0
      %p65 = por %p63, %p64
      %p66 = scmp.ne.s32.totalorder %s54, %s55
      %p67 = scmp.eq.s32.totalorder %s24, 1
      %p68 = por %p66, %p67
      %p70 = scmp.ne.s32.totalorder %s55, %s69
      %p71 = scmp.eq.s32.totalorder %s24, 0
      %p72 = por %p70, %p71
      %s74 = sadd.s32 %s73, 1
      %p77 = scmp.eq.s32.totalorder %s18, 1
      %p78 = scmp.ne.s32.totalorder %s73, %s75
      %p79 = scmp.eq.s32.totalorder %s18, 0
      %p80 = por %p78, %p79
      %p81 = scmp.ne.s32.totalorder %s73, %s75
      %p82 = scmp.eq.s32.totalorder %s23, 1
      %p83 = por %p81, %p82
      %p84 = scmp.ne.s32.totalorder %s75, %s76
      %p85 = scmp.eq.s32.totalorder %s23, 0
      %p86 = por %p84, %p85
      %p87 = scmp.ne.s32.totalorder %s75, %s76
      %p88 = scmp.eq.s32.totalorder %s24, 1
      %p89 = por %p87, %p88
      %p91 = scmp.ne.s32.totalorder %s76, %s90
      %p92 = scmp.eq.s32.totalorder %s24, 0
      %p93 = por %p91, %p92
      %s95 = sadd.s32 %s94, 1
      %p98 = scmp.eq.s32.totalorder %s18, 1
      %p99 = scmp.ne.s32.totalorder %s94, %s96
      %p100 = scmp.eq.s32.totalorder %s18, 0
      %p101 = por %p99, %p100
      %p102 = scmp.ne.s32.totalorder %s94, %s96
      %p103 = scmp.eq.s32.totalorder %s23, 1
      %p104 = por %p102, %p103
      %p105 = scmp.ne.s32.totalorder %s96, %s97
      %p106 = scmp.eq.s32.totalorder %s23, 0
      %p107 = por %p105, %p106
      %p108 = scmp.ne.s32.totalorder %s96, %s97
      %p109 = scmp.eq.s32.totalorder %s24, 1
      %p110 = por %p108, %p109
      %p112 = scmp.ne.s32.totalorder %s97, %s111
      %p113 = scmp.eq.s32.totalorder %s24, 0
      %p114 = por %p112, %p113
      %s116 = sadd.s32 %s115, 1
      %p119 = scmp.eq.s32.totalorder %s18, 1
      %p120 = scmp.ne.s32.totalorder %s115, %s117
      %p121 = scmp.eq.s32.totalorder %s18, 0
      %p122 = por %p120, %p121
      %p123 = scmp.ne.s32.totalorder %s115, %s117
      %p124 = scmp.eq.s32.totalorder %s23, 1
      %p125 = por %p123, %p124
      %p126 = scmp.ne.s32.totalorder %s117, %s118
      %p127 = scmp.eq.s32.totalorder %s23, 0
      %p128 = por %p126, %p127
      %p129 = scmp.ne.s32.totalorder %s117, %s118
      %p130 = scmp.eq.s32.totalorder %s24, 1
      %p131 = por %p129, %p130
      %p133 = scmp.ne.s32.totalorder %s118, %s132
      %p134 = scmp.eq.s32.totalorder %s24, 0
      %p135 = por %p133, %p134
      %s137 = sadd.s32 %s136, 1
      %p140 = scmp.eq.s32.totalorder %s18, 1
      %p141 = scmp.ne.s32.totalorder %s136, %s138
      %p142 = scmp.eq.s32.totalorder %s18, 0
      %p143 = por %p141, %p142
      %p144 = scmp.ne.s32.totalorder %s136, %s138
      %p145 = scmp.eq.s32.totalorder %s23, 1
      %p146 = por %p144, %p145
      %p147 = scmp.ne.s32.totalorder %s138, %s139
      %p148 = scmp.eq.s32.totalorder %s23, 0
      %p149 = por %p147, %p148
      %p150 = scmp.ne.s32.totalorder %s138, %s139
      %p151 = scmp.eq.s32.totalorder %s24, 1
      %p152 = por %p150, %p151
      %p154 = scmp.ne.s32.totalorder %s139, %s153
      %p155 = scmp.eq.s32.totalorder %s24, 0
      %p156 = por %p154, %p155
      %s158 = sadd.s32 %s157, 1
      %p161 = scmp.eq.s32.totalorder %s18, 1
      %p162 = scmp.ne.s32.totalorder %s157, %s159
      %p163 = scmp.eq.s32.totalorder %s18, 0
      %p164 = por %p162, %p163
      %p165 = scmp.ne.s32.totalorder %s157, %s159
      %p166 = scmp.eq.s32.totalorder %s23, 1
      %p167 = por %p165, %p166
      %p168 = scmp.ne.s32.totalorder %s159, %s160
      %p169 = scmp.eq.s32.totalorder %s23, 0
      %p170 = por %p168, %p169
      %p171 = scmp.ne.s32.totalorder %s159, %s160
      %p172 = scmp.eq.s32.totalorder %s24, 1
      %p173 = por %p171, %p172
      %p175 = scmp.ne.s32.totalorder %s160, %s174
      %p176 = scmp.eq.s32.totalorder %s24, 0
      %p177 = por %p175, %p176
      %s179 = sadd.s32 %s178, 1
      %p182 = scmp.eq.s32.totalorder %s18, 1
      %p183 = scmp.ne.s32.totalorder %s178, %s180
      %p184 = scmp.eq.s32.totalorder %s18, 0
      %p185 = por %p183, %p184
      %p186 = scmp.ne.s32.totalorder %s178, %s180
      %p187 = scmp.eq.s32.totalorder %s23, 1
      %p188 = por %p186, %p187
      %p189 = scmp.ne.s32.totalorder %s180, %s181
      %p190 = scmp.eq.s32.totalorder %s23, 0
      %p191 = por %p189, %p190
      %p192 = scmp.ne.s32.totalorder %s180, %s181
      %p193 = scmp.eq.s32.totalorder %s24, 1
      %p194 = por %p192, %p193
      %p196 = scmp.ne.s32.totalorder %s181, %s195
      %p197 = scmp.eq.s32.totalorder %s24, 0
      %p198 = por %p196, %p197
      %s200 = sadd.s32 %s199, 1
      %p203 = scmp.eq.s32.totalorder %s18, 1
      %p204 = scmp.ne.s32.totalorder %s199, %s201
      %p205 = scmp.eq.s32.totalorder %s18, 0
      %p206 = por %p204, %p205
      %p207 = scmp.ne.s32.totalorder %s199, %s201
      %p208 = scmp.eq.s32.totalorder %s23, 1
      %p209 = por %p207, %p208
      %p210 = scmp.ne.s32.totalorder %s201, %s202
      %p211 = scmp.eq.s32.totalorder %s23, 0
      %p212 = por %p210, %p211
      %p213 = scmp.ne.s32.totalorder %s201, %s202
      %p214 = scmp.eq.s32.totalorder %s24, 1
      %p215 = por %p213, %p214
      %p217 = scmp.ne.s32.totalorder %s202, %s216
      %p218 = scmp.eq.s32.totalorder %s24, 0
      %p219 = por %p217, %p218
      %s220 = ssub.s32 %s18, %s25
      %p221 = scmp.eq.s32.totalorder %s220, 0
      %s223 = sadd.s32 %s222, 1
      %s224 = scalar_select %p221, %s222, %s223
      %p227 = pneg %p221
      %p228 = scmp.eq.s32.totalorder %s18, 1
      %p229 = por %p227, %p228
      %p230 = scmp.ne.s32.totalorder %s222, %s225
      %p231 = scmp.eq.s32.totalorder %s18, 0
      %p232 = por %p230, %p231
      %p233 = scmp.ne.s32.totalorder %s222, %s225
      %p234 = scmp.eq.s32.totalorder %s23, 1
      %p235 = por %p233, %p234
      %p236 = scmp.ne.s32.totalorder %s225, %s226
      %p237 = scmp.eq.s32.totalorder %s23, 0
      %p238 = por %p236, %p237
      %p239 = scmp.ne.s32.totalorder %s225, %s226
      %p240 = scmp.eq.s32.totalorder %s24, 1
      %p241 = por %p239, %p240
      %p243 = scmp.ne.s32.totalorder %s226, %s242
      %p244 = scmp.eq.s32.totalorder %s24, 0
      %p245 = por %p243, %p244
      %p246 = scmp.le.s32.totalorder 1, %s18
      %p247 = scmp.lt.s32.totalorder %s18, 3
      %p248 = pnand %p246, %p247
      %p249 = pneg %p248
      // Predicated region
      $region9: #{cnn_forward.1} parent=5 // pred_check
        _
      $region10: #{cnn_forward.1} parent=5 // pred_check_branch
        %251 = sbr.rel (%p248) target = $region12
      $region11: #{cnn_forward.1} parent=5 // pred_region
        %s252 = ssub.s32 %s18, 1
        // Predicated region
        $region13: #{cnn_forward.1} parent=11 // pred_check
          %p253 = pneg %p65
        $region14: #{cnn_forward.1} parent=11 // pred_check_branch
          %255 = sbr.rel (%p253) target = $region16
        $region15: #{cnn_forward.1} parent=11 // pred_region
          _
        $region16: #{cnn_forward.1} parent=11 // pred_fallthru
          _
        // Predicated region
        $region17: #{cnn_forward.1} parent=11 // pred_check
          %p256 = pneg %p86
        $region18: #{cnn_forward.1} parent=11 // pred_check_branch
          %258 = sbr.rel (%p256) target = $region20
        $region19: #{cnn_forward.1} parent=11 // pred_region
          _
        $region20: #{cnn_forward.1} parent=11 // pred_fallthru
          _
        // Predicated region
        $region21: #{cnn_forward.1} parent=11 // pred_check
          %p259 = pneg %p107
        $region22: #{cnn_forward.1} parent=11 // pred_check_branch
          %261 = sbr.rel (%p259) target = $region24
        $region23: #{cnn_forward.1} parent=11 // pred_region
          _
        $region24: #{cnn_forward.1} parent=11 // pred_fallthru
          _
        // Predicated region
        $region25: #{cnn_forward.1} parent=11 // pred_check
          %p262 = pneg %p128
        $region26: #{cnn_forward.1} parent=11 // pred_check_branch
          %264 = sbr.rel (%p262) target = $region28
        $region27: #{cnn_forward.1} parent=11 // pred_region
          _
        $region28: #{cnn_forward.1} parent=11 // pred_fallthru
          _
        // Predicated region
        $region29: #{cnn_forward.1} parent=11 // pred_check
          %p265 = pneg %p149
        $region30: #{cnn_forward.1} parent=11 // pred_check_branch
          %267 = sbr.rel (%p265) target = $region32
        $region31: #{cnn_forward.1} parent=11 // pred_region
          _
        $region32: #{cnn_forward.1} parent=11 // pred_fallthru
          _
        // Predicated region
        $region33: #{cnn_forward.1} parent=11 // pred_check
          %p268 = pneg %p170
        $region34: #{cnn_forward.1} parent=11 // pred_check_branch
          %270 = sbr.rel (%p268) target = $region36
        $region35: #{cnn_forward.1} parent=11 // pred_region
          _
        $region36: #{cnn_forward.1} parent=11 // pred_fallthru
          _
        // Predicated region
        $region37: #{cnn_forward.1} parent=11 // pred_check
          %p271 = pneg %p191
        $region38: #{cnn_forward.1} parent=11 // pred_check_branch
          %273 = sbr.rel (%p271) target = $region40
        $region39: #{cnn_forward.1} parent=11 // pred_region
          _
        $region40: #{cnn_forward.1} parent=11 // pred_fallthru
          _
        // Predicated region
        $region41: #{cnn_forward.1} parent=11 // pred_check
          %p274 = pneg %p212
        $region42: #{cnn_forward.1} parent=11 // pred_check_branch
          %276 = sbr.rel (%p274) target = $region44
        $region43: #{cnn_forward.1} parent=11 // pred_region
          _
        $region44: #{cnn_forward.1} parent=11 // pred_fallthru
          _
      $region12: #{cnn_forward.1} parent=5 // pred_fallthru
        _
      %p277 = scmp.lt.s32.totalorder %s18, 2
      // Predicated region
      $region45: #{cnn_forward.1} parent=5 // pred_check
        %p278 = pneg %p277
      $region46: #{cnn_forward.1} parent=5 // pred_check_branch
        %280 = sbr.rel (%p278) target = $region48
      $region47: #{cnn_forward.1} parent=5 // pred_region
        // Predicated region
        $region49: #{cnn_forward.1} parent=47 // pred_check
          %p281 = pneg %p38
        $region50: #{cnn_forward.1} parent=47 // pred_check_branch
          %283 = sbr.rel (%p281) target = $region52
        $region51: #{cnn_forward.1} parent=47 // pred_region
          %s284 = smul.u32 102, %s18
          %p285 = scmp.lt.s32.totalorder %s284, 203
          %s286 = scalar_select %p285, %s284, 203
          %s287 = smul.addr %s286, 8
          %s288 = scalar_lea.vmem %s0, %s287
          %s289 = smul.u32 102, %s18
        $region52: #{cnn_forward.1} parent=47 // pred_fallthru
          _
      $region48: #{cnn_forward.1} parent=5 // pred_fallthru
        _
      %p290 = scmp.le.s32.totalorder 1, %s18
      %p291 = scmp.lt.s32.totalorder %s18, 3
      %p292 = pnand %p290, %p291
      %p293 = pneg %p292
      // Predicated region
      $region53: #{cnn_forward.1} parent=5 // pred_check
        _
      $region54: #{cnn_forward.1} parent=5 // pred_check_branch
        %295 = sbr.rel (%p292) target = $region56
      $region55: #{cnn_forward.1} parent=5 // pred_region
        %s296 = ssub.s32 %s18, 1
        %s297 = smul.u32 102, %s23
        %p298 = scmp.lt.s32.totalorder %s297, 203
        %s299 = scalar_select %p298, %s297, 203
        %s300 = smul.addr %s299, 8
        %s301 = scalar_lea.vmem %s0, %s300
        %p302 = pneg %p44
        %p303 = pneg %p41
        %p304 = pneg %p65
        %p305 = pneg %p62
        %p306 = pneg %p86
        %p307 = pneg %p83
        %p308 = pneg %p107
        %p309 = pneg %p104
        %p310 = pneg %p128
        %p311 = pneg %p125
        %p312 = pneg %p149
        %p313 = pneg %p146
        %p314 = pneg %p170
        %p315 = pneg %p167
        %p316 = pneg %p191
        %p317 = pneg %p188
        %p318 = pneg %p212
        %p319 = pneg %p209
        %p320 = pneg %p238
        %p321 = pneg %p235
        %s322 = sand.u32 %s225, 1
        %s323 = scalar_lea.sflag [#allocation6], %s322
        %s324 = sand.u32 %s225, 1
        %s325 = smul.addr %s324, 8
        %s326 = scalar_lea.vmem [#allocation5], %s325
        %s327 = smul.u32 102, %s23
        %p328 = scmp.lt.s32.totalorder %s327, 203
        %s329 = scalar_select %p328, %s327, 203
        %s330 = smul.addr %s329, 8
        %s331 = scalar_lea.vmem %s0, %s330
        %s332 = smul.u32 102, %s23
        %v333 = vld [vmem:[%s331] sm:$0xff]
        %v334 = vld [vmem:[%s331 + $0x8] sm:$0xff]
        %v335 = vld [vmem:[%s331 + $0x10] sm:$0xff]
        %v336 = vld [vmem:[%s331 + $0x18] sm:$0xff]
        %v337 = vld [vmem:[%s331 + $0x20] sm:$0xff]
        %v338 = vld [vmem:[%s331 + $0x28] sm:$0xff]
        %v339 = vld [vmem:[%s331 + $0x30] sm:$0xff]
        %v340 = vld [vmem:[%s331 + $0x38] sm:$0xff]
        %v341 = vld [vmem:[%s331 + $0x40] sm:$0xff]
        %v342 = vld [vmem:[%s331 + $0x48] sm:$0xff]
        %v343 = vld [vmem:[%s331 + $0x50] sm:$0xff]
        %v344 = vld [vmem:[%s331 + $0x58] sm:$0xff]
        %v345 = vld [vmem:[%s331 + $0x60] sm:$0xff]
        %v346 = vld [vmem:[%s331 + $0x68] sm:$0xff]
        %v347 = vld [vmem:[%s331 + $0x70] sm:$0xff]
        %v348 = vld [vmem:[%s331 + $0x78] sm:$0xff]
        %v349 = vld [vmem:[%s331 + $0x80] sm:$0xff]
        %v350 = vld [vmem:[%s331 + $0x88] sm:$0xff]
        %v351 = vld [vmem:[%s331 + $0x90] sm:$0xff]
        %v352 = vld [vmem:[%s331 + $0x98] sm:$0xff]
        %v353 = vld [vmem:[%s331 + $0xa0] sm:$0xff]
        %v354 = vld [vmem:[%s331 + $0xa8] sm:$0xff]
        %v355 = vld [vmem:[%s331 + $0xb0] sm:$0xff]
        %v356 = vld [vmem:[%s331 + $0xb8] sm:$0xff]
        %v357 = vld [vmem:[%s331 + $0xc0] sm:$0xff]
        %v358 = vld [vmem:[%s331 + $0xc8] sm:$0xff]
        %v359 = vld [vmem:[%s331 + $0xd0] sm:$0xff]
        %v360 = vld [vmem:[%s331 + $0xd8] sm:$0xff]
        %v361 = vld [vmem:[%s331 + $0xe0] sm:$0xff]
        %v362 = vld [vmem:[%s331 + $0xe8] sm:$0xff]
        %v363 = vld [vmem:[%s331 + $0xf0] sm:$0xff]
        %v364 = vld [vmem:[%s331 + $0xf8] sm:$0xff]
        %v365 = vld [vmem:[%s331 + $0x100] sm:$0xff]
        %v366 = vld [vmem:[%s331 + $0x108] sm:$0xff]
        %v367 = vld [vmem:[%s331 + $0x110] sm:$0xff]
        %v368 = vld [vmem:[%s331 + $0x118] sm:$0xff]
        %v369 = vld [vmem:[%s331 + $0x120] sm:$0xff]
        %v370 = vld [vmem:[%s331 + $0x128] sm:$0xff]
        %v371 = vld [vmem:[%s331 + $0x130] sm:$0xff]
        %v372 = vld [vmem:[%s331 + $0x138] sm:$0xff]
        %v373 = vld [vmem:[%s331 + $0x140] sm:$0xff]
        %v374 = vld [vmem:[%s331 + $0x148] sm:$0xff]
        %v375 = vld [vmem:[%s331 + $0x150] sm:$0xff]
        %v376 = vld [vmem:[%s331 + $0x158] sm:$0xff]
        %v377 = vld [vmem:[%s331 + $0x160] sm:$0xff]
        %v378 = vld [vmem:[%s331 + $0x168] sm:$0xff]
        %v379 = vld [vmem:[%s331 + $0x170] sm:$0xff]
        %v380 = vld [vmem:[%s331 + $0x178] sm:$0xff]
        %v381 = vld [vmem:[%s331 + $0x180] sm:$0xff]
        %v382 = vld [vmem:[%s331 + $0x188] sm:$0xff]
        %v383 = vld [vmem:[%s331 + $0x190] sm:$0xff]
        %v384 = vld [vmem:[%s331 + $0x198] sm:$0xff]
        %v385 = vld [vmem:[%s331 + $0x1a0] sm:$0xff]
        %v386 = vld [vmem:[%s331 + $0x1a8] sm:$0xff]
        %v387 = vld [vmem:[%s331 + $0x1b0] sm:$0xff]
        %v388 = vld [vmem:[%s331 + $0x1b8] sm:$0xff]
        %v389 = vld [vmem:[%s331 + $0x1c0] sm:$0xff]
        %v390 = vld [vmem:[%s331 + $0x1c8] sm:$0xff]
        %v391 = vld [vmem:[%s331 + $0x1d0] sm:$0xff]
        %v392 = vld [vmem:[%s331 + $0x1d8] sm:$0xff]
        %v393 = vld [vmem:[%s331 + $0x1e0] sm:$0xff]
        %v394 = vld [vmem:[%s331 + $0x1e8] sm:$0xff]
        %v395 = vld [vmem:[%s331 + $0x1f0] sm:$0xff]
        %v396 = vld [vmem:[%s331 + $0x1f8] sm:$0xff]
        %v397 = vld [vmem:[%s331 + $0x200] sm:$0xff]
        %v398 = vld [vmem:[%s331 + $0x208] sm:$0xff]
        %v399 = vld [vmem:[%s331 + $0x210] sm:$0xff]
        %v400 = vld [vmem:[%s331 + $0x218] sm:$0xff]
        %v401 = vld [vmem:[%s331 + $0x220] sm:$0xff]
        %v402 = vld [vmem:[%s331 + $0x228] sm:$0xff]
        %v403 = vld [vmem:[%s331 + $0x230] sm:$0xff]
        %v404 = vld [vmem:[%s331 + $0x238] sm:$0xff]
        %v405 = vld [vmem:[%s331 + $0x240] sm:$0xff]
        %v406 = vld [vmem:[%s331 + $0x248] sm:$0xff]
        %v407 = vld [vmem:[%s331 + $0x250] sm:$0xff]
        %v408 = vld [vmem:[%s331 + $0x258] sm:$0xff]
        %v409 = vld [vmem:[%s331 + $0x260] sm:$0xff]
        %v410 = vld [vmem:[%s331 + $0x268] sm:$0xff]
        %v411 = vld [vmem:[%s331 + $0x270] sm:$0xff]
        %v412 = vld [vmem:[%s331 + $0x278] sm:$0xff]
        %v413 = vld [vmem:[%s331 + $0x280] sm:$0xff]
        %v414 = vld [vmem:[%s331 + $0x288] sm:$0xff]
        %v415 = vld [vmem:[%s331 + $0x290] sm:$0xff]
        %v416 = vld [vmem:[%s331 + $0x298] sm:$0xff]
        %v417 = vld [vmem:[%s331 + $0x2a0] sm:$0xff]
        %v418 = vld [vmem:[%s331 + $0x2a8] sm:$0xff]
        %v419 = vld [vmem:[%s331 + $0x2b0] sm:$0xff]
        %v420 = vld [vmem:[%s331 + $0x2b8] sm:$0xff]
        %v421 = vld [vmem:[%s331 + $0x2c0] sm:$0xff]
        %v422 = vld [vmem:[%s331 + $0x2c8] sm:$0xff]
        %v423 = vld [vmem:[%s331 + $0x2d0] sm:$0xff]
        %v424 = vld [vmem:[%s331 + $0x2d8] sm:$0xff]
        %v425 = vld [vmem:[%s331 + $0x2e0] sm:$0xff]
        %v426 = vld [vmem:[%s331 + $0x2e8] sm:$0xff]
        %v427 = vld [vmem:[%s331 + $0x2f0] sm:$0xff]
        %v428 = vld [vmem:[%s331 + $0x2f8] sm:$0xff]
        %v429 = vld [vmem:[%s331 + $0x300] sm:$0xff]
        %v430 = vld [vmem:[%s331 + $0x308] sm:$0xff]
        %v431 = vld [vmem:[%s331 + $0x310] sm:$0xff]
        %v432 = vld [vmem:[%s331 + $0x318] sm:$0xff]
        %v433 = vld [vmem:[%s331 + $0x320] sm:$0xff]
        %v434 = vld [vmem:[%s331 + $0x328] sm:$0x3f]
        %v435 = vld [vmem:[%s1] sm:$0xf]
        %vm436 = vcmask 31744
        %v438 = vsel %vm436, %v333, 0
        %v441 = vsel %vm436, %v334, 0
        %v444 = vsel %vm436, %v335, 0
        %v447 = vsel %vm436, %v336, 0
        %v450 = vsel %vm436, %v337, 0
        %v453 = vsel %vm436, %v338, 0
        %v456 = vsel %vm436, %v339, 0
        %v459 = vsel %vm436, %v340, 0
        %v462 = vsel %vm436, %v341, 0
        %v465 = vsel %vm436, %v342, 0
        %v468 = vsel %vm436, %v343, 0
        %v471 = vsel %vm436, %v344, 0
        %v474 = vsel %vm436, %v345, 0
        %v477 = vsel %vm436, %v346, 0
        %v480 = vsel %vm436, %v347, 0
        %v483 = vsel %vm436, %v348, 0
        %v486 = vsel %vm436, %v349, 0
        %v489 = vsel %vm436, %v350, 0
        %v492 = vsel %vm436, %v351, 0
        %v495 = vsel %vm436, %v352, 0
        %v498 = vsel %vm436, %v353, 0
        %v501 = vsel %vm436, %v354, 0
        %v504 = vsel %vm436, %v355, 0
        %v507 = vsel %vm436, %v356, 0
        %v510 = vsel %vm436, %v357, 0
        %v513 = vsel %vm436, %v358, 0
        %v516 = vsel %vm436, %v359, 0
        %v519 = vsel %vm436, %v360, 0
        %v522 = vsel %vm436, %v361, 0
        %v525 = vsel %vm436, %v362, 0
        %v528 = vsel %vm436, %v363, 0
        %v531 = vsel %vm436, %v364, 0
        %v534 = vsel %vm436, %v365, 0
        %v537 = vsel %vm436, %v366, 0
        %v540 = vsel %vm436, %v367, 0
        %v543 = vsel %vm436, %v368, 0
        %v546 = vsel %vm436, %v369, 0
        %v549 = vsel %vm436, %v370, 0
        %v552 = vsel %vm436, %v371, 0
        %v555 = vsel %vm436, %v372, 0
        %v558 = vsel %vm436, %v373, 0
        %v561 = vsel %vm436, %v374, 0
        %v564 = vsel %vm436, %v375, 0
        %v567 = vsel %vm436, %v376, 0
        %v570 = vsel %vm436, %v377, 0
        %v573 = vsel %vm436, %v378, 0
        %v576 = vsel %vm436, %v379, 0
        %v579 = vsel %vm436, %v380, 0
        %v582 = vsel %vm436, %v381, 0
        %v585 = vsel %vm436, %v382, 0
        %v588 = vsel %vm436, %v383, 0
        %v591 = vsel %vm436, %v384, 0
        %v594 = vsel %vm436, %v385, 0
        %v597 = vsel %vm436, %v386, 0
        %v600 = vsel %vm436, %v387, 0
        %v603 = vsel %vm436, %v388, 0
        %v606 = vsel %vm436, %v389, 0
        %v609 = vsel %vm436, %v390, 0
        %v612 = vsel %vm436, %v391, 0
        %v615 = vsel %vm436, %v392, 0
        %v618 = vsel %vm436, %v393, 0
        %v621 = vsel %vm436, %v394, 0
        %v624 = vsel %vm436, %v395, 0
        %v627 = vsel %vm436, %v396, 0
        %v630 = vsel %vm436, %v397, 0
        %v633 = vsel %vm436, %v398, 0
        %v636 = vsel %vm436, %v399, 0
        %v639 = vsel %vm436, %v400, 0
        %v642 = vsel %vm436, %v401, 0
        %v645 = vsel %vm436, %v402, 0
        %v648 = vsel %vm436, %v403, 0
        %v651 = vsel %vm436, %v404, 0
        %v654 = vsel %vm436, %v405, 0
        %v657 = vsel %vm436, %v406, 0
        %v660 = vsel %vm436, %v407, 0
        %v663 = vsel %vm436, %v408, 0
        %v666 = vsel %vm436, %v409, 0
        %v669 = vsel %vm436, %v410, 0
        %v672 = vsel %vm436, %v411, 0
        %v675 = vsel %vm436, %v412, 0
        %v678 = vsel %vm436, %v413, 0
        %v681 = vsel %vm436, %v414, 0
        %v684 = vsel %vm436, %v415, 0
        %v687 = vsel %vm436, %v416, 0
        %v690 = vsel %vm436, %v417, 0
        %v693 = vsel %vm436, %v418, 0
        %v696 = vsel %vm436, %v419, 0
        %v699 = vsel %vm436, %v420, 0
        %v702 = vsel %vm436, %v421, 0
        %v705 = vsel %vm436, %v422, 0
        %v708 = vsel %vm436, %v423, 0
        %v711 = vsel %vm436, %v424, 0
        %v714 = vsel %vm436, %v425, 0
        %v717 = vsel %vm436, %v426, 0
        %v720 = vsel %vm436, %v427, 0
        %v723 = vsel %vm436, %v428, 0
        %v726 = vsel %vm436, %v429, 0
        %v729 = vsel %vm436, %v430, 0
        %v732 = vsel %vm436, %v431, 0
        %v735 = vsel %vm436, %v432, 0
        %v738 = vsel %vm436, %v433, 0
        %v741 = vsel %vm436, %v434, 0
        %vm743 = vcmask 1043456
        %v745 = vsel %vm743, %v435, 0
        %747 = vmatprep.subr.mxu0 0.0
        %748 = vmatpush1.msra.mxu0 %v745
        %749 = vmatprep.subr.mxu0 0.0
        %750 = vmatpush1.msra.mxu0 0.0
        %751 = vmatprep.subr.mxu0 0.0
        %752 = vmatpush1.msra.mxu0 0.0
        %753 = vmatprep.subr.mxu0 0.0
        %754 = vmatpush1.msra.mxu0 0.0
        %755 = vmatprep.subr.mxu0 0.0
        %756 = vmatpush1.msra.mxu0 0.0
        %757 = vmatprep.subr.mxu0 0.0
        %758 = vmatpush1.msra.mxu0 0.0
        %759 = vmatprep.subr.mxu0 0.0
        %760 = vmatpush1.msra.mxu0 0.0
        %761 = vmatprep.subr.mxu0 0.0
        %762 = vmatpush1.msra.mxu0 0.0
        %763 = vmatprep.subr.mxu0 0.0
        %764 = vmatpush1.msra.mxu0 0.0
        %765 = vmatprep.subr.mxu0 0.0
        %766 = vmatpush1.msra.mxu0 0.0
        %767 = vmatprep.subr.mxu0 0.0
        %768 = vmatpush1.msra.mxu0 0.0
        %769 = vmatprep.subr.mxu0 0.0
        %770 = vmatpush1.msra.mxu0 0.0
        %771 = vmatprep.subr.mxu0 0.0
        %772 = vmatpush1.msra.mxu0 0.0
        %773 = vmatprep.subr.mxu0 0.0
        %774 = vmatpush1.msra.mxu0 0.0
        %775 = vmatprep.subr.mxu0 0.0
        %776 = vmatpush1.msra.mxu0 0.0
        %777 = vmatprep.subr.mxu0 0.0
        %778 = vmatpush1.msra.mxu0 0.0
        %779 = vmatprep.subr.mxu0 0.0
        %780 = vmatpush1.msra.mxu0 0.0
        %781 = vmatprep.subr.mxu0 0.0
        %782 = vmatpush1.msra.mxu0 0.0
        %783 = vmatprep.subr.mxu0 0.0
        %784 = vmatpush1.msra.mxu0 0.0
        %785 = vmatprep.subr.mxu0 0.0
        %786 = vmatpush1.msra.mxu0 0.0
        %787 = vmatprep.subr.mxu0 0.0
        %788 = vmatpush1.msra.mxu0 0.0
        %789 = vmatprep.subr.mxu0 0.0
        %790 = vmatpush1.msra.mxu0 0.0
        %791 = vmatprep.subr.mxu0 0.0
        %792 = vmatpush1.msra.mxu0 0.0
        %793 = vmatprep.subr.mxu0 0.0
        %794 = vmatpush1.msra.mxu0 0.0
        %795 = vmatprep.subr.mxu0 0.0
        %796 = vmatpush1.msra.mxu0 0.0
        %797 = vmatprep.subr.mxu0 0.0
        %798 = vmatpush1.msra.mxu0 0.0
        %799 = vmatprep.subr.mxu0 0.0
        %800 = vmatpush1.msra.mxu0 0.0
        %801 = vmatprep.subr.mxu0 0.0
        %802 = vmatpush1.msra.mxu0 0.0
        %803 = vmatprep.subr.mxu0 0.0
        %804 = vmatpush1.msra.mxu0 0.0
        %805 = vmatprep.subr.mxu0 0.0
        %806 = vmatpush1.msra.mxu0 0.0
        %807 = vmatprep.subr.mxu0 0.0
        %808 = vmatpush1.msra.mxu0 0.0
        %809 = vmatprep.subr.mxu0 0.0
        %810 = vmatpush1.msra.mxu0 0.0
        %811 = vmatprep.mubr.f32.mxu0 0.0
        %812 = vmatmul.mubr.f32.gmra.mrb[0].mxu0 %v438
        %v813 = vpop.f32.mrb[0].mxu0
        %v814 = vadd.f32 0.0, %v813
        %v815 = vpop.f32.mrb[0].mxu0
        %816 = vmatprep.mubr.f32.mxu0 0.0
        %817 = vmatmul.mubr.f32.gmra.mrb[0].mxu0 %v441
        %v818 = vpop.f32.mrb[0].mxu0
        %v819 = vadd.f32 0.0, %v818
        %v820 = vpop.f32.mrb[0].mxu0
        %821 = vmatprep.mubr.f32.mxu0 0.0
        %822 = vmatmul.mubr.f32.gmra.mrb[0].mxu0 %v444
        %v823 = vpop.f32.mrb[0].mxu0
        %v824 = vadd.f32 0.0, %v823
        %v825 = vpop.f32.mrb[0].mxu0
        %826 = vmatprep.mubr.f32.mxu0 0.0
        %827 = vmatmul.mubr.f32.gmra.mrb[0].mxu0 %v447
        %v828 = vpop.f32.mrb[0].mxu0
        %v829 = vadd.f32 0.0, %v828
        %v830 = vpop.f32.mrb[0].mxu0
        %831 = vmatprep.mubr.f32.mxu0 0.0
        %832 = vmatmul.mubr.f32.gmra.mrb[0].mxu0 %v450
        %v833 = vpop.f32.mrb[0].mxu0
        %v834 = vadd.f32 0.0, %v833
        %v835 = vpop.f32.mrb[0].mxu0
        %836 = vmatprep.mubr.f32.mxu0 0.0
        %837 = vmatmul.mubr.f32.gmra.mrb[0].mxu0 %v453
        %v838 = vpop.f32.mrb[0].mxu0
        %v839 = vadd.f32 0.0, %v838
        %v840 = vpop.f32.mrb[0].mxu0
        %841 = vmatprep.mubr.f32.mxu0 0.0
        %842 = vmatmul.mubr.f32.gmra.mrb[0].mxu0 %v456
        %v843 = vpop.f32.mrb[0].mxu0
        %v844 = vadd.f32 0.0, %v843
        %v845 = vpop.f32.mrb[0].mxu0
        %846 = vmatprep.mubr.f32.mxu0 0.0
        %847 = vmatmul.mubr.f32.gmra.mrb[0].mxu0 %v459
        %v848 = vpop.f32.mrb[0].mxu0
        %v849 = vadd.f32 0.0, %v848
        %v850 = vpop.f32.mrb[0].mxu0
        %851 = vmatprep.mubr.f32.mxu0 0.0
        %852 = vmatmul.mubr.f32.gmra.mrb[0].mxu0 %v462
        %v853 = vpop.f32.mrb[0].mxu0
        %v854 = vadd.f32 0.0, %v853
        %v855 = vpop.f32.mrb[0].mxu0
        %856 = vmatprep.mubr.f32.mxu0 0.0
        %857 = vmatmul.mubr.f32.gmra.mrb[0].mxu0 %v465
        %v858 = vpop.f32.mrb[0].mxu0
        %v859 = vadd.f32 0.0, %v858
        %v860 = vpop.f32.mrb[0].mxu0
        %861 = vmatprep.mubr.f32.mxu0 0.0
        %862 = vmatmul.mubr.f32.gmra.mrb[0].mxu0 %v468
        %v863 = vpop.f32.mrb[0].mxu0
        %v864 = vadd.f32 0.0, %v863
        %v865 = vpop.f32.mrb[0].mxu0
        %866 = vmatprep.mubr.f32.mxu0 0.0
        %867 = vmatmul.mubr.f32.gmra.mrb[0].mxu0 %v471
        %v868 = vpop.f32.mrb[0].mxu0
        %v869 = vadd.f32 0.0, %v868
        %v870 = vpop.f32.mrb[0].mxu0
        %871 = vmatprep.mubr.f32.mxu0 0.0
        %872 = vmatmul.mubr.f32.gmra.mrb[0].mxu0 %v474
        %v873 = vpop.f32.mrb[0].mxu0
        %v874 = vadd.f32 0.0, %v873
        %v875 = vpop.f32.mrb[0].mxu0
        %876 = vmatprep.mubr.f32.mxu0 0.0
        %877 = vmatmul.mubr.f32.gmra.mrb[0].mxu0 %v477
        %v878 = vpop.f32.mrb[0].mxu0
        %v879 = vadd.f32 0.0, %v878
        %v880 = vpop.f32.mrb[0].mxu0
        %881 = vmatprep.mubr.f32.mxu0 0.0
        %882 = vmatmul.mubr.f32.gmra.mrb[0].mxu0 %v480
        %v883 = vpop.f32.mrb[0].mxu0
        %v884 = vadd.f32 0.0, %v883
        %v885 = vpop.f32.mrb[0].mxu0
        %886 = vmatprep.mubr.f32.mxu0 0.0
        %887 = vmatmul.mubr.f32.gmra.mrb[0].mxu0 %v483
        %v888 = vpop.f32.mrb[0].mxu0
        %v889 = vadd.f32 0.0, %v888
        %v890 = vpop.f32.mrb[0].mxu0
        %891 = vmatprep.mubr.f32.mxu0 0.0
        %892 = vmatmul.mubr.f32.gmra.mrb[0].mxu0 %v486
        %v893 = vpop.f32.mrb[0].mxu0
        %v894 = vadd.f32 0.0, %v893
        %v895 = vpop.f32.mrb[0].mxu0
        %896 = vmatprep.mubr.f32.mxu0 0.0
        %897 = vmatmul.mubr.f32.gmra.mrb[0].mxu0 %v489
        %v898 = vpop.f32.mrb[0].mxu0
        %v899 = vadd.f32 0.0, %v898
        %v900 = vpop.f32.mrb[0].mxu0
        %901 = vmatprep.mubr.f32.mxu0 0.0
        %902 = vmatmul.mubr.f32.gmra.mrb[0].mxu0 %v492
        %v903 = vpop.f32.mrb[0].mxu0
        %v904 = vadd.f32 0.0, %v903
        %v905 = vpop.f32.mrb[0].mxu0
        %906 = vmatprep.mubr.f32.mxu0 0.0
        %907 = vmatmul.mubr.f32.gmra.mrb[0].mxu0 %v495
        %v908 = vpop.f32.mrb[0].mxu0
        %v909 = vadd.f32 0.0, %v908
        %v910 = vpop.f32.mrb[0].mxu0
        %911 = vmatprep.mubr.f32.mxu0 0.0
        %912 = vmatmul.mubr.f32.gmra.mrb[0].mxu0 %v498
        %v913 = vpop.f32.mrb[0].mxu0
        %v914 = vadd.f32 0.0, %v913
        %v915 = vpop.f32.mrb[0].mxu0
        %916 = vmatprep.mubr.f32.mxu0 0.0
        %917 = vmatmul.mubr.f32.gmra.mrb[0].mxu0 %v501
        %v918 = vpop.f32.mrb[0].mxu0
        %v919 = vadd.f32 0.0, %v918
        %v920 = vpop.f32.mrb[0].mxu0
        %921 = vmatprep.mubr.f32.mxu0 0.0
        %922 = vmatmul.mubr.f32.gmra.mrb[0].mxu0 %v504
        %v923 = vpop.f32.mrb[0].mxu0
        %v924 = vadd.f32 0.0, %v923
        %v925 = vpop.f32.mrb[0].mxu0
        %926 = vmatprep.mubr.f32.mxu0 0.0
        %927 = vmatmul.mubr.f32.gmra.mrb[0].mxu0 %v507
        %v928 = vpop.f32.mrb[0].mxu0
        %v929 = vadd.f32 0.0, %v928
        %v930 = vpop.f32.mrb[0].mxu0
        %931 = vmatprep.mubr.f32.mxu0 0.0
        %932 = vmatmul.mubr.f32.gmra.mrb[0].mxu0 %v510
        %v933 = vpop.f32.mrb[0].mxu0
        %v934 = vadd.f32 0.0, %v933
        %v935 = vpop.f32.mrb[0].mxu0
        %936 = vmatprep.mubr.f32.mxu0 0.0
        %937 = vmatmul.mubr.f32.gmra.mrb[0].mxu0 %v513
        %v938 = vpop.f32.mrb[0].mxu0
        %v939 = vadd.f32 0.0, %v938
        %v940 = vpop.f32.mrb[0].mxu0
        %941 = vmatprep.mubr.f32.mxu0 0.0
        %942 = vmatmul.mubr.f32.gmra.mrb[0].mxu0 %v516
        %v943 = vpop.f32.mrb[0].mxu0
        %v944 = vadd.f32 0.0, %v943
        %v945 = vpop.f32.mrb[0].mxu0
        %946 = vmatprep.mubr.f32.mxu0 0.0
        %947 = vmatmul.mubr.f32.gmra.mrb[0].mxu0 %v519
        %v948 = vpop.f32.mrb[0].mxu0
        %v949 = vadd.f32 0.0, %v948
        %v950 = vpop.f32.mrb[0].mxu0
        %951 = vmatprep.mubr.f32.mxu0 0.0
        %952 = vmatmul.mubr.f32.gmra.mrb[0].mxu0 %v522
        %v953 = vpop.f32.mrb[0].mxu0
        %v954 = vadd.f32 0.0, %v953
        %v955 = vpop.f32.mrb[0].mxu0
        %956 = vmatprep.mubr.f32.mxu0 0.0
        %957 = vmatmul.mubr.f32.gmra.mrb[0].mxu0 %v525
        %v958 = vpop.f32.mrb[0].mxu0
        %v959 = vadd.f32 0.0, %v958
        %v960 = vpop.f32.mrb[0].mxu0
        %961 = vmatprep.mubr.f32.mxu0 0.0
        %962 = vmatmul.mubr.f32.gmra.mrb[0].mxu0 %v528
        %v963 = vpop.f32.mrb[0].mxu0
        %v964 = vadd.f32 0.0, %v963
        %v965 = vpop.f32.mrb[0].mxu0
        %966 = vmatprep.mubr.f32.mxu0 0.0
        %967 = vmatmul.mubr.f32.gmra.mrb[0].mxu0 %v531
        %v968 = vpop.f32.mrb[0].mxu0
        %v969 = vadd.f32 0.0, %v968
        %v970 = vpop.f32.mrb[0].mxu0
        %971 = vmatprep.mubr.f32.mxu0 0.0
        %972 = vmatmul.mubr.f32.gmra.mrb[0].mxu0 %v534
        %v973 = vpop.f32.mrb[0].mxu0
        %v974 = vadd.f32 0.0, %v973
        %v975 = vpop.f32.mrb[0].mxu0
        %976 = vmatprep.mubr.f32.mxu0 0.0
        %977 = vmatmul.mubr.f32.gmra.mrb[0].mxu0 %v537
        %v978 = vpop.f32.mrb[0].mxu0
        %v979 = vadd.f32 0.0, %v978
        %v980 = vpop.f32.mrb[0].mxu0
        %981 = vmatprep.mubr.f32.mxu0 0.0
        %982 = vmatmul.mubr.f32.gmra.mrb[0].mxu0 %v540
        %v983 = vpop.f32.mrb[0].mxu0
        %v984 = vadd.f32 0.0, %v983
        %v985 = vpop.f32.mrb[0].mxu0
        %986 = vmatprep.mubr.f32.mxu0 0.0
        %987 = vmatmul.mubr.f32.gmra.mrb[0].mxu0 %v543
        %v988 = vpop.f32.mrb[0].mxu0
        %v989 = vadd.f32 0.0, %v988
        %v990 = vpop.f32.mrb[0].mxu0
        %991 = vmatprep.mubr.f32.mxu0 0.0
        %992 = vmatmul.mubr.f32.gmra.mrb[0].mxu0 %v546
        %v993 = vpop.f32.mrb[0].mxu0
        %v994 = vadd.f32 0.0, %v993
        %v995 = vpop.f32.mrb[0].mxu0
        %996 = vmatprep.mubr.f32.mxu0 0.0
        %997 = vmatmul.mubr.f32.gmra.mrb[0].mxu0 %v549
        %v998 = vpop.f32.mrb[0].mxu0
        %v999 = vadd.f32 0.0, %v998
        %v1000 = vpop.f32.mrb[0].mxu0
        %1001 = vmatprep.mubr.f32.mxu0 0.0
        %1002 = vmatmul.mubr.f32.gmra.mrb[0].mxu0 %v552
        %v1003 = vpop.f32.mrb[0].mxu0
        %v1004 = vadd.f32 0.0, %v1003
        %v1005 = vpop.f32.mrb[0].mxu0
        %1006 = vmatprep.mubr.f32.mxu0 0.0
        %1007 = vmatmul.mubr.f32.gmra.mrb[0].mxu0 %v555
        %v1008 = vpop.f32.mrb[0].mxu0
        %v1009 = vadd.f32 0.0, %v1008
        %v1010 = vpop.f32.mrb[0].mxu0
        %1011 = vmatprep.mubr.f32.mxu0 0.0
        %1012 = vmatmul.mubr.f32.gmra.mrb[0].mxu0 %v558
        %v1013 = vpop.f32.mrb[0].mxu0
        %v1014 = vadd.f32 0.0, %v1013
        %v1015 = vpop.f32.mrb[0].mxu0
        %1016 = vmatprep.mubr.f32.mxu0 0.0
        %1017 = vmatmul.mubr.f32.gmra.mrb[0].mxu0 %v561
        %v1018 = vpop.f32.mrb[0].mxu0
        %v1019 = vadd.f32 0.0, %v1018
        %v1020 = vpop.f32.mrb[0].mxu0
        %1021 = vmatprep.mubr.f32.mxu0 0.0
        %1022 = vmatmul.mubr.f32.gmra.mrb[0].mxu0 %v564
        %v1023 = vpop.f32.mrb[0].mxu0
        %v1024 = vadd.f32 0.0, %v1023
        %v1025 = vpop.f32.mrb[0].mxu0
        %1026 = vmatprep.mubr.f32.mxu0 0.0
        %1027 = vmatmul.mubr.f32.gmra.mrb[0].mxu0 %v567
        %v1028 = vpop.f32.mrb[0].mxu0
        %v1029 = vadd.f32 0.0, %v1028
        %v1030 = vpop.f32.mrb[0].mxu0
        %1031 = vmatprep.mubr.f32.mxu0 0.0
        %1032 = vmatmul.mubr.f32.gmra.mrb[0].mxu0 %v570
        %v1033 = vpop.f32.mrb[0].mxu0
        %v1034 = vadd.f32 0.0, %v1033
        %v1035 = vpop.f32.mrb[0].mxu0
        %1036 = vmatprep.mubr.f32.mxu0 0.0
        %1037 = vmatmul.mubr.f32.gmra.mrb[0].mxu0 %v573
        %v1038 = vpop.f32.mrb[0].mxu0
        %v1039 = vadd.f32 0.0, %v1038
        %v1040 = vpop.f32.mrb[0].mxu0
        %1041 = vmatprep.mubr.f32.mxu0 0.0
        %1042 = vmatmul.mubr.f32.gmra.mrb[0].mxu0 %v576
        %v1043 = vpop.f32.mrb[0].mxu0
        %v1044 = vadd.f32 0.0, %v1043
        %v1045 = vpop.f32.mrb[0].mxu0
        %1046 = vmatprep.mubr.f32.mxu0 0.0
        %1047 = vmatmul.mubr.f32.gmra.mrb[0].mxu0 %v579
        %v1048 = vpop.f32.mrb[0].mxu0
        %v1049 = vadd.f32 0.0, %v1048
        %v1050 = vpop.f32.mrb[0].mxu0
        %1051 = vmatprep.mubr.f32.mxu0 0.0
        %1052 = vmatmul.mubr.f32.gmra.mrb[0].mxu0 %v582
        %v1053 = vpop.f32.mrb[0].mxu0
        %v1054 = vadd.f32 0.0, %v1053
        %v1055 = vpop.f32.mrb[0].mxu0
        %1056 = vmatprep.mubr.f32.mxu0 0.0
        %1057 = vmatmul.mubr.f32.gmra.mrb[0].mxu0 %v585
        %v1058 = vpop.f32.mrb[0].mxu0
        %v1059 = vadd.f32 0.0, %v1058
        %v1060 = vpop.f32.mrb[0].mxu0
        %1061 = vmatprep.mubr.f32.mxu0 0.0
        %1062 = vmatmul.mubr.f32.gmra.mrb[0].mxu0 %v588
        %v1063 = vpop.f32.mrb[0].mxu0
        %v1064 = vadd.f32 0.0, %v1063
        %v1065 = vpop.f32.mrb[0].mxu0
        %1066 = vmatprep.mubr.f32.mxu0 0.0
        %1067 = vmatmul.mubr.f32.gmra.mrb[0].mxu0 %v591
        %v1068 = vpop.f32.mrb[0].mxu0
        %v1069 = vadd.f32 0.0, %v1068
        %v1070 = vpop.f32.mrb[0].mxu0
        %1071 = vmatprep.mubr.f32.mxu0 0.0
        %1072 = vmatmul.mubr.f32.gmra.mrb[0].mxu0 %v594
        %v1073 = vpop.f32.mrb[0].mxu0
        %v1074 = vadd.f32 0.0, %v1073
        %v1075 = vpop.f32.mrb[0].mxu0
        %1076 = vmatprep.mubr.f32.mxu0 0.0
        %1077 = vmatmul.mubr.f32.gmra.mrb[0].mxu0 %v597
        %v1078 = vpop.f32.mrb[0].mxu0
        %v1079 = vadd.f32 0.0, %v1078
        %v1080 = vpop.f32.mrb[0].mxu0
        %1081 = vmatprep.mubr.f32.mxu0 0.0
        %1082 = vmatmul.mubr.f32.gmra.mrb[0].mxu0 %v600
        %v1083 = vpop.f32.mrb[0].mxu0
        %v1084 = vadd.f32 0.0, %v1083
        %v1085 = vpop.f32.mrb[0].mxu0
        %1086 = vmatprep.mubr.f32.mxu0 0.0
        %1087 = vmatmul.mubr.f32.gmra.mrb[0].mxu0 %v603
        %v1088 = vpop.f32.mrb[0].mxu0
        %v1089 = vadd.f32 0.0, %v1088
        %v1090 = vpop.f32.mrb[0].mxu0
        %1091 = vmatprep.mubr.f32.mxu0 0.0
        %1092 = vmatmul.mubr.f32.gmra.mrb[0].mxu0 %v606
        %v1093 = vpop.f32.mrb[0].mxu0
        %v1094 = vadd.f32 0.0, %v1093
        %v1095 = vpop.f32.mrb[0].mxu0
        %1096 = vmatprep.mubr.f32.mxu0 0.0
        %1097 = vmatmul.mubr.f32.gmra.mrb[0].mxu0 %v609
        %v1098 = vpop.f32.mrb[0].mxu0
        %v1099 = vadd.f32 0.0, %v1098
        %v1100 = vpop.f32.mrb[0].mxu0
        %1101 = vmatprep.mubr.f32.mxu0 0.0
        %1102 = vmatmul.mubr.f32.gmra.mrb[0].mxu0 %v612
        %v1103 = vpop.f32.mrb[0].mxu0
        %v1104 = vadd.f32 0.0, %v1103
        %v1105 = vpop.f32.mrb[0].mxu0
        %1106 = vmatprep.mubr.f32.mxu0 0.0
        %1107 = vmatmul.mubr.f32.gmra.mrb[0].mxu0 %v615
        %v1108 = vpop.f32.mrb[0].mxu0
        %v1109 = vadd.f32 0.0, %v1108
        %v1110 = vpop.f32.mrb[0].mxu0
        %1111 = vmatprep.mubr.f32.mxu0 0.0
        %1112 = vmatmul.mubr.f32.gmra.mrb[0].mxu0 %v618
        %v1113 = vpop.f32.mrb[0].mxu0
        %v1114 = vadd.f32 0.0, %v1113
        %v1115 = vpop.f32.mrb[0].mxu0
        %1116 = vmatprep.mubr.f32.mxu0 0.0
        %1117 = vmatmul.mubr.f32.gmra.mrb[0].mxu0 %v621
        %v1118 = vpop.f32.mrb[0].mxu0
        %v1119 = vadd.f32 0.0, %v1118
        %v1120 = vpop.f32.mrb[0].mxu0
        %1121 = vmatprep.mubr.f32.mxu0 0.0
        %1122 = vmatmul.mubr.f32.gmra.mrb[0].mxu0 %v624
        %v1123 = vpop.f32.mrb[0].mxu0
        %v1124 = vadd.f32 0.0, %v1123
        %v1125 = vpop.f32.mrb[0].mxu0
        %1126 = vmatprep.mubr.f32.mxu0 0.0
        %1127 = vmatmul.mubr.f32.gmra.mrb[0].mxu0 %v627
        %v1128 = vpop.f32.mrb[0].mxu0
        %v1129 = vadd.f32 0.0, %v1128
        %v1130 = vpop.f32.mrb[0].mxu0
        %1131 = vmatprep.mubr.f32.mxu0 0.0
        %1132 = vmatmul.mubr.f32.gmra.mrb[0].mxu0 %v630
        %v1133 = vpop.f32.mrb[0].mxu0
        %v1134 = vadd.f32 0.0, %v1133
        %v1135 = vpop.f32.mrb[0].mxu0
        %1136 = vmatprep.mubr.f32.mxu0 0.0
        %1137 = vmatmul.mubr.f32.gmra.mrb[0].mxu0 %v633
        %v1138 = vpop.f32.mrb[0].mxu0
        %v1139 = vadd.f32 0.0, %v1138
        %v1140 = vpop.f32.mrb[0].mxu0
        %1141 = vmatprep.mubr.f32.mxu0 0.0
        %1142 = vmatmul.mubr.f32.gmra.mrb[0].mxu0 %v636
        %v1143 = vpop.f32.mrb[0].mxu0
        %v1144 = vadd.f32 0.0, %v1143
        %v1145 = vpop.f32.mrb[0].mxu0
        %1146 = vmatprep.mubr.f32.mxu0 0.0
        %1147 = vmatmul.mubr.f32.gmra.mrb[0].mxu0 %v639
        %v1148 = vpop.f32.mrb[0].mxu0
        %v1149 = vadd.f32 0.0, %v1148
        %v1150 = vpop.f32.mrb[0].mxu0
        %1151 = vmatprep.mubr.f32.mxu0 0.0
        %1152 = vmatmul.mubr.f32.gmra.mrb[0].mxu0 %v642
        %v1153 = vpop.f32.mrb[0].mxu0
        %v1154 = vadd.f32 0.0, %v1153
        %v1155 = vpop.f32.mrb[0].mxu0
        %1156 = vmatprep.mubr.f32.mxu0 0.0
        %1157 = vmatmul.mubr.f32.gmra.mrb[0].mxu0 %v645
        %v1158 = vpop.f32.mrb[0].mxu0
        %v1159 = vadd.f32 0.0, %v1158
        %v1160 = vpop.f32.mrb[0].mxu0
        %1161 = vmatprep.mubr.f32.mxu0 0.0
        %1162 = vmatmul.mubr.f32.gmra.mrb[0].mxu0 %v648
        %v1163 = vpop.f32.mrb[0].mxu0
        %v1164 = vadd.f32 0.0, %v1163
        %v1165 = vpop.f32.mrb[0].mxu0
        %1166 = vmatprep.mubr.f32.mxu0 0.0
        %1167 = vmatmul.mubr.f32.gmra.mrb[0].mxu0 %v651
        %v1168 = vpop.f32.mrb[0].mxu0
        %v1169 = vadd.f32 0.0, %v1168
        %v1170 = vpop.f32.mrb[0].mxu0
        %1171 = vmatprep.mubr.f32.mxu0 0.0
        %1172 = vmatmul.mubr.f32.gmra.mrb[0].mxu0 %v654
        %v1173 = vpop.f32.mrb[0].mxu0
        %v1174 = vadd.f32 0.0, %v1173
        %v1175 = vpop.f32.mrb[0].mxu0
        %1176 = vmatprep.mubr.f32.mxu0 0.0
        %1177 = vmatmul.mubr.f32.gmra.mrb[0].mxu0 %v657
        %v1178 = vpop.f32.mrb[0].mxu0
        %v1179 = vadd.f32 0.0, %v1178
        %v1180 = vpop.f32.mrb[0].mxu0
        %1181 = vmatprep.mubr.f32.mxu0 0.0
        %1182 = vmatmul.mubr.f32.gmra.mrb[0].mxu0 %v660
        %v1183 = vpop.f32.mrb[0].mxu0
        %v1184 = vadd.f32 0.0, %v1183
        %v1185 = vpop.f32.mrb[0].mxu0
        %1186 = vmatprep.mubr.f32.mxu0 0.0
        %1187 = vmatmul.mubr.f32.gmra.mrb[0].mxu0 %v663
        %v1188 = vpop.f32.mrb[0].mxu0
        %v1189 = vadd.f32 0.0, %v1188
        %v1190 = vpop.f32.mrb[0].mxu0
        %1191 = vmatprep.mubr.f32.mxu0 0.0
        %1192 = vmatmul.mubr.f32.gmra.mrb[0].mxu0 %v666
        %v1193 = vpop.f32.mrb[0].mxu0
        %v1194 = vadd.f32 0.0, %v1193
        %v1195 = vpop.f32.mrb[0].mxu0
        %1196 = vmatprep.mubr.f32.mxu0 0.0
        %1197 = vmatmul.mubr.f32.gmra.mrb[0].mxu0 %v669
        %v1198 = vpop.f32.mrb[0].mxu0
        %v1199 = vadd.f32 0.0, %v1198
        %v1200 = vpop.f32.mrb[0].mxu0
        %1201 = vmatprep.mubr.f32.mxu0 0.0
        %1202 = vmatmul.mubr.f32.gmra.mrb[0].mxu0 %v672
        %v1203 = vpop.f32.mrb[0].mxu0
        %v1204 = vadd.f32 0.0, %v1203
        %v1205 = vpop.f32.mrb[0].mxu0
        %1206 = vmatprep.mubr.f32.mxu0 0.0
        %1207 = vmatmul.mubr.f32.gmra.mrb[0].mxu0 %v675
        %v1208 = vpop.f32.mrb[0].mxu0
        %v1209 = vadd.f32 0.0, %v1208
        %v1210 = vpop.f32.mrb[0].mxu0
        %1211 = vmatprep.mubr.f32.mxu0 0.0
        %1212 = vmatmul.mubr.f32.gmra.mrb[0].mxu0 %v678
        %v1213 = vpop.f32.mrb[0].mxu0
        %v1214 = vadd.f32 0.0, %v1213
        %v1215 = vpop.f32.mrb[0].mxu0
        %1216 = vmatprep.mubr.f32.mxu0 0.0
        %1217 = vmatmul.mubr.f32.gmra.mrb[0].mxu0 %v681
        %v1218 = vpop.f32.mrb[0].mxu0
        %v1219 = vadd.f32 0.0, %v1218
        %v1220 = vpop.f32.mrb[0].mxu0
        %1221 = vmatprep.mubr.f32.mxu0 0.0
        %1222 = vmatmul.mubr.f32.gmra.mrb[0].mxu0 %v684
        %v1223 = vpop.f32.mrb[0].mxu0
        %v1224 = vadd.f32 0.0, %v1223
        %v1225 = vpop.f32.mrb[0].mxu0
        %1226 = vmatprep.mubr.f32.mxu0 0.0
        %1227 = vmatmul.mubr.f32.gmra.mrb[0].mxu0 %v687
        %v1228 = vpop.f32.mrb[0].mxu0
        %v1229 = vadd.f32 0.0, %v1228
        %v1230 = vpop.f32.mrb[0].mxu0
        %1231 = vmatprep.mubr.f32.mxu0 0.0
        %1232 = vmatmul.mubr.f32.gmra.mrb[0].mxu0 %v690
        %v1233 = vpop.f32.mrb[0].mxu0
        %v1234 = vadd.f32 0.0, %v1233
        %v1235 = vpop.f32.mrb[0].mxu0
        %1236 = vmatprep.mubr.f32.mxu0 0.0
        %1237 = vmatmul.mubr.f32.gmra.mrb[0].mxu0 %v693
        %v1238 = vpop.f32.mrb[0].mxu0
        %v1239 = vadd.f32 0.0, %v1238
        %v1240 = vpop.f32.mrb[0].mxu0
        %1241 = vmatprep.mubr.f32.mxu0 0.0
        %1242 = vmatmul.mubr.f32.gmra.mrb[0].mxu0 %v696
        %v1243 = vpop.f32.mrb[0].mxu0
        %v1244 = vadd.f32 0.0, %v1243
        %v1245 = vpop.f32.mrb[0].mxu0
        %1246 = vmatprep.mubr.f32.mxu0 0.0
        %1247 = vmatmul.mubr.f32.gmra.mrb[0].mxu0 %v699
        %v1248 = vpop.f32.mrb[0].mxu0
        %v1249 = vadd.f32 0.0, %v1248
        %v1250 = vpop.f32.mrb[0].mxu0
        %1251 = vmatprep.mubr.f32.mxu0 0.0
        %1252 = vmatmul.mubr.f32.gmra.mrb[0].mxu0 %v702
        %v1253 = vpop.f32.mrb[0].mxu0
        %v1254 = vadd.f32 0.0, %v1253
        %v1255 = vpop.f32.mrb[0].mxu0
        %1256 = vmatprep.mubr.f32.mxu0 0.0
        %1257 = vmatmul.mubr.f32.gmra.mrb[0].mxu0 %v705
        %v1258 = vpop.f32.mrb[0].mxu0
        %v1259 = vadd.f32 0.0, %v1258
        %v1260 = vpop.f32.mrb[0].mxu0
        %1261 = vmatprep.mubr.f32.mxu0 0.0
        %1262 = vmatmul.mubr.f32.gmra.mrb[0].mxu0 %v708
        %v1263 = vpop.f32.mrb[0].mxu0
        %v1264 = vadd.f32 0.0, %v1263
        %v1265 = vpop.f32.mrb[0].mxu0
        %1266 = vmatprep.mubr.f32.mxu0 0.0
        %1267 = vmatmul.mubr.f32.gmra.mrb[0].mxu0 %v711
        %v1268 = vpop.f32.mrb[0].mxu0
        %v1269 = vadd.f32 0.0, %v1268
        %v1270 = vpop.f32.mrb[0].mxu0
        %1271 = vmatprep.mubr.f32.mxu0 0.0
        %1272 = vmatmul.mubr.f32.gmra.mrb[0].mxu0 %v714
        %v1273 = vpop.f32.mrb[0].mxu0
        %v1274 = vadd.f32 0.0, %v1273
        %v1275 = vpop.f32.mrb[0].mxu0
        %1276 = vmatprep.mubr.f32.mxu0 0.0
        %1277 = vmatmul.mubr.f32.gmra.mrb[0].mxu0 %v717
        %v1278 = vpop.f32.mrb[0].mxu0
        %v1279 = vadd.f32 0.0, %v1278
        %v1280 = vpop.f32.mrb[0].mxu0
        %1281 = vmatprep.mubr.f32.mxu0 0.0
        %1282 = vmatmul.mubr.f32.gmra.mrb[0].mxu0 %v720
        %v1283 = vpop.f32.mrb[0].mxu0
        %v1284 = vadd.f32 0.0, %v1283
        %v1285 = vpop.f32.mrb[0].mxu0
        %1286 = vmatprep.mubr.f32.mxu0 0.0
        %1287 = vmatmul.mubr.f32.gmra.mrb[0].mxu0 %v723
        %v1288 = vpop.f32.mrb[0].mxu0
        %v1289 = vadd.f32 0.0, %v1288
        %v1290 = vpop.f32.mrb[0].mxu0
        %1291 = vmatprep.mubr.f32.mxu0 0.0
        %1292 = vmatmul.mubr.f32.gmra.mrb[0].mxu0 %v726
        %v1293 = vpop.f32.mrb[0].mxu0
        %v1294 = vadd.f32 0.0, %v1293
        %v1295 = vpop.f32.mrb[0].mxu0
        %1296 = vmatprep.mubr.f32.mxu0 0.0
        %1297 = vmatmul.mubr.f32.gmra.mrb[0].mxu0 %v729
        %v1298 = vpop.f32.mrb[0].mxu0
        %v1299 = vadd.f32 0.0, %v1298
        %v1300 = vpop.f32.mrb[0].mxu0
        %1301 = vmatprep.mubr.f32.mxu0 0.0
        %1302 = vmatmul.mubr.f32.gmra.mrb[0].mxu0 %v732
        %v1303 = vpop.f32.mrb[0].mxu0
        %v1304 = vadd.f32 0.0, %v1303
        %v1305 = vpop.f32.mrb[0].mxu0
        %1306 = vmatprep.mubr.f32.mxu0 0.0
        %1307 = vmatmul.mubr.f32.gmra.mrb[0].mxu0 %v735
        %v1308 = vpop.f32.mrb[0].mxu0
        %v1309 = vadd.f32 0.0, %v1308
        %v1310 = vpop.f32.mrb[0].mxu0
        %1311 = vmatprep.mubr.f32.mxu0 0.0
        %1312 = vmatmul.mubr.f32.gmra.mrb[0].mxu0 %v738
        %v1313 = vpop.f32.mrb[0].mxu0
        %v1314 = vadd.f32 0.0, %v1313
        %v1315 = vpop.f32.mrb[0].mxu0
        %1316 = vmatprep.mubr.f32.mxu0 0.0
        %1317 = vmatmul.mubr.f32.gmra.mrb[0].mxu0 %v741
        %v1318 = vpop.f32.mrb[0].mxu0
        %v1319 = vadd.f32 0.0, %v1318
        %v1320 = vpop.f32.mrb[0].mxu0
        %1321 = vdwg.mxu0
        %vm1322 = vcmask 130048
        %1323 = vst.msk [vmem:[#allocation2] sm:$0xff] %vm1322, %v814
        %1324 = vst.msk [vmem:[#allocation2 + $0x8] sm:$0xff] %vm1322, %v819
        %1325 = vst.msk [vmem:[#allocation2 + $0x10] sm:$0xff] %vm1322, %v824
        %1326 = vst.msk [vmem:[#allocation2 + $0x18] sm:$0xff] %vm1322, %v829
        %1327 = vst.msk [vmem:[#allocation2 + $0x20] sm:$0xff] %vm1322, %v834
        %1328 = vst.msk [vmem:[#allocation2 + $0x28] sm:$0xff] %vm1322, %v839
        %1329 = vst.msk [vmem:[#allocation2 + $0x30] sm:$0xff] %vm1322, %v844
        %1330 = vst.msk [vmem:[#allocation2 + $0x38] sm:$0xff] %vm1322, %v849
        %1331 = vst.msk [vmem:[#allocation2 + $0x40] sm:$0xff] %vm1322, %v854
        %1332 = vst.msk [vmem:[#allocation2 + $0x48] sm:$0xff] %vm1322, %v859
        %1333 = vst.msk [vmem:[#allocation2 + $0x50] sm:$0xff] %vm1322, %v864
        %1334 = vst.msk [vmem:[#allocation2 + $0x58] sm:$0xff] %vm1322, %v869
        %1335 = vst.msk [vmem:[#allocation2 + $0x60] sm:$0xff] %vm1322, %v874
        %1336 = vst.msk [vmem:[#allocation2 + $0x68] sm:$0xff] %vm1322, %v879
        %1337 = vst.msk [vmem:[#allocation2 + $0x70] sm:$0xff] %vm1322, %v884
        %1338 = vst.msk [vmem:[#allocation2 + $0x78] sm:$0xff] %vm1322, %v889
        %1339 = vst.msk [vmem:[#allocation2 + $0x80] sm:$0xff] %vm1322, %v894
        %1340 = vst.msk [vmem:[#allocation2 + $0x88] sm:$0xff] %vm1322, %v899
        %1341 = vst.msk [vmem:[#allocation2 + $0x90] sm:$0xff] %vm1322, %v904
        %1342 = vst.msk [vmem:[#allocation2 + $0x98] sm:$0xff] %vm1322, %v909
        %1343 = vst.msk [vmem:[#allocation2 + $0xa0] sm:$0xff] %vm1322, %v914
        %1344 = vst.msk [vmem:[#allocation2 + $0xa8] sm:$0xff] %vm1322, %v919
        %1345 = vst.msk [vmem:[#allocation2 + $0xb0] sm:$0xff] %vm1322, %v924
        %1346 = vst.msk [vmem:[#allocation2 + $0xb8] sm:$0xff] %vm1322, %v929
        %1347 = vst.msk [vmem:[#allocation2 + $0xc0] sm:$0xff] %vm1322, %v934
        %1348 = vst.msk [vmem:[#allocation2 + $0xc8] sm:$0xff] %vm1322, %v939
        %1349 = vst.msk [vmem:[#allocation2 + $0xd0] sm:$0xff] %vm1322, %v944
        %1350 = vst.msk [vmem:[#allocation2 + $0xd8] sm:$0xff] %vm1322, %v949
        %1351 = vst.msk [vmem:[#allocation2 + $0xe0] sm:$0xff] %vm1322, %v954
        %1352 = vst.msk [vmem:[#allocation2 + $0xe8] sm:$0xff] %vm1322, %v959
        %1353 = vst.msk [vmem:[#allocation2 + $0xf0] sm:$0xff] %vm1322, %v964
        %1354 = vst.msk [vmem:[#allocation2 + $0xf8] sm:$0xff] %vm1322, %v969
        %1355 = vst.msk [vmem:[#allocation2 + $0x100] sm:$0xff] %vm1322, %v974
        %1356 = vst.msk [vmem:[#allocation2 + $0x108] sm:$0xff] %vm1322, %v979
        %1357 = vst.msk [vmem:[#allocation2 + $0x110] sm:$0xff] %vm1322, %v984
        %1358 = vst.msk [vmem:[#allocation2 + $0x118] sm:$0xff] %vm1322, %v989
        %1359 = vst.msk [vmem:[#allocation2 + $0x120] sm:$0xff] %vm1322, %v994
        %1360 = vst.msk [vmem:[#allocation2 + $0x128] sm:$0xff] %vm1322, %v999
        %1361 = vst.msk [vmem:[#allocation2 + $0x130] sm:$0xff] %vm1322, %v1004
        %1362 = vst.msk [vmem:[#allocation2 + $0x138] sm:$0xff] %vm1322, %v1009
        %1363 = vst.msk [vmem:[#allocation2 + $0x140] sm:$0xff] %vm1322, %v1014
        %1364 = vst.msk [vmem:[#allocation2 + $0x148] sm:$0xff] %vm1322, %v1019
        %1365 = vst.msk [vmem:[#allocation2 + $0x150] sm:$0xff] %vm1322, %v1024
        %1366 = vst.msk [vmem:[#allocation2 + $0x158] sm:$0xff] %vm1322, %v1029
        %1367 = vst.msk [vmem:[#allocation2 + $0x160] sm:$0xff] %vm1322, %v1034
        %1368 = vst.msk [vmem:[#allocation2 + $0x168] sm:$0xff] %vm1322, %v1039
        %1369 = vst.msk [vmem:[#allocation2 + $0x170] sm:$0xff] %vm1322, %v1044
        %1370 = vst.msk [vmem:[#allocation2 + $0x178] sm:$0xff] %vm1322, %v1049
        %1371 = vst.msk [vmem:[#allocation2 + $0x180] sm:$0xff] %vm1322, %v1054
        %1372 = vst.msk [vmem:[#allocation2 + $0x188] sm:$0xff] %vm1322, %v1059
        %1373 = vst.msk [vmem:[#allocation2 + $0x190] sm:$0xff] %vm1322, %v1064
        %1374 = vst.msk [vmem:[#allocation2 + $0x198] sm:$0xff] %vm1322, %v1069
        %1375 = vst.msk [vmem:[#allocation2 + $0x1a0] sm:$0xff] %vm1322, %v1074
        %1376 = vst.msk [vmem:[#allocation2 + $0x1a8] sm:$0xff] %vm1322, %v1079
        %1377 = vst.msk [vmem:[#allocation2 + $0x1b0] sm:$0xff] %vm1322, %v1084
        %1378 = vst.msk [vmem:[#allocation2 + $0x1b8] sm:$0xff] %vm1322, %v1089
        %1379 = vst.msk [vmem:[#allocation2 + $0x1c0] sm:$0xff] %vm1322, %v1094
        %1380 = vst.msk [vmem:[#allocation2 + $0x1c8] sm:$0xff] %vm1322, %v1099
        %1381 = vst.msk [vmem:[#allocation2 + $0x1d0] sm:$0xff] %vm1322, %v1104
        %1382 = vst.msk [vmem:[#allocation2 + $0x1d8] sm:$0xff] %vm1322, %v1109
        %1383 = vst.msk [vmem:[#allocation2 + $0x1e0] sm:$0xff] %vm1322, %v1114
        %1384 = vst.msk [vmem:[#allocation2 + $0x1e8] sm:$0xff] %vm1322, %v1119
        %1385 = vst.msk [vmem:[#allocation2 + $0x1f0] sm:$0xff] %vm1322, %v1124
        %1386 = vst.msk [vmem:[#allocation2 + $0x1f8] sm:$0xff] %vm1322, %v1129
        %1387 = vst.msk [vmem:[#allocation2 + $0x200] sm:$0xff] %vm1322, %v1134
        %1388 = vst.msk [vmem:[#allocation2 + $0x208] sm:$0xff] %vm1322, %v1139
        %1389 = vst.msk [vmem:[#allocation2 + $0x210] sm:$0xff] %vm1322, %v1144
        %1390 = vst.msk [vmem:[#allocation2 + $0x218] sm:$0xff] %vm1322, %v1149
        %1391 = vst.msk [vmem:[#allocation2 + $0x220] sm:$0xff] %vm1322, %v1154
        %1392 = vst.msk [vmem:[#allocation2 + $0x228] sm:$0xff] %vm1322, %v1159
        %1393 = vst.msk [vmem:[#allocation2 + $0x230] sm:$0xff] %vm1322, %v1164
        %1394 = vst.msk [vmem:[#allocation2 + $0x238] sm:$0xff] %vm1322, %v1169
        %1395 = vst.msk [vmem:[#allocation2 + $0x240] sm:$0xff] %vm1322, %v1174
        %1396 = vst.msk [vmem:[#allocation2 + $0x248] sm:$0xff] %vm1322, %v1179
        %1397 = vst.msk [vmem:[#allocation2 + $0x250] sm:$0xff] %vm1322, %v1184
        %1398 = vst.msk [vmem:[#allocation2 + $0x258] sm:$0xff] %vm1322, %v1189
        %1399 = vst.msk [vmem:[#allocation2 + $0x260] sm:$0xff] %vm1322, %v1194
        %1400 = vst.msk [vmem:[#allocation2 + $0x268] sm:$0xff] %vm1322, %v1199
        %1401 = vst.msk [vmem:[#allocation2 + $0x270] sm:$0xff] %vm1322, %v1204
        %1402 = vst.msk [vmem:[#allocation2 + $0x278] sm:$0xff] %vm1322, %v1209
        %1403 = vst.msk [vmem:[#allocation2 + $0x280] sm:$0xff] %vm1322, %v1214
        %1404 = vst.msk [vmem:[#allocation2 + $0x288] sm:$0xff] %vm1322, %v1219
        %1405 = vst.msk [vmem:[#allocation2 + $0x290] sm:$0xff] %vm1322, %v1224
        %1406 = vst.msk [vmem:[#allocation2 + $0x298] sm:$0xff] %vm1322, %v1229
        %1407 = vst.msk [vmem:[#allocation2 + $0x2a0] sm:$0xff] %vm1322, %v1234
        %1408 = vst.msk [vmem:[#allocation2 + $0x2a8] sm:$0xff] %vm1322, %v1239
        %1409 = vst.msk [vmem:[#allocation2 + $0x2b0] sm:$0xff] %vm1322, %v1244
        %1410 = vst.msk [vmem:[#allocation2 + $0x2b8] sm:$0xff] %vm1322, %v1249
        %1411 = vst.msk [vmem:[#allocation2 + $0x2c0] sm:$0xff] %vm1322, %v1254
        %1412 = vst.msk [vmem:[#allocation2 + $0x2c8] sm:$0xff] %vm1322, %v1259
        %1413 = vst.msk [vmem:[#allocation2 + $0x2d0] sm:$0xff] %vm1322, %v1264
        %1414 = vst.msk [vmem:[#allocation2 + $0x2d8] sm:$0xff] %vm1322, %v1269
        %1415 = vst.msk [vmem:[#allocation2 + $0x2e0] sm:$0xff] %vm1322, %v1274
        %1416 = vst.msk [vmem:[#allocation2 + $0x2e8] sm:$0xff] %vm1322, %v1279
        %1417 = vst.msk [vmem:[#allocation2 + $0x2f0] sm:$0xff] %vm1322, %v1284
        %1418 = vst.msk [vmem:[#allocation2 + $0x2f8] sm:$0xff] %vm1322, %v1289
        %1419 = vst.msk [vmem:[#allocation2 + $0x300] sm:$0xff] %vm1322, %v1294
        %1420 = vst.msk [vmem:[#allocation2 + $0x308] sm:$0xff] %vm1322, %v1299
        %1421 = vst.msk [vmem:[#allocation2 + $0x310] sm:$0xff] %vm1322, %v1304
        %1422 = vst.msk [vmem:[#allocation2 + $0x318] sm:$0xff] %vm1322, %v1309
        %1423 = vst.msk [vmem:[#allocation2 + $0x320] sm:$0xff] %vm1322, %v1314
        %vm1424 = vcmask 128000
        %1425 = vst.msk [vmem:[#allocation2 + $0x328] sm:$0x3f] %vm1424, %v1319
        %v1426 = vld [vmem:[#allocation2] sm:$0xff]
        %v1427 = vld [vmem:[#allocation2 + $0x8] sm:$0xff]
        %v1428 = vld [vmem:[#allocation2 + $0x10] sm:$0xff]
        %v1429 = vld [vmem:[#allocation2 + $0x18] sm:$0xff]
        %v1430 = vld [vmem:[#allocation2 + $0x20] sm:$0xff]
        %v1431 = vld [vmem:[#allocation2 + $0x28] sm:$0xff]
        %v1432 = vld [vmem:[#allocation2 + $0x30] sm:$0xff]
        %v1433 = vld [vmem:[#allocation2 + $0x38] sm:$0xff]
        %v1434 = vld [vmem:[#allocation2 + $0x40] sm:$0xff]
        %v1435 = vld [vmem:[#allocation2 + $0x48] sm:$0xff]
        %v1436 = vld [vmem:[#allocation2 + $0x50] sm:$0xff]
        %v1437 = vld [vmem:[#allocation2 + $0x58] sm:$0xff]
        %v1438 = vld [vmem:[#allocation2 + $0x60] sm:$0xff]
        %v1439 = vld [vmem:[#allocation2 + $0x68] sm:$0xff]
        %v1440 = vld [vmem:[#allocation2 + $0x70] sm:$0xff]
        %v1441 = vld [vmem:[#allocation2 + $0x78] sm:$0xff]
        %v1442 = vld [vmem:[#allocation2 + $0x80] sm:$0xff]
        %v1443 = vld [vmem:[#allocation2 + $0x88] sm:$0xff]
        %v1444 = vld [vmem:[#allocation2 + $0x90] sm:$0xff]
        %v1445 = vld [vmem:[#allocation2 + $0x98] sm:$0xff]
        %v1446 = vld [vmem:[#allocation2 + $0xa0] sm:$0xff]
        %v1447 = vld [vmem:[#allocation2 + $0xa8] sm:$0xff]
        %v1448 = vld [vmem:[#allocation2 + $0xb0] sm:$0xff]
        %v1449 = vld [vmem:[#allocation2 + $0xb8] sm:$0xff]
        %v1450 = vld [vmem:[#allocation2 + $0xc0] sm:$0xff]
        %v1451 = vld [vmem:[#allocation2 + $0xc8] sm:$0xff]
        %v1452 = vld [vmem:[#allocation2 + $0xd0] sm:$0xff]
        %v1453 = vld [vmem:[#allocation2 + $0xd8] sm:$0xff]
        %v1454 = vld [vmem:[#allocation2 + $0xe0] sm:$0xff]
        %v1455 = vld [vmem:[#allocation2 + $0xe8] sm:$0xff]
        %v1456 = vld [vmem:[#allocation2 + $0xf0] sm:$0xff]
        %v1457 = vld [vmem:[#allocation2 + $0xf8] sm:$0xff]
        %v1458 = vld [vmem:[#allocation2 + $0x100] sm:$0xff]
        %v1459 = vld [vmem:[#allocation2 + $0x108] sm:$0xff]
        %v1460 = vld [vmem:[#allocation2 + $0x110] sm:$0xff]
        %v1461 = vld [vmem:[#allocation2 + $0x118] sm:$0xff]
        %v1462 = vld [vmem:[#allocation2 + $0x120] sm:$0xff]
        %v1463 = vld [vmem:[#allocation2 + $0x128] sm:$0xff]
        %v1464 = vld [vmem:[#allocation2 + $0x130] sm:$0xff]
        %v1465 = vld [vmem:[#allocation2 + $0x138] sm:$0xff]
        %v1466 = vld [vmem:[#allocation2 + $0x140] sm:$0xff]
        %v1467 = vld [vmem:[#allocation2 + $0x148] sm:$0xff]
        %v1468 = vld [vmem:[#allocation2 + $0x150] sm:$0xff]
        %v1469 = vld [vmem:[#allocation2 + $0x158] sm:$0xff]
        %v1470 = vld [vmem:[#allocation2 + $0x160] sm:$0xff]
        %v1471 = vld [vmem:[#allocation2 + $0x168] sm:$0xff]
        %v1472 = vld [vmem:[#allocation2 + $0x170] sm:$0xff]
        %v1473 = vld [vmem:[#allocation2 + $0x178] sm:$0xff]
        %v1474 = vld [vmem:[#allocation2 + $0x180] sm:$0xff]
        %v1475 = vld [vmem:[#allocation2 + $0x188] sm:$0xff]
        %v1476 = vld [vmem:[#allocation2 + $0x190] sm:$0xff]
        %v1477 = vld [vmem:[#allocation2 + $0x198] sm:$0xff]
        %v1478 = vld [vmem:[#allocation2 + $0x1a0] sm:$0xff]
        %v1479 = vld [vmem:[#allocation2 + $0x1a8] sm:$0xff]
        %v1480 = vld [vmem:[#allocation2 + $0x1b0] sm:$0xff]
        %v1481 = vld [vmem:[#allocation2 + $0x1b8] sm:$0xff]
        %v1482 = vld [vmem:[#allocation2 + $0x1c0] sm:$0xff]
        %v1483 = vld [vmem:[#allocation2 + $0x1c8] sm:$0xff]
        %v1484 = vld [vmem:[#allocation2 + $0x1d0] sm:$0xff]
        %v1485 = vld [vmem:[#allocation2 + $0x1d8] sm:$0xff]
        %v1486 = vld [vmem:[#allocation2 + $0x1e0] sm:$0xff]
        %v1487 = vld [vmem:[#allocation2 + $0x1e8] sm:$0xff]
        %v1488 = vld [vmem:[#allocation2 + $0x1f0] sm:$0xff]
        %v1489 = vld [vmem:[#allocation2 + $0x1f8] sm:$0xff]
        %v1490 = vld [vmem:[#allocation2 + $0x200] sm:$0xff]
        %v1491 = vld [vmem:[#allocation2 + $0x208] sm:$0xff]
        %v1492 = vld [vmem:[#allocation2 + $0x210] sm:$0xff]
        %v1493 = vld [vmem:[#allocation2 + $0x218] sm:$0xff]
        %v1494 = vld [vmem:[#allocation2 + $0x220] sm:$0xff]
        %v1495 = vld [vmem:[#allocation2 + $0x228] sm:$0xff]
        %v1496 = vld [vmem:[#allocation2 + $0x230] sm:$0xff]
        %v1497 = vld [vmem:[#allocation2 + $0x238] sm:$0xff]
        %v1498 = vld [vmem:[#allocation2 + $0x240] sm:$0xff]
        %v1499 = vld [vmem:[#allocation2 + $0x248] sm:$0xff]
        %v1500 = vld [vmem:[#allocation2 + $0x250] sm:$0xff]
        %v1501 = vld [vmem:[#allocation2 + $0x258] sm:$0xff]
        %v1502 = vld [vmem:[#allocation2 + $0x260] sm:$0xff]
        %v1503 = vld [vmem:[#allocation2 + $0x268] sm:$0xff]
        %v1504 = vld [vmem:[#allocation2 + $0x270] sm:$0xff]
        %v1505 = vld [vmem:[#allocation2 + $0x278] sm:$0xff]
        %v1506 = vld [vmem:[#allocation2 + $0x280] sm:$0xff]
        %v1507 = vld [vmem:[#allocation2 + $0x288] sm:$0xff]
        %v1508 = vld [vmem:[#allocation2 + $0x290] sm:$0xff]
        %v1509 = vld [vmem:[#allocation2 + $0x298] sm:$0xff]
        %v1510 = vld [vmem:[#allocation2 + $0x2a0] sm:$0xff]
        %v1511 = vld [vmem:[#allocation2 + $0x2a8] sm:$0xff]
        %v1512 = vld [vmem:[#allocation2 + $0x2b0] sm:$0xff]
        %v1513 = vld [vmem:[#allocation2 + $0x2b8] sm:$0xff]
        %v1514 = vld [vmem:[#allocation2 + $0x2c0] sm:$0xff]
        %v1515 = vld [vmem:[#allocation2 + $0x2c8] sm:$0xff]
        %v1516 = vld [vmem:[#allocation2 + $0x2d0] sm:$0xff]
        %v1517 = vld [vmem:[#allocation2 + $0x2d8] sm:$0xff]
        %v1518 = vld [vmem:[#allocation2 + $0x2e0] sm:$0xff]
        %v1519 = vld [vmem:[#allocation2 + $0x2e8] sm:$0xff]
        %v1520 = vld [vmem:[#allocation2 + $0x2f0] sm:$0xff]
        %v1521 = vld [vmem:[#allocation2 + $0x2f8] sm:$0xff]
        %v1522 = vld [vmem:[#allocation2 + $0x300] sm:$0xff]
        %v1523 = vld [vmem:[#allocation2 + $0x308] sm:$0xff]
        %v1524 = vld [vmem:[#allocation2 + $0x310] sm:$0xff]
        %v1525 = vld [vmem:[#allocation2 + $0x318] sm:$0xff]
        %v1526 = vld [vmem:[#allocation2 + $0x320] sm:$0xff]
        %v1527 = vld [vmem:[#allocation2 + $0x328] sm:$0x3f]
        %v1528 = vld [vmem:[%s331 + $0x1] sm:$0xff]
        %v1529 = vld [vmem:[%s331 + $0x9] sm:$0xff]
        %v1530 = vld [vmem:[%s331 + $0x11] sm:$0xff]
        %v1531 = vld [vmem:[%s331 + $0x19] sm:$0xff]
        %v1532 = vld [vmem:[%s331 + $0x21] sm:$0xff]
        %v1533 = vld [vmem:[%s331 + $0x29] sm:$0xff]
        %v1534 = vld [vmem:[%s331 + $0x31] sm:$0xff]
        %v1535 = vld [vmem:[%s331 + $0x39] sm:$0xff]
        %v1536 = vld [vmem:[%s331 + $0x41] sm:$0xff]
        %v1537 = vld [vmem:[%s331 + $0x49] sm:$0xff]
        %v1538 = vld [vmem:[%s331 + $0x51] sm:$0xff]
        %v1539 = vld [vmem:[%s331 + $0x59] sm:$0xff]
        %v1540 = vld [vmem:[%s331 + $0x61] sm:$0xff]
        %v1541 = vld [vmem:[%s331 + $0x69] sm:$0xff]
        %v1542 = vld [vmem:[%s331 + $0x71] sm:$0xff]
        %v1543 = vld [vmem:[%s331 + $0x79] sm:$0xff]
        %v1544 = vld [vmem:[%s331 + $0x81] sm:$0xff]
        %v1545 = vld [vmem:[%s331 + $0x89] sm:$0xff]
        %v1546 = vld [vmem:[%s331 + $0x91] sm:$0xff]
        %v1547 = vld [vmem:[%s331 + $0x99] sm:$0xff]
        %v1548 = vld [vmem:[%s331 + $0xa1] sm:$0xff]
        %v1549 = vld [vmem:[%s331 + $0xa9] sm:$0xff]
        %v1550 = vld [vmem:[%s331 + $0xb1] sm:$0xff]
        %v1551 = vld [vmem:[%s331 + $0xb9] sm:$0xff]
        %v1552 = vld [vmem:[%s331 + $0xc1] sm:$0xff]
        %v1553 = vld [vmem:[%s331 + $0xc9] sm:$0xff]
        %v1554 = vld [vmem:[%s331 + $0xd1] sm:$0xff]
        %v1555 = vld [vmem:[%s331 + $0xd9] sm:$0xff]
        %v1556 = vld [vmem:[%s331 + $0xe1] sm:$0xff]
        %v1557 = vld [vmem:[%s331 + $0xe9] sm:$0xff]
        %v1558 = vld [vmem:[%s331 + $0xf1] sm:$0xff]
        %v1559 = vld [vmem:[%s331 + $0xf9] sm:$0xff]
        %v1560 = vld [vmem:[%s331 + $0x101] sm:$0xff]
        %v1561 = vld [vmem:[%s331 + $0x109] sm:$0xff]
        %v1562 = vld [vmem:[%s331 + $0x111] sm:$0xff]
        %v1563 = vld [vmem:[%s331 + $0x119] sm:$0xff]
        %v1564 = vld [vmem:[%s331 + $0x121] sm:$0xff]
        %v1565 = vld [vmem:[%s331 + $0x129] sm:$0xff]
        %v1566 = vld [vmem:[%s331 + $0x131] sm:$0xff]
        %v1567 = vld [vmem:[%s331 + $0x139] sm:$0xff]
        %v1568 = vld [vmem:[%s331 + $0x141] sm:$0xff]
        %v1569 = vld [vmem:[%s331 + $0x149] sm:$0xff]
        %v1570 = vld [vmem:[%s331 + $0x151] sm:$0xff]
        %v1571 = vld [vmem:[%s331 + $0x159] sm:$0xff]
        %v1572 = vld [vmem:[%s331 + $0x161] sm:$0xff]
        %v1573 = vld [vmem:[%s331 + $0x169] sm:$0xff]
        %v1574 = vld [vmem:[%s331 + $0x171] sm:$0xff]
        %v1575 = vld [vmem:[%s331 + $0x179] sm:$0xff]
        %v1576 = vld [vmem:[%s331 + $0x181] sm:$0xff]
        %v1577 = vld [vmem:[%s331 + $0x189] sm:$0xff]
        %v1578 = vld [vmem:[%s331 + $0x191] sm:$0xff]
        %v1579 = vld [vmem:[%s331 + $0x199] sm:$0xff]
        %v1580 = vld [vmem:[%s331 + $0x1a1] sm:$0xff]
        %v1581 = vld [vmem:[%s331 + $0x1a9] sm:$0xff]
        %v1582 = vld [vmem:[%s331 + $0x1b1] sm:$0xff]
        %v1583 = vld [vmem:[%s331 + $0x1b9] sm:$0xff]
        %v1584 = vld [vmem:[%s331 + $0x1c1] sm:$0xff]
        %v1585 = vld [vmem:[%s331 + $0x1c9] sm:$0xff]
        %v1586 = vld [vmem:[%s331 + $0x1d1] sm:$0xff]
        %v1587 = vld [vmem:[%s331 + $0x1d9] sm:$0xff]
        %v1588 = vld [vmem:[%s331 + $0x1e1] sm:$0xff]
        %v1589 = vld [vmem:[%s331 + $0x1e9] sm:$0xff]
        %v1590 = vld [vmem:[%s331 + $0x1f1] sm:$0xff]
        %v1591 = vld [vmem:[%s331 + $0x1f9] sm:$0xff]
        %v1592 = vld [vmem:[%s331 + $0x201] sm:$0xff]
        %v1593 = vld [vmem:[%s331 + $0x209] sm:$0xff]
        %v1594 = vld [vmem:[%s331 + $0x211] sm:$0xff]
        %v1595 = vld [vmem:[%s331 + $0x219] sm:$0xff]
        %v1596 = vld [vmem:[%s331 + $0x221] sm:$0xff]
        %v1597 = vld [vmem:[%s331 + $0x229] sm:$0xff]
        %v1598 = vld [vmem:[%s331 + $0x231] sm:$0xff]
        %v1599 = vld [vmem:[%s331 + $0x239] sm:$0xff]
        %v1600 = vld [vmem:[%s331 + $0x241] sm:$0xff]
        %v1601 = vld [vmem:[%s331 + $0x249] sm:$0xff]
        %v1602 = vld [vmem:[%s331 + $0x251] sm:$0xff]
        %v1603 = vld [vmem:[%s331 + $0x259] sm:$0xff]
        %v1604 = vld [vmem:[%s331 + $0x261] sm:$0xff]
        %v1605 = vld [vmem:[%s331 + $0x269] sm:$0xff]
        %v1606 = vld [vmem:[%s331 + $0x271] sm:$0xff]
        %v1607 = vld [vmem:[%s331 + $0x279] sm:$0xff]
        %v1608 = vld [vmem:[%s331 + $0x281] sm:$0xff]
        %v1609 = vld [vmem:[%s331 + $0x289] sm:$0xff]
        %v1610 = vld [vmem:[%s331 + $0x291] sm:$0xff]
        %v1611 = vld [vmem:[%s331 + $0x299] sm:$0xff]
        %v1612 = vld [vmem:[%s331 + $0x2a1] sm:$0xff]
        %v1613 = vld [vmem:[%s331 + $0x2a9] sm:$0xff]
        %v1614 = vld [vmem:[%s331 + $0x2b1] sm:$0xff]
        %v1615 = vld [vmem:[%s331 + $0x2b9] sm:$0xff]
        %v1616 = vld [vmem:[%s331 + $0x2c1] sm:$0xff]
        %v1617 = vld [vmem:[%s331 + $0x2c9] sm:$0xff]
        %v1618 = vld [vmem:[%s331 + $0x2d1] sm:$0xff]
        %v1619 = vld [vmem:[%s331 + $0x2d9] sm:$0xff]
        %v1620 = vld [vmem:[%s331 + $0x2e1] sm:$0xff]
        %v1621 = vld [vmem:[%s331 + $0x2e9] sm:$0xff]
        %v1622 = vld [vmem:[%s331 + $0x2f1] sm:$0xff]
        %v1623 = vld [vmem:[%s331 + $0x2f9] sm:$0xff]
        %v1624 = vld [vmem:[%s331 + $0x301] sm:$0xff]
        %v1625 = vld [vmem:[%s331 + $0x309] sm:$0xff]
        %v1626 = vld [vmem:[%s331 + $0x311] sm:$0xff]
        %v1627 = vld [vmem:[%s331 + $0x319] sm:$0xff]
        %v1628 = vld [vmem:[%s331 + $0x321] sm:$0xff]
        %v1629 = vld [vmem:[%s331 + $0x329] sm:$0x3f]
        %s1630 = scalar_lea.vmem %s1, 4
        %v1631 = vld [vmem:[%s1630] sm:$0xf]
        %v1633 = vsel %vm436, %v1528, 0
        %v1636 = vsel %vm436, %v1529, 0
        %v1639 = vsel %vm436, %v1530, 0
        %v1642 = vsel %vm436, %v1531, 0
        %v1645 = vsel %vm436, %v1532, 0
        %v1648 = vsel %vm436, %v1533, 0
        %v1651 = vsel %vm436, %v1534, 0
        %v1654 = vsel %vm436, %v1535, 0
        %v1657 = vsel %vm436, %v1536, 0
        %v1660 = vsel %vm436, %v1537, 0
        %v1663 = vsel %vm436, %v1538, 0
        %v1666 = vsel %vm436, %v1539, 0
        %v1669 = vsel %vm436, %v1540, 0
        %v1672 = vsel %vm436, %v1541, 0
        %v1675 = vsel %vm436, %v1542, 0
        %v1678 = vsel %vm436, %v1543, 0
        %v1681 = vsel %vm436, %v1544, 0
        %v1684 = vsel %vm436, %v1545, 0
        %v1687 = vsel %vm436, %v1546, 0
        %v1690 = vsel %vm436, %v1547, 0
        %v1693 = vsel %vm436, %v1548, 0
        %v1696 = vsel %vm436, %v1549, 0
        %v1699 = vsel %vm436, %v1550, 0
        %v1702 = vsel %vm436, %v1551, 0
        %v1705 = vsel %vm436, %v1552, 0
        %v1708 = vsel %vm436, %v1553, 0
        %v1711 = vsel %vm436, %v1554, 0
        %v1714 = vsel %vm436, %v1555, 0
        %v1717 = vsel %vm436, %v1556, 0
        %v1720 = vsel %vm436, %v1557, 0
        %v1723 = vsel %vm436, %v1558, 0
        %v1726 = vsel %vm436, %v1559, 0
        %v1729 = vsel %vm436, %v1560, 0
        %v1732 = vsel %vm436, %v1561, 0
        %v1735 = vsel %vm436, %v1562, 0
        %v1738 = vsel %vm436, %v1563, 0
        %v1741 = vsel %vm436, %v1564, 0
        %v1744 = vsel %vm436, %v1565, 0
        %v1747 = vsel %vm436, %v1566, 0
        %v1750 = vsel %vm436, %v1567, 0
        %v1753 = vsel %vm436, %v1568, 0
        %v1756 = vsel %vm436, %v1569, 0
        %v1759 = vsel %vm436, %v1570, 0
        %v1762 = vsel %vm436, %v1571, 0
        %v1765 = vsel %vm436, %v1572, 0
        %v1768 = vsel %vm436, %v1573, 0
        %v1771 = vsel %vm436, %v1574, 0
        %v1774 = vsel %vm436, %v1575, 0
        %v1777 = vsel %vm436, %v1576, 0
        %v1780 = vsel %vm436, %v1577, 0
        %v1783 = vsel %vm436, %v1578, 0
        %v1786 = vsel %vm436, %v1579, 0
        %v1789 = vsel %vm436, %v1580, 0
        %v1792 = vsel %vm436, %v1581, 0
        %v1795 = vsel %vm436, %v1582, 0
        %v1798 = vsel %vm436, %v1583, 0
        %v1801 = vsel %vm436, %v1584, 0
        %v1804 = vsel %vm436, %v1585, 0
        %v1807 = vsel %vm436, %v1586, 0
        %v1810 = vsel %vm436, %v1587, 0
        %v1813 = vsel %vm436, %v1588, 0
        %v1816 = vsel %vm436, %v1589, 0
        %v1819 = vsel %vm436, %v1590, 0
        %v1822 = vsel %vm436, %v1591, 0
        %v1825 = vsel %vm436, %v1592, 0
        %v1828 = vsel %vm436, %v1593, 0
        %v1831 = vsel %vm436, %v1594, 0
        %v1834 = vsel %vm436, %v1595, 0
        %v1837 = vsel %vm436, %v1596, 0
        %v1840 = vsel %vm436, %v1597, 0
        %v1843 = vsel %vm436, %v1598, 0
        %v1846 = vsel %vm436, %v1599, 0
        %v1849 = vsel %vm436, %v1600, 0
        %v1852 = vsel %vm436, %v1601, 0
        %v1855 = vsel %vm436, %v1602, 0
        %v1858 = vsel %vm436, %v1603, 0
        %v1861 = vsel %vm436, %v1604, 0
        %v1864 = vsel %vm436, %v1605, 0
        %v1867 = vsel %vm436, %v1606, 0
        %v1870 = vsel %vm436, %v1607, 0
        %v1873 = vsel %vm436, %v1608, 0
        %v1876 = vsel %vm436, %v1609, 0
        %v1879 = vsel %vm436, %v1610, 0
        %v1882 = vsel %vm436, %v1611, 0
        %v1885 = vsel %vm436, %v1612, 0
        %v1888 = vsel %vm436, %v1613, 0
        %v1891 = vsel %vm436, %v1614, 0
        %v1894 = vsel %vm436, %v1615, 0
        %v1897 = vsel %vm436, %v1616, 0
        %v1900 = vsel %vm436, %v1617, 0
        %v1903 = vsel %vm436, %v1618, 0
        %v1906 = vsel %vm436, %v1619, 0
        %v1909 = vsel %vm436, %v1620, 0
        %v1912 = vsel %vm436, %v1621, 0
        %v1915 = vsel %vm436, %v1622, 0
        %v1918 = vsel %vm436, %v1623, 0
        %v1921 = vsel %vm436, %v1624, 0
        %v1924 = vsel %vm436, %v1625, 0
        %v1927 = vsel %vm436, %v1626, 0
        %v1930 = vsel %vm436, %v1627, 0
        %v1933 = vsel %vm436, %v1628, 0
        %v1936 = vsel %vm436, %v1629, 0
        %v1939 = vsel %vm743, %v1631, 0
        %1941 = vmatprep.subr.mxu0 0.0
        %1942 = vmatpush1.msra.mxu0 %v1939
        %1943 = vmatprep.subr.mxu0 0.0
        %1944 = vmatpush1.msra.mxu0 0.0
        %1945 = vmatprep.subr.mxu0 0.0
        %1946 = vmatpush1.msra.mxu0 0.0
        %1947 = vmatprep.subr.mxu0 0.0
        %1948 = vmatpush1.msra.mxu0 0.0
        %1949 = vmatprep.subr.mxu0 0.0
        %1950 = vmatpush1.msra.mxu0 0.0
        %1951 = vmatprep.subr.mxu0 0.0
        %1952 = vmatpush1.msra.mxu0 0.0
        %1953 = vmatprep.subr.mxu0 0.0
        %1954 = vmatpush1.msra.mxu0 0.0
        %1955 = vmatprep.subr.mxu0 0.0
        %1956 = vmatpush1.msra.mxu0 0.0
        %1957 = vmatprep.subr.mxu0 0.0
        %1958 = vmatpush1.msra.mxu0 0.0
        %1959 = vmatprep.subr.mxu0 0.0
        %1960 = vmatpush1.msra.mxu0 0.0
        %1961 = vmatprep.subr.mxu0 0.0
        %1962 = vmatpush1.msra.mxu0 0.0
        %1963 = vmatprep.subr.mxu0 0.0
        %1964 = vmatpush1.msra.mxu0 0.0
        %1965 = vmatprep.subr.mxu0 0.0
        %1966 = vmatpush1.msra.mxu0 0.0
        %1967 = vmatprep.subr.mxu0 0.0
        %1968 = vmatpush1.msra.mxu0 0.0
        %1969 = vmatprep.subr.mxu0 0.0
        %1970 = vmatpush1.msra.mxu0 0.0
        %1971 = vmatprep.subr.mxu0 0.0
        %1972 = vmatpush1.msra.mxu0 0.0
        %1973 = vmatprep.subr.mxu0 0.0
        %1974 = vmatpush1.msra.mxu0 0.0
        %1975 = vmatprep.subr.mxu0 0.0
        %1976 = vmatpush1.msra.mxu0 0.0
        %1977 = vmatprep.subr.mxu0 0.0
        %1978 = vmatpush1.msra.mxu0 0.0
        %1979 = vmatprep.subr.mxu0 0.0
        %1980 = vmatpush1.msra.mxu0 0.0
        %1981 = vmatprep.subr.mxu0 0.0
        %1982 = vmatpush1.msra.mxu0 0.0
        %1983 = vmatprep.subr.mxu0 0.0
        %1984 = vmatpush1.msra.mxu0 0.0
        %1985 = vmatprep.subr.mxu0 0.0
        %1986 = vmatpush1.msra.mxu0 0.0
        %1987 = vmatprep.subr.mxu0 0.0
        %1988 = vmatpush1.msra.mxu0 0.0
        %1989 = vmatprep.subr.mxu0 0.0
        %1990 = vmatpush1.msra.mxu0 0.0
        %1991 = vmatprep.subr.mxu0 0.0
        %1992 = vmatpush1.msra.mxu0 0.0
        %1993 = vmatprep.subr.mxu0 0.0
        %1994 = vmatpush1.msra.mxu0 0.0
        %1995 = vmatprep.subr.mxu0 0.0
        %1996 = vmatpush1.msra.mxu0 0.0
        %1997 = vmatprep.subr.mxu0 0.0
        %1998 = vmatpush1.msra.mxu0 0.0
        %1999 = vmatprep.subr.mxu0 0.0
        %2000 = vmatpush1.msra.mxu0 0.0
        %2001 = vmatprep.subr.mxu0 0.0
        %2002 = vmatpush1.msra.mxu0 0.0
        %2003 = vmatprep.subr.mxu0 0.0
        %2004 = vmatpush1.msra.mxu0 0.0
        %2005 = vmatprep.mubr.f32.mxu0 0.0
        %2006 = vmatmul.mubr.f32.gmra.mrb[0].mxu0 %v1633
        %v2007 = vpop.f32.mrb[0].mxu0
        %v2008 = vadd.f32 0.0, %v2007
        %v2009 = vpop.f32.mrb[0].mxu0
        %2010 = vmatprep.mubr.f32.mxu0 0.0
        %2011 = vmatmul.mubr.f32.gmra.mrb[0].mxu0 %v1636
        %v2012 = vpop.f32.mrb[0].mxu0
        %v2013 = vadd.f32 0.0, %v2012
        %v2014 = vpop.f32.mrb[0].mxu0
        %2015 = vmatprep.mubr.f32.mxu0 0.0
        %2016 = vmatmul.mubr.f32.gmra.mrb[0].mxu0 %v1639
        %v2017 = vpop.f32.mrb[0].mxu0
        %v2018 = vadd.f32 0.0, %v2017
        %v2019 = vpop.f32.mrb[0].mxu0
        %2020 = vmatprep.mubr.f32.mxu0 0.0
        %2021 = vmatmul.mubr.f32.gmra.mrb[0].mxu0 %v1642
        %v2022 = vpop.f32.mrb[0].mxu0
        %v2023 = vadd.f32 0.0, %v2022
        %v2024 = vpop.f32.mrb[0].mxu0
        %2025 = vmatprep.mubr.f32.mxu0 0.0
        %2026 = vmatmul.mubr.f32.gmra.mrb[0].mxu0 %v1645
        %v2027 = vpop.f32.mrb[0].mxu0
        %v2028 = vadd.f32 0.0, %v2027
        %v2029 = vpop.f32.mrb[0].mxu0
        %2030 = vmatprep.mubr.f32.mxu0 0.0
        %2031 = vmatmul.mubr.f32.gmra.mrb[0].mxu0 %v1648
        %v2032 = vpop.f32.mrb[0].mxu0
        %v2033 = vadd.f32 0.0, %v2032
        %v2034 = vpop.f32.mrb[0].mxu0
        %2035 = vmatprep.mubr.f32.mxu0 0.0
        %2036 = vmatmul.mubr.f32.gmra.mrb[0].mxu0 %v1651
        %v2037 = vpop.f32.mrb[0].mxu0
        %v2038 = vadd.f32 0.0, %v2037
        %v2039 = vpop.f32.mrb[0].mxu0
        %2040 = vmatprep.mubr.f32.mxu0 0.0
        %2041 = vmatmul.mubr.f32.gmra.mrb[0].mxu0 %v1654
        %v2042 = vpop.f32.mrb[0].mxu0
        %v2043 = vadd.f32 0.0, %v2042
        %v2044 = vpop.f32.mrb[0].mxu0
        %2045 = vmatprep.mubr.f32.mxu0 0.0
        %2046 = vmatmul.mubr.f32.gmra.mrb[0].mxu0 %v1657
        %v2047 = vpop.f32.mrb[0].mxu0
        %v2048 = vadd.f32 0.0, %v2047
        %v2049 = vpop.f32.mrb[0].mxu0
        %2050 = vmatprep.mubr.f32.mxu0 0.0
        %2051 = vmatmul.mubr.f32.gmra.mrb[0].mxu0 %v1660
        %v2052 = vpop.f32.mrb[0].mxu0
        %v2053 = vadd.f32 0.0, %v2052
        %v2054 = vpop.f32.mrb[0].mxu0
        %2055 = vmatprep.mubr.f32.mxu0 0.0
        %2056 = vmatmul.mubr.f32.gmra.mrb[0].mxu0 %v1663
        %v2057 = vpop.f32.mrb[0].mxu0
        %v2058 = vadd.f32 0.0, %v2057
        %v2059 = vpop.f32.mrb[0].mxu0
        %2060 = vmatprep.mubr.f32.mxu0 0.0
        %2061 = vmatmul.mubr.f32.gmra.mrb[0].mxu0 %v1666
        %v2062 = vpop.f32.mrb[0].mxu0
        %v2063 = vadd.f32 0.0, %v2062
        %v2064 = vpop.f32.mrb[0].mxu0
        %2065 = vmatprep.mubr.f32.mxu0 0.0
        %2066 = vmatmul.mubr.f32.gmra.mrb[0].mxu0 %v1669
        %v2067 = vpop.f32.mrb[0].mxu0
        %v2068 = vadd.f32 0.0, %v2067
        %v2069 = vpop.f32.mrb[0].mxu0
        %2070 = vmatprep.mubr.f32.mxu0 0.0
        %2071 = vmatmul.mubr.f32.gmra.mrb[0].mxu0 %v1672
        %v2072 = vpop.f32.mrb[0].mxu0
        %v2073 = vadd.f32 0.0, %v2072
        %v2074 = vpop.f32.mrb[0].mxu0
        %2075 = vmatprep.mubr.f32.mxu0 0.0
        %2076 = vmatmul.mubr.f32.gmra.mrb[0].mxu0 %v1675
        %v2077 = vpop.f32.mrb[0].mxu0
        %v2078 = vadd.f32 0.0, %v2077
        %v2079 = vpop.f32.mrb[0].mxu0
        %2080 = vmatprep.mubr.f32.mxu0 0.0
        %2081 = vmatmul.mubr.f32.gmra.mrb[0].mxu0 %v1678
        %v2082 = vpop.f32.mrb[0].mxu0
        %v2083 = vadd.f32 0.0, %v2082
        %v2084 = vpop.f32.mrb[0].mxu0
        %2085 = vmatprep.mubr.f32.mxu0 0.0
        %2086 = vmatmul.mubr.f32.gmra.mrb[0].mxu0 %v1681
        %v2087 = vpop.f32.mrb[0].mxu0
        %v2088 = vadd.f32 0.0, %v2087
        %v2089 = vpop.f32.mrb[0].mxu0
        %2090 = vmatprep.mubr.f32.mxu0 0.0
        %2091 = vmatmul.mubr.f32.gmra.mrb[0].mxu0 %v1684
        %v2092 = vpop.f32.mrb[0].mxu0
        %v2093 = vadd.f32 0.0, %v2092
        %v2094 = vpop.f32.mrb[0].mxu0
        %2095 = vmatprep.mubr.f32.mxu0 0.0
        %2096 = vmatmul.mubr.f32.gmra.mrb[0].mxu0 %v1687
        %v2097 = vpop.f32.mrb[0].mxu0
        %v2098 = vadd.f32 0.0, %v2097
        %v2099 = vpop.f32.mrb[0].mxu0
        %2100 = vmatprep.mubr.f32.mxu0 0.0
        %2101 = vmatmul.mubr.f32.gmra.mrb[0].mxu0 %v1690
        %v2102 = vpop.f32.mrb[0].mxu0
        %v2103 = vadd.f32 0.0, %v2102
        %v2104 = vpop.f32.mrb[0].mxu0
        %2105 = vmatprep.mubr.f32.mxu0 0.0
        %2106 = vmatmul.mubr.f32.gmra.mrb[0].mxu0 %v1693
        %v2107 = vpop.f32.mrb[0].mxu0
        %v2108 = vadd.f32 0.0, %v2107
        %v2109 = vpop.f32.mrb[0].mxu0
        %2110 = vmatprep.mubr.f32.mxu0 0.0
        %2111 = vmatmul.mubr.f32.gmra.mrb[0].mxu0 %v1696
        %v2112 = vpop.f32.mrb[0].mxu0
        %v2113 = vadd.f32 0.0, %v2112
        %v2114 = vpop.f32.mrb[0].mxu0
        %2115 = vmatprep.mubr.f32.mxu0 0.0
        %2116 = vmatmul.mubr.f32.gmra.mrb[0].mxu0 %v1699
        %v2117 = vpop.f32.mrb[0].mxu0
        %v2118 = vadd.f32 0.0, %v2117
        %v2119 = vpop.f32.mrb[0].mxu0
        %2120 = vmatprep.mubr.f32.mxu0 0.0
        %2121 = vmatmul.mubr.f32.gmra.mrb[0].mxu0 %v1702
        %v2122 = vpop.f32.mrb[0].mxu0
        %v2123 = vadd.f32 0.0, %v2122
        %v2124 = vpop.f32.mrb[0].mxu0
        %2125 = vmatprep.mubr.f32.mxu0 0.0
        %2126 = vmatmul.mubr.f32.gmra.mrb[0].mxu0 %v1705
        %v2127 = vpop.f32.mrb[0].mxu0
        %v2128 = vadd.f32 0.0, %v2127
        %v2129 = vpop.f32.mrb[0].mxu0
        %2130 = vmatprep.mubr.f32.mxu0 0.0
        %2131 = vmatmul.mubr.f32.gmra.mrb[0].mxu0 %v1708
        %v2132 = vpop.f32.mrb[0].mxu0
        %v2133 = vadd.f32 0.0, %v2132
        %v2134 = vpop.f32.mrb[0].mxu0
        %2135 = vmatprep.mubr.f32.mxu0 0.0
        %2136 = vmatmul.mubr.f32.gmra.mrb[0].mxu0 %v1711
        %v2137 = vpop.f32.mrb[0].mxu0
        %v2138 = vadd.f32 0.0, %v2137
        %v2139 = vpop.f32.mrb[0].mxu0
        %2140 = vmatprep.mubr.f32.mxu0 0.0
        %2141 = vmatmul.mubr.f32.gmra.mrb[0].mxu0 %v1714
        %v2142 = vpop.f32.mrb[0].mxu0
        %v2143 = vadd.f32 0.0, %v2142
        %v2144 = vpop.f32.mrb[0].mxu0
        %2145 = vmatprep.mubr.f32.mxu0 0.0
        %2146 = vmatmul.mubr.f32.gmra.mrb[0].mxu0 %v1717
        %v2147 = vpop.f32.mrb[0].mxu0
        %v2148 = vadd.f32 0.0, %v2147
        %v2149 = vpop.f32.mrb[0].mxu0
        %2150 = vmatprep.mubr.f32.mxu0 0.0
        %2151 = vmatmul.mubr.f32.gmra.mrb[0].mxu0 %v1720
        %v2152 = vpop.f32.mrb[0].mxu0
        %v2153 = vadd.f32 0.0, %v2152
        %v2154 = vpop.f32.mrb[0].mxu0
        %2155 = vmatprep.mubr.f32.mxu0 0.0
        %2156 = vmatmul.mubr.f32.gmra.mrb[0].mxu0 %v1723
        %v2157 = vpop.f32.mrb[0].mxu0
        %v2158 = vadd.f32 0.0, %v2157
        %v2159 = vpop.f32.mrb[0].mxu0
        %2160 = vmatprep.mubr.f32.mxu0 0.0
        %2161 = vmatmul.mubr.f32.gmra.mrb[0].mxu0 %v1726
        %v2162 = vpop.f32.mrb[0].mxu0
        %v2163 = vadd.f32 0.0, %v2162
        %v2164 = vpop.f32.mrb[0].mxu0
        %2165 = vmatprep.mubr.f32.mxu0 0.0
        %2166 = vmatmul.mubr.f32.gmra.mrb[0].mxu0 %v1729
        %v2167 = vpop.f32.mrb[0].mxu0
        %v2168 = vadd.f32 0.0, %v2167
        %v2169 = vpop.f32.mrb[0].mxu0
        %2170 = vmatprep.mubr.f32.mxu0 0.0
        %2171 = vmatmul.mubr.f32.gmra.mrb[0].mxu0 %v1732
        %v2172 = vpop.f32.mrb[0].mxu0
        %v2173 = vadd.f32 0.0, %v2172
        %v2174 = vpop.f32.mrb[0].mxu0
        %2175 = vmatprep.mubr.f32.mxu0 0.0
        %2176 = vmatmul.mubr.f32.gmra.mrb[0].mxu0 %v1735
        %v2177 = vpop.f32.mrb[0].mxu0
        %v2178 = vadd.f32 0.0, %v2177
        %v2179 = vpop.f32.mrb[0].mxu0
        %2180 = vmatprep.mubr.f32.mxu0 0.0
        %2181 = vmatmul.mubr.f32.gmra.mrb[0].mxu0 %v1738
        %v2182 = vpop.f32.mrb[0].mxu0
        %v2183 = vadd.f32 0.0, %v2182
        %v2184 = vpop.f32.mrb[0].mxu0
        %2185 = vmatprep.mubr.f32.mxu0 0.0
        %2186 = vmatmul.mubr.f32.gmra.mrb[0].mxu0 %v1741
        %v2187 = vpop.f32.mrb[0].mxu0
        %v2188 = vadd.f32 0.0, %v2187
        %v2189 = vpop.f32.mrb[0].mxu0
        %2190 = vmatprep.mubr.f32.mxu0 0.0
        %2191 = vmatmul.mubr.f32.gmra.mrb[0].mxu0 %v1744
        %v2192 = vpop.f32.mrb[0].mxu0
        %v2193 = vadd.f32 0.0, %v2192
        %v2194 = vpop.f32.mrb[0].mxu0
        %2195 = vmatprep.mubr.f32.mxu0 0.0
        %2196 = vmatmul.mubr.f32.gmra.mrb[0].mxu0 %v1747
        %v2197 = vpop.f32.mrb[0].mxu0
        %v2198 = vadd.f32 0.0, %v2197
        %v2199 = vpop.f32.mrb[0].mxu0
        %2200 = vmatprep.mubr.f32.mxu0 0.0
        %2201 = vmatmul.mubr.f32.gmra.mrb[0].mxu0 %v1750
        %v2202 = vpop.f32.mrb[0].mxu0
        %v2203 = vadd.f32 0.0, %v2202
        %v2204 = vpop.f32.mrb[0].mxu0
        %2205 = vmatprep.mubr.f32.mxu0 0.0
        %2206 = vmatmul.mubr.f32.gmra.mrb[0].mxu0 %v1753
        %v2207 = vpop.f32.mrb[0].mxu0
        %v2208 = vadd.f32 0.0, %v2207
        %v2209 = vpop.f32.mrb[0].mxu0
        %2210 = vmatprep.mubr.f32.mxu0 0.0
        %2211 = vmatmul.mubr.f32.gmra.mrb[0].mxu0 %v1756
        %v2212 = vpop.f32.mrb[0].mxu0
        %v2213 = vadd.f32 0.0, %v2212
        %v2214 = vpop.f32.mrb[0].mxu0
        %2215 = vmatprep.mubr.f32.mxu0 0.0
        %2216 = vmatmul.mubr.f32.gmra.mrb[0].mxu0 %v1759
        %v2217 = vpop.f32.mrb[0].mxu0
        %v2218 = vadd.f32 0.0, %v2217
        %v2219 = vpop.f32.mrb[0].mxu0
        %2220 = vmatprep.mubr.f32.mxu0 0.0
        %2221 = vmatmul.mubr.f32.gmra.mrb[0].mxu0 %v1762
        %v2222 = vpop.f32.mrb[0].mxu0
        %v2223 = vadd.f32 0.0, %v2222
        %v2224 = vpop.f32.mrb[0].mxu0
        %2225 = vmatprep.mubr.f32.mxu0 0.0
        %2226 = vmatmul.mubr.f32.gmra.mrb[0].mxu0 %v1765
        %v2227 = vpop.f32.mrb[0].mxu0
        %v2228 = vadd.f32 0.0, %v2227
        %v2229 = vpop.f32.mrb[0].mxu0
        %2230 = vmatprep.mubr.f32.mxu0 0.0
        %2231 = vmatmul.mubr.f32.gmra.mrb[0].mxu0 %v1768
        %v2232 = vpop.f32.mrb[0].mxu0
        %v2233 = vadd.f32 0.0, %v2232
        %v2234 = vpop.f32.mrb[0].mxu0
        %2235 = vmatprep.mubr.f32.mxu0 0.0
        %2236 = vmatmul.mubr.f32.gmra.mrb[0].mxu0 %v1771
        %v2237 = vpop.f32.mrb[0].mxu0
        %v2238 = vadd.f32 0.0, %v2237
        %v2239 = vpop.f32.mrb[0].mxu0
        %2240 = vmatprep.mubr.f32.mxu0 0.0
        %2241 = vmatmul.mubr.f32.gmra.mrb[0].mxu0 %v1774
        %v2242 = vpop.f32.mrb[0].mxu0
        %v2243 = vadd.f32 0.0, %v2242
        %v2244 = vpop.f32.mrb[0].mxu0
        %2245 = vmatprep.mubr.f32.mxu0 0.0
        %2246 = vmatmul.mubr.f32.gmra.mrb[0].mxu0 %v1777
        %v2247 = vpop.f32.mrb[0].mxu0
        %v2248 = vadd.f32 0.0, %v2247
        %v2249 = vpop.f32.mrb[0].mxu0
        %2250 = vmatprep.mubr.f32.mxu0 0.0
        %2251 = vmatmul.mubr.f32.gmra.mrb[0].mxu0 %v1780
        %v2252 = vpop.f32.mrb[0].mxu0
        %v2253 = vadd.f32 0.0, %v2252
        %v2254 = vpop.f32.mrb[0].mxu0
        %2255 = vmatprep.mubr.f32.mxu0 0.0
        %2256 = vmatmul.mubr.f32.gmra.mrb[0].mxu0 %v1783
        %v2257 = vpop.f32.mrb[0].mxu0
        %v2258 = vadd.f32 0.0, %v2257
        %v2259 = vpop.f32.mrb[0].mxu0
        %2260 = vmatprep.mubr.f32.mxu0 0.0
        %2261 = vmatmul.mubr.f32.gmra.mrb[0].mxu0 %v1786
        %v2262 = vpop.f32.mrb[0].mxu0
        %v2263 = vadd.f32 0.0, %v2262
        %v2264 = vpop.f32.mrb[0].mxu0
        %2265 = vmatprep.mubr.f32.mxu0 0.0
        %2266 = vmatmul.mubr.f32.gmra.mrb[0].mxu0 %v1789
        %v2267 = vpop.f32.mrb[0].mxu0
        %v2268 = vadd.f32 0.0, %v2267
        %v2269 = vpop.f32.mrb[0].mxu0
        %2270 = vmatprep.mubr.f32.mxu0 0.0
        %2271 = vmatmul.mubr.f32.gmra.mrb[0].mxu0 %v1792
        %v2272 = vpop.f32.mrb[0].mxu0
        %v2273 = vadd.f32 0.0, %v2272
        %v2274 = vpop.f32.mrb[0].mxu0
        %2275 = vmatprep.mubr.f32.mxu0 0.0
        %2276 = vmatmul.mubr.f32.gmra.mrb[0].mxu0 %v1795
        %v2277 = vpop.f32.mrb[0].mxu0
        %v2278 = vadd.f32 0.0, %v2277
        %v2279 = vpop.f32.mrb[0].mxu0
        %2280 = vmatprep.mubr.f32.mxu0 0.0
        %2281 = vmatmul.mubr.f32.gmra.mrb[0].mxu0 %v1798
        %v2282 = vpop.f32.mrb[0].mxu0
        %v2283 = vadd.f32 0.0, %v2282
        %v2284 = vpop.f32.mrb[0].mxu0
        %2285 = vmatprep.mubr.f32.mxu0 0.0
        %2286 = vmatmul.mubr.f32.gmra.mrb[0].mxu0 %v1801
        %v2287 = vpop.f32.mrb[0].mxu0
        %v2288 = vadd.f32 0.0, %v2287
        %v2289 = vpop.f32.mrb[0].mxu0
        %2290 = vmatprep.mubr.f32.mxu0 0.0
        %2291 = vmatmul.mubr.f32.gmra.mrb[0].mxu0 %v1804
        %v2292 = vpop.f32.mrb[0].mxu0
        %v2293 = vadd.f32 0.0, %v2292
        %v2294 = vpop.f32.mrb[0].mxu0
        %2295 = vmatprep.mubr.f32.mxu0 0.0
        %2296 = vmatmul.mubr.f32.gmra.mrb[0].mxu0 %v1807
        %v2297 = vpop.f32.mrb[0].mxu0
        %v2298 = vadd.f32 0.0, %v2297
        %v2299 = vpop.f32.mrb[0].mxu0
        %2300 = vmatprep.mubr.f32.mxu0 0.0
        %2301 = vmatmul.mubr.f32.gmra.mrb[0].mxu0 %v1810
        %v2302 = vpop.f32.mrb[0].mxu0
        %v2303 = vadd.f32 0.0, %v2302
        %v2304 = vpop.f32.mrb[0].mxu0
        %2305 = vmatprep.mubr.f32.mxu0 0.0
        %2306 = vmatmul.mubr.f32.gmra.mrb[0].mxu0 %v1813
        %v2307 = vpop.f32.mrb[0].mxu0
        %v2308 = vadd.f32 0.0, %v2307
        %v2309 = vpop.f32.mrb[0].mxu0
        %2310 = vmatprep.mubr.f32.mxu0 0.0
        %2311 = vmatmul.mubr.f32.gmra.mrb[0].mxu0 %v1816
        %v2312 = vpop.f32.mrb[0].mxu0
        %v2313 = vadd.f32 0.0, %v2312
        %v2314 = vpop.f32.mrb[0].mxu0
        %2315 = vmatprep.mubr.f32.mxu0 0.0
        %2316 = vmatmul.mubr.f32.gmra.mrb[0].mxu0 %v1819
        %v2317 = vpop.f32.mrb[0].mxu0
        %v2318 = vadd.f32 0.0, %v2317
        %v2319 = vpop.f32.mrb[0].mxu0
        %2320 = vmatprep.mubr.f32.mxu0 0.0
        %2321 = vmatmul.mubr.f32.gmra.mrb[0].mxu0 %v1822
        %v2322 = vpop.f32.mrb[0].mxu0
        %v2323 = vadd.f32 0.0, %v2322
        %v2324 = vpop.f32.mrb[0].mxu0
        %2325 = vmatprep.mubr.f32.mxu0 0.0
        %2326 = vmatmul.mubr.f32.gmra.mrb[0].mxu0 %v1825
        %v2327 = vpop.f32.mrb[0].mxu0
        %v2328 = vadd.f32 0.0, %v2327
        %v2329 = vpop.f32.mrb[0].mxu0
        %2330 = vmatprep.mubr.f32.mxu0 0.0
        %2331 = vmatmul.mubr.f32.gmra.mrb[0].mxu0 %v1828
        %v2332 = vpop.f32.mrb[0].mxu0
        %v2333 = vadd.f32 0.0, %v2332
        %v2334 = vpop.f32.mrb[0].mxu0
        %2335 = vmatprep.mubr.f32.mxu0 0.0
        %2336 = vmatmul.mubr.f32.gmra.mrb[0].mxu0 %v1831
        %v2337 = vpop.f32.mrb[0].mxu0
        %v2338 = vadd.f32 0.0, %v2337
        %v2339 = vpop.f32.mrb[0].mxu0
        %2340 = vmatprep.mubr.f32.mxu0 0.0
        %2341 = vmatmul.mubr.f32.gmra.mrb[0].mxu0 %v1834
        %v2342 = vpop.f32.mrb[0].mxu0
        %v2343 = vadd.f32 0.0, %v2342
        %v2344 = vpop.f32.mrb[0].mxu0
        %2345 = vmatprep.mubr.f32.mxu0 0.0
        %2346 = vmatmul.mubr.f32.gmra.mrb[0].mxu0 %v1837
        %v2347 = vpop.f32.mrb[0].mxu0
        %v2348 = vadd.f32 0.0, %v2347
        %v2349 = vpop.f32.mrb[0].mxu0
        %2350 = vmatprep.mubr.f32.mxu0 0.0
        %2351 = vmatmul.mubr.f32.gmra.mrb[0].mxu0 %v1840
        %v2352 = vpop.f32.mrb[0].mxu0
        %v2353 = vadd.f32 0.0, %v2352
        %v2354 = vpop.f32.mrb[0].mxu0
        %2355 = vmatprep.mubr.f32.mxu0 0.0
        %2356 = vmatmul.mubr.f32.gmra.mrb[0].mxu0 %v1843
        %v2357 = vpop.f32.mrb[0].mxu0
        %v2358 = vadd.f32 0.0, %v2357
        %v2359 = vpop.f32.mrb[0].mxu0
        %2360 = vmatprep.mubr.f32.mxu0 0.0
        %2361 = vmatmul.mubr.f32.gmra.mrb[0].mxu0 %v1846
        %v2362 = vpop.f32.mrb[0].mxu0
        %v2363 = vadd.f32 0.0, %v2362
        %v2364 = vpop.f32.mrb[0].mxu0
        %2365 = vmatprep.mubr.f32.mxu0 0.0
        %2366 = vmatmul.mubr.f32.gmra.mrb[0].mxu0 %v1849
        %v2367 = vpop.f32.mrb[0].mxu0
        %v2368 = vadd.f32 0.0, %v2367
        %v2369 = vpop.f32.mrb[0].mxu0
        %2370 = vmatprep.mubr.f32.mxu0 0.0
        %2371 = vmatmul.mubr.f32.gmra.mrb[0].mxu0 %v1852
        %v2372 = vpop.f32.mrb[0].mxu0
        %v2373 = vadd.f32 0.0, %v2372
        %v2374 = vpop.f32.mrb[0].mxu0
        %2375 = vmatprep.mubr.f32.mxu0 0.0
        %2376 = vmatmul.mubr.f32.gmra.mrb[0].mxu0 %v1855
        %v2377 = vpop.f32.mrb[0].mxu0
        %v2378 = vadd.f32 0.0, %v2377
        %v2379 = vpop.f32.mrb[0].mxu0
        %2380 = vmatprep.mubr.f32.mxu0 0.0
        %2381 = vmatmul.mubr.f32.gmra.mrb[0].mxu0 %v1858
        %v2382 = vpop.f32.mrb[0].mxu0
        %v2383 = vadd.f32 0.0, %v2382
        %v2384 = vpop.f32.mrb[0].mxu0
        %2385 = vmatprep.mubr.f32.mxu0 0.0
        %2386 = vmatmul.mubr.f32.gmra.mrb[0].mxu0 %v1861
        %v2387 = vpop.f32.mrb[0].mxu0
        %v2388 = vadd.f32 0.0, %v2387
        %v2389 = vpop.f32.mrb[0].mxu0
        %2390 = vmatprep.mubr.f32.mxu0 0.0
        %2391 = vmatmul.mubr.f32.gmra.mrb[0].mxu0 %v1864
        %v2392 = vpop.f32.mrb[0].mxu0
        %v2393 = vadd.f32 0.0, %v2392
        %v2394 = vpop.f32.mrb[0].mxu0
        %2395 = vmatprep.mubr.f32.mxu0 0.0
        %2396 = vmatmul.mubr.f32.gmra.mrb[0].mxu0 %v1867
        %v2397 = vpop.f32.mrb[0].mxu0
        %v2398 = vadd.f32 0.0, %v2397
        %v2399 = vpop.f32.mrb[0].mxu0
        %2400 = vmatprep.mubr.f32.mxu0 0.0
        %2401 = vmatmul.mubr.f32.gmra.mrb[0].mxu0 %v1870
        %v2402 = vpop.f32.mrb[0].mxu0
        %v2403 = vadd.f32 0.0, %v2402
        %v2404 = vpop.f32.mrb[0].mxu0
        %2405 = vmatprep.mubr.f32.mxu0 0.0
        %2406 = vmatmul.mubr.f32.gmra.mrb[0].mxu0 %v1873
        %v2407 = vpop.f32.mrb[0].mxu0
        %v2408 = vadd.f32 0.0, %v2407
        %v2409 = vpop.f32.mrb[0].mxu0
        %2410 = vmatprep.mubr.f32.mxu0 0.0
        %2411 = vmatmul.mubr.f32.gmra.mrb[0].mxu0 %v1876
        %v2412 = vpop.f32.mrb[0].mxu0
        %v2413 = vadd.f32 0.0, %v2412
        %v2414 = vpop.f32.mrb[0].mxu0
        %2415 = vmatprep.mubr.f32.mxu0 0.0
        %2416 = vmatmul.mubr.f32.gmra.mrb[0].mxu0 %v1879
        %v2417 = vpop.f32.mrb[0].mxu0
        %v2418 = vadd.f32 0.0, %v2417
        %v2419 = vpop.f32.mrb[0].mxu0
        %2420 = vmatprep.mubr.f32.mxu0 0.0
        %2421 = vmatmul.mubr.f32.gmra.mrb[0].mxu0 %v1882
        %v2422 = vpop.f32.mrb[0].mxu0
        %v2423 = vadd.f32 0.0, %v2422
        %v2424 = vpop.f32.mrb[0].mxu0
        %2425 = vmatprep.mubr.f32.mxu0 0.0
        %2426 = vmatmul.mubr.f32.gmra.mrb[0].mxu0 %v1885
        %v2427 = vpop.f32.mrb[0].mxu0
        %v2428 = vadd.f32 0.0, %v2427
        %v2429 = vpop.f32.mrb[0].mxu0
        %2430 = vmatprep.mubr.f32.mxu0 0.0
        %2431 = vmatmul.mubr.f32.gmra.mrb[0].mxu0 %v1888
        %v2432 = vpop.f32.mrb[0].mxu0
        %v2433 = vadd.f32 0.0, %v2432
        %v2434 = vpop.f32.mrb[0].mxu0
        %2435 = vmatprep.mubr.f32.mxu0 0.0
        %2436 = vmatmul.mubr.f32.gmra.mrb[0].mxu0 %v1891
        %v2437 = vpop.f32.mrb[0].mxu0
        %v2438 = vadd.f32 0.0, %v2437
        %v2439 = vpop.f32.mrb[0].mxu0
        %2440 = vmatprep.mubr.f32.mxu0 0.0
        %2441 = vmatmul.mubr.f32.gmra.mrb[0].mxu0 %v1894
        %v2442 = vpop.f32.mrb[0].mxu0
        %v2443 = vadd.f32 0.0, %v2442
        %v2444 = vpop.f32.mrb[0].mxu0
        %2445 = vmatprep.mubr.f32.mxu0 0.0
        %2446 = vmatmul.mubr.f32.gmra.mrb[0].mxu0 %v1897
        %v2447 = vpop.f32.mrb[0].mxu0
        %v2448 = vadd.f32 0.0, %v2447
        %v2449 = vpop.f32.mrb[0].mxu0
        %2450 = vmatprep.mubr.f32.mxu0 0.0
        %2451 = vmatmul.mubr.f32.gmra.mrb[0].mxu0 %v1900
        %v2452 = vpop.f32.mrb[0].mxu0
        %v2453 = vadd.f32 0.0, %v2452
        %v2454 = vpop.f32.mrb[0].mxu0
        %2455 = vmatprep.mubr.f32.mxu0 0.0
        %2456 = vmatmul.mubr.f32.gmra.mrb[0].mxu0 %v1903
        %v2457 = vpop.f32.mrb[0].mxu0
        %v2458 = vadd.f32 0.0, %v2457
        %v2459 = vpop.f32.mrb[0].mxu0
        %2460 = vmatprep.mubr.f32.mxu0 0.0
        %2461 = vmatmul.mubr.f32.gmra.mrb[0].mxu0 %v1906
        %v2462 = vpop.f32.mrb[0].mxu0
        %v2463 = vadd.f32 0.0, %v2462
        %v2464 = vpop.f32.mrb[0].mxu0
        %2465 = vmatprep.mubr.f32.mxu0 0.0
        %2466 = vmatmul.mubr.f32.gmra.mrb[0].mxu0 %v1909
        %v2467 = vpop.f32.mrb[0].mxu0
        %v2468 = vadd.f32 0.0, %v2467
        %v2469 = vpop.f32.mrb[0].mxu0
        %2470 = vmatprep.mubr.f32.mxu0 0.0
        %2471 = vmatmul.mubr.f32.gmra.mrb[0].mxu0 %v1912
        %v2472 = vpop.f32.mrb[0].mxu0
        %v2473 = vadd.f32 0.0, %v2472
        %v2474 = vpop.f32.mrb[0].mxu0
        %2475 = vmatprep.mubr.f32.mxu0 0.0
        %2476 = vmatmul.mubr.f32.gmra.mrb[0].mxu0 %v1915
        %v2477 = vpop.f32.mrb[0].mxu0
        %v2478 = vadd.f32 0.0, %v2477
        %v2479 = vpop.f32.mrb[0].mxu0
        %2480 = vmatprep.mubr.f32.mxu0 0.0
        %2481 = vmatmul.mubr.f32.gmra.mrb[0].mxu0 %v1918
        %v2482 = vpop.f32.mrb[0].mxu0
        %v2483 = vadd.f32 0.0, %v2482
        %v2484 = vpop.f32.mrb[0].mxu0
        %2485 = vmatprep.mubr.f32.mxu0 0.0
        %2486 = vmatmul.mubr.f32.gmra.mrb[0].mxu0 %v1921
        %v2487 = vpop.f32.mrb[0].mxu0
        %v2488 = vadd.f32 0.0, %v2487
        %v2489 = vpop.f32.mrb[0].mxu0
        %2490 = vmatprep.mubr.f32.mxu0 0.0
        %2491 = vmatmul.mubr.f32.gmra.mrb[0].mxu0 %v1924
        %v2492 = vpop.f32.mrb[0].mxu0
        %v2493 = vadd.f32 0.0, %v2492
        %v2494 = vpop.f32.mrb[0].mxu0
        %2495 = vmatprep.mubr.f32.mxu0 0.0
        %2496 = vmatmul.mubr.f32.gmra.mrb[0].mxu0 %v1927
        %v2497 = vpop.f32.mrb[0].mxu0
        %v2498 = vadd.f32 0.0, %v2497
        %v2499 = vpop.f32.mrb[0].mxu0
        %2500 = vmatprep.mubr.f32.mxu0 0.0
        %2501 = vmatmul.mubr.f32.gmra.mrb[0].mxu0 %v1930
        %v2502 = vpop.f32.mrb[0].mxu0
        %v2503 = vadd.f32 0.0, %v2502
        %v2504 = vpop.f32.mrb[0].mxu0
        %2505 = vmatprep.mubr.f32.mxu0 0.0
        %2506 = vmatmul.mubr.f32.gmra.mrb[0].mxu0 %v1933
        %v2507 = vpop.f32.mrb[0].mxu0
        %v2508 = vadd.f32 0.0, %v2507
        %v2509 = vpop.f32.mrb[0].mxu0
        %2510 = vmatprep.mubr.f32.mxu0 0.0
        %2511 = vmatmul.mubr.f32.gmra.mrb[0].mxu0 %v1936
        %v2512 = vpop.f32.mrb[0].mxu0
        %v2513 = vadd.f32 0.0, %v2512
        %v2514 = vpop.f32.mrb[0].mxu0
        %2515 = vdwg.mxu0
        %v2516 = vadd.f32 %v1426, %v2008
        %v2517 = vadd.f32 %v1427, %v2013
        %v2518 = vadd.f32 %v1428, %v2018
        %v2519 = vadd.f32 %v1429, %v2023
        %v2520 = vadd.f32 %v1430, %v2028
        %v2521 = vadd.f32 %v1431, %v2033
        %v2522 = vadd.f32 %v1432, %v2038
        %v2523 = vadd.f32 %v1433, %v2043
        %v2524 = vadd.f32 %v1434, %v2048
        %v2525 = vadd.f32 %v1435, %v2053
        %v2526 = vadd.f32 %v1436, %v2058
        %v2527 = vadd.f32 %v1437, %v2063
        %v2528 = vadd.f32 %v1438, %v2068
        %v2529 = vadd.f32 %v1439, %v2073
        %v2530 = vadd.f32 %v1440, %v2078
        %v2531 = vadd.f32 %v1441, %v2083
        %v2532 = vadd.f32 %v1442, %v2088
        %v2533 = vadd.f32 %v1443, %v2093
        %v2534 = vadd.f32 %v1444, %v2098
        %v2535 = vadd.f32 %v1445, %v2103
        %v2536 = vadd.f32 %v1446, %v2108
        %v2537 = vadd.f32 %v1447, %v2113
        %v2538 = vadd.f32 %v1448, %v2118
        %v2539 = vadd.f32 %v1449, %v2123
        %v2540 = vadd.f32 %v1450, %v2128
        %v2541 = vadd.f32 %v1451, %v2133
        %v2542 = vadd.f32 %v1452, %v2138
        %v2543 = vadd.f32 %v1453, %v2143
        %v2544 = vadd.f32 %v1454, %v2148
        %v2545 = vadd.f32 %v1455, %v2153
        %v2546 = vadd.f32 %v1456, %v2158
        %v2547 = vadd.f32 %v1457, %v2163
        %v2548 = vadd.f32 %v1458, %v2168
        %v2549 = vadd.f32 %v1459, %v2173
        %v2550 = vadd.f32 %v1460, %v2178
        %v2551 = vadd.f32 %v1461, %v2183
        %v2552 = vadd.f32 %v1462, %v2188
        %v2553 = vadd.f32 %v1463, %v2193
        %v2554 = vadd.f32 %v1464, %v2198
        %v2555 = vadd.f32 %v1465, %v2203
        %v2556 = vadd.f32 %v1466, %v2208
        %v2557 = vadd.f32 %v1467, %v2213
        %v2558 = vadd.f32 %v1468, %v2218
        %v2559 = vadd.f32 %v1469, %v2223
        %v2560 = vadd.f32 %v1470, %v2228
        %v2561 = vadd.f32 %v1471, %v2233
        %v2562 = vadd.f32 %v1472, %v2238
        %v2563 = vadd.f32 %v1473, %v2243
        %v2564 = vadd.f32 %v1474, %v2248
        %v2565 = vadd.f32 %v1475, %v2253
        %v2566 = vadd.f32 %v1476, %v2258
        %v2567 = vadd.f32 %v1477, %v2263
        %v2568 = vadd.f32 %v1478, %v2268
        %v2569 = vadd.f32 %v1479, %v2273
        %v2570 = vadd.f32 %v1480, %v2278
        %v2571 = vadd.f32 %v1481, %v2283
        %v2572 = vadd.f32 %v1482, %v2288
        %v2573 = vadd.f32 %v1483, %v2293
        %v2574 = vadd.f32 %v1484, %v2298
        %v2575 = vadd.f32 %v1485, %v2303
        %v2576 = vadd.f32 %v1486, %v2308
        %v2577 = vadd.f32 %v1487, %v2313
        %v2578 = vadd.f32 %v1488, %v2318
        %v2579 = vadd.f32 %v1489, %v2323
        %v2580 = vadd.f32 %v1490, %v2328
        %v2581 = vadd.f32 %v1491, %v2333
        %v2582 = vadd.f32 %v1492, %v2338
        %v2583 = vadd.f32 %v1493, %v2343
        %v2584 = vadd.f32 %v1494, %v2348
        %v2585 = vadd.f32 %v1495, %v2353
        %v2586 = vadd.f32 %v1496, %v2358
        %v2587 = vadd.f32 %v1497, %v2363
        %v2588 = vadd.f32 %v1498, %v2368
        %v2589 = vadd.f32 %v1499, %v2373
        %v2590 = vadd.f32 %v1500, %v2378
        %v2591 = vadd.f32 %v1501, %v2383
        %v2592 = vadd.f32 %v1502, %v2388
        %v2593 = vadd.f32 %v1503, %v2393
        %v2594 = vadd.f32 %v1504, %v2398
        %v2595 = vadd.f32 %v1505, %v2403
        %v2596 = vadd.f32 %v1506, %v2408
        %v2597 = vadd.f32 %v1507, %v2413
        %v2598 = vadd.f32 %v1508, %v2418
        %v2599 = vadd.f32 %v1509, %v2423
        %v2600 = vadd.f32 %v1510, %v2428
        %v2601 = vadd.f32 %v1511, %v2433
        %v2602 = vadd.f32 %v1512, %v2438
        %v2603 = vadd.f32 %v1513, %v2443
        %v2604 = vadd.f32 %v1514, %v2448
        %v2605 = vadd.f32 %v1515, %v2453
        %v2606 = vadd.f32 %v1516, %v2458
        %v2607 = vadd.f32 %v1517, %v2463
        %v2608 = vadd.f32 %v1518, %v2468
        %v2609 = vadd.f32 %v1519, %v2473
        %v2610 = vadd.f32 %v1520, %v2478
        %v2611 = vadd.f32 %v1521, %v2483
        %v2612 = vadd.f32 %v1522, %v2488
        %v2613 = vadd.f32 %v1523, %v2493
        %v2614 = vadd.f32 %v1524, %v2498
        %v2615 = vadd.f32 %v1525, %v2503
        %v2616 = vadd.f32 %v1526, %v2508
        %v2617 = vadd.f32 %v1527, %v2513
        %2618 = vst.msk [vmem:[#allocation2] sm:$0xff] %vm1322, %v2516
        %2619 = vst.msk [vmem:[#allocation2 + $0x8] sm:$0xff] %vm1322, %v2517
        %2620 = vst.msk [vmem:[#allocation2 + $0x10] sm:$0xff] %vm1322, %v2518
        %2621 = vst.msk [vmem:[#allocation2 + $0x18] sm:$0xff] %vm1322, %v2519
        %2622 = vst.msk [vmem:[#allocation2 + $0x20] sm:$0xff] %vm1322, %v2520
        %2623 = vst.msk [vmem:[#allocation2 + $0x28] sm:$0xff] %vm1322, %v2521
        %2624 = vst.msk [vmem:[#allocation2 + $0x30] sm:$0xff] %vm1322, %v2522
        %2625 = vst.msk [vmem:[#allocation2 + $0x38] sm:$0xff] %vm1322, %v2523
        %2626 = vst.msk [vmem:[#allocation2 + $0x40] sm:$0xff] %vm1322, %v2524
        %2627 = vst.msk [vmem:[#allocation2 + $0x48] sm:$0xff] %vm1322, %v2525
        %2628 = vst.msk [vmem:[#allocation2 + $0x50] sm:$0xff] %vm1322, %v2526
        %2629 = vst.msk [vmem:[#allocation2 + $0x58] sm:$0xff] %vm1322, %v2527
        %2630 = vst.msk [vmem:[#allocation2 + $0x60] sm:$0xff] %vm1322, %v2528
        %2631 = vst.msk [vmem:[#allocation2 + $0x68] sm:$0xff] %vm1322, %v2529
        %2632 = vst.msk [vmem:[#allocation2 + $0x70] sm:$0xff] %vm1322, %v2530
        %2633 = vst.msk [vmem:[#allocation2 + $0x78] sm:$0xff] %vm1322, %v2531
        %2634 = vst.msk [vmem:[#allocation2 + $0x80] sm:$0xff] %vm1322, %v2532
        %2635 = vst.msk [vmem:[#allocation2 + $0x88] sm:$0xff] %vm1322, %v2533
        %2636 = vst.msk [vmem:[#allocation2 + $0x90] sm:$0xff] %vm1322, %v2534
        %2637 = vst.msk [vmem:[#allocation2 + $0x98] sm:$0xff] %vm1322, %v2535
        %2638 = vst.msk [vmem:[#allocation2 + $0xa0] sm:$0xff] %vm1322, %v2536
        %2639 = vst.msk [vmem:[#allocation2 + $0xa8] sm:$0xff] %vm1322, %v2537
        %2640 = vst.msk [vmem:[#allocation2 + $0xb0] sm:$0xff] %vm1322, %v2538
        %2641 = vst.msk [vmem:[#allocation2 + $0xb8] sm:$0xff] %vm1322, %v2539
        %2642 = vst.msk [vmem:[#allocation2 + $0xc0] sm:$0xff] %vm1322, %v2540
        %2643 = vst.msk [vmem:[#allocation2 + $0xc8] sm:$0xff] %vm1322, %v2541
        %2644 = vst.msk [vmem:[#allocation2 + $0xd0] sm:$0xff] %vm1322, %v2542
        %2645 = vst.msk [vmem:[#allocation2 + $0xd8] sm:$0xff] %vm1322, %v2543
        %2646 = vst.msk [vmem:[#allocation2 + $0xe0] sm:$0xff] %vm1322, %v2544
        %2647 = vst.msk [vmem:[#allocation2 + $0xe8] sm:$0xff] %vm1322, %v2545
        %2648 = vst.msk [vmem:[#allocation2 + $0xf0] sm:$0xff] %vm1322, %v2546
        %2649 = vst.msk [vmem:[#allocation2 + $0xf8] sm:$0xff] %vm1322, %v2547
        %2650 = vst.msk [vmem:[#allocation2 + $0x100] sm:$0xff] %vm1322, %v2548
        %2651 = vst.msk [vmem:[#allocation2 + $0x108] sm:$0xff] %vm1322, %v2549
        %2652 = vst.msk [vmem:[#allocation2 + $0x110] sm:$0xff] %vm1322, %v2550
        %2653 = vst.msk [vmem:[#allocation2 + $0x118] sm:$0xff] %vm1322, %v2551
        %2654 = vst.msk [vmem:[#allocation2 + $0x120] sm:$0xff] %vm1322, %v2552
        %2655 = vst.msk [vmem:[#allocation2 + $0x128] sm:$0xff] %vm1322, %v2553
        %2656 = vst.msk [vmem:[#allocation2 + $0x130] sm:$0xff] %vm1322, %v2554
        %2657 = vst.msk [vmem:[#allocation2 + $0x138] sm:$0xff] %vm1322, %v2555
        %2658 = vst.msk [vmem:[#allocation2 + $0x140] sm:$0xff] %vm1322, %v2556
        %2659 = vst.msk [vmem:[#allocation2 + $0x148] sm:$0xff] %vm1322, %v2557
        %2660 = vst.msk [vmem:[#allocation2 + $0x150] sm:$0xff] %vm1322, %v2558
        %2661 = vst.msk [vmem:[#allocation2 + $0x158] sm:$0xff] %vm1322, %v2559
        %2662 = vst.msk [vmem:[#allocation2 + $0x160] sm:$0xff] %vm1322, %v2560
        %2663 = vst.msk [vmem:[#allocation2 + $0x168] sm:$0xff] %vm1322, %v2561
        %2664 = vst.msk [vmem:[#allocation2 + $0x170] sm:$0xff] %vm1322, %v2562
        %2665 = vst.msk [vmem:[#allocation2 + $0x178] sm:$0xff] %vm1322, %v2563
        %2666 = vst.msk [vmem:[#allocation2 + $0x180] sm:$0xff] %vm1322, %v2564
        %2667 = vst.msk [vmem:[#allocation2 + $0x188] sm:$0xff] %vm1322, %v2565
        %2668 = vst.msk [vmem:[#allocation2 + $0x190] sm:$0xff] %vm1322, %v2566
        %2669 = vst.msk [vmem:[#allocation2 + $0x198] sm:$0xff] %vm1322, %v2567
        %2670 = vst.msk [vmem:[#allocation2 + $0x1a0] sm:$0xff] %vm1322, %v2568
        %2671 = vst.msk [vmem:[#allocation2 + $0x1a8] sm:$0xff] %vm1322, %v2569
        %2672 = vst.msk [vmem:[#allocation2 + $0x1b0] sm:$0xff] %vm1322, %v2570
        %2673 = vst.msk [vmem:[#allocation2 + $0x1b8] sm:$0xff] %vm1322, %v2571
        %2674 = vst.msk [vmem:[#allocation2 + $0x1c0] sm:$0xff] %vm1322, %v2572
        %2675 = vst.msk [vmem:[#allocation2 + $0x1c8] sm:$0xff] %vm1322, %v2573
        %2676 = vst.msk [vmem:[#allocation2 + $0x1d0] sm:$0xff] %vm1322, %v2574
        %2677 = vst.msk [vmem:[#allocation2 + $0x1d8] sm:$0xff] %vm1322, %v2575
        %2678 = vst.msk [vmem:[#allocation2 + $0x1e0] sm:$0xff] %vm1322, %v2576
        %2679 = vst.msk [vmem:[#allocation2 + $0x1e8] sm:$0xff] %vm1322, %v2577
        %2680 = vst.msk [vmem:[#allocation2 + $0x1f0] sm:$0xff] %vm1322, %v2578
        %2681 = vst.msk [vmem:[#allocation2 + $0x1f8] sm:$0xff] %vm1322, %v2579
        %2682 = vst.msk [vmem:[#allocation2 + $0x200] sm:$0xff] %vm1322, %v2580
        %2683 = vst.msk [vmem:[#allocation2 + $0x208] sm:$0xff] %vm1322, %v2581
        %2684 = vst.msk [vmem:[#allocation2 + $0x210] sm:$0xff] %vm1322, %v2582
        %2685 = vst.msk [vmem:[#allocation2 + $0x218] sm:$0xff] %vm1322, %v2583
        %2686 = vst.msk [vmem:[#allocation2 + $0x220] sm:$0xff] %vm1322, %v2584
        %2687 = vst.msk [vmem:[#allocation2 + $0x228] sm:$0xff] %vm1322, %v2585
        %2688 = vst.msk [vmem:[#allocation2 + $0x230] sm:$0xff] %vm1322, %v2586
        %2689 = vst.msk [vmem:[#allocation2 + $0x238] sm:$0xff] %vm1322, %v2587
        %2690 = vst.msk [vmem:[#allocation2 + $0x240] sm:$0xff] %vm1322, %v2588
        %2691 = vst.msk [vmem:[#allocation2 + $0x248] sm:$0xff] %vm1322, %v2589
        %2692 = vst.msk [vmem:[#allocation2 + $0x250] sm:$0xff] %vm1322, %v2590
        %2693 = vst.msk [vmem:[#allocation2 + $0x258] sm:$0xff] %vm1322, %v2591
        %2694 = vst.msk [vmem:[#allocation2 + $0x260] sm:$0xff] %vm1322, %v2592
        %2695 = vst.msk [vmem:[#allocation2 + $0x268] sm:$0xff] %vm1322, %v2593
        %2696 = vst.msk [vmem:[#allocation2 + $0x270] sm:$0xff] %vm1322, %v2594
        %2697 = vst.msk [vmem:[#allocation2 + $0x278] sm:$0xff] %vm1322, %v2595
        %2698 = vst.msk [vmem:[#allocation2 + $0x280] sm:$0xff] %vm1322, %v2596
        %2699 = vst.msk [vmem:[#allocation2 + $0x288] sm:$0xff] %vm1322, %v2597
        %2700 = vst.msk [vmem:[#allocation2 + $0x290] sm:$0xff] %vm1322, %v2598
        %2701 = vst.msk [vmem:[#allocation2 + $0x298] sm:$0xff] %vm1322, %v2599
        %2702 = vst.msk [vmem:[#allocation2 + $0x2a0] sm:$0xff] %vm1322, %v2600
        %2703 = vst.msk [vmem:[#allocation2 + $0x2a8] sm:$0xff] %vm1322, %v2601
        %2704 = vst.msk [vmem:[#allocation2 + $0x2b0] sm:$0xff] %vm1322, %v2602
        %2705 = vst.msk [vmem:[#allocation2 + $0x2b8] sm:$0xff] %vm1322, %v2603
        %2706 = vst.msk [vmem:[#allocation2 + $0x2c0] sm:$0xff] %vm1322, %v2604
        %2707 = vst.msk [vmem:[#allocation2 + $0x2c8] sm:$0xff] %vm1322, %v2605
        %2708 = vst.msk [vmem:[#allocation2 + $0x2d0] sm:$0xff] %vm1322, %v2606
        %2709 = vst.msk [vmem:[#allocation2 + $0x2d8] sm:$0xff] %vm1322, %v2607
        %2710 = vst.msk [vmem:[#allocation2 + $0x2e0] sm:$0xff] %vm1322, %v2608
        %2711 = vst.msk [vmem:[#allocation2 + $0x2e8] sm:$0xff] %vm1322, %v2609
        %2712 = vst.msk [vmem:[#allocation2 + $0x2f0] sm:$0xff] %vm1322, %v2610
        %2713 = vst.msk [vmem:[#allocation2 + $0x2f8] sm:$0xff] %vm1322, %v2611
        %2714 = vst.msk [vmem:[#allocation2 + $0x300] sm:$0xff] %vm1322, %v2612
        %2715 = vst.msk [vmem:[#allocation2 + $0x308] sm:$0xff] %vm1322, %v2613
        %2716 = vst.msk [vmem:[#allocation2 + $0x310] sm:$0xff] %vm1322, %v2614
        %2717 = vst.msk [vmem:[#allocation2 + $0x318] sm:$0xff] %vm1322, %v2615
        %2718 = vst.msk [vmem:[#allocation2 + $0x320] sm:$0xff] %vm1322, %v2616
        %2719 = vst.msk [vmem:[#allocation2 + $0x328] sm:$0x3f] %vm1424, %v2617
        %v2720 = vld [vmem:[#allocation2] sm:$0xff]
        %v2721 = vld [vmem:[#allocation2 + $0x8] sm:$0xff]
        %v2722 = vld [vmem:[#allocation2 + $0x10] sm:$0xff]
        %v2723 = vld [vmem:[#allocation2 + $0x18] sm:$0xff]
        %v2724 = vld [vmem:[#allocation2 + $0x20] sm:$0xff]
        %v2725 = vld [vmem:[#allocation2 + $0x28] sm:$0xff]
        %v2726 = vld [vmem:[#allocation2 + $0x30] sm:$0xff]
        %v2727 = vld [vmem:[#allocation2 + $0x38] sm:$0xff]
        %v2728 = vld [vmem:[#allocation2 + $0x40] sm:$0xff]
        %v2729 = vld [vmem:[#allocation2 + $0x48] sm:$0xff]
        %v2730 = vld [vmem:[#allocation2 + $0x50] sm:$0xff]
        %v2731 = vld [vmem:[#allocation2 + $0x58] sm:$0xff]
        %v2732 = vld [vmem:[#allocation2 + $0x60] sm:$0xff]
        %v2733 = vld [vmem:[#allocation2 + $0x68] sm:$0xff]
        %v2734 = vld [vmem:[#allocation2 + $0x70] sm:$0xff]
        %v2735 = vld [vmem:[#allocation2 + $0x78] sm:$0xff]
        %v2736 = vld [vmem:[#allocation2 + $0x80] sm:$0xff]
        %v2737 = vld [vmem:[#allocation2 + $0x88] sm:$0xff]
        %v2738 = vld [vmem:[#allocation2 + $0x90] sm:$0xff]
        %v2739 = vld [vmem:[#allocation2 + $0x98] sm:$0xff]
        %v2740 = vld [vmem:[#allocation2 + $0xa0] sm:$0xff]
        %v2741 = vld [vmem:[#allocation2 + $0xa8] sm:$0xff]
        %v2742 = vld [vmem:[#allocation2 + $0xb0] sm:$0xff]
        %v2743 = vld [vmem:[#allocation2 + $0xb8] sm:$0xff]
        %v2744 = vld [vmem:[#allocation2 + $0xc0] sm:$0xff]
        %v2745 = vld [vmem:[#allocation2 + $0xc8] sm:$0xff]
        %v2746 = vld [vmem:[#allocation2 + $0xd0] sm:$0xff]
        %v2747 = vld [vmem:[#allocation2 + $0xd8] sm:$0xff]
        %v2748 = vld [vmem:[#allocation2 + $0xe0] sm:$0xff]
        %v2749 = vld [vmem:[#allocation2 + $0xe8] sm:$0xff]
        %v2750 = vld [vmem:[#allocation2 + $0xf0] sm:$0xff]
        %v2751 = vld [vmem:[#allocation2 + $0xf8] sm:$0xff]
        %v2752 = vld [vmem:[#allocation2 + $0x100] sm:$0xff]
        %v2753 = vld [vmem:[#allocation2 + $0x108] sm:$0xff]
        %v2754 = vld [vmem:[#allocation2 + $0x110] sm:$0xff]
        %v2755 = vld [vmem:[#allocation2 + $0x118] sm:$0xff]
        %v2756 = vld [vmem:[#allocation2 + $0x120] sm:$0xff]
        %v2757 = vld [vmem:[#allocation2 + $0x128] sm:$0xff]
        %v2758 = vld [vmem:[#allocation2 + $0x130] sm:$0xff]
        %v2759 = vld [vmem:[#allocation2 + $0x138] sm:$0xff]
        %v2760 = vld [vmem:[#allocation2 + $0x140] sm:$0xff]
        %v2761 = vld [vmem:[#allocation2 + $0x148] sm:$0xff]
        %v2762 = vld [vmem:[#allocation2 + $0x150] sm:$0xff]
        %v2763 = vld [vmem:[#allocation2 + $0x158] sm:$0xff]
        %v2764 = vld [vmem:[#allocation2 + $0x160] sm:$0xff]
        %v2765 = vld [vmem:[#allocation2 + $0x168] sm:$0xff]
        %v2766 = vld [vmem:[#allocation2 + $0x170] sm:$0xff]
        %v2767 = vld [vmem:[#allocation2 + $0x178] sm:$0xff]
        %v2768 = vld [vmem:[#allocation2 + $0x180] sm:$0xff]
        %v2769 = vld [vmem:[#allocation2 + $0x188] sm:$0xff]
        %v2770 = vld [vmem:[#allocation2 + $0x190] sm:$0xff]
        %v2771 = vld [vmem:[#allocation2 + $0x198] sm:$0xff]
        %v2772 = vld [vmem:[#allocation2 + $0x1a0] sm:$0xff]
        %v2773 = vld [vmem:[#allocation2 + $0x1a8] sm:$0xff]
        %v2774 = vld [vmem:[#allocation2 + $0x1b0] sm:$0xff]
        %v2775 = vld [vmem:[#allocation2 + $0x1b8] sm:$0xff]
        %v2776 = vld [vmem:[#allocation2 + $0x1c0] sm:$0xff]
        %v2777 = vld [vmem:[#allocation2 + $0x1c8] sm:$0xff]
        %v2778 = vld [vmem:[#allocation2 + $0x1d0] sm:$0xff]
        %v2779 = vld [vmem:[#allocation2 + $0x1d8] sm:$0xff]
        %v2780 = vld [vmem:[#allocation2 + $0x1e0] sm:$0xff]
        %v2781 = vld [vmem:[#allocation2 + $0x1e8] sm:$0xff]
        %v2782 = vld [vmem:[#allocation2 + $0x1f0] sm:$0xff]
        %v2783 = vld [vmem:[#allocation2 + $0x1f8] sm:$0xff]
        %v2784 = vld [vmem:[#allocation2 + $0x200] sm:$0xff]
        %v2785 = vld [vmem:[#allocation2 + $0x208] sm:$0xff]
        %v2786 = vld [vmem:[#allocation2 + $0x210] sm:$0xff]
        %v2787 = vld [vmem:[#allocation2 + $0x218] sm:$0xff]
        %v2788 = vld [vmem:[#allocation2 + $0x220] sm:$0xff]
        %v2789 = vld [vmem:[#allocation2 + $0x228] sm:$0xff]
        %v2790 = vld [vmem:[#allocation2 + $0x230] sm:$0xff]
        %v2791 = vld [vmem:[#allocation2 + $0x238] sm:$0xff]
        %v2792 = vld [vmem:[#allocation2 + $0x240] sm:$0xff]
        %v2793 = vld [vmem:[#allocation2 + $0x248] sm:$0xff]
        %v2794 = vld [vmem:[#allocation2 + $0x250] sm:$0xff]
        %v2795 = vld [vmem:[#allocation2 + $0x258] sm:$0xff]
        %v2796 = vld [vmem:[#allocation2 + $0x260] sm:$0xff]
        %v2797 = vld [vmem:[#allocation2 + $0x268] sm:$0xff]
        %v2798 = vld [vmem:[#allocation2 + $0x270] sm:$0xff]
        %v2799 = vld [vmem:[#allocation2 + $0x278] sm:$0xff]
        %v2800 = vld [vmem:[#allocation2 + $0x280] sm:$0xff]
        %v2801 = vld [vmem:[#allocation2 + $0x288] sm:$0xff]
        %v2802 = vld [vmem:[#allocation2 + $0x290] sm:$0xff]
        %v2803 = vld [vmem:[#allocation2 + $0x298] sm:$0xff]
        %v2804 = vld [vmem:[#allocation2 + $0x2a0] sm:$0xff]
        %v2805 = vld [vmem:[#allocation2 + $0x2a8] sm:$0xff]
        %v2806 = vld [vmem:[#allocation2 + $0x2b0] sm:$0xff]
        %v2807 = vld [vmem:[#allocation2 + $0x2b8] sm:$0xff]
        %v2808 = vld [vmem:[#allocation2 + $0x2c0] sm:$0xff]
        %v2809 = vld [vmem:[#allocation2 + $0x2c8] sm:$0xff]
        %v2810 = vld [vmem:[#allocation2 + $0x2d0] sm:$0xff]
        %v2811 = vld [vmem:[#allocation2 + $0x2d8] sm:$0xff]
        %v2812 = vld [vmem:[#allocation2 + $0x2e0] sm:$0xff]
        %v2813 = vld [vmem:[#allocation2 + $0x2e8] sm:$0xff]
        %v2814 = vld [vmem:[#allocation2 + $0x2f0] sm:$0xff]
        %v2815 = vld [vmem:[#allocation2 + $0x2f8] sm:$0xff]
        %v2816 = vld [vmem:[#allocation2 + $0x300] sm:$0xff]
        %v2817 = vld [vmem:[#allocation2 + $0x308] sm:$0xff]
        %v2818 = vld [vmem:[#allocation2 + $0x310] sm:$0xff]
        %v2819 = vld [vmem:[#allocation2 + $0x318] sm:$0xff]
        %v2820 = vld [vmem:[#allocation2 + $0x320] sm:$0xff]
        %v2821 = vld [vmem:[#allocation2 + $0x328] sm:$0x3f]
        %v2822 = vld [vmem:[%s331 + $0x2] sm:$0xff]
        %v2823 = vld [vmem:[%s331 + $0xa] sm:$0xff]
        %v2824 = vld [vmem:[%s331 + $0x12] sm:$0xff]
        %v2825 = vld [vmem:[%s331 + $0x1a] sm:$0xff]
        %v2826 = vld [vmem:[%s331 + $0x22] sm:$0xff]
        %v2827 = vld [vmem:[%s331 + $0x2a] sm:$0xff]
        %v2828 = vld [vmem:[%s331 + $0x32] sm:$0xff]
        %v2829 = vld [vmem:[%s331 + $0x3a] sm:$0xff]
        %v2830 = vld [vmem:[%s331 + $0x42] sm:$0xff]
        %v2831 = vld [vmem:[%s331 + $0x4a] sm:$0xff]
        %v2832 = vld [vmem:[%s331 + $0x52] sm:$0xff]
        %v2833 = vld [vmem:[%s331 + $0x5a] sm:$0xff]
        %v2834 = vld [vmem:[%s331 + $0x62] sm:$0xff]
        %v2835 = vld [vmem:[%s331 + $0x6a] sm:$0xff]
        %v2836 = vld [vmem:[%s331 + $0x72] sm:$0xff]
        %v2837 = vld [vmem:[%s331 + $0x7a] sm:$0xff]
        %v2838 = vld [vmem:[%s331 + $0x82] sm:$0xff]
        %v2839 = vld [vmem:[%s331 + $0x8a] sm:$0xff]
        %v2840 = vld [vmem:[%s331 + $0x92] sm:$0xff]
        %v2841 = vld [vmem:[%s331 + $0x9a] sm:$0xff]
        %v2842 = vld [vmem:[%s331 + $0xa2] sm:$0xff]
        %v2843 = vld [vmem:[%s331 + $0xaa] sm:$0xff]
        %v2844 = vld [vmem:[%s331 + $0xb2] sm:$0xff]
        %v2845 = vld [vmem:[%s331 + $0xba] sm:$0xff]
        %v2846 = vld [vmem:[%s331 + $0xc2] sm:$0xff]
        %v2847 = vld [vmem:[%s331 + $0xca] sm:$0xff]
        %v2848 = vld [vmem:[%s331 + $0xd2] sm:$0xff]
        %v2849 = vld [vmem:[%s331 + $0xda] sm:$0xff]
        %v2850 = vld [vmem:[%s331 + $0xe2] sm:$0xff]
        %v2851 = vld [vmem:[%s331 + $0xea] sm:$0xff]
        %v2852 = vld [vmem:[%s331 + $0xf2] sm:$0xff]
        %v2853 = vld [vmem:[%s331 + $0xfa] sm:$0xff]
        %v2854 = vld [vmem:[%s331 + $0x102] sm:$0xff]
        %v2855 = vld [vmem:[%s331 + $0x10a] sm:$0xff]
        %v2856 = vld [vmem:[%s331 + $0x112] sm:$0xff]
        %v2857 = vld [vmem:[%s331 + $0x11a] sm:$0xff]
        %v2858 = vld [vmem:[%s331 + $0x122] sm:$0xff]
        %v2859 = vld [vmem:[%s331 + $0x12a] sm:$0xff]
        %v2860 = vld [vmem:[%s331 + $0x132] sm:$0xff]
        %v2861 = vld [vmem:[%s331 + $0x13a] sm:$0xff]
        %v2862 = vld [vmem:[%s331 + $0x142] sm:$0xff]
        %v2863 = vld [vmem:[%s331 + $0x14a] sm:$0xff]
        %v2864 = vld [vmem:[%s331 + $0x152] sm:$0xff]
        %v2865 = vld [vmem:[%s331 + $0x15a] sm:$0xff]
        %v2866 = vld [vmem:[%s331 + $0x162] sm:$0xff]
        %v2867 = vld [vmem:[%s331 + $0x16a] sm:$0xff]
        %v2868 = vld [vmem:[%s331 + $0x172] sm:$0xff]
        %v2869 = vld [vmem:[%s331 + $0x17a] sm:$0xff]
        %v2870 = vld [vmem:[%s331 + $0x182] sm:$0xff]
        %v2871 = vld [vmem:[%s331 + $0x18a] sm:$0xff]
        %v2872 = vld [vmem:[%s331 + $0x192] sm:$0xff]
        %v2873 = vld [vmem:[%s331 + $0x19a] sm:$0xff]
        %v2874 = vld [vmem:[%s331 + $0x1a2] sm:$0xff]
        %v2875 = vld [vmem:[%s331 + $0x1aa] sm:$0xff]
        %v2876 = vld [vmem:[%s331 + $0x1b2] sm:$0xff]
        %v2877 = vld [vmem:[%s331 + $0x1ba] sm:$0xff]
        %v2878 = vld [vmem:[%s331 + $0x1c2] sm:$0xff]
        %v2879 = vld [vmem:[%s331 + $0x1ca] sm:$0xff]
        %v2880 = vld [vmem:[%s331 + $0x1d2] sm:$0xff]
        %v2881 = vld [vmem:[%s331 + $0x1da] sm:$0xff]
        %v2882 = vld [vmem:[%s331 + $0x1e2] sm:$0xff]
        %v2883 = vld [vmem:[%s331 + $0x1ea] sm:$0xff]
        %v2884 = vld [vmem:[%s331 + $0x1f2] sm:$0xff]
        %v2885 = vld [vmem:[%s331 + $0x1fa] sm:$0xff]
        %v2886 = vld [vmem:[%s331 + $0x202] sm:$0xff]
        %v2887 = vld [vmem:[%s331 + $0x20a] sm:$0xff]
        %v2888 = vld [vmem:[%s331 + $0x212] sm:$0xff]
        %v2889 = vld [vmem:[%s331 + $0x21a] sm:$0xff]
        %v2890 = vld [vmem:[%s331 + $0x222] sm:$0xff]
        %v2891 = vld [vmem:[%s331 + $0x22a] sm:$0xff]
        %v2892 = vld [vmem:[%s331 + $0x232] sm:$0xff]
        %v2893 = vld [vmem:[%s331 + $0x23a] sm:$0xff]
        %v2894 = vld [vmem:[%s331 + $0x242] sm:$0xff]
        %v2895 = vld [vmem:[%s331 + $0x24a] sm:$0xff]
        %v2896 = vld [vmem:[%s331 + $0x252] sm:$0xff]
        %v2897 = vld [vmem:[%s331 + $0x25a] sm:$0xff]
        %v2898 = vld [vmem:[%s331 + $0x262] sm:$0xff]
        %v2899 = vld [vmem:[%s331 + $0x26a] sm:$0xff]
        %v2900 = vld [vmem:[%s331 + $0x272] sm:$0xff]
        %v2901 = vld [vmem:[%s331 + $0x27a] sm:$0xff]
        %v2902 = vld [vmem:[%s331 + $0x282] sm:$0xff]
        %v2903 = vld [vmem:[%s331 + $0x28a] sm:$0xff]
        %v2904 = vld [vmem:[%s331 + $0x292] sm:$0xff]
        %v2905 = vld [vmem:[%s331 + $0x29a] sm:$0xff]
        %v2906 = vld [vmem:[%s331 + $0x2a2] sm:$0xff]
        %v2907 = vld [vmem:[%s331 + $0x2aa] sm:$0xff]
        %v2908 = vld [vmem:[%s331 + $0x2b2] sm:$0xff]
        %v2909 = vld [vmem:[%s331 + $0x2ba] sm:$0xff]
        %v2910 = vld [vmem:[%s331 + $0x2c2] sm:$0xff]
        %v2911 = vld [vmem:[%s331 + $0x2ca] sm:$0xff]
        %v2912 = vld [vmem:[%s331 + $0x2d2] sm:$0xff]
        %v2913 = vld [vmem:[%s331 + $0x2da] sm:$0xff]
        %v2914 = vld [vmem:[%s331 + $0x2e2] sm:$0xff]
        %v2915 = vld [vmem:[%s331 + $0x2ea] sm:$0xff]
        %v2916 = vld [vmem:[%s331 + $0x2f2] sm:$0xff]
        %v2917 = vld [vmem:[%s331 + $0x2fa] sm:$0xff]
        %v2918 = vld [vmem:[%s331 + $0x302] sm:$0xff]
        %v2919 = vld [vmem:[%s331 + $0x30a] sm:$0xff]
        %v2920 = vld [vmem:[%s331 + $0x312] sm:$0xff]
        %v2921 = vld [vmem:[%s331 + $0x31a] sm:$0xff]
        %v2922 = vld [vmem:[%s331 + $0x322] sm:$0xff]
        %v2923 = vld [vmem:[%s331 + $0x32a] sm:$0x3f]
        %s2924 = scalar_lea.vmem %s1, 8
        %v2925 = vld [vmem:[%s2924] sm:$0xf]
        %v2927 = vsel %vm436, %v2822, 0
        %v2930 = vsel %vm436, %v2823, 0
        %v2933 = vsel %vm436, %v2824, 0
        %v2936 = vsel %vm436, %v2825, 0
        %v2939 = vsel %vm436, %v2826, 0
        %v2942 = vsel %vm436, %v2827, 0
        %v2945 = vsel %vm436, %v2828, 0
        %v2948 = vsel %vm436, %v2829, 0
        %v2951 = vsel %vm436, %v2830, 0
        %v2954 = vsel %vm436, %v2831, 0
        %v2957 = vsel %vm436, %v2832, 0
        %v2960 = vsel %vm436, %v2833, 0
        %v2963 = vsel %vm436, %v2834, 0
        %v2966 = vsel %vm436, %v2835, 0
        %v2969 = vsel %vm436, %v2836, 0
        %v2972 = vsel %vm436, %v2837, 0
        %v2975 = vsel %vm436, %v2838, 0
        %v2978 = vsel %vm436, %v2839, 0
        %v2981 = vsel %vm436, %v2840, 0
        %v2984 = vsel %vm436, %v2841, 0
        %v2987 = vsel %vm436, %v2842, 0
        %v2990 = vsel %vm436, %v2843, 0
        %v2993 = vsel %vm436, %v2844, 0
        %v2996 = vsel %vm436, %v2845, 0
        %v2999 = vsel %vm436, %v2846, 0
        %v3002 = vsel %vm436, %v2847, 0
        %v3005 = vsel %vm436, %v2848, 0
        %v3008 = vsel %vm436, %v2849, 0
        %v3011 = vsel %vm436, %v2850, 0
        %v3014 = vsel %vm436, %v2851, 0
        %v3017 = vsel %vm436, %v2852, 0
        %v3020 = vsel %vm436, %v2853, 0
        %v3023 = vsel %vm436, %v2854, 0
        %v3026 = vsel %vm436, %v2855, 0
        %v3029 = vsel %vm436, %v2856, 0
        %v3032 = vsel %vm436, %v2857, 0
        %v3035 = vsel %vm436, %v2858, 0
        %v3038 = vsel %vm436, %v2859, 0
        %v3041 = vsel %vm436, %v2860, 0
        %v3044 = vsel %vm436, %v2861, 0
        %v3047 = vsel %vm436, %v2862, 0
        %v3050 = vsel %vm436, %v2863, 0
        %v3053 = vsel %vm436, %v2864, 0
        %v3056 = vsel %vm436, %v2865, 0
        %v3059 = vsel %vm436, %v2866, 0
        %v3062 = vsel %vm436, %v2867, 0
        %v3065 = vsel %vm436, %v2868, 0
        %v3068 = vsel %vm436, %v2869, 0
        %v3071 = vsel %vm436, %v2870, 0
        %v3074 = vsel %vm436, %v2871, 0
        %v3077 = vsel %vm436, %v2872, 0
        %v3080 = vsel %vm436, %v2873, 0
        %v3083 = vsel %vm436, %v2874, 0
        %v3086 = vsel %vm436, %v2875, 0
        %v3089 = vsel %vm436, %v2876, 0
        %v3092 = vsel %vm436, %v2877, 0
        %v3095 = vsel %vm436, %v2878, 0
        %v3098 = vsel %vm436, %v2879, 0
        %v3101 = vsel %vm436, %v2880, 0
        %v3104 = vsel %vm436, %v2881, 0
        %v3107 = vsel %vm436, %v2882, 0
        %v3110 = vsel %vm436, %v2883, 0
        %v3113 = vsel %vm436, %v2884, 0
        %v3116 = vsel %vm436, %v2885, 0
        %v3119 = vsel %vm436, %v2886, 0
        %v3122 = vsel %vm436, %v2887, 0
        %v3125 = vsel %vm436, %v2888, 0
        %v3128 = vsel %vm436, %v2889, 0
        %v3131 = vsel %vm436, %v2890, 0
        %v3134 = vsel %vm436, %v2891, 0
        %v3137 = vsel %vm436, %v2892, 0
        %v3140 = vsel %vm436, %v2893, 0
        %v3143 = vsel %vm436, %v2894, 0
        %v3146 = vsel %vm436, %v2895, 0
        %v3149 = vsel %vm436, %v2896, 0
        %v3152 = vsel %vm436, %v2897, 0
        %v3155 = vsel %vm436, %v2898, 0
        %v3158 = vsel %vm436, %v2899, 0
        %v3161 = vsel %vm436, %v2900, 0
        %v3164 = vsel %vm436, %v2901, 0
        %v3167 = vsel %vm436, %v2902, 0
        %v3170 = vsel %vm436, %v2903, 0
        %v3173 = vsel %vm436, %v2904, 0
        %v3176 = vsel %vm436, %v2905, 0
        %v3179 = vsel %vm436, %v2906, 0
        %v3182 = vsel %vm436, %v2907, 0
        %v3185 = vsel %vm436, %v2908, 0
        %v3188 = vsel %vm436, %v2909, 0
        %v3191 = vsel %vm436, %v2910, 0
        %v3194 = vsel %vm436, %v2911, 0
        %v3197 = vsel %vm436, %v2912, 0
        %v3200 = vsel %vm436, %v2913, 0
        %v3203 = vsel %vm436, %v2914, 0
        %v3206 = vsel %vm436, %v2915, 0
        %v3209 = vsel %vm436, %v2916, 0
        %v3212 = vsel %vm436, %v2917, 0
        %v3215 = vsel %vm436, %v2918, 0
        %v3218 = vsel %vm436, %v2919, 0
        %v3221 = vsel %vm436, %v2920, 0
        %v3224 = vsel %vm436, %v2921, 0
        %v3227 = vsel %vm436, %v2922, 0
        %v3230 = vsel %vm436, %v2923, 0
        %v3233 = vsel %vm743, %v2925, 0
        %3235 = vmatprep.subr.mxu0 0.0
        %3236 = vmatpush1.msra.mxu0 %v3233
        %3237 = vmatprep.subr.mxu0 0.0
        %3238 = vmatpush1.msra.mxu0 0.0
        %3239 = vmatprep.subr.mxu0 0.0
        %3240 = vmatpush1.msra.mxu0 0.0
        %3241 = vmatprep.subr.mxu0 0.0
        %3242 = vmatpush1.msra.mxu0 0.0
        %3243 = vmatprep.subr.mxu0 0.0
        %3244 = vmatpush1.msra.mxu0 0.0
        %3245 = vmatprep.subr.mxu0 0.0
        %3246 = vmatpush1.msra.mxu0 0.0
        %3247 = vmatprep.subr.mxu0 0.0
        %3248 = vmatpush1.msra.mxu0 0.0
        %3249 = vmatprep.subr.mxu0 0.0
        %3250 = vmatpush1.msra.mxu0 0.0
        %3251 = vmatprep.subr.mxu0 0.0
        %3252 = vmatpush1.msra.mxu0 0.0
        %3253 = vmatprep.subr.mxu0 0.0
        %3254 = vmatpush1.msra.mxu0 0.0
        %3255 = vmatprep.subr.mxu0 0.0
        %3256 = vmatpush1.msra.mxu0 0.0
        %3257 = vmatprep.subr.mxu0 0.0
        %3258 = vmatpush1.msra.mxu0 0.0
        %3259 = vmatprep.subr.mxu0 0.0
        %3260 = vmatpush1.msra.mxu0 0.0
        %3261 = vmatprep.subr.mxu0 0.0
        %3262 = vmatpush1.msra.mxu0 0.0
        %3263 = vmatprep.subr.mxu0 0.0
        %3264 = vmatpush1.msra.mxu0 0.0
        %3265 = vmatprep.subr.mxu0 0.0
        %3266 = vmatpush1.msra.mxu0 0.0
        %3267 = vmatprep.subr.mxu0 0.0
        %3268 = vmatpush1.msra.mxu0 0.0
        %3269 = vmatprep.subr.mxu0 0.0
        %3270 = vmatpush1.msra.mxu0 0.0
        %3271 = vmatprep.subr.mxu0 0.0
        %3272 = vmatpush1.msra.mxu0 0.0
        %3273 = vmatprep.subr.mxu0 0.0
        %3274 = vmatpush1.msra.mxu0 0.0
        %3275 = vmatprep.subr.mxu0 0.0
        %3276 = vmatpush1.msra.mxu0 0.0
        %3277 = vmatprep.subr.mxu0 0.0
        %3278 = vmatpush1.msra.mxu0 0.0
        %3279 = vmatprep.subr.mxu0 0.0
        %3280 = vmatpush1.msra.mxu0 0.0
        %3281 = vmatprep.subr.mxu0 0.0
        %3282 = vmatpush1.msra.mxu0 0.0
        %3283 = vmatprep.subr.mxu0 0.0
        %3284 = vmatpush1.msra.mxu0 0.0
        %3285 = vmatprep.subr.mxu0 0.0
        %3286 = vmatpush1.msra.mxu0 0.0
        %3287 = vmatprep.subr.mxu0 0.0
        %3288 = vmatpush1.msra.mxu0 0.0
        %3289 = vmatprep.subr.mxu0 0.0
        %3290 = vmatpush1.msra.mxu0 0.0
        %3291 = vmatprep.subr.mxu0 0.0
        %3292 = vmatpush1.msra.mxu0 0.0
        %3293 = vmatprep.subr.mxu0 0.0
        %3294 = vmatpush1.msra.mxu0 0.0
        %3295 = vmatprep.subr.mxu0 0.0
        %3296 = vmatpush1.msra.mxu0 0.0
        %3297 = vmatprep.subr.mxu0 0.0
        %3298 = vmatpush1.msra.mxu0 0.0
        %3299 = vmatprep.mubr.f32.mxu0 0.0
        %3300 = vmatmul.mubr.f32.gmra.mrb[0].mxu0 %v2927
        %v3301 = vpop.f32.mrb[0].mxu0
        %v3302 = vadd.f32 0.0, %v3301
        %v3303 = vpop.f32.mrb[0].mxu0
        %3304 = vmatprep.mubr.f32.mxu0 0.0
        %3305 = vmatmul.mubr.f32.gmra.mrb[0].mxu0 %v2930
        %v3306 = vpop.f32.mrb[0].mxu0
        %v3307 = vadd.f32 0.0, %v3306
        %v3308 = vpop.f32.mrb[0].mxu0
        %3309 = vmatprep.mubr.f32.mxu0 0.0
        %3310 = vmatmul.mubr.f32.gmra.mrb[0].mxu0 %v2933
        %v3311 = vpop.f32.mrb[0].mxu0
        %v3312 = vadd.f32 0.0, %v3311
        %v3313 = vpop.f32.mrb[0].mxu0
        %3314 = vmatprep.mubr.f32.mxu0 0.0
        %3315 = vmatmul.mubr.f32.gmra.mrb[0].mxu0 %v2936
        %v3316 = vpop.f32.mrb[0].mxu0
        %v3317 = vadd.f32 0.0, %v3316
        %v3318 = vpop.f32.mrb[0].mxu0
        %3319 = vmatprep.mubr.f32.mxu0 0.0
        %3320 = vmatmul.mubr.f32.gmra.mrb[0].mxu0 %v2939
        %v3321 = vpop.f32.mrb[0].mxu0
        %v3322 = vadd.f32 0.0, %v3321
        %v3323 = vpop.f32.mrb[0].mxu0
        %3324 = vmatprep.mubr.f32.mxu0 0.0
        %3325 = vmatmul.mubr.f32.gmra.mrb[0].mxu0 %v2942
        %v3326 = vpop.f32.mrb[0].mxu0
        %v3327 = vadd.f32 0.0, %v3326
        %v3328 = vpop.f32.mrb[0].mxu0
        %3329 = vmatprep.mubr.f32.mxu0 0.0
        %3330 = vmatmul.mubr.f32.gmra.mrb[0].mxu0 %v2945
        %v3331 = vpop.f32.mrb[0].mxu0
        %v3332 = vadd.f32 0.0, %v3331
        %v3333 = vpop.f32.mrb[0].mxu0
        %3334 = vmatprep.mubr.f32.mxu0 0.0
        %3335 = vmatmul.mubr.f32.gmra.mrb[0].mxu0 %v2948
        %v3336 = vpop.f32.mrb[0].mxu0
        %v3337 = vadd.f32 0.0, %v3336
        %v3338 = vpop.f32.mrb[0].mxu0
        %3339 = vmatprep.mubr.f32.mxu0 0.0
        %3340 = vmatmul.mubr.f32.gmra.mrb[0].mxu0 %v2951
        %v3341 = vpop.f32.mrb[0].mxu0
        %v3342 = vadd.f32 0.0, %v3341
        %v3343 = vpop.f32.mrb[0].mxu0
        %3344 = vmatprep.mubr.f32.mxu0 0.0
        %3345 = vmatmul.mubr.f32.gmra.mrb[0].mxu0 %v2954
        %v3346 = vpop.f32.mrb[0].mxu0
        %v3347 = vadd.f32 0.0, %v3346
        %v3348 = vpop.f32.mrb[0].mxu0
        %3349 = vmatprep.mubr.f32.mxu0 0.0
        %3350 = vmatmul.mubr.f32.gmra.mrb[0].mxu0 %v2957
        %v3351 = vpop.f32.mrb[0].mxu0
        %v3352 = vadd.f32 0.0, %v3351
        %v3353 = vpop.f32.mrb[0].mxu0
        %3354 = vmatprep.mubr.f32.mxu0 0.0
        %3355 = vmatmul.mubr.f32.gmra.mrb[0].mxu0 %v2960
        %v3356 = vpop.f32.mrb[0].mxu0
        %v3357 = vadd.f32 0.0, %v3356
        %v3358 = vpop.f32.mrb[0].mxu0
        %3359 = vmatprep.mubr.f32.mxu0 0.0
        %3360 = vmatmul.mubr.f32.gmra.mrb[0].mxu0 %v2963
        %v3361 = vpop.f32.mrb[0].mxu0
        %v3362 = vadd.f32 0.0, %v3361
        %v3363 = vpop.f32.mrb[0].mxu0
        %3364 = vmatprep.mubr.f32.mxu0 0.0
        %3365 = vmatmul.mubr.f32.gmra.mrb[0].mxu0 %v2966
        %v3366 = vpop.f32.mrb[0].mxu0
        %v3367 = vadd.f32 0.0, %v3366
        %v3368 = vpop.f32.mrb[0].mxu0
        %3369 = vmatprep.mubr.f32.mxu0 0.0
        %3370 = vmatmul.mubr.f32.gmra.mrb[0].mxu0 %v2969
        %v3371 = vpop.f32.mrb[0].mxu0
        %v3372 = vadd.f32 0.0, %v3371
        %v3373 = vpop.f32.mrb[0].mxu0
        %3374 = vmatprep.mubr.f32.mxu0 0.0
        %3375 = vmatmul.mubr.f32.gmra.mrb[0].mxu0 %v2972
        %v3376 = vpop.f32.mrb[0].mxu0
        %v3377 = vadd.f32 0.0, %v3376
        %v3378 = vpop.f32.mrb[0].mxu0
        %3379 = vmatprep.mubr.f32.mxu0 0.0
        %3380 = vmatmul.mubr.f32.gmra.mrb[0].mxu0 %v2975
        %v3381 = vpop.f32.mrb[0].mxu0
        %v3382 = vadd.f32 0.0, %v3381
        %v3383 = vpop.f32.mrb[0].mxu0
        %3384 = vmatprep.mubr.f32.mxu0 0.0
        %3385 = vmatmul.mubr.f32.gmra.mrb[0].mxu0 %v2978
        %v3386 = vpop.f32.mrb[0].mxu0
        %v3387 = vadd.f32 0.0, %v3386
        %v3388 = vpop.f32.mrb[0].mxu0
        %3389 = vmatprep.mubr.f32.mxu0 0.0
        %3390 = vmatmul.mubr.f32.gmra.mrb[0].mxu0 %v2981
        %v3391 = vpop.f32.mrb[0].mxu0
        %v3392 = vadd.f32 0.0, %v3391
        %v3393 = vpop.f32.mrb[0].mxu0
        %3394 = vmatprep.mubr.f32.mxu0 0.0
        %3395 = vmatmul.mubr.f32.gmra.mrb[0].mxu0 %v2984
        %v3396 = vpop.f32.mrb[0].mxu0
        %v3397 = vadd.f32 0.0, %v3396
        %v3398 = vpop.f32.mrb[0].mxu0
        %3399 = vmatprep.mubr.f32.mxu0 0.0
        %3400 = vmatmul.mubr.f32.gmra.mrb[0].mxu0 %v2987
        %v3401 = vpop.f32.mrb[0].mxu0
        %v3402 = vadd.f32 0.0, %v3401
        %v3403 = vpop.f32.mrb[0].mxu0
        %3404 = vmatprep.mubr.f32.mxu0 0.0
        %3405 = vmatmul.mubr.f32.gmra.mrb[0].mxu0 %v2990
        %v3406 = vpop.f32.mrb[0].mxu0
        %v3407 = vadd.f32 0.0, %v3406
        %v3408 = vpop.f32.mrb[0].mxu0
        %3409 = vmatprep.mubr.f32.mxu0 0.0
        %3410 = vmatmul.mubr.f32.gmra.mrb[0].mxu0 %v2993
        %v3411 = vpop.f32.mrb[0].mxu0
        %v3412 = vadd.f32 0.0, %v3411
        %v3413 = vpop.f32.mrb[0].mxu0
        %3414 = vmatprep.mubr.f32.mxu0 0.0
        %3415 = vmatmul.mubr.f32.gmra.mrb[0].mxu0 %v2996
        %v3416 = vpop.f32.mrb[0].mxu0
        %v3417 = vadd.f32 0.0, %v3416
        %v3418 = vpop.f32.mrb[0].mxu0
        %3419 = vmatprep.mubr.f32.mxu0 0.0
        %3420 = vmatmul.mubr.f32.gmra.mrb[0].mxu0 %v2999
        %v3421 = vpop.f32.mrb[0].mxu0
        %v3422 = vadd.f32 0.0, %v3421
        %v3423 = vpop.f32.mrb[0].mxu0
        %3424 = vmatprep.mubr.f32.mxu0 0.0
        %3425 = vmatmul.mubr.f32.gmra.mrb[0].mxu0 %v3002
        %v3426 = vpop.f32.mrb[0].mxu0
        %v3427 = vadd.f32 0.0, %v3426
        %v3428 = vpop.f32.mrb[0].mxu0
        %3429 = vmatprep.mubr.f32.mxu0 0.0
        %3430 = vmatmul.mubr.f32.gmra.mrb[0].mxu0 %v3005
        %v3431 = vpop.f32.mrb[0].mxu0
        %v3432 = vadd.f32 0.0, %v3431
        %v3433 = vpop.f32.mrb[0].mxu0
        %3434 = vmatprep.mubr.f32.mxu0 0.0
        %3435 = vmatmul.mubr.f32.gmra.mrb[0].mxu0 %v3008
        %v3436 = vpop.f32.mrb[0].mxu0
        %v3437 = vadd.f32 0.0, %v3436
        %v3438 = vpop.f32.mrb[0].mxu0
        %3439 = vmatprep.mubr.f32.mxu0 0.0
        %3440 = vmatmul.mubr.f32.gmra.mrb[0].mxu0 %v3011
        %v3441 = vpop.f32.mrb[0].mxu0
        %v3442 = vadd.f32 0.0, %v3441
        %v3443 = vpop.f32.mrb[0].mxu0
        %3444 = vmatprep.mubr.f32.mxu0 0.0
        %3445 = vmatmul.mubr.f32.gmra.mrb[0].mxu0 %v3014
        %v3446 = vpop.f32.mrb[0].mxu0
        %v3447 = vadd.f32 0.0, %v3446
        %v3448 = vpop.f32.mrb[0].mxu0
        %3449 = vmatprep.mubr.f32.mxu0 0.0
        %3450 = vmatmul.mubr.f32.gmra.mrb[0].mxu0 %v3017
        %v3451 = vpop.f32.mrb[0].mxu0
        %v3452 = vadd.f32 0.0, %v3451
        %v3453 = vpop.f32.mrb[0].mxu0
        %3454 = vmatprep.mubr.f32.mxu0 0.0
        %3455 = vmatmul.mubr.f32.gmra.mrb[0].mxu0 %v3020
        %v3456 = vpop.f32.mrb[0].mxu0
        %v3457 = vadd.f32 0.0, %v3456
        %v3458 = vpop.f32.mrb[0].mxu0
        %3459 = vmatprep.mubr.f32.mxu0 0.0
        %3460 = vmatmul.mubr.f32.gmra.mrb[0].mxu0 %v3023
        %v3461 = vpop.f32.mrb[0].mxu0
        %v3462 = vadd.f32 0.0, %v3461
        %v3463 = vpop.f32.mrb[0].mxu0
        %3464 = vmatprep.mubr.f32.mxu0 0.0
        %3465 = vmatmul.mubr.f32.gmra.mrb[0].mxu0 %v3026
        %v3466 = vpop.f32.mrb[0].mxu0
        %v3467 = vadd.f32 0.0, %v3466
        %v3468 = vpop.f32.mrb[0].mxu0
        %3469 = vmatprep.mubr.f32.mxu0 0.0
        %3470 = vmatmul.mubr.f32.gmra.mrb[0].mxu0 %v3029
        %v3471 = vpop.f32.mrb[0].mxu0
        %v3472 = vadd.f32 0.0, %v3471
        %v3473 = vpop.f32.mrb[0].mxu0
        %3474 = vmatprep.mubr.f32.mxu0 0.0
        %3475 = vmatmul.mubr.f32.gmra.mrb[0].mxu0 %v3032
        %v3476 = vpop.f32.mrb[0].mxu0
        %v3477 = vadd.f32 0.0, %v3476
        %v3478 = vpop.f32.mrb[0].mxu0
        %3479 = vmatprep.mubr.f32.mxu0 0.0
        %3480 = vmatmul.mubr.f32.gmra.mrb[0].mxu0 %v3035
        %v3481 = vpop.f32.mrb[0].mxu0
        %v3482 = vadd.f32 0.0, %v3481
        %v3483 = vpop.f32.mrb[0].mxu0
        %3484 = vmatprep.mubr.f32.mxu0 0.0
        %3485 = vmatmul.mubr.f32.gmra.mrb[0].mxu0 %v3038
        %v3486 = vpop.f32.mrb[0].mxu0
        %v3487 = vadd.f32 0.0, %v3486
        %v3488 = vpop.f32.mrb[0].mxu0
        %3489 = vmatprep.mubr.f32.mxu0 0.0
        %3490 = vmatmul.mubr.f32.gmra.mrb[0].mxu0 %v3041
        %v3491 = vpop.f32.mrb[0].mxu0
        %v3492 = vadd.f32 0.0, %v3491
        %v3493 = vpop.f32.mrb[0].mxu0
        %3494 = vmatprep.mubr.f32.mxu0 0.0
        %3495 = vmatmul.mubr.f32.gmra.mrb[0].mxu0 %v3044
        %v3496 = vpop.f32.mrb[0].mxu0
        %v3497 = vadd.f32 0.0, %v3496
        %v3498 = vpop.f32.mrb[0].mxu0
        %3499 = vmatprep.mubr.f32.mxu0 0.0
        %3500 = vmatmul.mubr.f32.gmra.mrb[0].mxu0 %v3047
        %v3501 = vpop.f32.mrb[0].mxu0
        %v3502 = vadd.f32 0.0, %v3501
        %v3503 = vpop.f32.mrb[0].mxu0
        %3504 = vmatprep.mubr.f32.mxu0 0.0
        %3505 = vmatmul.mubr.f32.gmra.mrb[0].mxu0 %v3050
        %v3506 = vpop.f32.mrb[0].mxu0
        %v3507 = vadd.f32 0.0, %v3506
        %v3508 = vpop.f32.mrb[0].mxu0
        %3509 = vmatprep.mubr.f32.mxu0 0.0
        %3510 = vmatmul.mubr.f32.gmra.mrb[0].mxu0 %v3053
        %v3511 = vpop.f32.mrb[0].mxu0
        %v3512 = vadd.f32 0.0, %v3511
        %v3513 = vpop.f32.mrb[0].mxu0
        %3514 = vmatprep.mubr.f32.mxu0 0.0
        %3515 = vmatmul.mubr.f32.gmra.mrb[0].mxu0 %v3056
        %v3516 = vpop.f32.mrb[0].mxu0
        %v3517 = vadd.f32 0.0, %v3516
        %v3518 = vpop.f32.mrb[0].mxu0
        %3519 = vmatprep.mubr.f32.mxu0 0.0
        %3520 = vmatmul.mubr.f32.gmra.mrb[0].mxu0 %v3059
        %v3521 = vpop.f32.mrb[0].mxu0
        %v3522 = vadd.f32 0.0, %v3521
        %v3523 = vpop.f32.mrb[0].mxu0
        %3524 = vmatprep.mubr.f32.mxu0 0.0
        %3525 = vmatmul.mubr.f32.gmra.mrb[0].mxu0 %v3062
        %v3526 = vpop.f32.mrb[0].mxu0
        %v3527 = vadd.f32 0.0, %v3526
        %v3528 = vpop.f32.mrb[0].mxu0
        %3529 = vmatprep.mubr.f32.mxu0 0.0
        %3530 = vmatmul.mubr.f32.gmra.mrb[0].mxu0 %v3065
        %v3531 = vpop.f32.mrb[0].mxu0
        %v3532 = vadd.f32 0.0, %v3531
        %v3533 = vpop.f32.mrb[0].mxu0
        %3534 = vmatprep.mubr.f32.mxu0 0.0
        %3535 = vmatmul.mubr.f32.gmra.mrb[0].mxu0 %v3068
        %v3536 = vpop.f32.mrb[0].mxu0
        %v3537 = vadd.f32 0.0, %v3536
        %v3538 = vpop.f32.mrb[0].mxu0
        %3539 = vmatprep.mubr.f32.mxu0 0.0
        %3540 = vmatmul.mubr.f32.gmra.mrb[0].mxu0 %v3071
        %v3541 = vpop.f32.mrb[0].mxu0
        %v3542 = vadd.f32 0.0, %v3541
        %v3543 = vpop.f32.mrb[0].mxu0
        %3544 = vmatprep.mubr.f32.mxu0 0.0
        %3545 = vmatmul.mubr.f32.gmra.mrb[0].mxu0 %v3074
        %v3546 = vpop.f32.mrb[0].mxu0
        %v3547 = vadd.f32 0.0, %v3546
        %v3548 = vpop.f32.mrb[0].mxu0
        %3549 = vmatprep.mubr.f32.mxu0 0.0
        %3550 = vmatmul.mubr.f32.gmra.mrb[0].mxu0 %v3077
        %v3551 = vpop.f32.mrb[0].mxu0
        %v3552 = vadd.f32 0.0, %v3551
        %v3553 = vpop.f32.mrb[0].mxu0
        %3554 = vmatprep.mubr.f32.mxu0 0.0
        %3555 = vmatmul.mubr.f32.gmra.mrb[0].mxu0 %v3080
        %v3556 = vpop.f32.mrb[0].mxu0
        %v3557 = vadd.f32 0.0, %v3556
        %v3558 = vpop.f32.mrb[0].mxu0
        %3559 = vmatprep.mubr.f32.mxu0 0.0
        %3560 = vmatmul.mubr.f32.gmra.mrb[0].mxu0 %v3083
        %v3561 = vpop.f32.mrb[0].mxu0
        %v3562 = vadd.f32 0.0, %v3561
        %v3563 = vpop.f32.mrb[0].mxu0
        %3564 = vmatprep.mubr.f32.mxu0 0.0
        %3565 = vmatmul.mubr.f32.gmra.mrb[0].mxu0 %v3086
        %v3566 = vpop.f32.mrb[0].mxu0
        %v3567 = vadd.f32 0.0, %v3566
        %v3568 = vpop.f32.mrb[0].mxu0
        %3569 = vmatprep.mubr.f32.mxu0 0.0
        %3570 = vmatmul.mubr.f32.gmra.mrb[0].mxu0 %v3089
        %v3571 = vpop.f32.mrb[0].mxu0
        %v3572 = vadd.f32 0.0, %v3571
        %v3573 = vpop.f32.mrb[0].mxu0
        %3574 = vmatprep.mubr.f32.mxu0 0.0
        %3575 = vmatmul.mubr.f32.gmra.mrb[0].mxu0 %v3092
        %v3576 = vpop.f32.mrb[0].mxu0
        %v3577 = vadd.f32 0.0, %v3576
        %v3578 = vpop.f32.mrb[0].mxu0
        %3579 = vmatprep.mubr.f32.mxu0 0.0
        %3580 = vmatmul.mubr.f32.gmra.mrb[0].mxu0 %v3095
        %v3581 = vpop.f32.mrb[0].mxu0
        %v3582 = vadd.f32 0.0, %v3581
        %v3583 = vpop.f32.mrb[0].mxu0
        %3584 = vmatprep.mubr.f32.mxu0 0.0
        %3585 = vmatmul.mubr.f32.gmra.mrb[0].mxu0 %v3098
        %v3586 = vpop.f32.mrb[0].mxu0
        %v3587 = vadd.f32 0.0, %v3586
        %v3588 = vpop.f32.mrb[0].mxu0
        %3589 = vmatprep.mubr.f32.mxu0 0.0
        %3590 = vmatmul.mubr.f32.gmra.mrb[0].mxu0 %v3101
        %v3591 = vpop.f32.mrb[0].mxu0
        %v3592 = vadd.f32 0.0, %v3591
        %v3593 = vpop.f32.mrb[0].mxu0
        %3594 = vmatprep.mubr.f32.mxu0 0.0
        %3595 = vmatmul.mubr.f32.gmra.mrb[0].mxu0 %v3104
        %v3596 = vpop.f32.mrb[0].mxu0
        %v3597 = vadd.f32 0.0, %v3596
        %v3598 = vpop.f32.mrb[0].mxu0
        %3599 = vmatprep.mubr.f32.mxu0 0.0
        %3600 = vmatmul.mubr.f32.gmra.mrb[0].mxu0 %v3107
        %v3601 = vpop.f32.mrb[0].mxu0
        %v3602 = vadd.f32 0.0, %v3601
        %v3603 = vpop.f32.mrb[0].mxu0
        %3604 = vmatprep.mubr.f32.mxu0 0.0
        %3605 = vmatmul.mubr.f32.gmra.mrb[0].mxu0 %v3110
        %v3606 = vpop.f32.mrb[0].mxu0
        %v3607 = vadd.f32 0.0, %v3606
        %v3608 = vpop.f32.mrb[0].mxu0
        %3609 = vmatprep.mubr.f32.mxu0 0.0
        %3610 = vmatmul.mubr.f32.gmra.mrb[0].mxu0 %v3113
        %v3611 = vpop.f32.mrb[0].mxu0
        %v3612 = vadd.f32 0.0, %v3611
        %v3613 = vpop.f32.mrb[0].mxu0
        %3614 = vmatprep.mubr.f32.mxu0 0.0
        %3615 = vmatmul.mubr.f32.gmra.mrb[0].mxu0 %v3116
        %v3616 = vpop.f32.mrb[0].mxu0
        %v3617 = vadd.f32 0.0, %v3616
        %v3618 = vpop.f32.mrb[0].mxu0
        %3619 = vmatprep.mubr.f32.mxu0 0.0
        %3620 = vmatmul.mubr.f32.gmra.mrb[0].mxu0 %v3119
        %v3621 = vpop.f32.mrb[0].mxu0
        %v3622 = vadd.f32 0.0, %v3621
        %v3623 = vpop.f32.mrb[0].mxu0
        %3624 = vmatprep.mubr.f32.mxu0 0.0
        %3625 = vmatmul.mubr.f32.gmra.mrb[0].mxu0 %v3122
        %v3626 = vpop.f32.mrb[0].mxu0
        %v3627 = vadd.f32 0.0, %v3626
        %v3628 = vpop.f32.mrb[0].mxu0
        %3629 = vmatprep.mubr.f32.mxu0 0.0
        %3630 = vmatmul.mubr.f32.gmra.mrb[0].mxu0 %v3125
        %v3631 = vpop.f32.mrb[0].mxu0
        %v3632 = vadd.f32 0.0, %v3631
        %v3633 = vpop.f32.mrb[0].mxu0
        %3634 = vmatprep.mubr.f32.mxu0 0.0
        %3635 = vmatmul.mubr.f32.gmra.mrb[0].mxu0 %v3128
        %v3636 = vpop.f32.mrb[0].mxu0
        %v3637 = vadd.f32 0.0, %v3636
        %v3638 = vpop.f32.mrb[0].mxu0
        %3639 = vmatprep.mubr.f32.mxu0 0.0
        %3640 = vmatmul.mubr.f32.gmra.mrb[0].mxu0 %v3131
        %v3641 = vpop.f32.mrb[0].mxu0
        %v3642 = vadd.f32 0.0, %v3641
        %v3643 = vpop.f32.mrb[0].mxu0
        %3644 = vmatprep.mubr.f32.mxu0 0.0
        %3645 = vmatmul.mubr.f32.gmra.mrb[0].mxu0 %v3134
        %v3646 = vpop.f32.mrb[0].mxu0
        %v3647 = vadd.f32 0.0, %v3646
        %v3648 = vpop.f32.mrb[0].mxu0
        %3649 = vmatprep.mubr.f32.mxu0 0.0
        %3650 = vmatmul.mubr.f32.gmra.mrb[0].mxu0 %v3137
        %v3651 = vpop.f32.mrb[0].mxu0
        %v3652 = vadd.f32 0.0, %v3651
        %v3653 = vpop.f32.mrb[0].mxu0
        %3654 = vmatprep.mubr.f32.mxu0 0.0
        %3655 = vmatmul.mubr.f32.gmra.mrb[0].mxu0 %v3140
        %v3656 = vpop.f32.mrb[0].mxu0
        %v3657 = vadd.f32 0.0, %v3656
        %v3658 = vpop.f32.mrb[0].mxu0
        %3659 = vmatprep.mubr.f32.mxu0 0.0
        %3660 = vmatmul.mubr.f32.gmra.mrb[0].mxu0 %v3143
        %v3661 = vpop.f32.mrb[0].mxu0
        %v3662 = vadd.f32 0.0, %v3661
        %v3663 = vpop.f32.mrb[0].mxu0
        %3664 = vmatprep.mubr.f32.mxu0 0.0
        %3665 = vmatmul.mubr.f32.gmra.mrb[0].mxu0 %v3146
        %v3666 = vpop.f32.mrb[0].mxu0
        %v3667 = vadd.f32 0.0, %v3666
        %v3668 = vpop.f32.mrb[0].mxu0
        %3669 = vmatprep.mubr.f32.mxu0 0.0
        %3670 = vmatmul.mubr.f32.gmra.mrb[0].mxu0 %v3149
        %v3671 = vpop.f32.mrb[0].mxu0
        %v3672 = vadd.f32 0.0, %v3671
        %v3673 = vpop.f32.mrb[0].mxu0
        %3674 = vmatprep.mubr.f32.mxu0 0.0
        %3675 = vmatmul.mubr.f32.gmra.mrb[0].mxu0 %v3152
        %v3676 = vpop.f32.mrb[0].mxu0
        %v3677 = vadd.f32 0.0, %v3676
        %v3678 = vpop.f32.mrb[0].mxu0
        %3679 = vmatprep.mubr.f32.mxu0 0.0
        %3680 = vmatmul.mubr.f32.gmra.mrb[0].mxu0 %v3155
        %v3681 = vpop.f32.mrb[0].mxu0
        %v3682 = vadd.f32 0.0, %v3681
        %v3683 = vpop.f32.mrb[0].mxu0
        %3684 = vmatprep.mubr.f32.mxu0 0.0
        %3685 = vmatmul.mubr.f32.gmra.mrb[0].mxu0 %v3158
        %v3686 = vpop.f32.mrb[0].mxu0
        %v3687 = vadd.f32 0.0, %v3686
        %v3688 = vpop.f32.mrb[0].mxu0
        %3689 = vmatprep.mubr.f32.mxu0 0.0
        %3690 = vmatmul.mubr.f32.gmra.mrb[0].mxu0 %v3161
        %v3691 = vpop.f32.mrb[0].mxu0
        %v3692 = vadd.f32 0.0, %v3691
        %v3693 = vpop.f32.mrb[0].mxu0
        %3694 = vmatprep.mubr.f32.mxu0 0.0
        %3695 = vmatmul.mubr.f32.gmra.mrb[0].mxu0 %v3164
        %v3696 = vpop.f32.mrb[0].mxu0
        %v3697 = vadd.f32 0.0, %v3696
        %v3698 = vpop.f32.mrb[0].mxu0
        %3699 = vmatprep.mubr.f32.mxu0 0.0
        %3700 = vmatmul.mubr.f32.gmra.mrb[0].mxu0 %v3167
        %v3701 = vpop.f32.mrb[0].mxu0
        %v3702 = vadd.f32 0.0, %v3701
        %v3703 = vpop.f32.mrb[0].mxu0
        %3704 = vmatprep.mubr.f32.mxu0 0.0
        %3705 = vmatmul.mubr.f32.gmra.mrb[0].mxu0 %v3170
        %v3706 = vpop.f32.mrb[0].mxu0
        %v3707 = vadd.f32 0.0, %v3706
        %v3708 = vpop.f32.mrb[0].mxu0
        %3709 = vmatprep.mubr.f32.mxu0 0.0
        %3710 = vmatmul.mubr.f32.gmra.mrb[0].mxu0 %v3173
        %v3711 = vpop.f32.mrb[0].mxu0
        %v3712 = vadd.f32 0.0, %v3711
        %v3713 = vpop.f32.mrb[0].mxu0
        %3714 = vmatprep.mubr.f32.mxu0 0.0
        %3715 = vmatmul.mubr.f32.gmra.mrb[0].mxu0 %v3176
        %v3716 = vpop.f32.mrb[0].mxu0
        %v3717 = vadd.f32 0.0, %v3716
        %v3718 = vpop.f32.mrb[0].mxu0
        %3719 = vmatprep.mubr.f32.mxu0 0.0
        %3720 = vmatmul.mubr.f32.gmra.mrb[0].mxu0 %v3179
        %v3721 = vpop.f32.mrb[0].mxu0
        %v3722 = vadd.f32 0.0, %v3721
        %v3723 = vpop.f32.mrb[0].mxu0
        %3724 = vmatprep.mubr.f32.mxu0 0.0
        %3725 = vmatmul.mubr.f32.gmra.mrb[0].mxu0 %v3182
        %v3726 = vpop.f32.mrb[0].mxu0
        %v3727 = vadd.f32 0.0, %v3726
        %v3728 = vpop.f32.mrb[0].mxu0
        %3729 = vmatprep.mubr.f32.mxu0 0.0
        %3730 = vmatmul.mubr.f32.gmra.mrb[0].mxu0 %v3185
        %v3731 = vpop.f32.mrb[0].mxu0
        %v3732 = vadd.f32 0.0, %v3731
        %v3733 = vpop.f32.mrb[0].mxu0
        %3734 = vmatprep.mubr.f32.mxu0 0.0
        %3735 = vmatmul.mubr.f32.gmra.mrb[0].mxu0 %v3188
        %v3736 = vpop.f32.mrb[0].mxu0
        %v3737 = vadd.f32 0.0, %v3736
        %v3738 = vpop.f32.mrb[0].mxu0
        %3739 = vmatprep.mubr.f32.mxu0 0.0
        %3740 = vmatmul.mubr.f32.gmra.mrb[0].mxu0 %v3191
        %v3741 = vpop.f32.mrb[0].mxu0
        %v3742 = vadd.f32 0.0, %v3741
        %v3743 = vpop.f32.mrb[0].mxu0
        %3744 = vmatprep.mubr.f32.mxu0 0.0
        %3745 = vmatmul.mubr.f32.gmra.mrb[0].mxu0 %v3194
        %v3746 = vpop.f32.mrb[0].mxu0
        %v3747 = vadd.f32 0.0, %v3746
        %v3748 = vpop.f32.mrb[0].mxu0
        %3749 = vmatprep.mubr.f32.mxu0 0.0
        %3750 = vmatmul.mubr.f32.gmra.mrb[0].mxu0 %v3197
        %v3751 = vpop.f32.mrb[0].mxu0
        %v3752 = vadd.f32 0.0, %v3751
        %v3753 = vpop.f32.mrb[0].mxu0
        %3754 = vmatprep.mubr.f32.mxu0 0.0
        %3755 = vmatmul.mubr.f32.gmra.mrb[0].mxu0 %v3200
        %v3756 = vpop.f32.mrb[0].mxu0
        %v3757 = vadd.f32 0.0, %v3756
        %v3758 = vpop.f32.mrb[0].mxu0
        %3759 = vmatprep.mubr.f32.mxu0 0.0
        %3760 = vmatmul.mubr.f32.gmra.mrb[0].mxu0 %v3203
        %v3761 = vpop.f32.mrb[0].mxu0
        %v3762 = vadd.f32 0.0, %v3761
        %v3763 = vpop.f32.mrb[0].mxu0
        %3764 = vmatprep.mubr.f32.mxu0 0.0
        %3765 = vmatmul.mubr.f32.gmra.mrb[0].mxu0 %v3206
        %v3766 = vpop.f32.mrb[0].mxu0
        %v3767 = vadd.f32 0.0, %v3766
        %v3768 = vpop.f32.mrb[0].mxu0
        %3769 = vmatprep.mubr.f32.mxu0 0.0
        %3770 = vmatmul.mubr.f32.gmra.mrb[0].mxu0 %v3209
        %v3771 = vpop.f32.mrb[0].mxu0
        %v3772 = vadd.f32 0.0, %v3771
        %v3773 = vpop.f32.mrb[0].mxu0
        %3774 = vmatprep.mubr.f32.mxu0 0.0
        %3775 = vmatmul.mubr.f32.gmra.mrb[0].mxu0 %v3212
        %v3776 = vpop.f32.mrb[0].mxu0
        %v3777 = vadd.f32 0.0, %v3776
        %v3778 = vpop.f32.mrb[0].mxu0
        %3779 = vmatprep.mubr.f32.mxu0 0.0
        %3780 = vmatmul.mubr.f32.gmra.mrb[0].mxu0 %v3215
        %v3781 = vpop.f32.mrb[0].mxu0
        %v3782 = vadd.f32 0.0, %v3781
        %v3783 = vpop.f32.mrb[0].mxu0
        %3784 = vmatprep.mubr.f32.mxu0 0.0
        %3785 = vmatmul.mubr.f32.gmra.mrb[0].mxu0 %v3218
        %v3786 = vpop.f32.mrb[0].mxu0
        %v3787 = vadd.f32 0.0, %v3786
        %v3788 = vpop.f32.mrb[0].mxu0
        %3789 = vmatprep.mubr.f32.mxu0 0.0
        %3790 = vmatmul.mubr.f32.gmra.mrb[0].mxu0 %v3221
        %v3791 = vpop.f32.mrb[0].mxu0
        %v3792 = vadd.f32 0.0, %v3791
        %v3793 = vpop.f32.mrb[0].mxu0
        %3794 = vmatprep.mubr.f32.mxu0 0.0
        %3795 = vmatmul.mubr.f32.gmra.mrb[0].mxu0 %v3224
        %v3796 = vpop.f32.mrb[0].mxu0
        %v3797 = vadd.f32 0.0, %v3796
        %v3798 = vpop.f32.mrb[0].mxu0
        %3799 = vmatprep.mubr.f32.mxu0 0.0
        %3800 = vmatmul.mubr.f32.gmra.mrb[0].mxu0 %v3227
        %v3801 = vpop.f32.mrb[0].mxu0
        %v3802 = vadd.f32 0.0, %v3801
        %v3803 = vpop.f32.mrb[0].mxu0
        %3804 = vmatprep.mubr.f32.mxu0 0.0
        %3805 = vmatmul.mubr.f32.gmra.mrb[0].mxu0 %v3230
        %v3806 = vpop.f32.mrb[0].mxu0
        %v3807 = vadd.f32 0.0, %v3806
        %v3808 = vpop.f32.mrb[0].mxu0
        %3809 = vdwg.mxu0
        %v3810 = vadd.f32 %v2720, %v3302
        %v3811 = vadd.f32 %v2721, %v3307
        %v3812 = vadd.f32 %v2722, %v3312
        %v3813 = vadd.f32 %v2723, %v3317
        %v3814 = vadd.f32 %v2724, %v3322
        %v3815 = vadd.f32 %v2725, %v3327
        %v3816 = vadd.f32 %v2726, %v3332
        %v3817 = vadd.f32 %v2727, %v3337
        %v3818 = vadd.f32 %v2728, %v3342
        %v3819 = vadd.f32 %v2729, %v3347
        %v3820 = vadd.f32 %v2730, %v3352
        %v3821 = vadd.f32 %v2731, %v3357
        %v3822 = vadd.f32 %v2732, %v3362
        %v3823 = vadd.f32 %v2733, %v3367
        %v3824 = vadd.f32 %v2734, %v3372
        %v3825 = vadd.f32 %v2735, %v3377
        %v3826 = vadd.f32 %v2736, %v3382
        %v3827 = vadd.f32 %v2737, %v3387
        %v3828 = vadd.f32 %v2738, %v3392
        %v3829 = vadd.f32 %v2739, %v3397
        %v3830 = vadd.f32 %v2740, %v3402
        %v3831 = vadd.f32 %v2741, %v3407
        %v3832 = vadd.f32 %v2742, %v3412
        %v3833 = vadd.f32 %v2743, %v3417
        %v3834 = vadd.f32 %v2744, %v3422
        %v3835 = vadd.f32 %v2745, %v3427
        %v3836 = vadd.f32 %v2746, %v3432
        %v3837 = vadd.f32 %v2747, %v3437
        %v3838 = vadd.f32 %v2748, %v3442
        %v3839 = vadd.f32 %v2749, %v3447
        %v3840 = vadd.f32 %v2750, %v3452
        %v3841 = vadd.f32 %v2751, %v3457
        %v3842 = vadd.f32 %v2752, %v3462
        %v3843 = vadd.f32 %v2753, %v3467
        %v3844 = vadd.f32 %v2754, %v3472
        %v3845 = vadd.f32 %v2755, %v3477
        %v3846 = vadd.f32 %v2756, %v3482
        %v3847 = vadd.f32 %v2757, %v3487
        %v3848 = vadd.f32 %v2758, %v3492
        %v3849 = vadd.f32 %v2759, %v3497
        %v3850 = vadd.f32 %v2760, %v3502
        %v3851 = vadd.f32 %v2761, %v3507
        %v3852 = vadd.f32 %v2762, %v3512
        %v3853 = vadd.f32 %v2763, %v3517
        %v3854 = vadd.f32 %v2764, %v3522
        %v3855 = vadd.f32 %v2765, %v3527
        %v3856 = vadd.f32 %v2766, %v3532
        %v3857 = vadd.f32 %v2767, %v3537
        %v3858 = vadd.f32 %v2768, %v3542
        %v3859 = vadd.f32 %v2769, %v3547
        %v3860 = vadd.f32 %v2770, %v3552
        %v3861 = vadd.f32 %v2771, %v3557
        %v3862 = vadd.f32 %v2772, %v3562
        %v3863 = vadd.f32 %v2773, %v3567
        %v3864 = vadd.f32 %v2774, %v3572
        %v3865 = vadd.f32 %v2775, %v3577
        %v3866 = vadd.f32 %v2776, %v3582
        %v3867 = vadd.f32 %v2777, %v3587
        %v3868 = vadd.f32 %v2778, %v3592
        %v3869 = vadd.f32 %v2779, %v3597
        %v3870 = vadd.f32 %v2780, %v3602
        %v3871 = vadd.f32 %v2781, %v3607
        %v3872 = vadd.f32 %v2782, %v3612
        %v3873 = vadd.f32 %v2783, %v3617
        %v3874 = vadd.f32 %v2784, %v3622
        %v3875 = vadd.f32 %v2785, %v3627
        %v3876 = vadd.f32 %v2786, %v3632
        %v3877 = vadd.f32 %v2787, %v3637
        %v3878 = vadd.f32 %v2788, %v3642
        %v3879 = vadd.f32 %v2789, %v3647
        %v3880 = vadd.f32 %v2790, %v3652
        %v3881 = vadd.f32 %v2791, %v3657
        %v3882 = vadd.f32 %v2792, %v3662
        %v3883 = vadd.f32 %v2793, %v3667
        %v3884 = vadd.f32 %v2794, %v3672
        %v3885 = vadd.f32 %v2795, %v3677
        %v3886 = vadd.f32 %v2796, %v3682
        %v3887 = vadd.f32 %v2797, %v3687
        %v3888 = vadd.f32 %v2798, %v3692
        %v3889 = vadd.f32 %v2799, %v3697
        %v3890 = vadd.f32 %v2800, %v3702
        %v3891 = vadd.f32 %v2801, %v3707
        %v3892 = vadd.f32 %v2802, %v3712
        %v3893 = vadd.f32 %v2803, %v3717
        %v3894 = vadd.f32 %v2804, %v3722
        %v3895 = vadd.f32 %v2805, %v3727
        %v3896 = vadd.f32 %v2806, %v3732
        %v3897 = vadd.f32 %v2807, %v3737
        %v3898 = vadd.f32 %v2808, %v3742
        %v3899 = vadd.f32 %v2809, %v3747
        %v3900 = vadd.f32 %v2810, %v3752
        %v3901 = vadd.f32 %v2811, %v3757
        %v3902 = vadd.f32 %v2812, %v3762
        %v3903 = vadd.f32 %v2813, %v3767
        %v3904 = vadd.f32 %v2814, %v3772
        %v3905 = vadd.f32 %v2815, %v3777
        %v3906 = vadd.f32 %v2816, %v3782
        %v3907 = vadd.f32 %v2817, %v3787
        %v3908 = vadd.f32 %v2818, %v3792
        %v3909 = vadd.f32 %v2819, %v3797
        %v3910 = vadd.f32 %v2820, %v3802
        %v3911 = vadd.f32 %v2821, %v3807
        %3912 = vst.msk [vmem:[#allocation2] sm:$0xff] %vm1322, %v3810
        %3913 = vst.msk [vmem:[#allocation2 + $0x8] sm:$0xff] %vm1322, %v3811
        %3914 = vst.msk [vmem:[#allocation2 + $0x10] sm:$0xff] %vm1322, %v3812
        %3915 = vst.msk [vmem:[#allocation2 + $0x18] sm:$0xff] %vm1322, %v3813
        %3916 = vst.msk [vmem:[#allocation2 + $0x20] sm:$0xff] %vm1322, %v3814
        %3917 = vst.msk [vmem:[#allocation2 + $0x28] sm:$0xff] %vm1322, %v3815
        %3918 = vst.msk [vmem:[#allocation2 + $0x30] sm:$0xff] %vm1322, %v3816
        %3919 = vst.msk [vmem:[#allocation2 + $0x38] sm:$0xff] %vm1322, %v3817
        %3920 = vst.msk [vmem:[#allocation2 + $0x40] sm:$0xff] %vm1322, %v3818
        %3921 = vst.msk [vmem:[#allocation2 + $0x48] sm:$0xff] %vm1322, %v3819
        %3922 = vst.msk [vmem:[#allocation2 + $0x50] sm:$0xff] %vm1322, %v3820
        %3923 = vst.msk [vmem:[#allocation2 + $0x58] sm:$0xff] %vm1322, %v3821
        %3924 = vst.msk [vmem:[#allocation2 + $0x60] sm:$0xff] %vm1322, %v3822
        %3925 = vst.msk [vmem:[#allocation2 + $0x68] sm:$0xff] %vm1322, %v3823
        %3926 = vst.msk [vmem:[#allocation2 + $0x70] sm:$0xff] %vm1322, %v3824
        %3927 = vst.msk [vmem:[#allocation2 + $0x78] sm:$0xff] %vm1322, %v3825
        %3928 = vst.msk [vmem:[#allocation2 + $0x80] sm:$0xff] %vm1322, %v3826
        %3929 = vst.msk [vmem:[#allocation2 + $0x88] sm:$0xff] %vm1322, %v3827
        %3930 = vst.msk [vmem:[#allocation2 + $0x90] sm:$0xff] %vm1322, %v3828
        %3931 = vst.msk [vmem:[#allocation2 + $0x98] sm:$0xff] %vm1322, %v3829
        %3932 = vst.msk [vmem:[#allocation2 + $0xa0] sm:$0xff] %vm1322, %v3830
        %3933 = vst.msk [vmem:[#allocation2 + $0xa8] sm:$0xff] %vm1322, %v3831
        %3934 = vst.msk [vmem:[#allocation2 + $0xb0] sm:$0xff] %vm1322, %v3832
        %3935 = vst.msk [vmem:[#allocation2 + $0xb8] sm:$0xff] %vm1322, %v3833
        %3936 = vst.msk [vmem:[#allocation2 + $0xc0] sm:$0xff] %vm1322, %v3834
        %3937 = vst.msk [vmem:[#allocation2 + $0xc8] sm:$0xff] %vm1322, %v3835
        %3938 = vst.msk [vmem:[#allocation2 + $0xd0] sm:$0xff] %vm1322, %v3836
        %3939 = vst.msk [vmem:[#allocation2 + $0xd8] sm:$0xff] %vm1322, %v3837
        %3940 = vst.msk [vmem:[#allocation2 + $0xe0] sm:$0xff] %vm1322, %v3838
        %3941 = vst.msk [vmem:[#allocation2 + $0xe8] sm:$0xff] %vm1322, %v3839
        %3942 = vst.msk [vmem:[#allocation2 + $0xf0] sm:$0xff] %vm1322, %v3840
        %3943 = vst.msk [vmem:[#allocation2 + $0xf8] sm:$0xff] %vm1322, %v3841
        %3944 = vst.msk [vmem:[#allocation2 + $0x100] sm:$0xff] %vm1322, %v3842
        %3945 = vst.msk [vmem:[#allocation2 + $0x108] sm:$0xff] %vm1322, %v3843
        %3946 = vst.msk [vmem:[#allocation2 + $0x110] sm:$0xff] %vm1322, %v3844
        %3947 = vst.msk [vmem:[#allocation2 + $0x118] sm:$0xff] %vm1322, %v3845
        %3948 = vst.msk [vmem:[#allocation2 + $0x120] sm:$0xff] %vm1322, %v3846
        %3949 = vst.msk [vmem:[#allocation2 + $0x128] sm:$0xff] %vm1322, %v3847
        %3950 = vst.msk [vmem:[#allocation2 + $0x130] sm:$0xff] %vm1322, %v3848
        %3951 = vst.msk [vmem:[#allocation2 + $0x138] sm:$0xff] %vm1322, %v3849
        %3952 = vst.msk [vmem:[#allocation2 + $0x140] sm:$0xff] %vm1322, %v3850
        %3953 = vst.msk [vmem:[#allocation2 + $0x148] sm:$0xff] %vm1322, %v3851
        %3954 = vst.msk [vmem:[#allocation2 + $0x150] sm:$0xff] %vm1322, %v3852
        %3955 = vst.msk [vmem:[#allocation2 + $0x158] sm:$0xff] %vm1322, %v3853
        %3956 = vst.msk [vmem:[#allocation2 + $0x160] sm:$0xff] %vm1322, %v3854
        %3957 = vst.msk [vmem:[#allocation2 + $0x168] sm:$0xff] %vm1322, %v3855
        %3958 = vst.msk [vmem:[#allocation2 + $0x170] sm:$0xff] %vm1322, %v3856
        %3959 = vst.msk [vmem:[#allocation2 + $0x178] sm:$0xff] %vm1322, %v3857
        %3960 = vst.msk [vmem:[#allocation2 + $0x180] sm:$0xff] %vm1322, %v3858
        %3961 = vst.msk [vmem:[#allocation2 + $0x188] sm:$0xff] %vm1322, %v3859
        %3962 = vst.msk [vmem:[#allocation2 + $0x190] sm:$0xff] %vm1322, %v3860
        %3963 = vst.msk [vmem:[#allocation2 + $0x198] sm:$0xff] %vm1322, %v3861
        %3964 = vst.msk [vmem:[#allocation2 + $0x1a0] sm:$0xff] %vm1322, %v3862
        %3965 = vst.msk [vmem:[#allocation2 + $0x1a8] sm:$0xff] %vm1322, %v3863
        %3966 = vst.msk [vmem:[#allocation2 + $0x1b0] sm:$0xff] %vm1322, %v3864
        %3967 = vst.msk [vmem:[#allocation2 + $0x1b8] sm:$0xff] %vm1322, %v3865
        %3968 = vst.msk [vmem:[#allocation2 + $0x1c0] sm:$0xff] %vm1322, %v3866
        %3969 = vst.msk [vmem:[#allocation2 + $0x1c8] sm:$0xff] %vm1322, %v3867
        %3970 = vst.msk [vmem:[#allocation2 + $0x1d0] sm:$0xff] %vm1322, %v3868
        %3971 = vst.msk [vmem:[#allocation2 + $0x1d8] sm:$0xff] %vm1322, %v3869
        %3972 = vst.msk [vmem:[#allocation2 + $0x1e0] sm:$0xff] %vm1322, %v3870
        %3973 = vst.msk [vmem:[#allocation2 + $0x1e8] sm:$0xff] %vm1322, %v3871
        %3974 = vst.msk [vmem:[#allocation2 + $0x1f0] sm:$0xff] %vm1322, %v3872
        %3975 = vst.msk [vmem:[#allocation2 + $0x1f8] sm:$0xff] %vm1322, %v3873
        %3976 = vst.msk [vmem:[#allocation2 + $0x200] sm:$0xff] %vm1322, %v3874
        %3977 = vst.msk [vmem:[#allocation2 + $0x208] sm:$0xff] %vm1322, %v3875
        %3978 = vst.msk [vmem:[#allocation2 + $0x210] sm:$0xff] %vm1322, %v3876
        %3979 = vst.msk [vmem:[#allocation2 + $0x218] sm:$0xff] %vm1322, %v3877
        %3980 = vst.msk [vmem:[#allocation2 + $0x220] sm:$0xff] %vm1322, %v3878
        %3981 = vst.msk [vmem:[#allocation2 + $0x228] sm:$0xff] %vm1322, %v3879
        %3982 = vst.msk [vmem:[#allocation2 + $0x230] sm:$0xff] %vm1322, %v3880
        %3983 = vst.msk [vmem:[#allocation2 + $0x238] sm:$0xff] %vm1322, %v3881
        %3984 = vst.msk [vmem:[#allocation2 + $0x240] sm:$0xff] %vm1322, %v3882
        %3985 = vst.msk [vmem:[#allocation2 + $0x248] sm:$0xff] %vm1322, %v3883
        %3986 = vst.msk [vmem:[#allocation2 + $0x250] sm:$0xff] %vm1322, %v3884
        %3987 = vst.msk [vmem:[#allocation2 + $0x258] sm:$0xff] %vm1322, %v3885
        %3988 = vst.msk [vmem:[#allocation2 + $0x260] sm:$0xff] %vm1322, %v3886
        %3989 = vst.msk [vmem:[#allocation2 + $0x268] sm:$0xff] %vm1322, %v3887
        %3990 = vst.msk [vmem:[#allocation2 + $0x270] sm:$0xff] %vm1322, %v3888
        %3991 = vst.msk [vmem:[#allocation2 + $0x278] sm:$0xff] %vm1322, %v3889
        %3992 = vst.msk [vmem:[#allocation2 + $0x280] sm:$0xff] %vm1322, %v3890
        %3993 = vst.msk [vmem:[#allocation2 + $0x288] sm:$0xff] %vm1322, %v3891
        %3994 = vst.msk [vmem:[#allocation2 + $0x290] sm:$0xff] %vm1322, %v3892
        %3995 = vst.msk [vmem:[#allocation2 + $0x298] sm:$0xff] %vm1322, %v3893
        %3996 = vst.msk [vmem:[#allocation2 + $0x2a0] sm:$0xff] %vm1322, %v3894
        %3997 = vst.msk [vmem:[#allocation2 + $0x2a8] sm:$0xff] %vm1322, %v3895
        %3998 = vst.msk [vmem:[#allocation2 + $0x2b0] sm:$0xff] %vm1322, %v3896
        %3999 = vst.msk [vmem:[#allocation2 + $0x2b8] sm:$0xff] %vm1322, %v3897
        %4000 = vst.msk [vmem:[#allocation2 + $0x2c0] sm:$0xff] %vm1322, %v3898
        %4001 = vst.msk [vmem:[#allocation2 + $0x2c8] sm:$0xff] %vm1322, %v3899
        %4002 = vst.msk [vmem:[#allocation2 + $0x2d0] sm:$0xff] %vm1322, %v3900
        %4003 = vst.msk [vmem:[#allocation2 + $0x2d8] sm:$0xff] %vm1322, %v3901
        %4004 = vst.msk [vmem:[#allocation2 + $0x2e0] sm:$0xff] %vm1322, %v3902
        %4005 = vst.msk [vmem:[#allocation2 + $0x2e8] sm:$0xff] %vm1322, %v3903
        %4006 = vst.msk [vmem:[#allocation2 + $0x2f0] sm:$0xff] %vm1322, %v3904
        %4007 = vst.msk [vmem:[#allocation2 + $0x2f8] sm:$0xff] %vm1322, %v3905
        %4008 = vst.msk [vmem:[#allocation2 + $0x300] sm:$0xff] %vm1322, %v3906
        %4009 = vst.msk [vmem:[#allocation2 + $0x308] sm:$0xff] %vm1322, %v3907
        %4010 = vst.msk [vmem:[#allocation2 + $0x310] sm:$0xff] %vm1322, %v3908
        %4011 = vst.msk [vmem:[#allocation2 + $0x318] sm:$0xff] %vm1322, %v3909
        %4012 = vst.msk [vmem:[#allocation2 + $0x320] sm:$0xff] %vm1322, %v3910
        %4013 = vst.msk [vmem:[#allocation2 + $0x328] sm:$0x3f] %vm1424, %v3911
        %v4014 = vld [vmem:[#allocation2] sm:$0xff]
        %v4015 = vld [vmem:[#allocation2 + $0x8] sm:$0xff]
        %v4016 = vld [vmem:[#allocation2 + $0x10] sm:$0xff]
        %v4017 = vld [vmem:[#allocation2 + $0x18] sm:$0xff]
        %v4018 = vld [vmem:[#allocation2 + $0x20] sm:$0xff]
        %v4019 = vld [vmem:[#allocation2 + $0x28] sm:$0xff]
        %v4020 = vld [vmem:[#allocation2 + $0x30] sm:$0xff]
        %v4021 = vld [vmem:[#allocation2 + $0x38] sm:$0xff]
        %v4022 = vld [vmem:[#allocation2 + $0x40] sm:$0xff]
        %v4023 = vld [vmem:[#allocation2 + $0x48] sm:$0xff]
        %v4024 = vld [vmem:[#allocation2 + $0x50] sm:$0xff]
        %v4025 = vld [vmem:[#allocation2 + $0x58] sm:$0xff]
        %v4026 = vld [vmem:[#allocation2 + $0x60] sm:$0xff]
        %v4027 = vld [vmem:[#allocation2 + $0x68] sm:$0xff]
        %v4028 = vld [vmem:[#allocation2 + $0x70] sm:$0xff]
        %v4029 = vld [vmem:[#allocation2 + $0x78] sm:$0xff]
        %v4030 = vld [vmem:[#allocation2 + $0x80] sm:$0xff]
        %v4031 = vld [vmem:[#allocation2 + $0x88] sm:$0xff]
        %v4032 = vld [vmem:[#allocation2 + $0x90] sm:$0xff]
        %v4033 = vld [vmem:[#allocation2 + $0x98] sm:$0xff]
        %v4034 = vld [vmem:[#allocation2 + $0xa0] sm:$0xff]
        %v4035 = vld [vmem:[#allocation2 + $0xa8] sm:$0xff]
        %v4036 = vld [vmem:[#allocation2 + $0xb0] sm:$0xff]
        %v4037 = vld [vmem:[#allocation2 + $0xb8] sm:$0xff]
        %v4038 = vld [vmem:[#allocation2 + $0xc0] sm:$0xff]
        %v4039 = vld [vmem:[#allocation2 + $0xc8] sm:$0xff]
        %v4040 = vld [vmem:[#allocation2 + $0xd0] sm:$0xff]
        %v4041 = vld [vmem:[#allocation2 + $0xd8] sm:$0xff]
        %v4042 = vld [vmem:[#allocation2 + $0xe0] sm:$0xff]
        %v4043 = vld [vmem:[#allocation2 + $0xe8] sm:$0xff]
        %v4044 = vld [vmem:[#allocation2 + $0xf0] sm:$0xff]
        %v4045 = vld [vmem:[#allocation2 + $0xf8] sm:$0xff]
        %v4046 = vld [vmem:[#allocation2 + $0x100] sm:$0xff]
        %v4047 = vld [vmem:[#allocation2 + $0x108] sm:$0xff]
        %v4048 = vld [vmem:[#allocation2 + $0x110] sm:$0xff]
        %v4049 = vld [vmem:[#allocation2 + $0x118] sm:$0xff]
        %v4050 = vld [vmem:[#allocation2 + $0x120] sm:$0xff]
        %v4051 = vld [vmem:[#allocation2 + $0x128] sm:$0xff]
        %v4052 = vld [vmem:[#allocation2 + $0x130] sm:$0xff]
        %v4053 = vld [vmem:[#allocation2 + $0x138] sm:$0xff]
        %v4054 = vld [vmem:[#allocation2 + $0x140] sm:$0xff]
        %v4055 = vld [vmem:[#allocation2 + $0x148] sm:$0xff]
        %v4056 = vld [vmem:[#allocation2 + $0x150] sm:$0xff]
        %v4057 = vld [vmem:[#allocation2 + $0x158] sm:$0xff]
        %v4058 = vld [vmem:[#allocation2 + $0x160] sm:$0xff]
        %v4059 = vld [vmem:[#allocation2 + $0x168] sm:$0xff]
        %v4060 = vld [vmem:[#allocation2 + $0x170] sm:$0xff]
        %v4061 = vld [vmem:[#allocation2 + $0x178] sm:$0xff]
        %v4062 = vld [vmem:[#allocation2 + $0x180] sm:$0xff]
        %v4063 = vld [vmem:[#allocation2 + $0x188] sm:$0xff]
        %v4064 = vld [vmem:[#allocation2 + $0x190] sm:$0xff]
        %v4065 = vld [vmem:[#allocation2 + $0x198] sm:$0xff]
        %v4066 = vld [vmem:[#allocation2 + $0x1a0] sm:$0xff]
        %v4067 = vld [vmem:[#allocation2 + $0x1a8] sm:$0xff]
        %v4068 = vld [vmem:[#allocation2 + $0x1b0] sm:$0xff]
        %v4069 = vld [vmem:[#allocation2 + $0x1b8] sm:$0xff]
        %v4070 = vld [vmem:[#allocation2 + $0x1c0] sm:$0xff]
        %v4071 = vld [vmem:[#allocation2 + $0x1c8] sm:$0xff]
        %v4072 = vld [vmem:[#allocation2 + $0x1d0] sm:$0xff]
        %v4073 = vld [vmem:[#allocation2 + $0x1d8] sm:$0xff]
        %v4074 = vld [vmem:[#allocation2 + $0x1e0] sm:$0xff]
        %v4075 = vld [vmem:[#allocation2 + $0x1e8] sm:$0xff]
        %v4076 = vld [vmem:[#allocation2 + $0x1f0] sm:$0xff]
        %v4077 = vld [vmem:[#allocation2 + $0x1f8] sm:$0xff]
        %v4078 = vld [vmem:[#allocation2 + $0x200] sm:$0xff]
        %v4079 = vld [vmem:[#allocation2 + $0x208] sm:$0xff]
        %v4080 = vld [vmem:[#allocation2 + $0x210] sm:$0xff]
        %v4081 = vld [vmem:[#allocation2 + $0x218] sm:$0xff]
        %v4082 = vld [vmem:[#allocation2 + $0x220] sm:$0xff]
        %v4083 = vld [vmem:[#allocation2 + $0x228] sm:$0xff]
        %v4084 = vld [vmem:[#allocation2 + $0x230] sm:$0xff]
        %v4085 = vld [vmem:[#allocation2 + $0x238] sm:$0xff]
        %v4086 = vld [vmem:[#allocation2 + $0x240] sm:$0xff]
        %v4087 = vld [vmem:[#allocation2 + $0x248] sm:$0xff]
        %v4088 = vld [vmem:[#allocation2 + $0x250] sm:$0xff]
        %v4089 = vld [vmem:[#allocation2 + $0x258] sm:$0xff]
        %v4090 = vld [vmem:[#allocation2 + $0x260] sm:$0xff]
        %v4091 = vld [vmem:[#allocation2 + $0x268] sm:$0xff]
        %v4092 = vld [vmem:[#allocation2 + $0x270] sm:$0xff]
        %v4093 = vld [vmem:[#allocation2 + $0x278] sm:$0xff]
        %v4094 = vld [vmem:[#allocation2 + $0x280] sm:$0xff]
        %v4095 = vld [vmem:[#allocation2 + $0x288] sm:$0xff]
        %v4096 = vld [vmem:[#allocation2 + $0x290] sm:$0xff]
        %v4097 = vld [vmem:[#allocation2 + $0x298] sm:$0xff]
        %v4098 = vld [vmem:[#allocation2 + $0x2a0] sm:$0xff]
        %v4099 = vld [vmem:[#allocation2 + $0x2a8] sm:$0xff]
        %v4100 = vld [vmem:[#allocation2 + $0x2b0] sm:$0xff]
        %v4101 = vld [vmem:[#allocation2 + $0x2b8] sm:$0xff]
        %v4102 = vld [vmem:[#allocation2 + $0x2c0] sm:$0xff]
        %v4103 = vld [vmem:[#allocation2 + $0x2c8] sm:$0xff]
        %v4104 = vld [vmem:[#allocation2 + $0x2d0] sm:$0xff]
        %v4105 = vld [vmem:[#allocation2 + $0x2d8] sm:$0xff]
        %v4106 = vld [vmem:[#allocation2 + $0x2e0] sm:$0xff]
        %v4107 = vld [vmem:[#allocation2 + $0x2e8] sm:$0xff]
        %v4108 = vld [vmem:[#allocation2 + $0x2f0] sm:$0xff]
        %v4109 = vld [vmem:[#allocation2 + $0x2f8] sm:$0xff]
        %v4110 = vld [vmem:[#allocation2 + $0x300] sm:$0xff]
        %v4111 = vld [vmem:[#allocation2 + $0x308] sm:$0xff]
        %v4112 = vld [vmem:[#allocation2 + $0x310] sm:$0xff]
        %v4113 = vld [vmem:[#allocation2 + $0x318] sm:$0xff]
        %v4114 = vld [vmem:[#allocation2 + $0x320] sm:$0xff]
        %v4115 = vld [vmem:[#allocation2 + $0x328] sm:$0x3f]
        %v4116 = vld [vmem:[%s2] sm:$0x1]
        %v4118 = vlaneseq
        %v4119 = vshrl.u32 %v4118, 7
        %v4120 = vsub.s32 0, %v4119
        %v4121 = vrot.slane %v4116, %v4120
        %v4123 = vadd.f32 %v4014, %v4121
        %v4124 = vadd.f32 %v4015, %v4121
        %v4125 = vadd.f32 %v4016, %v4121
        %v4126 = vadd.f32 %v4017, %v4121
        %v4127 = vadd.f32 %v4018, %v4121
        %v4128 = vadd.f32 %v4019, %v4121
        %v4129 = vadd.f32 %v4020, %v4121
        %v4130 = vadd.f32 %v4021, %v4121
        %v4131 = vadd.f32 %v4022, %v4121
        %v4132 = vadd.f32 %v4023, %v4121
        %v4133 = vadd.f32 %v4024, %v4121
        %v4134 = vadd.f32 %v4025, %v4121
        %v4135 = vadd.f32 %v4026, %v4121
        %v4136 = vadd.f32 %v4027, %v4121
        %v4137 = vadd.f32 %v4028, %v4121
        %v4138 = vadd.f32 %v4029, %v4121
        %v4139 = vadd.f32 %v4030, %v4121
        %v4140 = vadd.f32 %v4031, %v4121
        %v4141 = vadd.f32 %v4032, %v4121
        %v4142 = vadd.f32 %v4033, %v4121
        %v4143 = vadd.f32 %v4034, %v4121
        %v4144 = vadd.f32 %v4035, %v4121
        %v4145 = vadd.f32 %v4036, %v4121
        %v4146 = vadd.f32 %v4037, %v4121
        %v4147 = vadd.f32 %v4038, %v4121
        %v4148 = vadd.f32 %v4039, %v4121
        %v4149 = vadd.f32 %v4040, %v4121
        %v4150 = vadd.f32 %v4041, %v4121
        %v4151 = vadd.f32 %v4042, %v4121
        %v4152 = vadd.f32 %v4043, %v4121
        %v4153 = vadd.f32 %v4044, %v4121
        %v4154 = vadd.f32 %v4045, %v4121
        %v4155 = vadd.f32 %v4046, %v4121
        %v4156 = vadd.f32 %v4047, %v4121
        %v4157 = vadd.f32 %v4048, %v4121
        %v4158 = vadd.f32 %v4049, %v4121
        %v4159 = vadd.f32 %v4050, %v4121
        %v4160 = vadd.f32 %v4051, %v4121
        %v4161 = vadd.f32 %v4052, %v4121
        %v4162 = vadd.f32 %v4053, %v4121
        %v4163 = vadd.f32 %v4054, %v4121
        %v4164 = vadd.f32 %v4055, %v4121
        %v4165 = vadd.f32 %v4056, %v4121
        %v4166 = vadd.f32 %v4057, %v4121
        %v4167 = vadd.f32 %v4058, %v4121
        %v4168 = vadd.f32 %v4059, %v4121
        %v4169 = vadd.f32 %v4060, %v4121
        %v4170 = vadd.f32 %v4061, %v4121
        %v4171 = vadd.f32 %v4062, %v4121
        %v4172 = vadd.f32 %v4063, %v4121
        %v4173 = vadd.f32 %v4064, %v4121
        %v4174 = vadd.f32 %v4065, %v4121
        %v4175 = vadd.f32 %v4066, %v4121
        %v4176 = vadd.f32 %v4067, %v4121
        %v4177 = vadd.f32 %v4068, %v4121
        %v4178 = vadd.f32 %v4069, %v4121
        %v4179 = vadd.f32 %v4070, %v4121
        %v4180 = vadd.f32 %v4071, %v4121
        %v4181 = vadd.f32 %v4072, %v4121
        %v4182 = vadd.f32 %v4073, %v4121
        %v4183 = vadd.f32 %v4074, %v4121
        %v4184 = vadd.f32 %v4075, %v4121
        %v4185 = vadd.f32 %v4076, %v4121
        %v4186 = vadd.f32 %v4077, %v4121
        %v4187 = vadd.f32 %v4078, %v4121
        %v4188 = vadd.f32 %v4079, %v4121
        %v4189 = vadd.f32 %v4080, %v4121
        %v4190 = vadd.f32 %v4081, %v4121
        %v4191 = vadd.f32 %v4082, %v4121
        %v4192 = vadd.f32 %v4083, %v4121
        %v4193 = vadd.f32 %v4084, %v4121
        %v4194 = vadd.f32 %v4085, %v4121
        %v4195 = vadd.f32 %v4086, %v4121
        %v4196 = vadd.f32 %v4087, %v4121
        %v4197 = vadd.f32 %v4088, %v4121
        %v4198 = vadd.f32 %v4089, %v4121
        %v4199 = vadd.f32 %v4090, %v4121
        %v4200 = vadd.f32 %v4091, %v4121
        %v4201 = vadd.f32 %v4092, %v4121
        %v4202 = vadd.f32 %v4093, %v4121
        %v4203 = vadd.f32 %v4094, %v4121
        %v4204 = vadd.f32 %v4095, %v4121
        %v4205 = vadd.f32 %v4096, %v4121
        %v4206 = vadd.f32 %v4097, %v4121
        %v4207 = vadd.f32 %v4098, %v4121
        %v4208 = vadd.f32 %v4099, %v4121
        %v4209 = vadd.f32 %v4100, %v4121
        %v4210 = vadd.f32 %v4101, %v4121
        %v4211 = vadd.f32 %v4102, %v4121
        %v4212 = vadd.f32 %v4103, %v4121
        %v4213 = vadd.f32 %v4104, %v4121
        %v4214 = vadd.f32 %v4105, %v4121
        %v4215 = vadd.f32 %v4106, %v4121
        %v4216 = vadd.f32 %v4107, %v4121
        %v4217 = vadd.f32 %v4108, %v4121
        %v4218 = vadd.f32 %v4109, %v4121
        %v4219 = vadd.f32 %v4110, %v4121
        %v4220 = vadd.f32 %v4111, %v4121
        %v4221 = vadd.f32 %v4112, %v4121
        %v4222 = vadd.f32 %v4113, %v4121
        %v4223 = vadd.f32 %v4114, %v4121
        %v4224 = vadd.f32 %v4115, %v4121
        %v4225 = vmax.f32 %v4123, 0.0
        %v4226 = vmax.f32 %v4124, 0.0
        %v4227 = vmax.f32 %v4125, 0.0
        %v4228 = vmax.f32 %v4126, 0.0
        %v4229 = vmax.f32 %v4127, 0.0
        %v4230 = vmax.f32 %v4128, 0.0
        %v4231 = vmax.f32 %v4129, 0.0
        %v4232 = vmax.f32 %v4130, 0.0
        %v4233 = vmax.f32 %v4131, 0.0
        %v4234 = vmax.f32 %v4132, 0.0
        %v4235 = vmax.f32 %v4133, 0.0
        %v4236 = vmax.f32 %v4134, 0.0
        %v4237 = vmax.f32 %v4135, 0.0
        %v4238 = vmax.f32 %v4136, 0.0
        %v4239 = vmax.f32 %v4137, 0.0
        %v4240 = vmax.f32 %v4138, 0.0
        %v4241 = vmax.f32 %v4139, 0.0
        %v4242 = vmax.f32 %v4140, 0.0
        %v4243 = vmax.f32 %v4141, 0.0
        %v4244 = vmax.f32 %v4142, 0.0
        %v4245 = vmax.f32 %v4143, 0.0
        %v4246 = vmax.f32 %v4144, 0.0
        %v4247 = vmax.f32 %v4145, 0.0
        %v4248 = vmax.f32 %v4146, 0.0
        %v4249 = vmax.f32 %v4147, 0.0
        %v4250 = vmax.f32 %v4148, 0.0
        %v4251 = vmax.f32 %v4149, 0.0
        %v4252 = vmax.f32 %v4150, 0.0
        %v4253 = vmax.f32 %v4151, 0.0
        %v4254 = vmax.f32 %v4152, 0.0
        %v4255 = vmax.f32 %v4153, 0.0
        %v4256 = vmax.f32 %v4154, 0.0
        %v4257 = vmax.f32 %v4155, 0.0
        %v4258 = vmax.f32 %v4156, 0.0
        %v4259 = vmax.f32 %v4157, 0.0
        %v4260 = vmax.f32 %v4158, 0.0
        %v4261 = vmax.f32 %v4159, 0.0
        %v4262 = vmax.f32 %v4160, 0.0
        %v4263 = vmax.f32 %v4161, 0.0
        %v4264 = vmax.f32 %v4162, 0.0
        %v4265 = vmax.f32 %v4163, 0.0
        %v4266 = vmax.f32 %v4164, 0.0
        %v4267 = vmax.f32 %v4165, 0.0
        %v4268 = vmax.f32 %v4166, 0.0
        %v4269 = vmax.f32 %v4167, 0.0
        %v4270 = vmax.f32 %v4168, 0.0
        %v4271 = vmax.f32 %v4169, 0.0
        %v4272 = vmax.f32 %v4170, 0.0
        %v4273 = vmax.f32 %v4171, 0.0
        %v4274 = vmax.f32 %v4172, 0.0
        %v4275 = vmax.f32 %v4173, 0.0
        %v4276 = vmax.f32 %v4174, 0.0
        %v4277 = vmax.f32 %v4175, 0.0
        %v4278 = vmax.f32 %v4176, 0.0
        %v4279 = vmax.f32 %v4177, 0.0
        %v4280 = vmax.f32 %v4178, 0.0
        %v4281 = vmax.f32 %v4179, 0.0
        %v4282 = vmax.f32 %v4180, 0.0
        %v4283 = vmax.f32 %v4181, 0.0
        %v4284 = vmax.f32 %v4182, 0.0
        %v4285 = vmax.f32 %v4183, 0.0
        %v4286 = vmax.f32 %v4184, 0.0
        %v4287 = vmax.f32 %v4185, 0.0
        %v4288 = vmax.f32 %v4186, 0.0
        %v4289 = vmax.f32 %v4187, 0.0
        %v4290 = vmax.f32 %v4188, 0.0
        %v4291 = vmax.f32 %v4189, 0.0
        %v4292 = vmax.f32 %v4190, 0.0
        %v4293 = vmax.f32 %v4191, 0.0
        %v4294 = vmax.f32 %v4192, 0.0
        %v4295 = vmax.f32 %v4193, 0.0
        %v4296 = vmax.f32 %v4194, 0.0
        %v4297 = vmax.f32 %v4195, 0.0
        %v4298 = vmax.f32 %v4196, 0.0
        %v4299 = vmax.f32 %v4197, 0.0
        %v4300 = vmax.f32 %v4198, 0.0
        %v4301 = vmax.f32 %v4199, 0.0
        %v4302 = vmax.f32 %v4200, 0.0
        %v4303 = vmax.f32 %v4201, 0.0
        %v4304 = vmax.f32 %v4202, 0.0
        %v4305 = vmax.f32 %v4203, 0.0
        %v4306 = vmax.f32 %v4204, 0.0
        %v4307 = vmax.f32 %v4205, 0.0
        %v4308 = vmax.f32 %v4206, 0.0
        %v4309 = vmax.f32 %v4207, 0.0
        %v4310 = vmax.f32 %v4208, 0.0
        %v4311 = vmax.f32 %v4209, 0.0
        %v4312 = vmax.f32 %v4210, 0.0
        %v4313 = vmax.f32 %v4211, 0.0
        %v4314 = vmax.f32 %v4212, 0.0
        %v4315 = vmax.f32 %v4213, 0.0
        %v4316 = vmax.f32 %v4214, 0.0
        %v4317 = vmax.f32 %v4215, 0.0
        %v4318 = vmax.f32 %v4216, 0.0
        %v4319 = vmax.f32 %v4217, 0.0
        %v4320 = vmax.f32 %v4218, 0.0
        %v4321 = vmax.f32 %v4219, 0.0
        %v4322 = vmax.f32 %v4220, 0.0
        %v4323 = vmax.f32 %v4221, 0.0
        %v4324 = vmax.f32 %v4222, 0.0
        %v4325 = vmax.f32 %v4223, 0.0
        %v4326 = vmax.f32 %v4224, 0.0
        %4327 = vst.msk [vmem:[#allocation2] sm:$0xff] %vm1322, %v4225
        %4328 = vst.msk [vmem:[#allocation2 + $0x8] sm:$0xff] %vm1322, %v4226
        %4329 = vst.msk [vmem:[#allocation2 + $0x10] sm:$0xff] %vm1322, %v4227
        %4330 = vst.msk [vmem:[#allocation2 + $0x18] sm:$0xff] %vm1322, %v4228
        %4331 = vst.msk [vmem:[#allocation2 + $0x20] sm:$0xff] %vm1322, %v4229
        %4332 = vst.msk [vmem:[#allocation2 + $0x28] sm:$0xff] %vm1322, %v4230
        %4333 = vst.msk [vmem:[#allocation2 + $0x30] sm:$0xff] %vm1322, %v4231
        %4334 = vst.msk [vmem:[#allocation2 + $0x38] sm:$0xff] %vm1322, %v4232
        %4335 = vst.msk [vmem:[#allocation2 + $0x40] sm:$0xff] %vm1322, %v4233
        %4336 = vst.msk [vmem:[#allocation2 + $0x48] sm:$0xff] %vm1322, %v4234
        %4337 = vst.msk [vmem:[#allocation2 + $0x50] sm:$0xff] %vm1322, %v4235
        %4338 = vst.msk [vmem:[#allocation2 + $0x58] sm:$0xff] %vm1322, %v4236
        %4339 = vst.msk [vmem:[#allocation2 + $0x60] sm:$0xff] %vm1322, %v4237
        %4340 = vst.msk [vmem:[#allocation2 + $0x68] sm:$0xff] %vm1322, %v4238
        %4341 = vst.msk [vmem:[#allocation2 + $0x70] sm:$0xff] %vm1322, %v4239
        %4342 = vst.msk [vmem:[#allocation2 + $0x78] sm:$0xff] %vm1322, %v4240
        %4343 = vst.msk [vmem:[#allocation2 + $0x80] sm:$0xff] %vm1322, %v4241
        %4344 = vst.msk [vmem:[#allocation2 + $0x88] sm:$0xff] %vm1322, %v4242
        %4345 = vst.msk [vmem:[#allocation2 + $0x90] sm:$0xff] %vm1322, %v4243
        %4346 = vst.msk [vmem:[#allocation2 + $0x98] sm:$0xff] %vm1322, %v4244
        %4347 = vst.msk [vmem:[#allocation2 + $0xa0] sm:$0xff] %vm1322, %v4245
        %4348 = vst.msk [vmem:[#allocation2 + $0xa8] sm:$0xff] %vm1322, %v4246
        %4349 = vst.msk [vmem:[#allocation2 + $0xb0] sm:$0xff] %vm1322, %v4247
        %4350 = vst.msk [vmem:[#allocation2 + $0xb8] sm:$0xff] %vm1322, %v4248
        %4351 = vst.msk [vmem:[#allocation2 + $0xc0] sm:$0xff] %vm1322, %v4249
        %4352 = vst.msk [vmem:[#allocation2 + $0xc8] sm:$0xff] %vm1322, %v4250
        %4353 = vst.msk [vmem:[#allocation2 + $0xd0] sm:$0xff] %vm1322, %v4251
        %4354 = vst.msk [vmem:[#allocation2 + $0xd8] sm:$0xff] %vm1322, %v4252
        %4355 = vst.msk [vmem:[#allocation2 + $0xe0] sm:$0xff] %vm1322, %v4253
        %4356 = vst.msk [vmem:[#allocation2 + $0xe8] sm:$0xff] %vm1322, %v4254
        %4357 = vst.msk [vmem:[#allocation2 + $0xf0] sm:$0xff] %vm1322, %v4255
        %4358 = vst.msk [vmem:[#allocation2 + $0xf8] sm:$0xff] %vm1322, %v4256
        %4359 = vst.msk [vmem:[#allocation2 + $0x100] sm:$0xff] %vm1322, %v4257
        %4360 = vst.msk [vmem:[#allocation2 + $0x108] sm:$0xff] %vm1322, %v4258
        %4361 = vst.msk [vmem:[#allocation2 + $0x110] sm:$0xff] %vm1322, %v4259
        %4362 = vst.msk [vmem:[#allocation2 + $0x118] sm:$0xff] %vm1322, %v4260
        %4363 = vst.msk [vmem:[#allocation2 + $0x120] sm:$0xff] %vm1322, %v4261
        %4364 = vst.msk [vmem:[#allocation2 + $0x128] sm:$0xff] %vm1322, %v4262
        %4365 = vst.msk [vmem:[#allocation2 + $0x130] sm:$0xff] %vm1322, %v4263
        %4366 = vst.msk [vmem:[#allocation2 + $0x138] sm:$0xff] %vm1322, %v4264
        %4367 = vst.msk [vmem:[#allocation2 + $0x140] sm:$0xff] %vm1322, %v4265
        %4368 = vst.msk [vmem:[#allocation2 + $0x148] sm:$0xff] %vm1322, %v4266
        %4369 = vst.msk [vmem:[#allocation2 + $0x150] sm:$0xff] %vm1322, %v4267
        %4370 = vst.msk [vmem:[#allocation2 + $0x158] sm:$0xff] %vm1322, %v4268
        %4371 = vst.msk [vmem:[#allocation2 + $0x160] sm:$0xff] %vm1322, %v4269
        %4372 = vst.msk [vmem:[#allocation2 + $0x168] sm:$0xff] %vm1322, %v4270
        %4373 = vst.msk [vmem:[#allocation2 + $0x170] sm:$0xff] %vm1322, %v4271
        %4374 = vst.msk [vmem:[#allocation2 + $0x178] sm:$0xff] %vm1322, %v4272
        %4375 = vst.msk [vmem:[#allocation2 + $0x180] sm:$0xff] %vm1322, %v4273
        %4376 = vst.msk [vmem:[#allocation2 + $0x188] sm:$0xff] %vm1322, %v4274
        %4377 = vst.msk [vmem:[#allocation2 + $0x190] sm:$0xff] %vm1322, %v4275
        %4378 = vst.msk [vmem:[#allocation2 + $0x198] sm:$0xff] %vm1322, %v4276
        %4379 = vst.msk [vmem:[#allocation2 + $0x1a0] sm:$0xff] %vm1322, %v4277
        %4380 = vst.msk [vmem:[#allocation2 + $0x1a8] sm:$0xff] %vm1322, %v4278
        %4381 = vst.msk [vmem:[#allocation2 + $0x1b0] sm:$0xff] %vm1322, %v4279
        %4382 = vst.msk [vmem:[#allocation2 + $0x1b8] sm:$0xff] %vm1322, %v4280
        %4383 = vst.msk [vmem:[#allocation2 + $0x1c0] sm:$0xff] %vm1322, %v4281
        %4384 = vst.msk [vmem:[#allocation2 + $0x1c8] sm:$0xff] %vm1322, %v4282
        %4385 = vst.msk [vmem:[#allocation2 + $0x1d0] sm:$0xff] %vm1322, %v4283
        %4386 = vst.msk [vmem:[#allocation2 + $0x1d8] sm:$0xff] %vm1322, %v4284
        %4387 = vst.msk [vmem:[#allocation2 + $0x1e0] sm:$0xff] %vm1322, %v4285
        %4388 = vst.msk [vmem:[#allocation2 + $0x1e8] sm:$0xff] %vm1322, %v4286
        %4389 = vst.msk [vmem:[#allocation2 + $0x1f0] sm:$0xff] %vm1322, %v4287
        %4390 = vst.msk [vmem:[#allocation2 + $0x1f8] sm:$0xff] %vm1322, %v4288
        %4391 = vst.msk [vmem:[#allocation2 + $0x200] sm:$0xff] %vm1322, %v4289
        %4392 = vst.msk [vmem:[#allocation2 + $0x208] sm:$0xff] %vm1322, %v4290
        %4393 = vst.msk [vmem:[#allocation2 + $0x210] sm:$0xff] %vm1322, %v4291
        %4394 = vst.msk [vmem:[#allocation2 + $0x218] sm:$0xff] %vm1322, %v4292
        %4395 = vst.msk [vmem:[#allocation2 + $0x220] sm:$0xff] %vm1322, %v4293
        %4396 = vst.msk [vmem:[#allocation2 + $0x228] sm:$0xff] %vm1322, %v4294
        %4397 = vst.msk [vmem:[#allocation2 + $0x230] sm:$0xff] %vm1322, %v4295
        %4398 = vst.msk [vmem:[#allocation2 + $0x238] sm:$0xff] %vm1322, %v4296
        %4399 = vst.msk [vmem:[#allocation2 + $0x240] sm:$0xff] %vm1322, %v4297
        %4400 = vst.msk [vmem:[#allocation2 + $0x248] sm:$0xff] %vm1322, %v4298
        %4401 = vst.msk [vmem:[#allocation2 + $0x250] sm:$0xff] %vm1322, %v4299
        %4402 = vst.msk [vmem:[#allocation2 + $0x258] sm:$0xff] %vm1322, %v4300
        %4403 = vst.msk [vmem:[#allocation2 + $0x260] sm:$0xff] %vm1322, %v4301
        %4404 = vst.msk [vmem:[#allocation2 + $0x268] sm:$0xff] %vm1322, %v4302
        %4405 = vst.msk [vmem:[#allocation2 + $0x270] sm:$0xff] %vm1322, %v4303
        %4406 = vst.msk [vmem:[#allocation2 + $0x278] sm:$0xff] %vm1322, %v4304
        %4407 = vst.msk [vmem:[#allocation2 + $0x280] sm:$0xff] %vm1322, %v4305
        %4408 = vst.msk [vmem:[#allocation2 + $0x288] sm:$0xff] %vm1322, %v4306
        %4409 = vst.msk [vmem:[#allocation2 + $0x290] sm:$0xff] %vm1322, %v4307
        %4410 = vst.msk [vmem:[#allocation2 + $0x298] sm:$0xff] %vm1322, %v4308
        %4411 = vst.msk [vmem:[#allocation2 + $0x2a0] sm:$0xff] %vm1322, %v4309
        %4412 = vst.msk [vmem:[#allocation2 + $0x2a8] sm:$0xff] %vm1322, %v4310
        %4413 = vst.msk [vmem:[#allocation2 + $0x2b0] sm:$0xff] %vm1322, %v4311
        %4414 = vst.msk [vmem:[#allocation2 + $0x2b8] sm:$0xff] %vm1322, %v4312
        %4415 = vst.msk [vmem:[#allocation2 + $0x2c0] sm:$0xff] %vm1322, %v4313
        %4416 = vst.msk [vmem:[#allocation2 + $0x2c8] sm:$0xff] %vm1322, %v4314
        %4417 = vst.msk [vmem:[#allocation2 + $0x2d0] sm:$0xff] %vm1322, %v4315
        %4418 = vst.msk [vmem:[#allocation2 + $0x2d8] sm:$0xff] %vm1322, %v4316
        %4419 = vst.msk [vmem:[#allocation2 + $0x2e0] sm:$0xff] %vm1322, %v4317
        %4420 = vst.msk [vmem:[#allocation2 + $0x2e8] sm:$0xff] %vm1322, %v4318
        %4421 = vst.msk [vmem:[#allocation2 + $0x2f0] sm:$0xff] %vm1322, %v4319
        %4422 = vst.msk [vmem:[#allocation2 + $0x2f8] sm:$0xff] %vm1322, %v4320
        %4423 = vst.msk [vmem:[#allocation2 + $0x300] sm:$0xff] %vm1322, %v4321
        %4424 = vst.msk [vmem:[#allocation2 + $0x308] sm:$0xff] %vm1322, %v4322
        %4425 = vst.msk [vmem:[#allocation2 + $0x310] sm:$0xff] %vm1322, %v4323
        %4426 = vst.msk [vmem:[#allocation2 + $0x318] sm:$0xff] %vm1322, %v4324
        %4427 = vst.msk [vmem:[#allocation2 + $0x320] sm:$0xff] %vm1322, %v4325
        %4428 = vst.msk [vmem:[#allocation2 + $0x328] sm:$0x3f] %vm1424, %v4326
        %v4429 = vld [vmem:[#allocation2] ss:$2 sm:$0xff]
        %s4430 = scalar_lea.vmem [#allocation2], 16
        %v4431 = vld [vmem:[%s4430] ss:$2 sm:$0xff]
        %s4432 = scalar_lea.vmem [#allocation2], 32
        %v4433 = vld [vmem:[%s4432] ss:$2 sm:$0xff]
        %s4434 = scalar_lea.vmem [#allocation2], 48
        %v4435 = vld [vmem:[%s4434] ss:$2 sm:$0xff]
        %s4436 = scalar_lea.vmem [#allocation2], 64
        %v4437 = vld [vmem:[%s4436] ss:$2 sm:$0xff]
        %s4438 = scalar_lea.vmem [#allocation2], 80
        %v4439 = vld [vmem:[%s4438] ss:$2 sm:$0xff]
        %s4440 = scalar_lea.vmem [#allocation2], 96
        %v4441 = vld [vmem:[%s4440] ss:$2 sm:$0x3]
        %s4442 = scalar_lea.vmem [#allocation2], 1
        %v4443 = vld [vmem:[%s4442] ss:$2 sm:$0xff]
        %s4444 = scalar_lea.vmem [#allocation2], 17
        %v4445 = vld [vmem:[%s4444] ss:$2 sm:$0xff]
        %s4446 = scalar_lea.vmem [#allocation2], 33
        %v4447 = vld [vmem:[%s4446] ss:$2 sm:$0xff]
        %s4448 = scalar_lea.vmem [#allocation2], 49
        %v4449 = vld [vmem:[%s4448] ss:$2 sm:$0xff]
        %s4450 = scalar_lea.vmem [#allocation2], 65
        %v4451 = vld [vmem:[%s4450] ss:$2 sm:$0xff]
        %s4452 = scalar_lea.vmem [#allocation2], 81
        %v4453 = vld [vmem:[%s4452] ss:$2 sm:$0xff]
        %s4454 = scalar_lea.vmem [#allocation2], 97
        %v4455 = vld [vmem:[%s4454] ss:$2 sm:$0x3]
        %v4456 = vmax.f32 %v4429, %v4443
        %v4457 = vmax.f32 %v4431, %v4445
        %v4458 = vmax.f32 %v4433, %v4447
        %v4459 = vmax.f32 %v4435, %v4449
        %v4460 = vmax.f32 %v4437, %v4451
        %v4461 = vmax.f32 %v4439, %v4453
        %v4462 = vmax.f32 %v4441, %v4455
        %4463 = vst.msk [vmem:[#allocation3] sm:$0xff] %vm1322, %v4456
        %4464 = vst.msk [vmem:[#allocation3 + $0x8] sm:$0xff] %vm1322, %v4457
        %4465 = vst.msk [vmem:[#allocation3 + $0x10] sm:$0xff] %vm1322, %v4458
        %4466 = vst.msk [vmem:[#allocation3 + $0x18] sm:$0xff] %vm1322, %v4459
        %4467 = vst.msk [vmem:[#allocation3 + $0x20] sm:$0xff] %vm1322, %v4460
        %4468 = vst.msk [vmem:[#allocation3 + $0x28] sm:$0xff] %vm1322, %v4461
        %vm4469 = vcmask 123904
        %4470 = vst.msk [vmem:[#allocation3 + $0x30] sm:$0x3] %vm4469, %v4462
        %s4471 = scalar_lea.vmem [#allocation2], 102
        %v4472 = vld [vmem:[%s4471] ss:$2 sm:$0xff]
        %s4473 = scalar_lea.vmem [#allocation2], 118
        %v4474 = vld [vmem:[%s4473] ss:$2 sm:$0xff]
        %s4475 = scalar_lea.vmem [#allocation2], 134
        %v4476 = vld [vmem:[%s4475] ss:$2 sm:$0xff]
        %s4477 = scalar_lea.vmem [#allocation2], 150
        %v4478 = vld [vmem:[%s4477] ss:$2 sm:$0xff]
        %s4479 = scalar_lea.vmem [#allocation2], 166
        %v4480 = vld [vmem:[%s4479] ss:$2 sm:$0xff]
        %s4481 = scalar_lea.vmem [#allocation2], 182
        %v4482 = vld [vmem:[%s4481] ss:$2 sm:$0xff]
        %s4483 = scalar_lea.vmem [#allocation2], 198
        %v4484 = vld [vmem:[%s4483] ss:$2 sm:$0x3]
        %s4485 = scalar_lea.vmem [#allocation2], 103
        %v4486 = vld [vmem:[%s4485] ss:$2 sm:$0xff]
        %s4487 = scalar_lea.vmem [#allocation2], 119
        %v4488 = vld [vmem:[%s4487] ss:$2 sm:$0xff]
        %s4489 = scalar_lea.vmem [#allocation2], 135
        %v4490 = vld [vmem:[%s4489] ss:$2 sm:$0xff]
        %s4491 = scalar_lea.vmem [#allocation2], 151
        %v4492 = vld [vmem:[%s4491] ss:$2 sm:$0xff]
        %s4493 = scalar_lea.vmem [#allocation2], 167
        %v4494 = vld [vmem:[%s4493] ss:$2 sm:$0xff]
        %s4495 = scalar_lea.vmem [#allocation2], 183
        %v4496 = vld [vmem:[%s4495] ss:$2 sm:$0xff]
        %s4497 = scalar_lea.vmem [#allocation2], 199
        %v4498 = vld [vmem:[%s4497] ss:$2 sm:$0x3]
        %v4499 = vmax.f32 %v4472, %v4486
        %v4500 = vmax.f32 %v4474, %v4488
        %v4501 = vmax.f32 %v4476, %v4490
        %v4502 = vmax.f32 %v4478, %v4492
        %v4503 = vmax.f32 %v4480, %v4494
        %v4504 = vmax.f32 %v4482, %v4496
        %v4505 = vmax.f32 %v4484, %v4498
        %4506 = vst.msk [vmem:[#allocation3 + $0x32] sm:$0xff] %vm1322, %v4499
        %4507 = vst.msk [vmem:[#allocation3 + $0x3a] sm:$0xff] %vm1322, %v4500
        %4508 = vst.msk [vmem:[#allocation3 + $0x42] sm:$0xff] %vm1322, %v4501
        %4509 = vst.msk [vmem:[#allocation3 + $0x4a] sm:$0xff] %vm1322, %v4502
        %4510 = vst.msk [vmem:[#allocation3 + $0x52] sm:$0xff] %vm1322, %v4503
        %4511 = vst.msk [vmem:[#allocation3 + $0x5a] sm:$0xff] %vm1322, %v4504
        %4512 = vst.msk [vmem:[#allocation3 + $0x62] sm:$0x3] %vm4469, %v4505
        %s4513 = scalar_lea.vmem [#allocation2], 204
        %v4514 = vld [vmem:[%s4513] ss:$2 sm:$0xff]
        %s4515 = scalar_lea.vmem [#allocation2], 220
        %v4516 = vld [vmem:[%s4515] ss:$2 sm:$0xff]
        %s4517 = scalar_lea.vmem [#allocation2], 236
        %v4518 = vld [vmem:[%s4517] ss:$2 sm:$0xff]
        %s4519 = scalar_lea.vmem [#allocation2], 252
        %v4520 = vld [vmem:[%s4519] ss:$2 sm:$0xff]
        %s4521 = scalar_lea.vmem [#allocation2], 268
        %v4522 = vld [vmem:[%s4521] ss:$2 sm:$0xff]
        %s4523 = scalar_lea.vmem [#allocation2], 284
        %v4524 = vld [vmem:[%s4523] ss:$2 sm:$0xff]
        %s4525 = scalar_lea.vmem [#allocation2], 300
        %v4526 = vld [vmem:[%s4525] ss:$2 sm:$0x3]
        %s4527 = scalar_lea.vmem [#allocation2], 205
        %v4528 = vld [vmem:[%s4527] ss:$2 sm:$0xff]
        %s4529 = scalar_lea.vmem [#allocation2], 221
        %v4530 = vld [vmem:[%s4529] ss:$2 sm:$0xff]
        %s4531 = scalar_lea.vmem [#allocation2], 237
        %v4532 = vld [vmem:[%s4531] ss:$2 sm:$0xff]
        %s4533 = scalar_lea.vmem [#allocation2], 253
        %v4534 = vld [vmem:[%s4533] ss:$2 sm:$0xff]
        %s4535 = scalar_lea.vmem [#allocation2], 269
        %v4536 = vld [vmem:[%s4535] ss:$2 sm:$0xff]
        %s4537 = scalar_lea.vmem [#allocation2], 285
        %v4538 = vld [vmem:[%s4537] ss:$2 sm:$0xff]
        %s4539 = scalar_lea.vmem [#allocation2], 301
        %v4540 = vld [vmem:[%s4539] ss:$2 sm:$0x3]
        %v4541 = vmax.f32 %v4514, %v4528
        %v4542 = vmax.f32 %v4516, %v4530
        %v4543 = vmax.f32 %v4518, %v4532
        %v4544 = vmax.f32 %v4520, %v4534
        %v4545 = vmax.f32 %v4522, %v4536
        %v4546 = vmax.f32 %v4524, %v4538
        %v4547 = vmax.f32 %v4526, %v4540
        %4548 = vst.msk [vmem:[#allocation3 + $0x64] sm:$0xff] %vm1322, %v4541
        %4549 = vst.msk [vmem:[#allocation3 + $0x6c] sm:$0xff] %vm1322, %v4542
        %4550 = vst.msk [vmem:[#allocation3 + $0x74] sm:$0xff] %vm1322, %v4543
        %4551 = vst.msk [vmem:[#allocation3 + $0x7c] sm:$0xff] %vm1322, %v4544
        %4552 = vst.msk [vmem:[#allocation3 + $0x84] sm:$0xff] %vm1322, %v4545
        %4553 = vst.msk [vmem:[#allocation3 + $0x8c] sm:$0xff] %vm1322, %v4546
        %4554 = vst.msk [vmem:[#allocation3 + $0x94] sm:$0x3] %vm4469, %v4547
        %s4555 = scalar_lea.vmem [#allocation2], 306
        %v4556 = vld [vmem:[%s4555] ss:$2 sm:$0xff]
        %s4557 = scalar_lea.vmem [#allocation2], 322
        %v4558 = vld [vmem:[%s4557] ss:$2 sm:$0xff]
        %s4559 = scalar_lea.vmem [#allocation2], 338
        %v4560 = vld [vmem:[%s4559] ss:$2 sm:$0xff]
        %s4561 = scalar_lea.vmem [#allocation2], 354
        %v4562 = vld [vmem:[%s4561] ss:$2 sm:$0xff]
        %s4563 = scalar_lea.vmem [#allocation2], 370
        %v4564 = vld [vmem:[%s4563] ss:$2 sm:$0xff]
        %s4565 = scalar_lea.vmem [#allocation2], 386
        %v4566 = vld [vmem:[%s4565] ss:$2 sm:$0xff]
        %s4567 = scalar_lea.vmem [#allocation2], 402
        %v4568 = vld [vmem:[%s4567] ss:$2 sm:$0x3]
        %s4569 = scalar_lea.vmem [#allocation2], 307
        %v4570 = vld [vmem:[%s4569] ss:$2 sm:$0xff]
        %s4571 = scalar_lea.vmem [#allocation2], 323
        %v4572 = vld [vmem:[%s4571] ss:$2 sm:$0xff]
        %s4573 = scalar_lea.vmem [#allocation2], 339
        %v4574 = vld [vmem:[%s4573] ss:$2 sm:$0xff]
        %s4575 = scalar_lea.vmem [#allocation2], 355
        %v4576 = vld [vmem:[%s4575] ss:$2 sm:$0xff]
        %s4577 = scalar_lea.vmem [#allocation2], 371
        %v4578 = vld [vmem:[%s4577] ss:$2 sm:$0xff]
        %s4579 = scalar_lea.vmem [#allocation2], 387
        %v4580 = vld [vmem:[%s4579] ss:$2 sm:$0xff]
        %s4581 = scalar_lea.vmem [#allocation2], 403
        %v4582 = vld [vmem:[%s4581] ss:$2 sm:$0x3]
        %v4583 = vmax.f32 %v4556, %v4570
        %v4584 = vmax.f32 %v4558, %v4572
        %v4585 = vmax.f32 %v4560, %v4574
        %v4586 = vmax.f32 %v4562, %v4576
        %v4587 = vmax.f32 %v4564, %v4578
        %v4588 = vmax.f32 %v4566, %v4580
        %v4589 = vmax.f32 %v4568, %v4582
        %4590 = vst.msk [vmem:[#allocation3 + $0x96] sm:$0xff] %vm1322, %v4583
        %4591 = vst.msk [vmem:[#allocation3 + $0x9e] sm:$0xff] %vm1322, %v4584
        %4592 = vst.msk [vmem:[#allocation3 + $0xa6] sm:$0xff] %vm1322, %v4585
        %4593 = vst.msk [vmem:[#allocation3 + $0xae] sm:$0xff] %vm1322, %v4586
        %4594 = vst.msk [vmem:[#allocation3 + $0xb6] sm:$0xff] %vm1322, %v4587
        %4595 = vst.msk [vmem:[#allocation3 + $0xbe] sm:$0xff] %vm1322, %v4588
        %4596 = vst.msk [vmem:[#allocation3 + $0xc6] sm:$0x3] %vm4469, %v4589
        %s4597 = scalar_lea.vmem [#allocation2], 408
        %v4598 = vld [vmem:[%s4597] ss:$2 sm:$0xff]
        %s4599 = scalar_lea.vmem [#allocation2], 424
        %v4600 = vld [vmem:[%s4599] ss:$2 sm:$0xff]
        %s4601 = scalar_lea.vmem [#allocation2], 440
        %v4602 = vld [vmem:[%s4601] ss:$2 sm:$0xff]
        %s4603 = scalar_lea.vmem [#allocation2], 456
        %v4604 = vld [vmem:[%s4603] ss:$2 sm:$0xff]
        %s4605 = scalar_lea.vmem [#allocation2], 472
        %v4606 = vld [vmem:[%s4605] ss:$2 sm:$0xff]
        %s4607 = scalar_lea.vmem [#allocation2], 488
        %v4608 = vld [vmem:[%s4607] ss:$2 sm:$0xff]
        %s4609 = scalar_lea.vmem [#allocation2], 504
        %v4610 = vld [vmem:[%s4609] ss:$2 sm:$0x3]
        %s4611 = scalar_lea.vmem [#allocation2], 409
        %v4612 = vld [vmem:[%s4611] ss:$2 sm:$0xff]
        %s4613 = scalar_lea.vmem [#allocation2], 425
        %v4614 = vld [vmem:[%s4613] ss:$2 sm:$0xff]
        %s4615 = scalar_lea.vmem [#allocation2], 441
        %v4616 = vld [vmem:[%s4615] ss:$2 sm:$0xff]
        %s4617 = scalar_lea.vmem [#allocation2], 457
        %v4618 = vld [vmem:[%s4617] ss:$2 sm:$0xff]
        %s4619 = scalar_lea.vmem [#allocation2], 473
        %v4620 = vld [vmem:[%s4619] ss:$2 sm:$0xff]
        %s4621 = scalar_lea.vmem [#allocation2], 489
        %v4622 = vld [vmem:[%s4621] ss:$2 sm:$0xff]
        %s4623 = scalar_lea.vmem [#allocation2], 505
        %v4624 = vld [vmem:[%s4623] ss:$2 sm:$0x3]
        %v4625 = vmax.f32 %v4598, %v4612
        %v4626 = vmax.f32 %v4600, %v4614
        %v4627 = vmax.f32 %v4602, %v4616
        %v4628 = vmax.f32 %v4604, %v4618
        %v4629 = vmax.f32 %v4606, %v4620
        %v4630 = vmax.f32 %v4608, %v4622
        %v4631 = vmax.f32 %v4610, %v4624
        %4632 = vst.msk [vmem:[#allocation3 + $0xc8] sm:$0xff] %vm1322, %v4625
        %4633 = vst.msk [vmem:[#allocation3 + $0xd0] sm:$0xff] %vm1322, %v4626
        %4634 = vst.msk [vmem:[#allocation3 + $0xd8] sm:$0xff] %vm1322, %v4627
        %4635 = vst.msk [vmem:[#allocation3 + $0xe0] sm:$0xff] %vm1322, %v4628
        %4636 = vst.msk [vmem:[#allocation3 + $0xe8] sm:$0xff] %vm1322, %v4629
        %4637 = vst.msk [vmem:[#allocation3 + $0xf0] sm:$0xff] %vm1322, %v4630
        %4638 = vst.msk [vmem:[#allocation3 + $0xf8] sm:$0x3] %vm4469, %v4631
        %s4639 = scalar_lea.vmem [#allocation2], 510
        %v4640 = vld [vmem:[%s4639] ss:$2 sm:$0xff]
        %s4641 = scalar_lea.vmem [#allocation2], 526
        %v4642 = vld [vmem:[%s4641] ss:$2 sm:$0xff]
        %s4643 = scalar_lea.vmem [#allocation2], 542
        %v4644 = vld [vmem:[%s4643] ss:$2 sm:$0xff]
        %s4645 = scalar_lea.vmem [#allocation2], 558
        %v4646 = vld [vmem:[%s4645] ss:$2 sm:$0xff]
        %s4647 = scalar_lea.vmem [#allocation2], 574
        %v4648 = vld [vmem:[%s4647] ss:$2 sm:$0xff]
        %s4649 = scalar_lea.vmem [#allocation2], 590
        %v4650 = vld [vmem:[%s4649] ss:$2 sm:$0xff]
        %s4651 = scalar_lea.vmem [#allocation2], 606
        %v4652 = vld [vmem:[%s4651] ss:$2 sm:$0x3]
        %s4653 = scalar_lea.vmem [#allocation2], 511
        %v4654 = vld [vmem:[%s4653] ss:$2 sm:$0xff]
        %s4655 = scalar_lea.vmem [#allocation2], 527
        %v4656 = vld [vmem:[%s4655] ss:$2 sm:$0xff]
        %s4657 = scalar_lea.vmem [#allocation2], 543
        %v4658 = vld [vmem:[%s4657] ss:$2 sm:$0xff]
        %s4659 = scalar_lea.vmem [#allocation2], 559
        %v4660 = vld [vmem:[%s4659] ss:$2 sm:$0xff]
        %s4661 = scalar_lea.vmem [#allocation2], 575
        %v4662 = vld [vmem:[%s4661] ss:$2 sm:$0xff]
        %s4663 = scalar_lea.vmem [#allocation2], 591
        %v4664 = vld [vmem:[%s4663] ss:$2 sm:$0xff]
        %s4665 = scalar_lea.vmem [#allocation2], 607
        %v4666 = vld [vmem:[%s4665] ss:$2 sm:$0x3]
        %v4667 = vmax.f32 %v4640, %v4654
        %v4668 = vmax.f32 %v4642, %v4656
        %v4669 = vmax.f32 %v4644, %v4658
        %v4670 = vmax.f32 %v4646, %v4660
        %v4671 = vmax.f32 %v4648, %v4662
        %v4672 = vmax.f32 %v4650, %v4664
        %v4673 = vmax.f32 %v4652, %v4666
        %4674 = vst.msk [vmem:[#allocation3 + $0xfa] sm:$0xff] %vm1322, %v4667
        %4675 = vst.msk [vmem:[#allocation3 + $0x102] sm:$0xff] %vm1322, %v4668
        %4676 = vst.msk [vmem:[#allocation3 + $0x10a] sm:$0xff] %vm1322, %v4669
        %4677 = vst.msk [vmem:[#allocation3 + $0x112] sm:$0xff] %vm1322, %v4670
        %4678 = vst.msk [vmem:[#allocation3 + $0x11a] sm:$0xff] %vm1322, %v4671
        %4679 = vst.msk [vmem:[#allocation3 + $0x122] sm:$0xff] %vm1322, %v4672
        %4680 = vst.msk [vmem:[#allocation3 + $0x12a] sm:$0x3] %vm4469, %v4673
        %s4681 = scalar_lea.vmem [#allocation2], 612
        %v4682 = vld [vmem:[%s4681] ss:$2 sm:$0xff]
        %s4683 = scalar_lea.vmem [#allocation2], 628
        %v4684 = vld [vmem:[%s4683] ss:$2 sm:$0xff]
        %s4685 = scalar_lea.vmem [#allocation2], 644
        %v4686 = vld [vmem:[%s4685] ss:$2 sm:$0xff]
        %s4687 = scalar_lea.vmem [#allocation2], 660
        %v4688 = vld [vmem:[%s4687] ss:$2 sm:$0xff]
        %s4689 = scalar_lea.vmem [#allocation2], 676
        %v4690 = vld [vmem:[%s4689] ss:$2 sm:$0xff]
        %s4691 = scalar_lea.vmem [#allocation2], 692
        %v4692 = vld [vmem:[%s4691] ss:$2 sm:$0xff]
        %s4693 = scalar_lea.vmem [#allocation2], 708
        %v4694 = vld [vmem:[%s4693] ss:$2 sm:$0x3]
        %s4695 = scalar_lea.vmem [#allocation2], 613
        %v4696 = vld [vmem:[%s4695] ss:$2 sm:$0xff]
        %s4697 = scalar_lea.vmem [#allocation2], 629
        %v4698 = vld [vmem:[%s4697] ss:$2 sm:$0xff]
        %s4699 = scalar_lea.vmem [#allocation2], 645
        %v4700 = vld [vmem:[%s4699] ss:$2 sm:$0xff]
        %s4701 = scalar_lea.vmem [#allocation2], 661
        %v4702 = vld [vmem:[%s4701] ss:$2 sm:$0xff]
        %s4703 = scalar_lea.vmem [#allocation2], 677
        %v4704 = vld [vmem:[%s4703] ss:$2 sm:$0xff]
        %s4705 = scalar_lea.vmem [#allocation2], 693
        %v4706 = vld [vmem:[%s4705] ss:$2 sm:$0xff]
        %s4707 = scalar_lea.vmem [#allocation2], 709
        %v4708 = vld [vmem:[%s4707] ss:$2 sm:$0x3]
        %v4709 = vmax.f32 %v4682, %v4696
        %v4710 = vmax.f32 %v4684, %v4698
        %v4711 = vmax.f32 %v4686, %v4700
        %v4712 = vmax.f32 %v4688, %v4702
        %v4713 = vmax.f32 %v4690, %v4704
        %v4714 = vmax.f32 %v4692, %v4706
        %v4715 = vmax.f32 %v4694, %v4708
        %4716 = vst.msk [vmem:[#allocation3 + $0x12c] sm:$0xff] %vm1322, %v4709
        %4717 = vst.msk [vmem:[#allocation3 + $0x134] sm:$0xff] %vm1322, %v4710
        %4718 = vst.msk [vmem:[#allocation3 + $0x13c] sm:$0xff] %vm1322, %v4711
        %4719 = vst.msk [vmem:[#allocation3 + $0x144] sm:$0xff] %vm1322, %v4712
        %4720 = vst.msk [vmem:[#allocation3 + $0x14c] sm:$0xff] %vm1322, %v4713
        %4721 = vst.msk [vmem:[#allocation3 + $0x154] sm:$0xff] %vm1322, %v4714
        %4722 = vst.msk [vmem:[#allocation3 + $0x15c] sm:$0x3] %vm4469, %v4715
        %s4723 = scalar_lea.vmem [#allocation2], 714
        %v4724 = vld [vmem:[%s4723] ss:$2 sm:$0xff]
        %s4725 = scalar_lea.vmem [#allocation2], 730
        %v4726 = vld [vmem:[%s4725] ss:$2 sm:$0xff]
        %s4727 = scalar_lea.vmem [#allocation2], 746
        %v4728 = vld [vmem:[%s4727] ss:$2 sm:$0xff]
        %s4729 = scalar_lea.vmem [#allocation2], 762
        %v4730 = vld [vmem:[%s4729] ss:$2 sm:$0xff]
        %s4731 = scalar_lea.vmem [#allocation2], 778
        %v4732 = vld [vmem:[%s4731] ss:$2 sm:$0xff]
        %s4733 = scalar_lea.vmem [#allocation2], 794
        %v4734 = vld [vmem:[%s4733] ss:$2 sm:$0xff]
        %s4735 = scalar_lea.vmem [#allocation2], 810
        %v4736 = vld [vmem:[%s4735] ss:$2 sm:$0x3]
        %s4737 = scalar_lea.vmem [#allocation2], 715
        %v4738 = vld [vmem:[%s4737] ss:$2 sm:$0xff]
        %s4739 = scalar_lea.vmem [#allocation2], 731
        %v4740 = vld [vmem:[%s4739] ss:$2 sm:$0xff]
        %s4741 = scalar_lea.vmem [#allocation2], 747
        %v4742 = vld [vmem:[%s4741] ss:$2 sm:$0xff]
        %s4743 = scalar_lea.vmem [#allocation2], 763
        %v4744 = vld [vmem:[%s4743] ss:$2 sm:$0xff]
        %s4745 = scalar_lea.vmem [#allocation2], 779
        %v4746 = vld [vmem:[%s4745] ss:$2 sm:$0xff]
        %s4747 = scalar_lea.vmem [#allocation2], 795
        %v4748 = vld [vmem:[%s4747] ss:$2 sm:$0xff]
        %s4749 = scalar_lea.vmem [#allocation2], 811
        %v4750 = vld [vmem:[%s4749] ss:$2 sm:$0x3]
        %v4751 = vmax.f32 %v4724, %v4738
        %v4752 = vmax.f32 %v4726, %v4740
        %v4753 = vmax.f32 %v4728, %v4742
        %v4754 = vmax.f32 %v4730, %v4744
        %v4755 = vmax.f32 %v4732, %v4746
        %v4756 = vmax.f32 %v4734, %v4748
        %v4757 = vmax.f32 %v4736, %v4750
        %4758 = vst.msk [vmem:[#allocation3 + $0x15e] sm:$0xff] %vm1322, %v4751
        %4759 = vst.msk [vmem:[#allocation3 + $0x166] sm:$0xff] %vm1322, %v4752
        %4760 = vst.msk [vmem:[#allocation3 + $0x16e] sm:$0xff] %vm1322, %v4753
        %4761 = vst.msk [vmem:[#allocation3 + $0x176] sm:$0xff] %vm1322, %v4754
        %4762 = vst.msk [vmem:[#allocation3 + $0x17e] sm:$0xff] %vm1322, %v4755
        %4763 = vst.msk [vmem:[#allocation3 + $0x186] sm:$0xff] %vm1322, %v4756
        %4764 = vst.msk [vmem:[#allocation3 + $0x18e] sm:$0x3] %vm4469, %v4757
        %v4765 = vld [vmem:[#allocation3] sm:$0xff]
        %v4766 = vld [vmem:[#allocation3 + $0x8] sm:$0xff]
        %v4767 = vld [vmem:[#allocation3 + $0x10] sm:$0xff]
        %v4768 = vld [vmem:[#allocation3 + $0x18] sm:$0xff]
        %v4769 = vld [vmem:[#allocation3 + $0x20] sm:$0xff]
        %v4770 = vld [vmem:[#allocation3 + $0x28] sm:$0xff]
        %v4771 = vld [vmem:[#allocation3 + $0x30] sm:$0xff]
        %v4772 = vld [vmem:[#allocation3 + $0x38] sm:$0xff]
        %v4773 = vld [vmem:[#allocation3 + $0x40] sm:$0xff]
        %v4774 = vld [vmem:[#allocation3 + $0x48] sm:$0xff]
        %v4775 = vld [vmem:[#allocation3 + $0x50] sm:$0xff]
        %v4776 = vld [vmem:[#allocation3 + $0x58] sm:$0xff]
        %v4777 = vld [vmem:[#allocation3 + $0x60] sm:$0xff]
        %v4778 = vld [vmem:[#allocation3 + $0x68] sm:$0xff]
        %v4779 = vld [vmem:[#allocation3 + $0x70] sm:$0xff]
        %v4780 = vld [vmem:[#allocation3 + $0x78] sm:$0xff]
        %v4781 = vld [vmem:[#allocation3 + $0x80] sm:$0xff]
        %v4782 = vld [vmem:[#allocation3 + $0x88] sm:$0xff]
        %v4783 = vld [vmem:[#allocation3 + $0x90] sm:$0xff]
        %v4784 = vld [vmem:[#allocation3 + $0x98] sm:$0xff]
        %v4785 = vld [vmem:[#allocation3 + $0xa0] sm:$0xff]
        %v4786 = vld [vmem:[#allocation3 + $0xa8] sm:$0xff]
        %v4787 = vld [vmem:[#allocation3 + $0xb0] sm:$0xff]
        %v4788 = vld [vmem:[#allocation3 + $0xb8] sm:$0xff]
        %v4789 = vld [vmem:[#allocation3 + $0xc0] sm:$0xff]
        %v4790 = vld [vmem:[#allocation3 + $0xc8] sm:$0xff]
        %v4791 = vld [vmem:[#allocation3 + $0xd0] sm:$0xff]
        %v4792 = vld [vmem:[#allocation3 + $0xd8] sm:$0xff]
        %v4793 = vld [vmem:[#allocation3 + $0xe0] sm:$0xff]
        %v4794 = vld [vmem:[#allocation3 + $0xe8] sm:$0xff]
        %v4795 = vld [vmem:[#allocation3 + $0xf0] sm:$0xff]
        %v4796 = vld [vmem:[#allocation3 + $0xf8] sm:$0xff]
        %v4797 = vld [vmem:[#allocation3 + $0x100] sm:$0xff]
        %v4798 = vld [vmem:[#allocation3 + $0x108] sm:$0xff]
        %v4799 = vld [vmem:[#allocation3 + $0x110] sm:$0xff]
        %v4800 = vld [vmem:[#allocation3 + $0x118] sm:$0xff]
        %v4801 = vld [vmem:[#allocation3 + $0x120] sm:$0xff]
        %v4802 = vld [vmem:[#allocation3 + $0x128] sm:$0xff]
        %v4803 = vld [vmem:[#allocation3 + $0x130] sm:$0xff]
        %v4804 = vld [vmem:[#allocation3 + $0x138] sm:$0xff]
        %v4805 = vld [vmem:[#allocation3 + $0x140] sm:$0xff]
        %v4806 = vld [vmem:[#allocation3 + $0x148] sm:$0xff]
        %v4807 = vld [vmem:[#allocation3 + $0x150] sm:$0xff]
        %v4808 = vld [vmem:[#allocation3 + $0x158] sm:$0xff]
        %v4809 = vld [vmem:[#allocation3 + $0x160] sm:$0xff]
        %v4810 = vld [vmem:[#allocation3 + $0x168] sm:$0xff]
        %v4811 = vld [vmem:[#allocation3 + $0x170] sm:$0xff]
        %v4812 = vld [vmem:[#allocation3 + $0x178] sm:$0xff]
        %v4813 = vld [vmem:[#allocation3 + $0x180] sm:$0xff]
        %v4814 = vld [vmem:[#allocation3 + $0x188] sm:$0x3f]
        %v4815 = vld [vmem:[%s3] sm:$0xff]
        %v4816 = vld [vmem:[%s3 + $0x8] sm:$0xff]
        %v4818 = vsel %vm1322, %v4765, 0
        %v4821 = vsel %vm1322, %v4766, 0
        %v4824 = vsel %vm1322, %v4767, 0
        %v4827 = vsel %vm1322, %v4768, 0
        %v4830 = vsel %vm1322, %v4769, 0
        %v4833 = vsel %vm1322, %v4770, 0
        %v4836 = vsel %vm1322, %v4771, 0
        %v4839 = vsel %vm1322, %v4772, 0
        %v4842 = vsel %vm1322, %v4773, 0
        %v4845 = vsel %vm1322, %v4774, 0
        %v4848 = vsel %vm1322, %v4775, 0
        %v4851 = vsel %vm1322, %v4776, 0
        %v4854 = vsel %vm1322, %v4777, 0
        %v4857 = vsel %vm1322, %v4778, 0
        %v4860 = vsel %vm1322, %v4779, 0
        %v4863 = vsel %vm1322, %v4780, 0
        %v4866 = vsel %vm1322, %v4781, 0
        %v4869 = vsel %vm1322, %v4782, 0
        %v4872 = vsel %vm1322, %v4783, 0
        %v4875 = vsel %vm1322, %v4784, 0
        %v4878 = vsel %vm1322, %v4785, 0
        %v4881 = vsel %vm1322, %v4786, 0
        %v4884 = vsel %vm1322, %v4787, 0
        %v4887 = vsel %vm1322, %v4788, 0
        %v4890 = vsel %vm1322, %v4789, 0
        %v4893 = vsel %vm1322, %v4790, 0
        %v4896 = vsel %vm1322, %v4791, 0
        %v4899 = vsel %vm1322, %v4792, 0
        %v4902 = vsel %vm1322, %v4793, 0
        %v4905 = vsel %vm1322, %v4794, 0
        %v4908 = vsel %vm1322, %v4795, 0
        %v4911 = vsel %vm1322, %v4796, 0
        %v4914 = vsel %vm1322, %v4797, 0
        %v4917 = vsel %vm1322, %v4798, 0
        %v4920 = vsel %vm1322, %v4799, 0
        %v4923 = vsel %vm1322, %v4800, 0
        %v4926 = vsel %vm1322, %v4801, 0
        %v4929 = vsel %vm1322, %v4802, 0
        %v4932 = vsel %vm1322, %v4803, 0
        %v4935 = vsel %vm1322, %v4804, 0
        %v4938 = vsel %vm1322, %v4805, 0
        %v4941 = vsel %vm1322, %v4806, 0
        %v4944 = vsel %vm1322, %v4807, 0
        %v4947 = vsel %vm1322, %v4808, 0
        %v4950 = vsel %vm1322, %v4809, 0
        %v4953 = vsel %vm1322, %v4810, 0
        %v4956 = vsel %vm1322, %v4811, 0
        %v4959 = vsel %vm1322, %v4812, 0
        %v4962 = vsel %vm1322, %v4813, 0
        %v4965 = vsel %vm1322, %v4814, 0
        %4967 = vmatprep.subr.mxu0 0.0
        %4968 = vmatpush1.msra.mxu0 %v4815
        %4969 = vmatprep.subr.mxu0 0.0
        %4970 = vmatpush1.msra.mxu0 %v4816
        %4971 = vmatprep.subr.mxu0 0.0
        %4972 = vmatpush1.msra.mxu0 0.0
        %4973 = vmatprep.subr.mxu0 0.0
        %4974 = vmatpush1.msra.mxu0 0.0
        %4975 = vmatprep.subr.mxu0 0.0
        %4976 = vmatpush1.msra.mxu0 0.0
        %4977 = vmatprep.subr.mxu0 0.0
        %4978 = vmatpush1.msra.mxu0 0.0
        %4979 = vmatprep.subr.mxu0 0.0
        %4980 = vmatpush1.msra.mxu0 0.0
        %4981 = vmatprep.subr.mxu0 0.0
        %4982 = vmatpush1.msra.mxu0 0.0
        %4983 = vmatprep.subr.mxu0 0.0
        %4984 = vmatpush1.msra.mxu0 0.0
        %4985 = vmatprep.subr.mxu0 0.0
        %4986 = vmatpush1.msra.mxu0 0.0
        %4987 = vmatprep.subr.mxu0 0.0
        %4988 = vmatpush1.msra.mxu0 0.0
        %4989 = vmatprep.subr.mxu0 0.0
        %4990 = vmatpush1.msra.mxu0 0.0
        %4991 = vmatprep.subr.mxu0 0.0
        %4992 = vmatpush1.msra.mxu0 0.0
        %4993 = vmatprep.subr.mxu0 0.0
        %4994 = vmatpush1.msra.mxu0 0.0
        %4995 = vmatprep.subr.mxu0 0.0
        %4996 = vmatpush1.msra.mxu0 0.0
        %4997 = vmatprep.subr.mxu0 0.0
        %4998 = vmatpush1.msra.mxu0 0.0
        %4999 = vmatprep.subr.mxu0 0.0
        %5000 = vmatpush1.msra.mxu0 0.0
        %5001 = vmatprep.subr.mxu0 0.0
        %5002 = vmatpush1.msra.mxu0 0.0
        %5003 = vmatprep.subr.mxu0 0.0
        %5004 = vmatpush1.msra.mxu0 0.0
        %5005 = vmatprep.subr.mxu0 0.0
        %5006 = vmatpush1.msra.mxu0 0.0
        %5007 = vmatprep.subr.mxu0 0.0
        %5008 = vmatpush1.msra.mxu0 0.0
        %5009 = vmatprep.subr.mxu0 0.0
        %5010 = vmatpush1.msra.mxu0 0.0
        %5011 = vmatprep.subr.mxu0 0.0
        %5012 = vmatpush1.msra.mxu0 0.0
        %5013 = vmatprep.subr.mxu0 0.0
        %5014 = vmatpush1.msra.mxu0 0.0
        %5015 = vmatprep.subr.mxu0 0.0
        %5016 = vmatpush1.msra.mxu0 0.0
        %5017 = vmatprep.subr.mxu0 0.0
        %5018 = vmatpush1.msra.mxu0 0.0
        %5019 = vmatprep.subr.mxu0 0.0
        %5020 = vmatpush1.msra.mxu0 0.0
        %5021 = vmatprep.subr.mxu0 0.0
        %5022 = vmatpush1.msra.mxu0 0.0
        %5023 = vmatprep.subr.mxu0 0.0
        %5024 = vmatpush1.msra.mxu0 0.0
        %5025 = vmatprep.subr.mxu0 0.0
        %5026 = vmatpush1.msra.mxu0 0.0
        %5027 = vmatprep.subr.mxu0 0.0
        %5028 = vmatpush1.msra.mxu0 0.0
        %5029 = vmatprep.subr.mxu0 0.0
        %5030 = vmatpush1.msra.mxu0 0.0
        %5031 = vmatprep.mubr.f32.mxu0 0.0
        %5032 = vmatmul.mubr.f32.gmra.mrb[0].mxu0 %v4818
        %v5033 = vpop.f32.mrb[0].mxu0
        %v5034 = vadd.f32 0.0, %v5033
        %v5035 = vpop.f32.mrb[0].mxu0
        %5036 = vmatprep.mubr.f32.mxu0 0.0
        %5037 = vmatmul.mubr.f32.gmra.mrb[0].mxu0 %v4821
        %v5038 = vpop.f32.mrb[0].mxu0
        %v5039 = vadd.f32 0.0, %v5038
        %v5040 = vpop.f32.mrb[0].mxu0
        %5041 = vmatprep.mubr.f32.mxu0 0.0
        %5042 = vmatmul.mubr.f32.gmra.mrb[0].mxu0 %v4824
        %v5043 = vpop.f32.mrb[0].mxu0
        %v5044 = vadd.f32 0.0, %v5043
        %v5045 = vpop.f32.mrb[0].mxu0
        %5046 = vmatprep.mubr.f32.mxu0 0.0
        %5047 = vmatmul.mubr.f32.gmra.mrb[0].mxu0 %v4827
        %v5048 = vpop.f32.mrb[0].mxu0
        %v5049 = vadd.f32 0.0, %v5048
        %v5050 = vpop.f32.mrb[0].mxu0
        %5051 = vmatprep.mubr.f32.mxu0 0.0
        %5052 = vmatmul.mubr.f32.gmra.mrb[0].mxu0 %v4830
        %v5053 = vpop.f32.mrb[0].mxu0
        %v5054 = vadd.f32 0.0, %v5053
        %v5055 = vpop.f32.mrb[0].mxu0
        %5056 = vmatprep.mubr.f32.mxu0 0.0
        %5057 = vmatmul.mubr.f32.gmra.mrb[0].mxu0 %v4833
        %v5058 = vpop.f32.mrb[0].mxu0
        %v5059 = vadd.f32 0.0, %v5058
        %v5060 = vpop.f32.mrb[0].mxu0
        %5061 = vmatprep.mubr.f32.mxu0 0.0
        %5062 = vmatmul.mubr.f32.gmra.mrb[0].mxu0 %v4836
        %v5063 = vpop.f32.mrb[0].mxu0
        %v5064 = vadd.f32 0.0, %v5063
        %v5065 = vpop.f32.mrb[0].mxu0
        %5066 = vmatprep.mubr.f32.mxu0 0.0
        %5067 = vmatmul.mubr.f32.gmra.mrb[0].mxu0 %v4839
        %v5068 = vpop.f32.mrb[0].mxu0
        %v5069 = vadd.f32 0.0, %v5068
        %v5070 = vpop.f32.mrb[0].mxu0
        %5071 = vmatprep.mubr.f32.mxu0 0.0
        %5072 = vmatmul.mubr.f32.gmra.mrb[0].mxu0 %v4842
        %v5073 = vpop.f32.mrb[0].mxu0
        %v5074 = vadd.f32 0.0, %v5073
        %v5075 = vpop.f32.mrb[0].mxu0
        %5076 = vmatprep.mubr.f32.mxu0 0.0
        %5077 = vmatmul.mubr.f32.gmra.mrb[0].mxu0 %v4845
        %v5078 = vpop.f32.mrb[0].mxu0
        %v5079 = vadd.f32 0.0, %v5078
        %v5080 = vpop.f32.mrb[0].mxu0
        %5081 = vmatprep.mubr.f32.mxu0 0.0
        %5082 = vmatmul.mubr.f32.gmra.mrb[0].mxu0 %v4848
        %v5083 = vpop.f32.mrb[0].mxu0
        %v5084 = vadd.f32 0.0, %v5083
        %v5085 = vpop.f32.mrb[0].mxu0
        %5086 = vmatprep.mubr.f32.mxu0 0.0
        %5087 = vmatmul.mubr.f32.gmra.mrb[0].mxu0 %v4851
        %v5088 = vpop.f32.mrb[0].mxu0
        %v5089 = vadd.f32 0.0, %v5088
        %v5090 = vpop.f32.mrb[0].mxu0
        %5091 = vmatprep.mubr.f32.mxu0 0.0
        %5092 = vmatmul.mubr.f32.gmra.mrb[0].mxu0 %v4854
        %v5093 = vpop.f32.mrb[0].mxu0
        %v5094 = vadd.f32 0.0, %v5093
        %v5095 = vpop.f32.mrb[0].mxu0
        %5096 = vmatprep.mubr.f32.mxu0 0.0
        %5097 = vmatmul.mubr.f32.gmra.mrb[0].mxu0 %v4857
        %v5098 = vpop.f32.mrb[0].mxu0
        %v5099 = vadd.f32 0.0, %v5098
        %v5100 = vpop.f32.mrb[0].mxu0
        %5101 = vmatprep.mubr.f32.mxu0 0.0
        %5102 = vmatmul.mubr.f32.gmra.mrb[0].mxu0 %v4860
        %v5103 = vpop.f32.mrb[0].mxu0
        %v5104 = vadd.f32 0.0, %v5103
        %v5105 = vpop.f32.mrb[0].mxu0
        %5106 = vmatprep.mubr.f32.mxu0 0.0
        %5107 = vmatmul.mubr.f32.gmra.mrb[0].mxu0 %v4863
        %v5108 = vpop.f32.mrb[0].mxu0
        %v5109 = vadd.f32 0.0, %v5108
        %v5110 = vpop.f32.mrb[0].mxu0
        %5111 = vmatprep.mubr.f32.mxu0 0.0
        %5112 = vmatmul.mubr.f32.gmra.mrb[0].mxu0 %v4866
        %v5113 = vpop.f32.mrb[0].mxu0
        %v5114 = vadd.f32 0.0, %v5113
        %v5115 = vpop.f32.mrb[0].mxu0
        %5116 = vmatprep.mubr.f32.mxu0 0.0
        %5117 = vmatmul.mubr.f32.gmra.mrb[0].mxu0 %v4869
        %v5118 = vpop.f32.mrb[0].mxu0
        %v5119 = vadd.f32 0.0, %v5118
        %v5120 = vpop.f32.mrb[0].mxu0
        %5121 = vmatprep.mubr.f32.mxu0 0.0
        %5122 = vmatmul.mubr.f32.gmra.mrb[0].mxu0 %v4872
        %v5123 = vpop.f32.mrb[0].mxu0
        %v5124 = vadd.f32 0.0, %v5123
        %v5125 = vpop.f32.mrb[0].mxu0
        %5126 = vmatprep.mubr.f32.mxu0 0.0
        %5127 = vmatmul.mubr.f32.gmra.mrb[0].mxu0 %v4875
        %v5128 = vpop.f32.mrb[0].mxu0
        %v5129 = vadd.f32 0.0, %v5128
        %v5130 = vpop.f32.mrb[0].mxu0
        %5131 = vmatprep.mubr.f32.mxu0 0.0
        %5132 = vmatmul.mubr.f32.gmra.mrb[0].mxu0 %v4878
        %v5133 = vpop.f32.mrb[0].mxu0
        %v5134 = vadd.f32 0.0, %v5133
        %v5135 = vpop.f32.mrb[0].mxu0
        %5136 = vmatprep.mubr.f32.mxu0 0.0
        %5137 = vmatmul.mubr.f32.gmra.mrb[0].mxu0 %v4881
        %v5138 = vpop.f32.mrb[0].mxu0
        %v5139 = vadd.f32 0.0, %v5138
        %v5140 = vpop.f32.mrb[0].mxu0
        %5141 = vmatprep.mubr.f32.mxu0 0.0
        %5142 = vmatmul.mubr.f32.gmra.mrb[0].mxu0 %v4884
        %v5143 = vpop.f32.mrb[0].mxu0
        %v5144 = vadd.f32 0.0, %v5143
        %v5145 = vpop.f32.mrb[0].mxu0
        %5146 = vmatprep.mubr.f32.mxu0 0.0
        %5147 = vmatmul.mubr.f32.gmra.mrb[0].mxu0 %v4887
        %v5148 = vpop.f32.mrb[0].mxu0
        %v5149 = vadd.f32 0.0, %v5148
        %v5150 = vpop.f32.mrb[0].mxu0
        %5151 = vmatprep.mubr.f32.mxu0 0.0
        %5152 = vmatmul.mubr.f32.gmra.mrb[0].mxu0 %v4890
        %v5153 = vpop.f32.mrb[0].mxu0
        %v5154 = vadd.f32 0.0, %v5153
        %v5155 = vpop.f32.mrb[0].mxu0
        %5156 = vmatprep.mubr.f32.mxu0 0.0
        %5157 = vmatmul.mubr.f32.gmra.mrb[0].mxu0 %v4893
        %v5158 = vpop.f32.mrb[0].mxu0
        %v5159 = vadd.f32 0.0, %v5158
        %v5160 = vpop.f32.mrb[0].mxu0
        %5161 = vmatprep.mubr.f32.mxu0 0.0
        %5162 = vmatmul.mubr.f32.gmra.mrb[0].mxu0 %v4896
        %v5163 = vpop.f32.mrb[0].mxu0
        %v5164 = vadd.f32 0.0, %v5163
        %v5165 = vpop.f32.mrb[0].mxu0
        %5166 = vmatprep.mubr.f32.mxu0 0.0
        %5167 = vmatmul.mubr.f32.gmra.mrb[0].mxu0 %v4899
        %v5168 = vpop.f32.mrb[0].mxu0
        %v5169 = vadd.f32 0.0, %v5168
        %v5170 = vpop.f32.mrb[0].mxu0
        %5171 = vmatprep.mubr.f32.mxu0 0.0
        %5172 = vmatmul.mubr.f32.gmra.mrb[0].mxu0 %v4902
        %v5173 = vpop.f32.mrb[0].mxu0
        %v5174 = vadd.f32 0.0, %v5173
        %v5175 = vpop.f32.mrb[0].mxu0
        %5176 = vmatprep.mubr.f32.mxu0 0.0
        %5177 = vmatmul.mubr.f32.gmra.mrb[0].mxu0 %v4905
        %v5178 = vpop.f32.mrb[0].mxu0
        %v5179 = vadd.f32 0.0, %v5178
        %v5180 = vpop.f32.mrb[0].mxu0
        %5181 = vmatprep.mubr.f32.mxu0 0.0
        %5182 = vmatmul.mubr.f32.gmra.mrb[0].mxu0 %v4908
        %v5183 = vpop.f32.mrb[0].mxu0
        %v5184 = vadd.f32 0.0, %v5183
        %v5185 = vpop.f32.mrb[0].mxu0
        %5186 = vmatprep.mubr.f32.mxu0 0.0
        %5187 = vmatmul.mubr.f32.gmra.mrb[0].mxu0 %v4911
        %v5188 = vpop.f32.mrb[0].mxu0
        %v5189 = vadd.f32 0.0, %v5188
        %v5190 = vpop.f32.mrb[0].mxu0
        %5191 = vmatprep.mubr.f32.mxu0 0.0
        %5192 = vmatmul.mubr.f32.gmra.mrb[0].mxu0 %v4914
        %v5193 = vpop.f32.mrb[0].mxu0
        %v5194 = vadd.f32 0.0, %v5193
        %v5195 = vpop.f32.mrb[0].mxu0
        %5196 = vmatprep.mubr.f32.mxu0 0.0
        %5197 = vmatmul.mubr.f32.gmra.mrb[0].mxu0 %v4917
        %v5198 = vpop.f32.mrb[0].mxu0
        %v5199 = vadd.f32 0.0, %v5198
        %v5200 = vpop.f32.mrb[0].mxu0
        %5201 = vmatprep.mubr.f32.mxu0 0.0
        %5202 = vmatmul.mubr.f32.gmra.mrb[0].mxu0 %v4920
        %v5203 = vpop.f32.mrb[0].mxu0
        %v5204 = vadd.f32 0.0, %v5203
        %v5205 = vpop.f32.mrb[0].mxu0
        %5206 = vmatprep.mubr.f32.mxu0 0.0
        %5207 = vmatmul.mubr.f32.gmra.mrb[0].mxu0 %v4923
        %v5208 = vpop.f32.mrb[0].mxu0
        %v5209 = vadd.f32 0.0, %v5208
        %v5210 = vpop.f32.mrb[0].mxu0
        %5211 = vmatprep.mubr.f32.mxu0 0.0
        %5212 = vmatmul.mubr.f32.gmra.mrb[0].mxu0 %v4926
        %v5213 = vpop.f32.mrb[0].mxu0
        %v5214 = vadd.f32 0.0, %v5213
        %v5215 = vpop.f32.mrb[0].mxu0
        %5216 = vmatprep.mubr.f32.mxu0 0.0
        %5217 = vmatmul.mubr.f32.gmra.mrb[0].mxu0 %v4929
        %v5218 = vpop.f32.mrb[0].mxu0
        %v5219 = vadd.f32 0.0, %v5218
        %v5220 = vpop.f32.mrb[0].mxu0
        %5221 = vmatprep.mubr.f32.mxu0 0.0
        %5222 = vmatmul.mubr.f32.gmra.mrb[0].mxu0 %v4932
        %v5223 = vpop.f32.mrb[0].mxu0
        %v5224 = vadd.f32 0.0, %v5223
        %v5225 = vpop.f32.mrb[0].mxu0
        %5226 = vmatprep.mubr.f32.mxu0 0.0
        %5227 = vmatmul.mubr.f32.gmra.mrb[0].mxu0 %v4935
        %v5228 = vpop.f32.mrb[0].mxu0
        %v5229 = vadd.f32 0.0, %v5228
        %v5230 = vpop.f32.mrb[0].mxu0
        %5231 = vmatprep.mubr.f32.mxu0 0.0
        %5232 = vmatmul.mubr.f32.gmra.mrb[0].mxu0 %v4938
        %v5233 = vpop.f32.mrb[0].mxu0
        %v5234 = vadd.f32 0.0, %v5233
        %v5235 = vpop.f32.mrb[0].mxu0
        %5236 = vmatprep.mubr.f32.mxu0 0.0
        %5237 = vmatmul.mubr.f32.gmra.mrb[0].mxu0 %v4941
        %v5238 = vpop.f32.mrb[0].mxu0
        %v5239 = vadd.f32 0.0, %v5238
        %v5240 = vpop.f32.mrb[0].mxu0
        %5241 = vmatprep.mubr.f32.mxu0 0.0
        %5242 = vmatmul.mubr.f32.gmra.mrb[0].mxu0 %v4944
        %v5243 = vpop.f32.mrb[0].mxu0
        %v5244 = vadd.f32 0.0, %v5243
        %v5245 = vpop.f32.mrb[0].mxu0
        %5246 = vmatprep.mubr.f32.mxu0 0.0
        %5247 = vmatmul.mubr.f32.gmra.mrb[0].mxu0 %v4947
        %v5248 = vpop.f32.mrb[0].mxu0
        %v5249 = vadd.f32 0.0, %v5248
        %v5250 = vpop.f32.mrb[0].mxu0
        %5251 = vmatprep.mubr.f32.mxu0 0.0
        %5252 = vmatmul.mubr.f32.gmra.mrb[0].mxu0 %v4950
        %v5253 = vpop.f32.mrb[0].mxu0
        %v5254 = vadd.f32 0.0, %v5253
        %v5255 = vpop.f32.mrb[0].mxu0
        %5256 = vmatprep.mubr.f32.mxu0 0.0
        %5257 = vmatmul.mubr.f32.gmra.mrb[0].mxu0 %v4953
        %v5258 = vpop.f32.mrb[0].mxu0
        %v5259 = vadd.f32 0.0, %v5258
        %v5260 = vpop.f32.mrb[0].mxu0
        %5261 = vmatprep.mubr.f32.mxu0 0.0
        %5262 = vmatmul.mubr.f32.gmra.mrb[0].mxu0 %v4956
        %v5263 = vpop.f32.mrb[0].mxu0
        %v5264 = vadd.f32 0.0, %v5263
        %v5265 = vpop.f32.mrb[0].mxu0
        %5266 = vmatprep.mubr.f32.mxu0 0.0
        %5267 = vmatmul.mubr.f32.gmra.mrb[0].mxu0 %v4959
        %v5268 = vpop.f32.mrb[0].mxu0
        %v5269 = vadd.f32 0.0, %v5268
        %v5270 = vpop.f32.mrb[0].mxu0
        %5271 = vmatprep.mubr.f32.mxu0 0.0
        %5272 = vmatmul.mubr.f32.gmra.mrb[0].mxu0 %v4962
        %v5273 = vpop.f32.mrb[0].mxu0
        %v5274 = vadd.f32 0.0, %v5273
        %v5275 = vpop.f32.mrb[0].mxu0
        %5276 = vmatprep.mubr.f32.mxu0 0.0
        %5277 = vmatmul.mubr.f32.gmra.mrb[0].mxu0 %v4965
        %v5278 = vpop.f32.mrb[0].mxu0
        %v5279 = vadd.f32 0.0, %v5278
        %v5280 = vpop.f32.mrb[0].mxu0
        %5281 = vdwg.mxu0
        %vm5282 = vcmask 261120
        %5283 = vst.msk [vmem:[#allocation4] sm:$0xff] %vm5282, %v5034
        %5284 = vst.msk [vmem:[#allocation4 + $0x8] sm:$0xff] %vm5282, %v5039
        %5285 = vst.msk [vmem:[#allocation4 + $0x10] sm:$0xff] %vm5282, %v5044
        %5286 = vst.msk [vmem:[#allocation4 + $0x18] sm:$0xff] %vm5282, %v5049
        %5287 = vst.msk [vmem:[#allocation4 + $0x20] sm:$0xff] %vm5282, %v5054
        %5288 = vst.msk [vmem:[#allocation4 + $0x28] sm:$0xff] %vm5282, %v5059
        %5289 = vst.msk [vmem:[#allocation4 + $0x30] sm:$0xff] %vm5282, %v5064
        %5290 = vst.msk [vmem:[#allocation4 + $0x38] sm:$0xff] %vm5282, %v5069
        %5291 = vst.msk [vmem:[#allocation4 + $0x40] sm:$0xff] %vm5282, %v5074
        %5292 = vst.msk [vmem:[#allocation4 + $0x48] sm:$0xff] %vm5282, %v5079
        %5293 = vst.msk [vmem:[#allocation4 + $0x50] sm:$0xff] %vm5282, %v5084
        %5294 = vst.msk [vmem:[#allocation4 + $0x58] sm:$0xff] %vm5282, %v5089
        %5295 = vst.msk [vmem:[#allocation4 + $0x60] sm:$0xff] %vm5282, %v5094
        %5296 = vst.msk [vmem:[#allocation4 + $0x68] sm:$0xff] %vm5282, %v5099
        %5297 = vst.msk [vmem:[#allocation4 + $0x70] sm:$0xff] %vm5282, %v5104
        %5298 = vst.msk [vmem:[#allocation4 + $0x78] sm:$0xff] %vm5282, %v5109
        %5299 = vst.msk [vmem:[#allocation4 + $0x80] sm:$0xff] %vm5282, %v5114
        %5300 = vst.msk [vmem:[#allocation4 + $0x88] sm:$0xff] %vm5282, %v5119
        %5301 = vst.msk [vmem:[#allocation4 + $0x90] sm:$0xff] %vm5282, %v5124
        %5302 = vst.msk [vmem:[#allocation4 + $0x98] sm:$0xff] %vm5282, %v5129
        %5303 = vst.msk [vmem:[#allocation4 + $0xa0] sm:$0xff] %vm5282, %v5134
        %5304 = vst.msk [vmem:[#allocation4 + $0xa8] sm:$0xff] %vm5282, %v5139
        %5305 = vst.msk [vmem:[#allocation4 + $0xb0] sm:$0xff] %vm5282, %v5144
        %5306 = vst.msk [vmem:[#allocation4 + $0xb8] sm:$0xff] %vm5282, %v5149
        %5307 = vst.msk [vmem:[#allocation4 + $0xc0] sm:$0xff] %vm5282, %v5154
        %5308 = vst.msk [vmem:[#allocation4 + $0xc8] sm:$0xff] %vm5282, %v5159
        %5309 = vst.msk [vmem:[#allocation4 + $0xd0] sm:$0xff] %vm5282, %v5164
        %5310 = vst.msk [vmem:[#allocation4 + $0xd8] sm:$0xff] %vm5282, %v5169
        %5311 = vst.msk [vmem:[#allocation4 + $0xe0] sm:$0xff] %vm5282, %v5174
        %5312 = vst.msk [vmem:[#allocation4 + $0xe8] sm:$0xff] %vm5282, %v5179
        %5313 = vst.msk [vmem:[#allocation4 + $0xf0] sm:$0xff] %vm5282, %v5184
        %5314 = vst.msk [vmem:[#allocation4 + $0xf8] sm:$0xff] %vm5282, %v5189
        %5315 = vst.msk [vmem:[#allocation4 + $0x100] sm:$0xff] %vm5282, %v5194
        %5316 = vst.msk [vmem:[#allocation4 + $0x108] sm:$0xff] %vm5282, %v5199
        %5317 = vst.msk [vmem:[#allocation4 + $0x110] sm:$0xff] %vm5282, %v5204
        %5318 = vst.msk [vmem:[#allocation4 + $0x118] sm:$0xff] %vm5282, %v5209
        %5319 = vst.msk [vmem:[#allocation4 + $0x120] sm:$0xff] %vm5282, %v5214
        %5320 = vst.msk [vmem:[#allocation4 + $0x128] sm:$0xff] %vm5282, %v5219
        %5321 = vst.msk [vmem:[#allocation4 + $0x130] sm:$0xff] %vm5282, %v5224
        %5322 = vst.msk [vmem:[#allocation4 + $0x138] sm:$0xff] %vm5282, %v5229
        %5323 = vst.msk [vmem:[#allocation4 + $0x140] sm:$0xff] %vm5282, %v5234
        %5324 = vst.msk [vmem:[#allocation4 + $0x148] sm:$0xff] %vm5282, %v5239
        %5325 = vst.msk [vmem:[#allocation4 + $0x150] sm:$0xff] %vm5282, %v5244
        %5326 = vst.msk [vmem:[#allocation4 + $0x158] sm:$0xff] %vm5282, %v5249
        %5327 = vst.msk [vmem:[#allocation4 + $0x160] sm:$0xff] %vm5282, %v5254
        %5328 = vst.msk [vmem:[#allocation4 + $0x168] sm:$0xff] %vm5282, %v5259
        %5329 = vst.msk [vmem:[#allocation4 + $0x170] sm:$0xff] %vm5282, %v5264
        %5330 = vst.msk [vmem:[#allocation4 + $0x178] sm:$0xff] %vm5282, %v5269
        %5331 = vst.msk [vmem:[#allocation4 + $0x180] sm:$0xff] %vm5282, %v5274
        %vm5332 = vcmask 259072
        %5333 = vst.msk [vmem:[#allocation4 + $0x188] sm:$0x3f] %vm5332, %v5279
        %v5334 = vld [vmem:[#allocation4] sm:$0xff]
        %v5335 = vld [vmem:[#allocation4 + $0x8] sm:$0xff]
        %v5336 = vld [vmem:[#allocation4 + $0x10] sm:$0xff]
        %v5337 = vld [vmem:[#allocation4 + $0x18] sm:$0xff]
        %v5338 = vld [vmem:[#allocation4 + $0x20] sm:$0xff]
        %v5339 = vld [vmem:[#allocation4 + $0x28] sm:$0xff]
        %v5340 = vld [vmem:[#allocation4 + $0x30] sm:$0xff]
        %v5341 = vld [vmem:[#allocation4 + $0x38] sm:$0xff]
        %v5342 = vld [vmem:[#allocation4 + $0x40] sm:$0xff]
        %v5343 = vld [vmem:[#allocation4 + $0x48] sm:$0xff]
        %v5344 = vld [vmem:[#allocation4 + $0x50] sm:$0xff]
        %v5345 = vld [vmem:[#allocation4 + $0x58] sm:$0xff]
        %v5346 = vld [vmem:[#allocation4 + $0x60] sm:$0xff]
        %v5347 = vld [vmem:[#allocation4 + $0x68] sm:$0xff]
        %v5348 = vld [vmem:[#allocation4 + $0x70] sm:$0xff]
        %v5349 = vld [vmem:[#allocation4 + $0x78] sm:$0xff]
        %v5350 = vld [vmem:[#allocation4 + $0x80] sm:$0xff]
        %v5351 = vld [vmem:[#allocation4 + $0x88] sm:$0xff]
        %v5352 = vld [vmem:[#allocation4 + $0x90] sm:$0xff]
        %v5353 = vld [vmem:[#allocation4 + $0x98] sm:$0xff]
        %v5354 = vld [vmem:[#allocation4 + $0xa0] sm:$0xff]
        %v5355 = vld [vmem:[#allocation4 + $0xa8] sm:$0xff]
        %v5356 = vld [vmem:[#allocation4 + $0xb0] sm:$0xff]
        %v5357 = vld [vmem:[#allocation4 + $0xb8] sm:$0xff]
        %v5358 = vld [vmem:[#allocation4 + $0xc0] sm:$0xff]
        %v5359 = vld [vmem:[#allocation4 + $0xc8] sm:$0xff]
        %v5360 = vld [vmem:[#allocation4 + $0xd0] sm:$0xff]
        %v5361 = vld [vmem:[#allocation4 + $0xd8] sm:$0xff]
        %v5362 = vld [vmem:[#allocation4 + $0xe0] sm:$0xff]
        %v5363 = vld [vmem:[#allocation4 + $0xe8] sm:$0xff]
        %v5364 = vld [vmem:[#allocation4 + $0xf0] sm:$0xff]
        %v5365 = vld [vmem:[#allocation4 + $0xf8] sm:$0xff]
        %v5366 = vld [vmem:[#allocation4 + $0x100] sm:$0xff]
        %v5367 = vld [vmem:[#allocation4 + $0x108] sm:$0xff]
        %v5368 = vld [vmem:[#allocation4 + $0x110] sm:$0xff]
        %v5369 = vld [vmem:[#allocation4 + $0x118] sm:$0xff]
        %v5370 = vld [vmem:[#allocation4 + $0x120] sm:$0xff]
        %v5371 = vld [vmem:[#allocation4 + $0x128] sm:$0xff]
        %v5372 = vld [vmem:[#allocation4 + $0x130] sm:$0xff]
        %v5373 = vld [vmem:[#allocation4 + $0x138] sm:$0xff]
        %v5374 = vld [vmem:[#allocation4 + $0x140] sm:$0xff]
        %v5375 = vld [vmem:[#allocation4 + $0x148] sm:$0xff]
        %v5376 = vld [vmem:[#allocation4 + $0x150] sm:$0xff]
        %v5377 = vld [vmem:[#allocation4 + $0x158] sm:$0xff]
        %v5378 = vld [vmem:[#allocation4 + $0x160] sm:$0xff]
        %v5379 = vld [vmem:[#allocation4 + $0x168] sm:$0xff]
        %v5380 = vld [vmem:[#allocation4 + $0x170] sm:$0xff]
        %v5381 = vld [vmem:[#allocation4 + $0x178] sm:$0xff]
        %v5382 = vld [vmem:[#allocation4 + $0x180] sm:$0xff]
        %v5383 = vld [vmem:[#allocation4 + $0x188] sm:$0x3f]
        %v5384 = vld [vmem:[#allocation3 + $0x1] sm:$0xff]
        %v5385 = vld [vmem:[#allocation3 + $0x9] sm:$0xff]
        %v5386 = vld [vmem:[#allocation3 + $0x11] sm:$0xff]
        %v5387 = vld [vmem:[#allocation3 + $0x19] sm:$0xff]
        %v5388 = vld [vmem:[#allocation3 + $0x21] sm:$0xff]
        %v5389 = vld [vmem:[#allocation3 + $0x29] sm:$0xff]
        %v5390 = vld [vmem:[#allocation3 + $0x31] sm:$0xff]
        %v5391 = vld [vmem:[#allocation3 + $0x39] sm:$0xff]
        %v5392 = vld [vmem:[#allocation3 + $0x41] sm:$0xff]
        %v5393 = vld [vmem:[#allocation3 + $0x49] sm:$0xff]
        %v5394 = vld [vmem:[#allocation3 + $0x51] sm:$0xff]
        %v5395 = vld [vmem:[#allocation3 + $0x59] sm:$0xff]
        %v5396 = vld [vmem:[#allocation3 + $0x61] sm:$0xff]
        %v5397 = vld [vmem:[#allocation3 + $0x69] sm:$0xff]
        %v5398 = vld [vmem:[#allocation3 + $0x71] sm:$0xff]
        %v5399 = vld [vmem:[#allocation3 + $0x79] sm:$0xff]
        %v5400 = vld [vmem:[#allocation3 + $0x81] sm:$0xff]
        %v5401 = vld [vmem:[#allocation3 + $0x89] sm:$0xff]
        %v5402 = vld [vmem:[#allocation3 + $0x91] sm:$0xff]
        %v5403 = vld [vmem:[#allocation3 + $0x99] sm:$0xff]
        %v5404 = vld [vmem:[#allocation3 + $0xa1] sm:$0xff]
        %v5405 = vld [vmem:[#allocation3 + $0xa9] sm:$0xff]
        %v5406 = vld [vmem:[#allocation3 + $0xb1] sm:$0xff]
        %v5407 = vld [vmem:[#allocation3 + $0xb9] sm:$0xff]
        %v5408 = vld [vmem:[#allocation3 + $0xc1] sm:$0xff]
        %v5409 = vld [vmem:[#allocation3 + $0xc9] sm:$0xff]
        %v5410 = vld [vmem:[#allocation3 + $0xd1] sm:$0xff]
        %v5411 = vld [vmem:[#allocation3 + $0xd9] sm:$0xff]
        %v5412 = vld [vmem:[#allocation3 + $0xe1] sm:$0xff]
        %v5413 = vld [vmem:[#allocation3 + $0xe9] sm:$0xff]
        %v5414 = vld [vmem:[#allocation3 + $0xf1] sm:$0xff]
        %v5415 = vld [vmem:[#allocation3 + $0xf9] sm:$0xff]
        %v5416 = vld [vmem:[#allocation3 + $0x101] sm:$0xff]
        %v5417 = vld [vmem:[#allocation3 + $0x109] sm:$0xff]
        %v5418 = vld [vmem:[#allocation3 + $0x111] sm:$0xff]
        %v5419 = vld [vmem:[#allocation3 + $0x119] sm:$0xff]
        %v5420 = vld [vmem:[#allocation3 + $0x121] sm:$0xff]
        %v5421 = vld [vmem:[#allocation3 + $0x129] sm:$0xff]
        %v5422 = vld [vmem:[#allocation3 + $0x131] sm:$0xff]
        %v5423 = vld [vmem:[#allocation3 + $0x139] sm:$0xff]
        %v5424 = vld [vmem:[#allocation3 + $0x141] sm:$0xff]
        %v5425 = vld [vmem:[#allocation3 + $0x149] sm:$0xff]
        %v5426 = vld [vmem:[#allocation3 + $0x151] sm:$0xff]
        %v5427 = vld [vmem:[#allocation3 + $0x159] sm:$0xff]
        %v5428 = vld [vmem:[#allocation3 + $0x161] sm:$0xff]
        %v5429 = vld [vmem:[#allocation3 + $0x169] sm:$0xff]
        %v5430 = vld [vmem:[#allocation3 + $0x171] sm:$0xff]
        %v5431 = vld [vmem:[#allocation3 + $0x179] sm:$0xff]
        %v5432 = vld [vmem:[#allocation3 + $0x181] sm:$0xff]
        %v5433 = vld [vmem:[#allocation3 + $0x189] sm:$0x3f]
        %s5434 = scalar_lea.vmem %s3, 16
        %v5435 = vld [vmem:[%s5434] sm:$0xff]
        %v5436 = vld [vmem:[%s5434 + $0x8] sm:$0xff]
        %v5438 = vsel %vm1322, %v5384, 0
        %v5441 = vsel %vm1322, %v5385, 0
        %v5444 = vsel %vm1322, %v5386, 0
        %v5447 = vsel %vm1322, %v5387, 0
        %v5450 = vsel %vm1322, %v5388, 0
        %v5453 = vsel %vm1322, %v5389, 0
        %v5456 = vsel %vm1322, %v5390, 0
        %v5459 = vsel %vm1322, %v5391, 0
        %v5462 = vsel %vm1322, %v5392, 0
        %v5465 = vsel %vm1322, %v5393, 0
        %v5468 = vsel %vm1322, %v5394, 0
        %v5471 = vsel %vm1322, %v5395, 0
        %v5474 = vsel %vm1322, %v5396, 0
        %v5477 = vsel %vm1322, %v5397, 0
        %v5480 = vsel %vm1322, %v5398, 0
        %v5483 = vsel %vm1322, %v5399, 0
        %v5486 = vsel %vm1322, %v5400, 0
        %v5489 = vsel %vm1322, %v5401, 0
        %v5492 = vsel %vm1322, %v5402, 0
        %v5495 = vsel %vm1322, %v5403, 0
        %v5498 = vsel %vm1322, %v5404, 0
        %v5501 = vsel %vm1322, %v5405, 0
        %v5504 = vsel %vm1322, %v5406, 0
        %v5507 = vsel %vm1322, %v5407, 0
        %v5510 = vsel %vm1322, %v5408, 0
        %v5513 = vsel %vm1322, %v5409, 0
        %v5516 = vsel %vm1322, %v5410, 0
        %v5519 = vsel %vm1322, %v5411, 0
        %v5522 = vsel %vm1322, %v5412, 0
        %v5525 = vsel %vm1322, %v5413, 0
        %v5528 = vsel %vm1322, %v5414, 0
        %v5531 = vsel %vm1322, %v5415, 0
        %v5534 = vsel %vm1322, %v5416, 0
        %v5537 = vsel %vm1322, %v5417, 0
        %v5540 = vsel %vm1322, %v5418, 0
        %v5543 = vsel %vm1322, %v5419, 0
        %v5546 = vsel %vm1322, %v5420, 0
        %v5549 = vsel %vm1322, %v5421, 0
        %v5552 = vsel %vm1322, %v5422, 0
        %v5555 = vsel %vm1322, %v5423, 0
        %v5558 = vsel %vm1322, %v5424, 0
        %v5561 = vsel %vm1322, %v5425, 0
        %v5564 = vsel %vm1322, %v5426, 0
        %v5567 = vsel %vm1322, %v5427, 0
        %v5570 = vsel %vm1322, %v5428, 0
        %v5573 = vsel %vm1322, %v5429, 0
        %v5576 = vsel %vm1322, %v5430, 0
        %v5579 = vsel %vm1322, %v5431, 0
        %v5582 = vsel %vm1322, %v5432, 0
        %v5585 = vsel %vm1322, %v5433, 0
        %5587 = vmatprep.subr.mxu0 0.0
        %5588 = vmatpush1.msra.mxu0 %v5435
        %5589 = vmatprep.subr.mxu0 0.0
        %5590 = vmatpush1.msra.mxu0 %v5436
        %5591 = vmatprep.subr.mxu0 0.0
        %5592 = vmatpush1.msra.mxu0 0.0
        %5593 = vmatprep.subr.mxu0 0.0
        %5594 = vmatpush1.msra.mxu0 0.0
        %5595 = vmatprep.subr.mxu0 0.0
        %5596 = vmatpush1.msra.mxu0 0.0
        %5597 = vmatprep.subr.mxu0 0.0
        %5598 = vmatpush1.msra.mxu0 0.0
        %5599 = vmatprep.subr.mxu0 0.0
        %5600 = vmatpush1.msra.mxu0 0.0
        %5601 = vmatprep.subr.mxu0 0.0
        %5602 = vmatpush1.msra.mxu0 0.0
        %5603 = vmatprep.subr.mxu0 0.0
        %5604 = vmatpush1.msra.mxu0 0.0
        %5605 = vmatprep.subr.mxu0 0.0
        %5606 = vmatpush1.msra.mxu0 0.0
        %5607 = vmatprep.subr.mxu0 0.0
        %5608 = vmatpush1.msra.mxu0 0.0
        %5609 = vmatprep.subr.mxu0 0.0
        %5610 = vmatpush1.msra.mxu0 0.0
        %5611 = vmatprep.subr.mxu0 0.0
        %5612 = vmatpush1.msra.mxu0 0.0
        %5613 = vmatprep.subr.mxu0 0.0
        %5614 = vmatpush1.msra.mxu0 0.0
        %5615 = vmatprep.subr.mxu0 0.0
        %5616 = vmatpush1.msra.mxu0 0.0
        %5617 = vmatprep.subr.mxu0 0.0
        %5618 = vmatpush1.msra.mxu0 0.0
        %5619 = vmatprep.subr.mxu0 0.0
        %5620 = vmatpush1.msra.mxu0 0.0
        %5621 = vmatprep.subr.mxu0 0.0
        %5622 = vmatpush1.msra.mxu0 0.0
        %5623 = vmatprep.subr.mxu0 0.0
        %5624 = vmatpush1.msra.mxu0 0.0
        %5625 = vmatprep.subr.mxu0 0.0
        %5626 = vmatpush1.msra.mxu0 0.0
        %5627 = vmatprep.subr.mxu0 0.0
        %5628 = vmatpush1.msra.mxu0 0.0
        %5629 = vmatprep.subr.mxu0 0.0
        %5630 = vmatpush1.msra.mxu0 0.0
        %5631 = vmatprep.subr.mxu0 0.0
        %5632 = vmatpush1.msra.mxu0 0.0
        %5633 = vmatprep.subr.mxu0 0.0
        %5634 = vmatpush1.msra.mxu0 0.0
        %5635 = vmatprep.subr.mxu0 0.0
        %5636 = vmatpush1.msra.mxu0 0.0
        %5637 = vmatprep.subr.mxu0 0.0
        %5638 = vmatpush1.msra.mxu0 0.0
        %5639 = vmatprep.subr.mxu0 0.0
        %5640 = vmatpush1.msra.mxu0 0.0
        %5641 = vmatprep.subr.mxu0 0.0
        %5642 = vmatpush1.msra.mxu0 0.0
        %5643 = vmatprep.subr.mxu0 0.0
        %5644 = vmatpush1.msra.mxu0 0.0
        %5645 = vmatprep.subr.mxu0 0.0
        %5646 = vmatpush1.msra.mxu0 0.0
        %5647 = vmatprep.subr.mxu0 0.0
        %5648 = vmatpush1.msra.mxu0 0.0
        %5649 = vmatprep.subr.mxu0 0.0
        %5650 = vmatpush1.msra.mxu0 0.0
        %5651 = vmatprep.mubr.f32.mxu0 0.0
        %5652 = vmatmul.mubr.f32.gmra.mrb[0].mxu0 %v5438
        %v5653 = vpop.f32.mrb[0].mxu0
        %v5654 = vadd.f32 0.0, %v5653
        %v5655 = vpop.f32.mrb[0].mxu0
        %5656 = vmatprep.mubr.f32.mxu0 0.0
        %5657 = vmatmul.mubr.f32.gmra.mrb[0].mxu0 %v5441
        %v5658 = vpop.f32.mrb[0].mxu0
        %v5659 = vadd.f32 0.0, %v5658
        %v5660 = vpop.f32.mrb[0].mxu0
        %5661 = vmatprep.mubr.f32.mxu0 0.0
        %5662 = vmatmul.mubr.f32.gmra.mrb[0].mxu0 %v5444
        %v5663 = vpop.f32.mrb[0].mxu0
        %v5664 = vadd.f32 0.0, %v5663
        %v5665 = vpop.f32.mrb[0].mxu0
        %5666 = vmatprep.mubr.f32.mxu0 0.0
        %5667 = vmatmul.mubr.f32.gmra.mrb[0].mxu0 %v5447
        %v5668 = vpop.f32.mrb[0].mxu0
        %v5669 = vadd.f32 0.0, %v5668
        %v5670 = vpop.f32.mrb[0].mxu0
        %5671 = vmatprep.mubr.f32.mxu0 0.0
        %5672 = vmatmul.mubr.f32.gmra.mrb[0].mxu0 %v5450
        %v5673 = vpop.f32.mrb[0].mxu0
        %v5674 = vadd.f32 0.0, %v5673
        %v5675 = vpop.f32.mrb[0].mxu0
        %5676 = vmatprep.mubr.f32.mxu0 0.0
        %5677 = vmatmul.mubr.f32.gmra.mrb[0].mxu0 %v5453
        %v5678 = vpop.f32.mrb[0].mxu0
        %v5679 = vadd.f32 0.0, %v5678
        %v5680 = vpop.f32.mrb[0].mxu0
        %5681 = vmatprep.mubr.f32.mxu0 0.0
        %5682 = vmatmul.mubr.f32.gmra.mrb[0].mxu0 %v5456
        %v5683 = vpop.f32.mrb[0].mxu0
        %v5684 = vadd.f32 0.0, %v5683
        %v5685 = vpop.f32.mrb[0].mxu0
        %5686 = vmatprep.mubr.f32.mxu0 0.0
        %5687 = vmatmul.mubr.f32.gmra.mrb[0].mxu0 %v5459
        %v5688 = vpop.f32.mrb[0].mxu0
        %v5689 = vadd.f32 0.0, %v5688
        %v5690 = vpop.f32.mrb[0].mxu0
        %5691 = vmatprep.mubr.f32.mxu0 0.0
        %5692 = vmatmul.mubr.f32.gmra.mrb[0].mxu0 %v5462
        %v5693 = vpop.f32.mrb[0].mxu0
        %v5694 = vadd.f32 0.0, %v5693
        %v5695 = vpop.f32.mrb[0].mxu0
        %5696 = vmatprep.mubr.f32.mxu0 0.0
        %5697 = vmatmul.mubr.f32.gmra.mrb[0].mxu0 %v5465
        %v5698 = vpop.f32.mrb[0].mxu0
        %v5699 = vadd.f32 0.0, %v5698
        %v5700 = vpop.f32.mrb[0].mxu0
        %5701 = vmatprep.mubr.f32.mxu0 0.0
        %5702 = vmatmul.mubr.f32.gmra.mrb[0].mxu0 %v5468
        %v5703 = vpop.f32.mrb[0].mxu0
        %v5704 = vadd.f32 0.0, %v5703
        %v5705 = vpop.f32.mrb[0].mxu0
        %5706 = vmatprep.mubr.f32.mxu0 0.0
        %5707 = vmatmul.mubr.f32.gmra.mrb[0].mxu0 %v5471
        %v5708 = vpop.f32.mrb[0].mxu0
        %v5709 = vadd.f32 0.0, %v5708
        %v5710 = vpop.f32.mrb[0].mxu0
        %5711 = vmatprep.mubr.f32.mxu0 0.0
        %5712 = vmatmul.mubr.f32.gmra.mrb[0].mxu0 %v5474
        %v5713 = vpop.f32.mrb[0].mxu0
        %v5714 = vadd.f32 0.0, %v5713
        %v5715 = vpop.f32.mrb[0].mxu0
        %5716 = vmatprep.mubr.f32.mxu0 0.0
        %5717 = vmatmul.mubr.f32.gmra.mrb[0].mxu0 %v5477
        %v5718 = vpop.f32.mrb[0].mxu0
        %v5719 = vadd.f32 0.0, %v5718
        %v5720 = vpop.f32.mrb[0].mxu0
        %5721 = vmatprep.mubr.f32.mxu0 0.0
        %5722 = vmatmul.mubr.f32.gmra.mrb[0].mxu0 %v5480
        %v5723 = vpop.f32.mrb[0].mxu0
        %v5724 = vadd.f32 0.0, %v5723
        %v5725 = vpop.f32.mrb[0].mxu0
        %5726 = vmatprep.mubr.f32.mxu0 0.0
        %5727 = vmatmul.mubr.f32.gmra.mrb[0].mxu0 %v5483
        %v5728 = vpop.f32.mrb[0].mxu0
        %v5729 = vadd.f32 0.0, %v5728
        %v5730 = vpop.f32.mrb[0].mxu0
        %5731 = vmatprep.mubr.f32.mxu0 0.0
        %5732 = vmatmul.mubr.f32.gmra.mrb[0].mxu0 %v5486
        %v5733 = vpop.f32.mrb[0].mxu0
        %v5734 = vadd.f32 0.0, %v5733
        %v5735 = vpop.f32.mrb[0].mxu0
        %5736 = vmatprep.mubr.f32.mxu0 0.0
        %5737 = vmatmul.mubr.f32.gmra.mrb[0].mxu0 %v5489
        %v5738 = vpop.f32.mrb[0].mxu0
        %v5739 = vadd.f32 0.0, %v5738
        %v5740 = vpop.f32.mrb[0].mxu0
        %5741 = vmatprep.mubr.f32.mxu0 0.0
        %5742 = vmatmul.mubr.f32.gmra.mrb[0].mxu0 %v5492
        %v5743 = vpop.f32.mrb[0].mxu0
        %v5744 = vadd.f32 0.0, %v5743
        %v5745 = vpop.f32.mrb[0].mxu0
        %5746 = vmatprep.mubr.f32.mxu0 0.0
        %5747 = vmatmul.mubr.f32.gmra.mrb[0].mxu0 %v5495
        %v5748 = vpop.f32.mrb[0].mxu0
        %v5749 = vadd.f32 0.0, %v5748
        %v5750 = vpop.f32.mrb[0].mxu0
        %5751 = vmatprep.mubr.f32.mxu0 0.0
        %5752 = vmatmul.mubr.f32.gmra.mrb[0].mxu0 %v5498
        %v5753 = vpop.f32.mrb[0].mxu0
        %v5754 = vadd.f32 0.0, %v5753
        %v5755 = vpop.f32.mrb[0].mxu0
        %5756 = vmatprep.mubr.f32.mxu0 0.0
        %5757 = vmatmul.mubr.f32.gmra.mrb[0].mxu0 %v5501
        %v5758 = vpop.f32.mrb[0].mxu0
        %v5759 = vadd.f32 0.0, %v5758
        %v5760 = vpop.f32.mrb[0].mxu0
        %5761 = vmatprep.mubr.f32.mxu0 0.0
        %5762 = vmatmul.mubr.f32.gmra.mrb[0].mxu0 %v5504
        %v5763 = vpop.f32.mrb[0].mxu0
        %v5764 = vadd.f32 0.0, %v5763
        %v5765 = vpop.f32.mrb[0].mxu0
        %5766 = vmatprep.mubr.f32.mxu0 0.0
        %5767 = vmatmul.mubr.f32.gmra.mrb[0].mxu0 %v5507
        %v5768 = vpop.f32.mrb[0].mxu0
        %v5769 = vadd.f32 0.0, %v5768
        %v5770 = vpop.f32.mrb[0].mxu0
        %5771 = vmatprep.mubr.f32.mxu0 0.0
        %5772 = vmatmul.mubr.f32.gmra.mrb[0].mxu0 %v5510
        %v5773 = vpop.f32.mrb[0].mxu0
        %v5774 = vadd.f32 0.0, %v5773
        %v5775 = vpop.f32.mrb[0].mxu0
        %5776 = vmatprep.mubr.f32.mxu0 0.0
        %5777 = vmatmul.mubr.f32.gmra.mrb[0].mxu0 %v5513
        %v5778 = vpop.f32.mrb[0].mxu0
        %v5779 = vadd.f32 0.0, %v5778
        %v5780 = vpop.f32.mrb[0].mxu0
        %5781 = vmatprep.mubr.f32.mxu0 0.0
        %5782 = vmatmul.mubr.f32.gmra.mrb[0].mxu0 %v5516
        %v5783 = vpop.f32.mrb[0].mxu0
        %v5784 = vadd.f32 0.0, %v5783
        %v5785 = vpop.f32.mrb[0].mxu0
        %5786 = vmatprep.mubr.f32.mxu0 0.0
        %5787 = vmatmul.mubr.f32.gmra.mrb[0].mxu0 %v5519
        %v5788 = vpop.f32.mrb[0].mxu0
        %v5789 = vadd.f32 0.0, %v5788
        %v5790 = vpop.f32.mrb[0].mxu0
        %5791 = vmatprep.mubr.f32.mxu0 0.0
        %5792 = vmatmul.mubr.f32.gmra.mrb[0].mxu0 %v5522
        %v5793 = vpop.f32.mrb[0].mxu0
        %v5794 = vadd.f32 0.0, %v5793
        %v5795 = vpop.f32.mrb[0].mxu0
        %5796 = vmatprep.mubr.f32.mxu0 0.0
        %5797 = vmatmul.mubr.f32.gmra.mrb[0].mxu0 %v5525
        %v5798 = vpop.f32.mrb[0].mxu0
        %v5799 = vadd.f32 0.0, %v5798
        %v5800 = vpop.f32.mrb[0].mxu0
        %5801 = vmatprep.mubr.f32.mxu0 0.0
        %5802 = vmatmul.mubr.f32.gmra.mrb[0].mxu0 %v5528
        %v5803 = vpop.f32.mrb[0].mxu0
        %v5804 = vadd.f32 0.0, %v5803
        %v5805 = vpop.f32.mrb[0].mxu0
        %5806 = vmatprep.mubr.f32.mxu0 0.0
        %5807 = vmatmul.mubr.f32.gmra.mrb[0].mxu0 %v5531
        %v5808 = vpop.f32.mrb[0].mxu0
        %v5809 = vadd.f32 0.0, %v5808
        %v5810 = vpop.f32.mrb[0].mxu0
        %5811 = vmatprep.mubr.f32.mxu0 0.0
        %5812 = vmatmul.mubr.f32.gmra.mrb[0].mxu0 %v5534
        %v5813 = vpop.f32.mrb[0].mxu0
        %v5814 = vadd.f32 0.0, %v5813
        %v5815 = vpop.f32.mrb[0].mxu0
        %5816 = vmatprep.mubr.f32.mxu0 0.0
        %5817 = vmatmul.mubr.f32.gmra.mrb[0].mxu0 %v5537
        %v5818 = vpop.f32.mrb[0].mxu0
        %v5819 = vadd.f32 0.0, %v5818
        %v5820 = vpop.f32.mrb[0].mxu0
        %5821 = vmatprep.mubr.f32.mxu0 0.0
        %5822 = vmatmul.mubr.f32.gmra.mrb[0].mxu0 %v5540
        %v5823 = vpop.f32.mrb[0].mxu0
        %v5824 = vadd.f32 0.0, %v5823
        %v5825 = vpop.f32.mrb[0].mxu0
        %5826 = vmatprep.mubr.f32.mxu0 0.0
        %5827 = vmatmul.mubr.f32.gmra.mrb[0].mxu0 %v5543
        %v5828 = vpop.f32.mrb[0].mxu0
        %v5829 = vadd.f32 0.0, %v5828
        %v5830 = vpop.f32.mrb[0].mxu0
        %5831 = vmatprep.mubr.f32.mxu0 0.0
        %5832 = vmatmul.mubr.f32.gmra.mrb[0].mxu0 %v5546
        %v5833 = vpop.f32.mrb[0].mxu0
        %v5834 = vadd.f32 0.0, %v5833
        %v5835 = vpop.f32.mrb[0].mxu0
        %5836 = vmatprep.mubr.f32.mxu0 0.0
        %5837 = vmatmul.mubr.f32.gmra.mrb[0].mxu0 %v5549
        %v5838 = vpop.f32.mrb[0].mxu0
        %v5839 = vadd.f32 0.0, %v5838
        %v5840 = vpop.f32.mrb[0].mxu0
        %5841 = vmatprep.mubr.f32.mxu0 0.0
        %5842 = vmatmul.mubr.f32.gmra.mrb[0].mxu0 %v5552
        %v5843 = vpop.f32.mrb[0].mxu0
        %v5844 = vadd.f32 0.0, %v5843
        %v5845 = vpop.f32.mrb[0].mxu0
        %5846 = vmatprep.mubr.f32.mxu0 0.0
        %5847 = vmatmul.mubr.f32.gmra.mrb[0].mxu0 %v5555
        %v5848 = vpop.f32.mrb[0].mxu0
        %v5849 = vadd.f32 0.0, %v5848
        %v5850 = vpop.f32.mrb[0].mxu0
        %5851 = vmatprep.mubr.f32.mxu0 0.0
        %5852 = vmatmul.mubr.f32.gmra.mrb[0].mxu0 %v5558
        %v5853 = vpop.f32.mrb[0].mxu0
        %v5854 = vadd.f32 0.0, %v5853
        %v5855 = vpop.f32.mrb[0].mxu0
        %5856 = vmatprep.mubr.f32.mxu0 0.0
        %5857 = vmatmul.mubr.f32.gmra.mrb[0].mxu0 %v5561
        %v5858 = vpop.f32.mrb[0].mxu0
        %v5859 = vadd.f32 0.0, %v5858
        %v5860 = vpop.f32.mrb[0].mxu0
        %5861 = vmatprep.mubr.f32.mxu0 0.0
        %5862 = vmatmul.mubr.f32.gmra.mrb[0].mxu0 %v5564
        %v5863 = vpop.f32.mrb[0].mxu0
        %v5864 = vadd.f32 0.0, %v5863
        %v5865 = vpop.f32.mrb[0].mxu0
        %5866 = vmatprep.mubr.f32.mxu0 0.0
        %5867 = vmatmul.mubr.f32.gmra.mrb[0].mxu0 %v5567
        %v5868 = vpop.f32.mrb[0].mxu0
        %v5869 = vadd.f32 0.0, %v5868
        %v5870 = vpop.f32.mrb[0].mxu0
        %5871 = vmatprep.mubr.f32.mxu0 0.0
        %5872 = vmatmul.mubr.f32.gmra.mrb[0].mxu0 %v5570
        %v5873 = vpop.f32.mrb[0].mxu0
        %v5874 = vadd.f32 0.0, %v5873
        %v5875 = vpop.f32.mrb[0].mxu0
        %5876 = vmatprep.mubr.f32.mxu0 0.0
        %5877 = vmatmul.mubr.f32.gmra.mrb[0].mxu0 %v5573
        %v5878 = vpop.f32.mrb[0].mxu0
        %v5879 = vadd.f32 0.0, %v5878
        %v5880 = vpop.f32.mrb[0].mxu0
        %5881 = vmatprep.mubr.f32.mxu0 0.0
        %5882 = vmatmul.mubr.f32.gmra.mrb[0].mxu0 %v5576
        %v5883 = vpop.f32.mrb[0].mxu0
        %v5884 = vadd.f32 0.0, %v5883
        %v5885 = vpop.f32.mrb[0].mxu0
        %5886 = vmatprep.mubr.f32.mxu0 0.0
        %5887 = vmatmul.mubr.f32.gmra.mrb[0].mxu0 %v5579
        %v5888 = vpop.f32.mrb[0].mxu0
        %v5889 = vadd.f32 0.0, %v5888
        %v5890 = vpop.f32.mrb[0].mxu0
        %5891 = vmatprep.mubr.f32.mxu0 0.0
        %5892 = vmatmul.mubr.f32.gmra.mrb[0].mxu0 %v5582
        %v5893 = vpop.f32.mrb[0].mxu0
        %v5894 = vadd.f32 0.0, %v5893
        %v5895 = vpop.f32.mrb[0].mxu0
        %5896 = vmatprep.mubr.f32.mxu0 0.0
        %5897 = vmatmul.mubr.f32.gmra.mrb[0].mxu0 %v5585
        %v5898 = vpop.f32.mrb[0].mxu0
        %v5899 = vadd.f32 0.0, %v5898
        %v5900 = vpop.f32.mrb[0].mxu0
        %5901 = vdwg.mxu0
        %v5902 = vadd.f32 %v5334, %v5654
        %v5903 = vadd.f32 %v5335, %v5659
        %v5904 = vadd.f32 %v5336, %v5664
        %v5905 = vadd.f32 %v5337, %v5669
        %v5906 = vadd.f32 %v5338, %v5674
        %v5907 = vadd.f32 %v5339, %v5679
        %v5908 = vadd.f32 %v5340, %v5684
        %v5909 = vadd.f32 %v5341, %v5689
        %v5910 = vadd.f32 %v5342, %v5694
        %v5911 = vadd.f32 %v5343, %v5699
        %v5912 = vadd.f32 %v5344, %v5704
        %v5913 = vadd.f32 %v5345, %v5709
        %v5914 = vadd.f32 %v5346, %v5714
        %v5915 = vadd.f32 %v5347, %v5719
        %v5916 = vadd.f32 %v5348, %v5724
        %v5917 = vadd.f32 %v5349, %v5729
        %v5918 = vadd.f32 %v5350, %v5734
        %v5919 = vadd.f32 %v5351, %v5739
        %v5920 = vadd.f32 %v5352, %v5744
        %v5921 = vadd.f32 %v5353, %v5749
        %v5922 = vadd.f32 %v5354, %v5754
        %v5923 = vadd.f32 %v5355, %v5759
        %v5924 = vadd.f32 %v5356, %v5764
        %v5925 = vadd.f32 %v5357, %v5769
        %v5926 = vadd.f32 %v5358, %v5774
        %v5927 = vadd.f32 %v5359, %v5779
        %v5928 = vadd.f32 %v5360, %v5784
        %v5929 = vadd.f32 %v5361, %v5789
        %v5930 = vadd.f32 %v5362, %v5794
        %v5931 = vadd.f32 %v5363, %v5799
        %v5932 = vadd.f32 %v5364, %v5804
        %v5933 = vadd.f32 %v5365, %v5809
        %v5934 = vadd.f32 %v5366, %v5814
        %v5935 = vadd.f32 %v5367, %v5819
        %v5936 = vadd.f32 %v5368, %v5824
        %v5937 = vadd.f32 %v5369, %v5829
        %v5938 = vadd.f32 %v5370, %v5834
        %v5939 = vadd.f32 %v5371, %v5839
        %v5940 = vadd.f32 %v5372, %v5844
        %v5941 = vadd.f32 %v5373, %v5849
        %v5942 = vadd.f32 %v5374, %v5854
        %v5943 = vadd.f32 %v5375, %v5859
        %v5944 = vadd.f32 %v5376, %v5864
        %v5945 = vadd.f32 %v5377, %v5869
        %v5946 = vadd.f32 %v5378, %v5874
        %v5947 = vadd.f32 %v5379, %v5879
        %v5948 = vadd.f32 %v5380, %v5884
        %v5949 = vadd.f32 %v5381, %v5889
        %v5950 = vadd.f32 %v5382, %v5894
        %v5951 = vadd.f32 %v5383, %v5899
        %5952 = vst.msk [vmem:[#allocation4] sm:$0xff] %vm5282, %v5902
        %5953 = vst.msk [vmem:[#allocation4 + $0x8] sm:$0xff] %vm5282, %v5903
        %5954 = vst.msk [vmem:[#allocation4 + $0x10] sm:$0xff] %vm5282, %v5904
        %5955 = vst.msk [vmem:[#allocation4 + $0x18] sm:$0xff] %vm5282, %v5905
        %5956 = vst.msk [vmem:[#allocation4 + $0x20] sm:$0xff] %vm5282, %v5906
        %5957 = vst.msk [vmem:[#allocation4 + $0x28] sm:$0xff] %vm5282, %v5907
        %5958 = vst.msk [vmem:[#allocation4 + $0x30] sm:$0xff] %vm5282, %v5908
        %5959 = vst.msk [vmem:[#allocation4 + $0x38] sm:$0xff] %vm5282, %v5909
        %5960 = vst.msk [vmem:[#allocation4 + $0x40] sm:$0xff] %vm5282, %v5910
        %5961 = vst.msk [vmem:[#allocation4 + $0x48] sm:$0xff] %vm5282, %v5911
        %5962 = vst.msk [vmem:[#allocation4 + $0x50] sm:$0xff] %vm5282, %v5912
        %5963 = vst.msk [vmem:[#allocation4 + $0x58] sm:$0xff] %vm5282, %v5913
        %5964 = vst.msk [vmem:[#allocation4 + $0x60] sm:$0xff] %vm5282, %v5914
        %5965 = vst.msk [vmem:[#allocation4 + $0x68] sm:$0xff] %vm5282, %v5915
        %5966 = vst.msk [vmem:[#allocation4 + $0x70] sm:$0xff] %vm5282, %v5916
        %5967 = vst.msk [vmem:[#allocation4 + $0x78] sm:$0xff] %vm5282, %v5917
        %5968 = vst.msk [vmem:[#allocation4 + $0x80] sm:$0xff] %vm5282, %v5918
        %5969 = vst.msk [vmem:[#allocation4 + $0x88] sm:$0xff] %vm5282, %v5919
        %5970 = vst.msk [vmem:[#allocation4 + $0x90] sm:$0xff] %vm5282, %v5920
        %5971 = vst.msk [vmem:[#allocation4 + $0x98] sm:$0xff] %vm5282, %v5921
        %5972 = vst.msk [vmem:[#allocation4 + $0xa0] sm:$0xff] %vm5282, %v5922
        %5973 = vst.msk [vmem:[#allocation4 + $0xa8] sm:$0xff] %vm5282, %v5923
        %5974 = vst.msk [vmem:[#allocation4 + $0xb0] sm:$0xff] %vm5282, %v5924
        %5975 = vst.msk [vmem:[#allocation4 + $0xb8] sm:$0xff] %vm5282, %v5925
        %5976 = vst.msk [vmem:[#allocation4 + $0xc0] sm:$0xff] %vm5282, %v5926
        %5977 = vst.msk [vmem:[#allocation4 + $0xc8] sm:$0xff] %vm5282, %v5927
        %5978 = vst.msk [vmem:[#allocation4 + $0xd0] sm:$0xff] %vm5282, %v5928
        %5979 = vst.msk [vmem:[#allocation4 + $0xd8] sm:$0xff] %vm5282, %v5929
        %5980 = vst.msk [vmem:[#allocation4 + $0xe0] sm:$0xff] %vm5282, %v5930
        %5981 = vst.msk [vmem:[#allocation4 + $0xe8] sm:$0xff] %vm5282, %v5931
        %5982 = vst.msk [vmem:[#allocation4 + $0xf0] sm:$0xff] %vm5282, %v5932
        %5983 = vst.msk [vmem:[#allocation4 + $0xf8] sm:$0xff] %vm5282, %v5933
        %5984 = vst.msk [vmem:[#allocation4 + $0x100] sm:$0xff] %vm5282, %v5934
        %5985 = vst.msk [vmem:[#allocation4 + $0x108] sm:$0xff] %vm5282, %v5935
        %5986 = vst.msk [vmem:[#allocation4 + $0x110] sm:$0xff] %vm5282, %v5936
        %5987 = vst.msk [vmem:[#allocation4 + $0x118] sm:$0xff] %vm5282, %v5937
        %5988 = vst.msk [vmem:[#allocation4 + $0x120] sm:$0xff] %vm5282, %v5938
        %5989 = vst.msk [vmem:[#allocation4 + $0x128] sm:$0xff] %vm5282, %v5939
        %5990 = vst.msk [vmem:[#allocation4 + $0x130] sm:$0xff] %vm5282, %v5940
        %5991 = vst.msk [vmem:[#allocation4 + $0x138] sm:$0xff] %vm5282, %v5941
        %5992 = vst.msk [vmem:[#allocation4 + $0x140] sm:$0xff] %vm5282, %v5942
        %5993 = vst.msk [vmem:[#allocation4 + $0x148] sm:$0xff] %vm5282, %v5943
        %5994 = vst.msk [vmem:[#allocation4 + $0x150] sm:$0xff] %vm5282, %v5944
        %5995 = vst.msk [vmem:[#allocation4 + $0x158] sm:$0xff] %vm5282, %v5945
        %5996 = vst.msk [vmem:[#allocation4 + $0x160] sm:$0xff] %vm5282, %v5946
        %5997 = vst.msk [vmem:[#allocation4 + $0x168] sm:$0xff] %vm5282, %v5947
        %5998 = vst.msk [vmem:[#allocation4 + $0x170] sm:$0xff] %vm5282, %v5948
        %5999 = vst.msk [vmem:[#allocation4 + $0x178] sm:$0xff] %vm5282, %v5949
        %6000 = vst.msk [vmem:[#allocation4 + $0x180] sm:$0xff] %vm5282, %v5950
        %6001 = vst.msk [vmem:[#allocation4 + $0x188] sm:$0x3f] %vm5332, %v5951
        %v6002 = vld [vmem:[#allocation4] sm:$0xff]
        %v6003 = vld [vmem:[#allocation4 + $0x8] sm:$0xff]
        %v6004 = vld [vmem:[#allocation4 + $0x10] sm:$0xff]
        %v6005 = vld [vmem:[#allocation4 + $0x18] sm:$0xff]
        %v6006 = vld [vmem:[#allocation4 + $0x20] sm:$0xff]
        %v6007 = vld [vmem:[#allocation4 + $0x28] sm:$0xff]
        %v6008 = vld [vmem:[#allocation4 + $0x30] sm:$0xff]
        %v6009 = vld [vmem:[#allocation4 + $0x38] sm:$0xff]
        %v6010 = vld [vmem:[#allocation4 + $0x40] sm:$0xff]
        %v6011 = vld [vmem:[#allocation4 + $0x48] sm:$0xff]
        %v6012 = vld [vmem:[#allocation4 + $0x50] sm:$0xff]
        %v6013 = vld [vmem:[#allocation4 + $0x58] sm:$0xff]
        %v6014 = vld [vmem:[#allocation4 + $0x60] sm:$0xff]
        %v6015 = vld [vmem:[#allocation4 + $0x68] sm:$0xff]
        %v6016 = vld [vmem:[#allocation4 + $0x70] sm:$0xff]
        %v6017 = vld [vmem:[#allocation4 + $0x78] sm:$0xff]
        %v6018 = vld [vmem:[#allocation4 + $0x80] sm:$0xff]
        %v6019 = vld [vmem:[#allocation4 + $0x88] sm:$0xff]
        %v6020 = vld [vmem:[#allocation4 + $0x90] sm:$0xff]
        %v6021 = vld [vmem:[#allocation4 + $0x98] sm:$0xff]
        %v6022 = vld [vmem:[#allocation4 + $0xa0] sm:$0xff]
        %v6023 = vld [vmem:[#allocation4 + $0xa8] sm:$0xff]
        %v6024 = vld [vmem:[#allocation4 + $0xb0] sm:$0xff]
        %v6025 = vld [vmem:[#allocation4 + $0xb8] sm:$0xff]
        %v6026 = vld [vmem:[#allocation4 + $0xc0] sm:$0xff]
        %v6027 = vld [vmem:[#allocation4 + $0xc8] sm:$0xff]
        %v6028 = vld [vmem:[#allocation4 + $0xd0] sm:$0xff]
        %v6029 = vld [vmem:[#allocation4 + $0xd8] sm:$0xff]
        %v6030 = vld [vmem:[#allocation4 + $0xe0] sm:$0xff]
        %v6031 = vld [vmem:[#allocation4 + $0xe8] sm:$0xff]
        %v6032 = vld [vmem:[#allocation4 + $0xf0] sm:$0xff]
        %v6033 = vld [vmem:[#allocation4 + $0xf8] sm:$0xff]
        %v6034 = vld [vmem:[#allocation4 + $0x100] sm:$0xff]
        %v6035 = vld [vmem:[#allocation4 + $0x108] sm:$0xff]
        %v6036 = vld [vmem:[#allocation4 + $0x110] sm:$0xff]
        %v6037 = vld [vmem:[#allocation4 + $0x118] sm:$0xff]
        %v6038 = vld [vmem:[#allocation4 + $0x120] sm:$0xff]
        %v6039 = vld [vmem:[#allocation4 + $0x128] sm:$0xff]
        %v6040 = vld [vmem:[#allocation4 + $0x130] sm:$0xff]
        %v6041 = vld [vmem:[#allocation4 + $0x138] sm:$0xff]
        %v6042 = vld [vmem:[#allocation4 + $0x140] sm:$0xff]
        %v6043 = vld [vmem:[#allocation4 + $0x148] sm:$0xff]
        %v6044 = vld [vmem:[#allocation4 + $0x150] sm:$0xff]
        %v6045 = vld [vmem:[#allocation4 + $0x158] sm:$0xff]
        %v6046 = vld [vmem:[#allocation4 + $0x160] sm:$0xff]
        %v6047 = vld [vmem:[#allocation4 + $0x168] sm:$0xff]
        %v6048 = vld [vmem:[#allocation4 + $0x170] sm:$0xff]
        %v6049 = vld [vmem:[#allocation4 + $0x178] sm:$0xff]
        %v6050 = vld [vmem:[#allocation4 + $0x180] sm:$0xff]
        %v6051 = vld [vmem:[#allocation4 + $0x188] sm:$0x3f]
        %v6052 = vld [vmem:[#allocation3 + $0x2] sm:$0xff]
        %v6053 = vld [vmem:[#allocation3 + $0xa] sm:$0xff]
        %v6054 = vld [vmem:[#allocation3 + $0x12] sm:$0xff]
        %v6055 = vld [vmem:[#allocation3 + $0x1a] sm:$0xff]
        %v6056 = vld [vmem:[#allocation3 + $0x22] sm:$0xff]
        %v6057 = vld [vmem:[#allocation3 + $0x2a] sm:$0xff]
        %v6058 = vld [vmem:[#allocation3 + $0x32] sm:$0xff]
        %v6059 = vld [vmem:[#allocation3 + $0x3a] sm:$0xff]
        %v6060 = vld [vmem:[#allocation3 + $0x42] sm:$0xff]
        %v6061 = vld [vmem:[#allocation3 + $0x4a] sm:$0xff]
        %v6062 = vld [vmem:[#allocation3 + $0x52] sm:$0xff]
        %v6063 = vld [vmem:[#allocation3 + $0x5a] sm:$0xff]
        %v6064 = vld [vmem:[#allocation3 + $0x62] sm:$0xff]
        %v6065 = vld [vmem:[#allocation3 + $0x6a] sm:$0xff]
        %v6066 = vld [vmem:[#allocation3 + $0x72] sm:$0xff]
        %v6067 = vld [vmem:[#allocation3 + $0x7a] sm:$0xff]
        %v6068 = vld [vmem:[#allocation3 + $0x82] sm:$0xff]
        %v6069 = vld [vmem:[#allocation3 + $0x8a] sm:$0xff]
        %v6070 = vld [vmem:[#allocation3 + $0x92] sm:$0xff]
        %v6071 = vld [vmem:[#allocation3 + $0x9a] sm:$0xff]
        %v6072 = vld [vmem:[#allocation3 + $0xa2] sm:$0xff]
        %v6073 = vld [vmem:[#allocation3 + $0xaa] sm:$0xff]
        %v6074 = vld [vmem:[#allocation3 + $0xb2] sm:$0xff]
        %v6075 = vld [vmem:[#allocation3 + $0xba] sm:$0xff]
        %v6076 = vld [vmem:[#allocation3 + $0xc2] sm:$0xff]
        %v6077 = vld [vmem:[#allocation3 + $0xca] sm:$0xff]
        %v6078 = vld [vmem:[#allocation3 + $0xd2] sm:$0xff]
        %v6079 = vld [vmem:[#allocation3 + $0xda] sm:$0xff]
        %v6080 = vld [vmem:[#allocation3 + $0xe2] sm:$0xff]
        %v6081 = vld [vmem:[#allocation3 + $0xea] sm:$0xff]
        %v6082 = vld [vmem:[#allocation3 + $0xf2] sm:$0xff]
        %v6083 = vld [vmem:[#allocation3 + $0xfa] sm:$0xff]
        %v6084 = vld [vmem:[#allocation3 + $0x102] sm:$0xff]
        %v6085 = vld [vmem:[#allocation3 + $0x10a] sm:$0xff]
        %v6086 = vld [vmem:[#allocation3 + $0x112] sm:$0xff]
        %v6087 = vld [vmem:[#allocation3 + $0x11a] sm:$0xff]
        %v6088 = vld [vmem:[#allocation3 + $0x122] sm:$0xff]
        %v6089 = vld [vmem:[#allocation3 + $0x12a] sm:$0xff]
        %v6090 = vld [vmem:[#allocation3 + $0x132] sm:$0xff]
        %v6091 = vld [vmem:[#allocation3 + $0x13a] sm:$0xff]
        %v6092 = vld [vmem:[#allocation3 + $0x142] sm:$0xff]
        %v6093 = vld [vmem:[#allocation3 + $0x14a] sm:$0xff]
        %v6094 = vld [vmem:[#allocation3 + $0x152] sm:$0xff]
        %v6095 = vld [vmem:[#allocation3 + $0x15a] sm:$0xff]
        %v6096 = vld [vmem:[#allocation3 + $0x162] sm:$0xff]
        %v6097 = vld [vmem:[#allocation3 + $0x16a] sm:$0xff]
        %v6098 = vld [vmem:[#allocation3 + $0x172] sm:$0xff]
        %v6099 = vld [vmem:[#allocation3 + $0x17a] sm:$0xff]
        %v6100 = vld [vmem:[#allocation3 + $0x182] sm:$0xff]
        %v6101 = vld [vmem:[#allocation3 + $0x18a] sm:$0x3f]
        %s6102 = scalar_lea.vmem %s3, 32
        %v6103 = vld [vmem:[%s6102] sm:$0xff]
        %v6104 = vld [vmem:[%s6102 + $0x8] sm:$0xff]
        %v6106 = vsel %vm1322, %v6052, 0
        %v6109 = vsel %vm1322, %v6053, 0
        %v6112 = vsel %vm1322, %v6054, 0
        %v6115 = vsel %vm1322, %v6055, 0
        %v6118 = vsel %vm1322, %v6056, 0
        %v6121 = vsel %vm1322, %v6057, 0
        %v6124 = vsel %vm1322, %v6058, 0
        %v6127 = vsel %vm1322, %v6059, 0
        %v6130 = vsel %vm1322, %v6060, 0
        %v6133 = vsel %vm1322, %v6061, 0
        %v6136 = vsel %vm1322, %v6062, 0
        %v6139 = vsel %vm1322, %v6063, 0
        %v6142 = vsel %vm1322, %v6064, 0
        %v6145 = vsel %vm1322, %v6065, 0
        %v6148 = vsel %vm1322, %v6066, 0
        %v6151 = vsel %vm1322, %v6067, 0
        %v6154 = vsel %vm1322, %v6068, 0
        %v6157 = vsel %vm1322, %v6069, 0
        %v6160 = vsel %vm1322, %v6070, 0
        %v6163 = vsel %vm1322, %v6071, 0
        %v6166 = vsel %vm1322, %v6072, 0
        %v6169 = vsel %vm1322, %v6073, 0
        %v6172 = vsel %vm1322, %v6074, 0
        %v6175 = vsel %vm1322, %v6075, 0
        %v6178 = vsel %vm1322, %v6076, 0
        %v6181 = vsel %vm1322, %v6077, 0
        %v6184 = vsel %vm1322, %v6078, 0
        %v6187 = vsel %vm1322, %v6079, 0
        %v6190 = vsel %vm1322, %v6080, 0
        %v6193 = vsel %vm1322, %v6081, 0
        %v6196 = vsel %vm1322, %v6082, 0
        %v6199 = vsel %vm1322, %v6083, 0
        %v6202 = vsel %vm1322, %v6084, 0
        %v6205 = vsel %vm1322, %v6085, 0
        %v6208 = vsel %vm1322, %v6086, 0
        %v6211 = vsel %vm1322, %v6087, 0
        %v6214 = vsel %vm1322, %v6088, 0
        %v6217 = vsel %vm1322, %v6089, 0
        %v6220 = vsel %vm1322, %v6090, 0
        %v6223 = vsel %vm1322, %v6091, 0
        %v6226 = vsel %vm1322, %v6092, 0
        %v6229 = vsel %vm1322, %v6093, 0
        %v6232 = vsel %vm1322, %v6094, 0
        %v6235 = vsel %vm1322, %v6095, 0
        %v6238 = vsel %vm1322, %v6096, 0
        %v6241 = vsel %vm1322, %v6097, 0
        %v6244 = vsel %vm1322, %v6098, 0
        %v6247 = vsel %vm1322, %v6099, 0
        %v6250 = vsel %vm1322, %v6100, 0
        %v6253 = vsel %vm1322, %v6101, 0
        %6255 = vmatprep.subr.mxu0 0.0
        %6256 = vmatpush1.msra.mxu0 %v6103
        %6257 = vmatprep.subr.mxu0 0.0
        %6258 = vmatpush1.msra.mxu0 %v6104
        %6259 = vmatprep.subr.mxu0 0.0
        %6260 = vmatpush1.msra.mxu0 0.0
        %6261 = vmatprep.subr.mxu0 0.0
        %6262 = vmatpush1.msra.mxu0 0.0
        %6263 = vmatprep.subr.mxu0 0.0
        %6264 = vmatpush1.msra.mxu0 0.0
        %6265 = vmatprep.subr.mxu0 0.0
        %6266 = vmatpush1.msra.mxu0 0.0
        %6267 = vmatprep.subr.mxu0 0.0
        %6268 = vmatpush1.msra.mxu0 0.0
        %6269 = vmatprep.subr.mxu0 0.0
        %6270 = vmatpush1.msra.mxu0 0.0
        %6271 = vmatprep.subr.mxu0 0.0
        %6272 = vmatpush1.msra.mxu0 0.0
        %6273 = vmatprep.subr.mxu0 0.0
        %6274 = vmatpush1.msra.mxu0 0.0
        %6275 = vmatprep.subr.mxu0 0.0
        %6276 = vmatpush1.msra.mxu0 0.0
        %6277 = vmatprep.subr.mxu0 0.0
        %6278 = vmatpush1.msra.mxu0 0.0
        %6279 = vmatprep.subr.mxu0 0.0
        %6280 = vmatpush1.msra.mxu0 0.0
        %6281 = vmatprep.subr.mxu0 0.0
        %6282 = vmatpush1.msra.mxu0 0.0
        %6283 = vmatprep.subr.mxu0 0.0
        %6284 = vmatpush1.msra.mxu0 0.0
        %6285 = vmatprep.subr.mxu0 0.0
        %6286 = vmatpush1.msra.mxu0 0.0
        %6287 = vmatprep.subr.mxu0 0.0
        %6288 = vmatpush1.msra.mxu0 0.0
        %6289 = vmatprep.subr.mxu0 0.0
        %6290 = vmatpush1.msra.mxu0 0.0
        %6291 = vmatprep.subr.mxu0 0.0
        %6292 = vmatpush1.msra.mxu0 0.0
        %6293 = vmatprep.subr.mxu0 0.0
        %6294 = vmatpush1.msra.mxu0 0.0
        %6295 = vmatprep.subr.mxu0 0.0
        %6296 = vmatpush1.msra.mxu0 0.0
        %6297 = vmatprep.subr.mxu0 0.0
        %6298 = vmatpush1.msra.mxu0 0.0
        %6299 = vmatprep.subr.mxu0 0.0
        %6300 = vmatpush1.msra.mxu0 0.0
        %6301 = vmatprep.subr.mxu0 0.0
        %6302 = vmatpush1.msra.mxu0 0.0
        %6303 = vmatprep.subr.mxu0 0.0
        %6304 = vmatpush1.msra.mxu0 0.0
        %6305 = vmatprep.subr.mxu0 0.0
        %6306 = vmatpush1.msra.mxu0 0.0
        %6307 = vmatprep.subr.mxu0 0.0
        %6308 = vmatpush1.msra.mxu0 0.0
        %6309 = vmatprep.subr.mxu0 0.0
        %6310 = vmatpush1.msra.mxu0 0.0
        %6311 = vmatprep.subr.mxu0 0.0
        %6312 = vmatpush1.msra.mxu0 0.0
        %6313 = vmatprep.subr.mxu0 0.0
        %6314 = vmatpush1.msra.mxu0 0.0
        %6315 = vmatprep.subr.mxu0 0.0
        %6316 = vmatpush1.msra.mxu0 0.0
        %6317 = vmatprep.subr.mxu0 0.0
        %6318 = vmatpush1.msra.mxu0 0.0
        %6319 = vmatprep.mubr.f32.mxu0 0.0
        %6320 = vmatmul.mubr.f32.gmra.mrb[0].mxu0 %v6106
        %v6321 = vpop.f32.mrb[0].mxu0
        %v6322 = vadd.f32 0.0, %v6321
        %v6323 = vpop.f32.mrb[0].mxu0
        %6324 = vmatprep.mubr.f32.mxu0 0.0
        %6325 = vmatmul.mubr.f32.gmra.mrb[0].mxu0 %v6109
        %v6326 = vpop.f32.mrb[0].mxu0
        %v6327 = vadd.f32 0.0, %v6326
        %v6328 = vpop.f32.mrb[0].mxu0
        %6329 = vmatprep.mubr.f32.mxu0 0.0
        %6330 = vmatmul.mubr.f32.gmra.mrb[0].mxu0 %v6112
        %v6331 = vpop.f32.mrb[0].mxu0
        %v6332 = vadd.f32 0.0, %v6331
        %v6333 = vpop.f32.mrb[0].mxu0
        %6334 = vmatprep.mubr.f32.mxu0 0.0
        %6335 = vmatmul.mubr.f32.gmra.mrb[0].mxu0 %v6115
        %v6336 = vpop.f32.mrb[0].mxu0
        %v6337 = vadd.f32 0.0, %v6336
        %v6338 = vpop.f32.mrb[0].mxu0
        %6339 = vmatprep.mubr.f32.mxu0 0.0
        %6340 = vmatmul.mubr.f32.gmra.mrb[0].mxu0 %v6118
        %v6341 = vpop.f32.mrb[0].mxu0
        %v6342 = vadd.f32 0.0, %v6341
        %v6343 = vpop.f32.mrb[0].mxu0
        %6344 = vmatprep.mubr.f32.mxu0 0.0
        %6345 = vmatmul.mubr.f32.gmra.mrb[0].mxu0 %v6121
        %v6346 = vpop.f32.mrb[0].mxu0
        %v6347 = vadd.f32 0.0, %v6346
        %v6348 = vpop.f32.mrb[0].mxu0
        %6349 = vmatprep.mubr.f32.mxu0 0.0
        %6350 = vmatmul.mubr.f32.gmra.mrb[0].mxu0 %v6124
        %v6351 = vpop.f32.mrb[0].mxu0
        %v6352 = vadd.f32 0.0, %v6351
        %v6353 = vpop.f32.mrb[0].mxu0
        %6354 = vmatprep.mubr.f32.mxu0 0.0
        %6355 = vmatmul.mubr.f32.gmra.mrb[0].mxu0 %v6127
        %v6356 = vpop.f32.mrb[0].mxu0
        %v6357 = vadd.f32 0.0, %v6356
        %v6358 = vpop.f32.mrb[0].mxu0
        %6359 = vmatprep.mubr.f32.mxu0 0.0
        %6360 = vmatmul.mubr.f32.gmra.mrb[0].mxu0 %v6130
        %v6361 = vpop.f32.mrb[0].mxu0
        %v6362 = vadd.f32 0.0, %v6361
        %v6363 = vpop.f32.mrb[0].mxu0
        %6364 = vmatprep.mubr.f32.mxu0 0.0
        %6365 = vmatmul.mubr.f32.gmra.mrb[0].mxu0 %v6133
        %v6366 = vpop.f32.mrb[0].mxu0
        %v6367 = vadd.f32 0.0, %v6366
        %v6368 = vpop.f32.mrb[0].mxu0
        %6369 = vmatprep.mubr.f32.mxu0 0.0
        %6370 = vmatmul.mubr.f32.gmra.mrb[0].mxu0 %v6136
        %v6371 = vpop.f32.mrb[0].mxu0
        %v6372 = vadd.f32 0.0, %v6371
        %v6373 = vpop.f32.mrb[0].mxu0
        %6374 = vmatprep.mubr.f32.mxu0 0.0
        %6375 = vmatmul.mubr.f32.gmra.mrb[0].mxu0 %v6139
        %v6376 = vpop.f32.mrb[0].mxu0
        %v6377 = vadd.f32 0.0, %v6376
        %v6378 = vpop.f32.mrb[0].mxu0
        %6379 = vmatprep.mubr.f32.mxu0 0.0
        %6380 = vmatmul.mubr.f32.gmra.mrb[0].mxu0 %v6142
        %v6381 = vpop.f32.mrb[0].mxu0
        %v6382 = vadd.f32 0.0, %v6381
        %v6383 = vpop.f32.mrb[0].mxu0
        %6384 = vmatprep.mubr.f32.mxu0 0.0
        %6385 = vmatmul.mubr.f32.gmra.mrb[0].mxu0 %v6145
        %v6386 = vpop.f32.mrb[0].mxu0
        %v6387 = vadd.f32 0.0, %v6386
        %v6388 = vpop.f32.mrb[0].mxu0
        %6389 = vmatprep.mubr.f32.mxu0 0.0
        %6390 = vmatmul.mubr.f32.gmra.mrb[0].mxu0 %v6148
        %v6391 = vpop.f32.mrb[0].mxu0
        %v6392 = vadd.f32 0.0, %v6391
        %v6393 = vpop.f32.mrb[0].mxu0
        %6394 = vmatprep.mubr.f32.mxu0 0.0
        %6395 = vmatmul.mubr.f32.gmra.mrb[0].mxu0 %v6151
        %v6396 = vpop.f32.mrb[0].mxu0
        %v6397 = vadd.f32 0.0, %v6396
        %v6398 = vpop.f32.mrb[0].mxu0
        %6399 = vmatprep.mubr.f32.mxu0 0.0
        %6400 = vmatmul.mubr.f32.gmra.mrb[0].mxu0 %v6154
        %v6401 = vpop.f32.mrb[0].mxu0
        %v6402 = vadd.f32 0.0, %v6401
        %v6403 = vpop.f32.mrb[0].mxu0
        %6404 = vmatprep.mubr.f32.mxu0 0.0
        %6405 = vmatmul.mubr.f32.gmra.mrb[0].mxu0 %v6157
        %v6406 = vpop.f32.mrb[0].mxu0
        %v6407 = vadd.f32 0.0, %v6406
        %v6408 = vpop.f32.mrb[0].mxu0
        %6409 = vmatprep.mubr.f32.mxu0 0.0
        %6410 = vmatmul.mubr.f32.gmra.mrb[0].mxu0 %v6160
        %v6411 = vpop.f32.mrb[0].mxu0
        %v6412 = vadd.f32 0.0, %v6411
        %v6413 = vpop.f32.mrb[0].mxu0
        %6414 = vmatprep.mubr.f32.mxu0 0.0
        %6415 = vmatmul.mubr.f32.gmra.mrb[0].mxu0 %v6163
        %v6416 = vpop.f32.mrb[0].mxu0
        %v6417 = vadd.f32 0.0, %v6416
        %v6418 = vpop.f32.mrb[0].mxu0
        %6419 = vmatprep.mubr.f32.mxu0 0.0
        %6420 = vmatmul.mubr.f32.gmra.mrb[0].mxu0 %v6166
        %v6421 = vpop.f32.mrb[0].mxu0
        %v6422 = vadd.f32 0.0, %v6421
        %v6423 = vpop.f32.mrb[0].mxu0
        %6424 = vmatprep.mubr.f32.mxu0 0.0
        %6425 = vmatmul.mubr.f32.gmra.mrb[0].mxu0 %v6169
        %v6426 = vpop.f32.mrb[0].mxu0
        %v6427 = vadd.f32 0.0, %v6426
        %v6428 = vpop.f32.mrb[0].mxu0
        %6429 = vmatprep.mubr.f32.mxu0 0.0
        %6430 = vmatmul.mubr.f32.gmra.mrb[0].mxu0 %v6172
        %v6431 = vpop.f32.mrb[0].mxu0
        %v6432 = vadd.f32 0.0, %v6431
        %v6433 = vpop.f32.mrb[0].mxu0
        %6434 = vmatprep.mubr.f32.mxu0 0.0
        %6435 = vmatmul.mubr.f32.gmra.mrb[0].mxu0 %v6175
        %v6436 = vpop.f32.mrb[0].mxu0
        %v6437 = vadd.f32 0.0, %v6436
        %v6438 = vpop.f32.mrb[0].mxu0
        %6439 = vmatprep.mubr.f32.mxu0 0.0
        %6440 = vmatmul.mubr.f32.gmra.mrb[0].mxu0 %v6178
        %v6441 = vpop.f32.mrb[0].mxu0
        %v6442 = vadd.f32 0.0, %v6441
        %v6443 = vpop.f32.mrb[0].mxu0
        %6444 = vmatprep.mubr.f32.mxu0 0.0
        %6445 = vmatmul.mubr.f32.gmra.mrb[0].mxu0 %v6181
        %v6446 = vpop.f32.mrb[0].mxu0
        %v6447 = vadd.f32 0.0, %v6446
        %v6448 = vpop.f32.mrb[0].mxu0
        %6449 = vmatprep.mubr.f32.mxu0 0.0
        %6450 = vmatmul.mubr.f32.gmra.mrb[0].mxu0 %v6184
        %v6451 = vpop.f32.mrb[0].mxu0
        %v6452 = vadd.f32 0.0, %v6451
        %v6453 = vpop.f32.mrb[0].mxu0
        %6454 = vmatprep.mubr.f32.mxu0 0.0
        %6455 = vmatmul.mubr.f32.gmra.mrb[0].mxu0 %v6187
        %v6456 = vpop.f32.mrb[0].mxu0
        %v6457 = vadd.f32 0.0, %v6456
        %v6458 = vpop.f32.mrb[0].mxu0
        %6459 = vmatprep.mubr.f32.mxu0 0.0
        %6460 = vmatmul.mubr.f32.gmra.mrb[0].mxu0 %v6190
        %v6461 = vpop.f32.mrb[0].mxu0
        %v6462 = vadd.f32 0.0, %v6461
        %v6463 = vpop.f32.mrb[0].mxu0
        %6464 = vmatprep.mubr.f32.mxu0 0.0
        %6465 = vmatmul.mubr.f32.gmra.mrb[0].mxu0 %v6193
        %v6466 = vpop.f32.mrb[0].mxu0
        %v6467 = vadd.f32 0.0, %v6466
        %v6468 = vpop.f32.mrb[0].mxu0
        %6469 = vmatprep.mubr.f32.mxu0 0.0
        %6470 = vmatmul.mubr.f32.gmra.mrb[0].mxu0 %v6196
        %v6471 = vpop.f32.mrb[0].mxu0
        %v6472 = vadd.f32 0.0, %v6471
        %v6473 = vpop.f32.mrb[0].mxu0
        %6474 = vmatprep.mubr.f32.mxu0 0.0
        %6475 = vmatmul.mubr.f32.gmra.mrb[0].mxu0 %v6199
        %v6476 = vpop.f32.mrb[0].mxu0
        %v6477 = vadd.f32 0.0, %v6476
        %v6478 = vpop.f32.mrb[0].mxu0
        %6479 = vmatprep.mubr.f32.mxu0 0.0
        %6480 = vmatmul.mubr.f32.gmra.mrb[0].mxu0 %v6202
        %v6481 = vpop.f32.mrb[0].mxu0
        %v6482 = vadd.f32 0.0, %v6481
        %v6483 = vpop.f32.mrb[0].mxu0
        %6484 = vmatprep.mubr.f32.mxu0 0.0
        %6485 = vmatmul.mubr.f32.gmra.mrb[0].mxu0 %v6205
        %v6486 = vpop.f32.mrb[0].mxu0
        %v6487 = vadd.f32 0.0, %v6486
        %v6488 = vpop.f32.mrb[0].mxu0
        %6489 = vmatprep.mubr.f32.mxu0 0.0
        %6490 = vmatmul.mubr.f32.gmra.mrb[0].mxu0 %v6208
        %v6491 = vpop.f32.mrb[0].mxu0
        %v6492 = vadd.f32 0.0, %v6491
        %v6493 = vpop.f32.mrb[0].mxu0
        %6494 = vmatprep.mubr.f32.mxu0 0.0
        %6495 = vmatmul.mubr.f32.gmra.mrb[0].mxu0 %v6211
        %v6496 = vpop.f32.mrb[0].mxu0
        %v6497 = vadd.f32 0.0, %v6496
        %v6498 = vpop.f32.mrb[0].mxu0
        %6499 = vmatprep.mubr.f32.mxu0 0.0
        %6500 = vmatmul.mubr.f32.gmra.mrb[0].mxu0 %v6214
        %v6501 = vpop.f32.mrb[0].mxu0
        %v6502 = vadd.f32 0.0, %v6501
        %v6503 = vpop.f32.mrb[0].mxu0
        %6504 = vmatprep.mubr.f32.mxu0 0.0
        %6505 = vmatmul.mubr.f32.gmra.mrb[0].mxu0 %v6217
        %v6506 = vpop.f32.mrb[0].mxu0
        %v6507 = vadd.f32 0.0, %v6506
        %v6508 = vpop.f32.mrb[0].mxu0
        %6509 = vmatprep.mubr.f32.mxu0 0.0
        %6510 = vmatmul.mubr.f32.gmra.mrb[0].mxu0 %v6220
        %v6511 = vpop.f32.mrb[0].mxu0
        %v6512 = vadd.f32 0.0, %v6511
        %v6513 = vpop.f32.mrb[0].mxu0
        %6514 = vmatprep.mubr.f32.mxu0 0.0
        %6515 = vmatmul.mubr.f32.gmra.mrb[0].mxu0 %v6223
        %v6516 = vpop.f32.mrb[0].mxu0
        %v6517 = vadd.f32 0.0, %v6516
        %v6518 = vpop.f32.mrb[0].mxu0
        %6519 = vmatprep.mubr.f32.mxu0 0.0
        %6520 = vmatmul.mubr.f32.gmra.mrb[0].mxu0 %v6226
        %v6521 = vpop.f32.mrb[0].mxu0
        %v6522 = vadd.f32 0.0, %v6521
        %v6523 = vpop.f32.mrb[0].mxu0
        %6524 = vmatprep.mubr.f32.mxu0 0.0
        %6525 = vmatmul.mubr.f32.gmra.mrb[0].mxu0 %v6229
        %v6526 = vpop.f32.mrb[0].mxu0
        %v6527 = vadd.f32 0.0, %v6526
        %v6528 = vpop.f32.mrb[0].mxu0
        %6529 = vmatprep.mubr.f32.mxu0 0.0
        %6530 = vmatmul.mubr.f32.gmra.mrb[0].mxu0 %v6232
        %v6531 = vpop.f32.mrb[0].mxu0
        %v6532 = vadd.f32 0.0, %v6531
        %v6533 = vpop.f32.mrb[0].mxu0
        %6534 = vmatprep.mubr.f32.mxu0 0.0
        %6535 = vmatmul.mubr.f32.gmra.mrb[0].mxu0 %v6235
        %v6536 = vpop.f32.mrb[0].mxu0
        %v6537 = vadd.f32 0.0, %v6536
        %v6538 = vpop.f32.mrb[0].mxu0
        %6539 = vmatprep.mubr.f32.mxu0 0.0
        %6540 = vmatmul.mubr.f32.gmra.mrb[0].mxu0 %v6238
        %v6541 = vpop.f32.mrb[0].mxu0
        %v6542 = vadd.f32 0.0, %v6541
        %v6543 = vpop.f32.mrb[0].mxu0
        %6544 = vmatprep.mubr.f32.mxu0 0.0
        %6545 = vmatmul.mubr.f32.gmra.mrb[0].mxu0 %v6241
        %v6546 = vpop.f32.mrb[0].mxu0
        %v6547 = vadd.f32 0.0, %v6546
        %v6548 = vpop.f32.mrb[0].mxu0
        %6549 = vmatprep.mubr.f32.mxu0 0.0
        %6550 = vmatmul.mubr.f32.gmra.mrb[0].mxu0 %v6244
        %v6551 = vpop.f32.mrb[0].mxu0
        %v6552 = vadd.f32 0.0, %v6551
        %v6553 = vpop.f32.mrb[0].mxu0
        %6554 = vmatprep.mubr.f32.mxu0 0.0
        %6555 = vmatmul.mubr.f32.gmra.mrb[0].mxu0 %v6247
        %v6556 = vpop.f32.mrb[0].mxu0
        %v6557 = vadd.f32 0.0, %v6556
        %v6558 = vpop.f32.mrb[0].mxu0
        %6559 = vmatprep.mubr.f32.mxu0 0.0
        %6560 = vmatmul.mubr.f32.gmra.mrb[0].mxu0 %v6250
        %v6561 = vpop.f32.mrb[0].mxu0
        %v6562 = vadd.f32 0.0, %v6561
        %v6563 = vpop.f32.mrb[0].mxu0
        %6564 = vmatprep.mubr.f32.mxu0 0.0
        %6565 = vmatmul.mubr.f32.gmra.mrb[0].mxu0 %v6253
        %v6566 = vpop.f32.mrb[0].mxu0
        %v6567 = vadd.f32 0.0, %v6566
        %v6568 = vpop.f32.mrb[0].mxu0
        %6569 = vdwg.mxu0
        %v6570 = vadd.f32 %v6002, %v6322
        %v6571 = vadd.f32 %v6003, %v6327
        %v6572 = vadd.f32 %v6004, %v6332
        %v6573 = vadd.f32 %v6005, %v6337
        %v6574 = vadd.f32 %v6006, %v6342
        %v6575 = vadd.f32 %v6007, %v6347
        %v6576 = vadd.f32 %v6008, %v6352
        %v6577 = vadd.f32 %v6009, %v6357
        %v6578 = vadd.f32 %v6010, %v6362
        %v6579 = vadd.f32 %v6011, %v6367
        %v6580 = vadd.f32 %v6012, %v6372
        %v6581 = vadd.f32 %v6013, %v6377
        %v6582 = vadd.f32 %v6014, %v6382
        %v6583 = vadd.f32 %v6015, %v6387
        %v6584 = vadd.f32 %v6016, %v6392
        %v6585 = vadd.f32 %v6017, %v6397
        %v6586 = vadd.f32 %v6018, %v6402
        %v6587 = vadd.f32 %v6019, %v6407
        %v6588 = vadd.f32 %v6020, %v6412
        %v6589 = vadd.f32 %v6021, %v6417
        %v6590 = vadd.f32 %v6022, %v6422
        %v6591 = vadd.f32 %v6023, %v6427
        %v6592 = vadd.f32 %v6024, %v6432
        %v6593 = vadd.f32 %v6025, %v6437
        %v6594 = vadd.f32 %v6026, %v6442
        %v6595 = vadd.f32 %v6027, %v6447
        %v6596 = vadd.f32 %v6028, %v6452
        %v6597 = vadd.f32 %v6029, %v6457
        %v6598 = vadd.f32 %v6030, %v6462
        %v6599 = vadd.f32 %v6031, %v6467
        %v6600 = vadd.f32 %v6032, %v6472
        %v6601 = vadd.f32 %v6033, %v6477
        %v6602 = vadd.f32 %v6034, %v6482
        %v6603 = vadd.f32 %v6035, %v6487
        %v6604 = vadd.f32 %v6036, %v6492
        %v6605 = vadd.f32 %v6037, %v6497
        %v6606 = vadd.f32 %v6038, %v6502
        %v6607 = vadd.f32 %v6039, %v6507
        %v6608 = vadd.f32 %v6040, %v6512
        %v6609 = vadd.f32 %v6041, %v6517
        %v6610 = vadd.f32 %v6042, %v6522
        %v6611 = vadd.f32 %v6043, %v6527
        %v6612 = vadd.f32 %v6044, %v6532
        %v6613 = vadd.f32 %v6045, %v6537
        %v6614 = vadd.f32 %v6046, %v6542
        %v6615 = vadd.f32 %v6047, %v6547
        %v6616 = vadd.f32 %v6048, %v6552
        %v6617 = vadd.f32 %v6049, %v6557
        %v6618 = vadd.f32 %v6050, %v6562
        %v6619 = vadd.f32 %v6051, %v6567
        %6620 = vst.msk [vmem:[#allocation4] sm:$0xff] %vm5282, %v6570
        %6621 = vst.msk [vmem:[#allocation4 + $0x8] sm:$0xff] %vm5282, %v6571
        %6622 = vst.msk [vmem:[#allocation4 + $0x10] sm:$0xff] %vm5282, %v6572
        %6623 = vst.msk [vmem:[#allocation4 + $0x18] sm:$0xff] %vm5282, %v6573
        %6624 = vst.msk [vmem:[#allocation4 + $0x20] sm:$0xff] %vm5282, %v6574
        %6625 = vst.msk [vmem:[#allocation4 + $0x28] sm:$0xff] %vm5282, %v6575
        %6626 = vst.msk [vmem:[#allocation4 + $0x30] sm:$0xff] %vm5282, %v6576
        %6627 = vst.msk [vmem:[#allocation4 + $0x38] sm:$0xff] %vm5282, %v6577
        %6628 = vst.msk [vmem:[#allocation4 + $0x40] sm:$0xff] %vm5282, %v6578
        %6629 = vst.msk [vmem:[#allocation4 + $0x48] sm:$0xff] %vm5282, %v6579
        %6630 = vst.msk [vmem:[#allocation4 + $0x50] sm:$0xff] %vm5282, %v6580
        %6631 = vst.msk [vmem:[#allocation4 + $0x58] sm:$0xff] %vm5282, %v6581
        %6632 = vst.msk [vmem:[#allocation4 + $0x60] sm:$0xff] %vm5282, %v6582
        %6633 = vst.msk [vmem:[#allocation4 + $0x68] sm:$0xff] %vm5282, %v6583
        %6634 = vst.msk [vmem:[#allocation4 + $0x70] sm:$0xff] %vm5282, %v6584
        %6635 = vst.msk [vmem:[#allocation4 + $0x78] sm:$0xff] %vm5282, %v6585
        %6636 = vst.msk [vmem:[#allocation4 + $0x80] sm:$0xff] %vm5282, %v6586
        %6637 = vst.msk [vmem:[#allocation4 + $0x88] sm:$0xff] %vm5282, %v6587
        %6638 = vst.msk [vmem:[#allocation4 + $0x90] sm:$0xff] %vm5282, %v6588
        %6639 = vst.msk [vmem:[#allocation4 + $0x98] sm:$0xff] %vm5282, %v6589
        %6640 = vst.msk [vmem:[#allocation4 + $0xa0] sm:$0xff] %vm5282, %v6590
        %6641 = vst.msk [vmem:[#allocation4 + $0xa8] sm:$0xff] %vm5282, %v6591
        %6642 = vst.msk [vmem:[#allocation4 + $0xb0] sm:$0xff] %vm5282, %v6592
        %6643 = vst.msk [vmem:[#allocation4 + $0xb8] sm:$0xff] %vm5282, %v6593
        %6644 = vst.msk [vmem:[#allocation4 + $0xc0] sm:$0xff] %vm5282, %v6594
        %6645 = vst.msk [vmem:[#allocation4 + $0xc8] sm:$0xff] %vm5282, %v6595
        %6646 = vst.msk [vmem:[#allocation4 + $0xd0] sm:$0xff] %vm5282, %v6596
        %6647 = vst.msk [vmem:[#allocation4 + $0xd8] sm:$0xff] %vm5282, %v6597
        %6648 = vst.msk [vmem:[#allocation4 + $0xe0] sm:$0xff] %vm5282, %v6598
        %6649 = vst.msk [vmem:[#allocation4 + $0xe8] sm:$0xff] %vm5282, %v6599
        %6650 = vst.msk [vmem:[#allocation4 + $0xf0] sm:$0xff] %vm5282, %v6600
        %6651 = vst.msk [vmem:[#allocation4 + $0xf8] sm:$0xff] %vm5282, %v6601
        %6652 = vst.msk [vmem:[#allocation4 + $0x100] sm:$0xff] %vm5282, %v6602
        %6653 = vst.msk [vmem:[#allocation4 + $0x108] sm:$0xff] %vm5282, %v6603
        %6654 = vst.msk [vmem:[#allocation4 + $0x110] sm:$0xff] %vm5282, %v6604
        %6655 = vst.msk [vmem:[#allocation4 + $0x118] sm:$0xff] %vm5282, %v6605
        %6656 = vst.msk [vmem:[#allocation4 + $0x120] sm:$0xff] %vm5282, %v6606
        %6657 = vst.msk [vmem:[#allocation4 + $0x128] sm:$0xff] %vm5282, %v6607
        %6658 = vst.msk [vmem:[#allocation4 + $0x130] sm:$0xff] %vm5282, %v6608
        %6659 = vst.msk [vmem:[#allocation4 + $0x138] sm:$0xff] %vm5282, %v6609
        %6660 = vst.msk [vmem:[#allocation4 + $0x140] sm:$0xff] %vm5282, %v6610
        %6661 = vst.msk [vmem:[#allocation4 + $0x148] sm:$0xff] %vm5282, %v6611
        %6662 = vst.msk [vmem:[#allocation4 + $0x150] sm:$0xff] %vm5282, %v6612
        %6663 = vst.msk [vmem:[#allocation4 + $0x158] sm:$0xff] %vm5282, %v6613
        %6664 = vst.msk [vmem:[#allocation4 + $0x160] sm:$0xff] %vm5282, %v6614
        %6665 = vst.msk [vmem:[#allocation4 + $0x168] sm:$0xff] %vm5282, %v6615
        %6666 = vst.msk [vmem:[#allocation4 + $0x170] sm:$0xff] %vm5282, %v6616
        %6667 = vst.msk [vmem:[#allocation4 + $0x178] sm:$0xff] %vm5282, %v6617
        %6668 = vst.msk [vmem:[#allocation4 + $0x180] sm:$0xff] %vm5282, %v6618
        %6669 = vst.msk [vmem:[#allocation4 + $0x188] sm:$0x3f] %vm5332, %v6619
        %v6670 = vld [vmem:[#allocation4] sm:$0xff]
        %v6671 = vld [vmem:[#allocation4 + $0x8] sm:$0xff]
        %v6672 = vld [vmem:[#allocation4 + $0x10] sm:$0xff]
        %v6673 = vld [vmem:[#allocation4 + $0x18] sm:$0xff]
        %v6674 = vld [vmem:[#allocation4 + $0x20] sm:$0xff]
        %v6675 = vld [vmem:[#allocation4 + $0x28] sm:$0xff]
        %v6676 = vld [vmem:[#allocation4 + $0x30] sm:$0xff]
        %v6677 = vld [vmem:[#allocation4 + $0x38] sm:$0xff]
        %v6678 = vld [vmem:[#allocation4 + $0x40] sm:$0xff]
        %v6679 = vld [vmem:[#allocation4 + $0x48] sm:$0xff]
        %v6680 = vld [vmem:[#allocation4 + $0x50] sm:$0xff]
        %v6681 = vld [vmem:[#allocation4 + $0x58] sm:$0xff]
        %v6682 = vld [vmem:[#allocation4 + $0x60] sm:$0xff]
        %v6683 = vld [vmem:[#allocation4 + $0x68] sm:$0xff]
        %v6684 = vld [vmem:[#allocation4 + $0x70] sm:$0xff]
        %v6685 = vld [vmem:[#allocation4 + $0x78] sm:$0xff]
        %v6686 = vld [vmem:[#allocation4 + $0x80] sm:$0xff]
        %v6687 = vld [vmem:[#allocation4 + $0x88] sm:$0xff]
        %v6688 = vld [vmem:[#allocation4 + $0x90] sm:$0xff]
        %v6689 = vld [vmem:[#allocation4 + $0x98] sm:$0xff]
        %v6690 = vld [vmem:[#allocation4 + $0xa0] sm:$0xff]
        %v6691 = vld [vmem:[#allocation4 + $0xa8] sm:$0xff]
        %v6692 = vld [vmem:[#allocation4 + $0xb0] sm:$0xff]
        %v6693 = vld [vmem:[#allocation4 + $0xb8] sm:$0xff]
        %v6694 = vld [vmem:[#allocation4 + $0xc0] sm:$0xff]
        %v6695 = vld [vmem:[#allocation4 + $0xc8] sm:$0xff]
        %v6696 = vld [vmem:[#allocation4 + $0xd0] sm:$0xff]
        %v6697 = vld [vmem:[#allocation4 + $0xd8] sm:$0xff]
        %v6698 = vld [vmem:[#allocation4 + $0xe0] sm:$0xff]
        %v6699 = vld [vmem:[#allocation4 + $0xe8] sm:$0xff]
        %v6700 = vld [vmem:[#allocation4 + $0xf0] sm:$0xff]
        %v6701 = vld [vmem:[#allocation4 + $0xf8] sm:$0xff]
        %v6702 = vld [vmem:[#allocation4 + $0x100] sm:$0xff]
        %v6703 = vld [vmem:[#allocation4 + $0x108] sm:$0xff]
        %v6704 = vld [vmem:[#allocation4 + $0x110] sm:$0xff]
        %v6705 = vld [vmem:[#allocation4 + $0x118] sm:$0xff]
        %v6706 = vld [vmem:[#allocation4 + $0x120] sm:$0xff]
        %v6707 = vld [vmem:[#allocation4 + $0x128] sm:$0xff]
        %v6708 = vld [vmem:[#allocation4 + $0x130] sm:$0xff]
        %v6709 = vld [vmem:[#allocation4 + $0x138] sm:$0xff]
        %v6710 = vld [vmem:[#allocation4 + $0x140] sm:$0xff]
        %v6711 = vld [vmem:[#allocation4 + $0x148] sm:$0xff]
        %v6712 = vld [vmem:[#allocation4 + $0x150] sm:$0xff]
        %v6713 = vld [vmem:[#allocation4 + $0x158] sm:$0xff]
        %v6714 = vld [vmem:[#allocation4 + $0x160] sm:$0xff]
        %v6715 = vld [vmem:[#allocation4 + $0x168] sm:$0xff]
        %v6716 = vld [vmem:[#allocation4 + $0x170] sm:$0xff]
        %v6717 = vld [vmem:[#allocation4 + $0x178] sm:$0xff]
        %v6718 = vld [vmem:[#allocation4 + $0x180] sm:$0xff]
        %v6719 = vld [vmem:[#allocation4 + $0x188] sm:$0x3f]
        %v6720 = vld [vmem:[%s4] sm:$0x1]
        %v6722 = vlaneseq
        %v6723 = vshrl.u32 %v6722, 7
        %v6724 = vsub.s32 0, %v6723
        %v6725 = vrot.slane %v6720, %v6724
        %v6727 = vadd.f32 %v6670, %v6725
        %v6728 = vadd.f32 %v6671, %v6725
        %v6729 = vadd.f32 %v6672, %v6725
        %v6730 = vadd.f32 %v6673, %v6725
        %v6731 = vadd.f32 %v6674, %v6725
        %v6732 = vadd.f32 %v6675, %v6725
        %v6733 = vadd.f32 %v6676, %v6725
        %v6734 = vadd.f32 %v6677, %v6725
        %v6735 = vadd.f32 %v6678, %v6725
        %v6736 = vadd.f32 %v6679, %v6725
        %v6737 = vadd.f32 %v6680, %v6725
        %v6738 = vadd.f32 %v6681, %v6725
        %v6739 = vadd.f32 %v6682, %v6725
        %v6740 = vadd.f32 %v6683, %v6725
        %v6741 = vadd.f32 %v6684, %v6725
        %v6742 = vadd.f32 %v6685, %v6725
        %v6743 = vadd.f32 %v6686, %v6725
        %v6744 = vadd.f32 %v6687, %v6725
        %v6745 = vadd.f32 %v6688, %v6725
        %v6746 = vadd.f32 %v6689, %v6725
        %v6747 = vadd.f32 %v6690, %v6725
        %v6748 = vadd.f32 %v6691, %v6725
        %v6749 = vadd.f32 %v6692, %v6725
        %v6750 = vadd.f32 %v6693, %v6725
        %v6751 = vadd.f32 %v6694, %v6725
        %v6752 = vadd.f32 %v6695, %v6725
        %v6753 = vadd.f32 %v6696, %v6725
        %v6754 = vadd.f32 %v6697, %v6725
        %v6755 = vadd.f32 %v6698, %v6725
        %v6756 = vadd.f32 %v6699, %v6725
        %v6757 = vadd.f32 %v6700, %v6725
        %v6758 = vadd.f32 %v6701, %v6725
        %v6759 = vadd.f32 %v6702, %v6725
        %v6760 = vadd.f32 %v6703, %v6725
        %v6761 = vadd.f32 %v6704, %v6725
        %v6762 = vadd.f32 %v6705, %v6725
        %v6763 = vadd.f32 %v6706, %v6725
        %v6764 = vadd.f32 %v6707, %v6725
        %v6765 = vadd.f32 %v6708, %v6725
        %v6766 = vadd.f32 %v6709, %v6725
        %v6767 = vadd.f32 %v6710, %v6725
        %v6768 = vadd.f32 %v6711, %v6725
        %v6769 = vadd.f32 %v6712, %v6725
        %v6770 = vadd.f32 %v6713, %v6725
        %v6771 = vadd.f32 %v6714, %v6725
        %v6772 = vadd.f32 %v6715, %v6725
        %v6773 = vadd.f32 %v6716, %v6725
        %v6774 = vadd.f32 %v6717, %v6725
        %v6775 = vadd.f32 %v6718, %v6725
        %v6776 = vadd.f32 %v6719, %v6725
        %v6777 = vmax.f32 %v6727, 0.0
        %v6778 = vmax.f32 %v6728, 0.0
        %v6779 = vmax.f32 %v6729, 0.0
        %v6780 = vmax.f32 %v6730, 0.0
        %v6781 = vmax.f32 %v6731, 0.0
        %v6782 = vmax.f32 %v6732, 0.0
        %v6783 = vmax.f32 %v6733, 0.0
        %v6784 = vmax.f32 %v6734, 0.0
        %v6785 = vmax.f32 %v6735, 0.0
        %v6786 = vmax.f32 %v6736, 0.0
        %v6787 = vmax.f32 %v6737, 0.0
        %v6788 = vmax.f32 %v6738, 0.0
        %v6789 = vmax.f32 %v6739, 0.0
        %v6790 = vmax.f32 %v6740, 0.0
        %v6791 = vmax.f32 %v6741, 0.0
        %v6792 = vmax.f32 %v6742, 0.0
        %v6793 = vmax.f32 %v6743, 0.0
        %v6794 = vmax.f32 %v6744, 0.0
        %v6795 = vmax.f32 %v6745, 0.0
        %v6796 = vmax.f32 %v6746, 0.0
        %v6797 = vmax.f32 %v6747, 0.0
        %v6798 = vmax.f32 %v6748, 0.0
        %v6799 = vmax.f32 %v6749, 0.0
        %v6800 = vmax.f32 %v6750, 0.0
        %v6801 = vmax.f32 %v6751, 0.0
        %v6802 = vmax.f32 %v6752, 0.0
        %v6803 = vmax.f32 %v6753, 0.0
        %v6804 = vmax.f32 %v6754, 0.0
        %v6805 = vmax.f32 %v6755, 0.0
        %v6806 = vmax.f32 %v6756, 0.0
        %v6807 = vmax.f32 %v6757, 0.0
        %v6808 = vmax.f32 %v6758, 0.0
        %v6809 = vmax.f32 %v6759, 0.0
        %v6810 = vmax.f32 %v6760, 0.0
        %v6811 = vmax.f32 %v6761, 0.0
        %v6812 = vmax.f32 %v6762, 0.0
        %v6813 = vmax.f32 %v6763, 0.0
        %v6814 = vmax.f32 %v6764, 0.0
        %v6815 = vmax.f32 %v6765, 0.0
        %v6816 = vmax.f32 %v6766, 0.0
        %v6817 = vmax.f32 %v6767, 0.0
        %v6818 = vmax.f32 %v6768, 0.0
        %v6819 = vmax.f32 %v6769, 0.0
        %v6820 = vmax.f32 %v6770, 0.0
        %v6821 = vmax.f32 %v6771, 0.0
        %v6822 = vmax.f32 %v6772, 0.0
        %v6823 = vmax.f32 %v6773, 0.0
        %v6824 = vmax.f32 %v6774, 0.0
        %v6825 = vmax.f32 %v6775, 0.0
        %v6826 = vmax.f32 %v6776, 0.0
        %6827 = vst.msk [vmem:[#allocation4] sm:$0xff] %vm5282, %v6777
        %6828 = vst.msk [vmem:[#allocation4 + $0x8] sm:$0xff] %vm5282, %v6778
        %6829 = vst.msk [vmem:[#allocation4 + $0x10] sm:$0xff] %vm5282, %v6779
        %6830 = vst.msk [vmem:[#allocation4 + $0x18] sm:$0xff] %vm5282, %v6780
        %6831 = vst.msk [vmem:[#allocation4 + $0x20] sm:$0xff] %vm5282, %v6781
        %6832 = vst.msk [vmem:[#allocation4 + $0x28] sm:$0xff] %vm5282, %v6782
        %6833 = vst.msk [vmem:[#allocation4 + $0x30] sm:$0xff] %vm5282, %v6783
        %6834 = vst.msk [vmem:[#allocation4 + $0x38] sm:$0xff] %vm5282, %v6784
        %6835 = vst.msk [vmem:[#allocation4 + $0x40] sm:$0xff] %vm5282, %v6785
        %6836 = vst.msk [vmem:[#allocation4 + $0x48] sm:$0xff] %vm5282, %v6786
        %6837 = vst.msk [vmem:[#allocation4 + $0x50] sm:$0xff] %vm5282, %v6787
        %6838 = vst.msk [vmem:[#allocation4 + $0x58] sm:$0xff] %vm5282, %v6788
        %6839 = vst.msk [vmem:[#allocation4 + $0x60] sm:$0xff] %vm5282, %v6789
        %6840 = vst.msk [vmem:[#allocation4 + $0x68] sm:$0xff] %vm5282, %v6790
        %6841 = vst.msk [vmem:[#allocation4 + $0x70] sm:$0xff] %vm5282, %v6791
        %6842 = vst.msk [vmem:[#allocation4 + $0x78] sm:$0xff] %vm5282, %v6792
        %6843 = vst.msk [vmem:[#allocation4 + $0x80] sm:$0xff] %vm5282, %v6793
        %6844 = vst.msk [vmem:[#allocation4 + $0x88] sm:$0xff] %vm5282, %v6794
        %6845 = vst.msk [vmem:[#allocation4 + $0x90] sm:$0xff] %vm5282, %v6795
        %6846 = vst.msk [vmem:[#allocation4 + $0x98] sm:$0xff] %vm5282, %v6796
        %6847 = vst.msk [vmem:[#allocation4 + $0xa0] sm:$0xff] %vm5282, %v6797
        %6848 = vst.msk [vmem:[#allocation4 + $0xa8] sm:$0xff] %vm5282, %v6798
        %6849 = vst.msk [vmem:[#allocation4 + $0xb0] sm:$0xff] %vm5282, %v6799
        %6850 = vst.msk [vmem:[#allocation4 + $0xb8] sm:$0xff] %vm5282, %v6800
        %6851 = vst.msk [vmem:[#allocation4 + $0xc0] sm:$0xff] %vm5282, %v6801
        %6852 = vst.msk [vmem:[#allocation4 + $0xc8] sm:$0xff] %vm5282, %v6802
        %6853 = vst.msk [vmem:[#allocation4 + $0xd0] sm:$0xff] %vm5282, %v6803
        %6854 = vst.msk [vmem:[#allocation4 + $0xd8] sm:$0xff] %vm5282, %v6804
        %6855 = vst.msk [vmem:[#allocation4 + $0xe0] sm:$0xff] %vm5282, %v6805
        %6856 = vst.msk [vmem:[#allocation4 + $0xe8] sm:$0xff] %vm5282, %v6806
        %6857 = vst.msk [vmem:[#allocation4 + $0xf0] sm:$0xff] %vm5282, %v6807
        %6858 = vst.msk [vmem:[#allocation4 + $0xf8] sm:$0xff] %vm5282, %v6808
        %6859 = vst.msk [vmem:[#allocation4 + $0x100] sm:$0xff] %vm5282, %v6809
        %6860 = vst.msk [vmem:[#allocation4 + $0x108] sm:$0xff] %vm5282, %v6810
        %6861 = vst.msk [vmem:[#allocation4 + $0x110] sm:$0xff] %vm5282, %v6811
        %6862 = vst.msk [vmem:[#allocation4 + $0x118] sm:$0xff] %vm5282, %v6812
        %6863 = vst.msk [vmem:[#allocation4 + $0x120] sm:$0xff] %vm5282, %v6813
        %6864 = vst.msk [vmem:[#allocation4 + $0x128] sm:$0xff] %vm5282, %v6814
        %6865 = vst.msk [vmem:[#allocation4 + $0x130] sm:$0xff] %vm5282, %v6815
        %6866 = vst.msk [vmem:[#allocation4 + $0x138] sm:$0xff] %vm5282, %v6816
        %6867 = vst.msk [vmem:[#allocation4 + $0x140] sm:$0xff] %vm5282, %v6817
        %6868 = vst.msk [vmem:[#allocation4 + $0x148] sm:$0xff] %vm5282, %v6818
        %6869 = vst.msk [vmem:[#allocation4 + $0x150] sm:$0xff] %vm5282, %v6819
        %6870 = vst.msk [vmem:[#allocation4 + $0x158] sm:$0xff] %vm5282, %v6820
        %6871 = vst.msk [vmem:[#allocation4 + $0x160] sm:$0xff] %vm5282, %v6821
        %6872 = vst.msk [vmem:[#allocation4 + $0x168] sm:$0xff] %vm5282, %v6822
        %6873 = vst.msk [vmem:[#allocation4 + $0x170] sm:$0xff] %vm5282, %v6823
        %6874 = vst.msk [vmem:[#allocation4 + $0x178] sm:$0xff] %vm5282, %v6824
        %6875 = vst.msk [vmem:[#allocation4 + $0x180] sm:$0xff] %vm5282, %v6825
        %6876 = vst.msk [vmem:[#allocation4 + $0x188] sm:$0x3f] %vm5332, %v6826
        %v6877 = vld [vmem:[#allocation4] ss:$50 sm:$0xff]
        %s6878 = scalar_lea.vmem [#allocation4], 1
        %v6879 = vld [vmem:[%s6878] ss:$50 sm:$0xff]
        %v6880 = vmax.f32 %v6877, %v6879
        %v6881 = vld [vmem:[%s5] sm:$0xff]
        %v6882 = vld [vmem:[%s5 + $0x8] sm:$0xff]
        %v6883 = vld [vmem:[%s5 + $0x10] sm:$0xff]
        %v6884 = vld [vmem:[%s5 + $0x18] sm:$0xff]
        %s6885 = scalar_lea.vmem [#allocation4], 2
        %v6886 = vld [vmem:[%s6885] ss:$50 sm:$0xff]
        %s6887 = scalar_lea.vmem [#allocation4], 3
        %v6888 = vld [vmem:[%s6887] ss:$50 sm:$0xff]
        %v6889 = vmax.f32 %v6886, %v6888
        %v6890 = vld [vmem:[%s5 + $0x20] sm:$0xff]
        %v6891 = vld [vmem:[%s5 + $0x28] sm:$0xff]
        %v6892 = vld [vmem:[%s5 + $0x30] sm:$0xff]
        %v6893 = vld [vmem:[%s5 + $0x38] sm:$0xff]
        %v6895 = vsel %vm5282, %v6889, 0
        %6897 = vmatprep.subr.mxu0 0.0
        %6898 = vmatpush1.msra.mxu0 %v6890
        %6899 = vmatprep.subr.mxu0 0.0
        %6900 = vmatpush1.msra.mxu0 %v6891
        %6901 = vmatprep.subr.mxu0 0.0
        %6902 = vmatpush1.msra.mxu0 %v6892
        %6903 = vmatprep.subr.mxu0 0.0
        %6904 = vmatpush1.msra.mxu0 %v6893
        %6905 = vmatprep.subr.mxu0 0.0
        %6906 = vmatpush1.msra.mxu0 0.0
        %6907 = vmatprep.subr.mxu0 0.0
        %6908 = vmatpush1.msra.mxu0 0.0
        %6909 = vmatprep.subr.mxu0 0.0
        %6910 = vmatpush1.msra.mxu0 0.0
        %6911 = vmatprep.subr.mxu0 0.0
        %6912 = vmatpush1.msra.mxu0 0.0
        %6913 = vmatprep.subr.mxu0 0.0
        %6914 = vmatpush1.msra.mxu0 0.0
        %6915 = vmatprep.subr.mxu0 0.0
        %6916 = vmatpush1.msra.mxu0 0.0
        %6917 = vmatprep.subr.mxu0 0.0
        %6918 = vmatpush1.msra.mxu0 0.0
        %6919 = vmatprep.subr.mxu0 0.0
        %6920 = vmatpush1.msra.mxu0 0.0
        %6921 = vmatprep.subr.mxu0 0.0
        %6922 = vmatpush1.msra.mxu0 0.0
        %6923 = vmatprep.subr.mxu0 0.0
        %6924 = vmatpush1.msra.mxu0 0.0
        %6925 = vmatprep.subr.mxu0 0.0
        %6926 = vmatpush1.msra.mxu0 0.0
        %6927 = vmatprep.subr.mxu0 0.0
        %6928 = vmatpush1.msra.mxu0 0.0
        %6929 = vmatprep.subr.mxu0 0.0
        %6930 = vmatpush1.msra.mxu0 0.0
        %6931 = vmatprep.subr.mxu0 0.0
        %6932 = vmatpush1.msra.mxu0 0.0
        %6933 = vmatprep.subr.mxu0 0.0
        %6934 = vmatpush1.msra.mxu0 0.0
        %6935 = vmatprep.subr.mxu0 0.0
        %6936 = vmatpush1.msra.mxu0 0.0
        %6937 = vmatprep.subr.mxu0 0.0
        %6938 = vmatpush1.msra.mxu0 0.0
        %6939 = vmatprep.subr.mxu0 0.0
        %6940 = vmatpush1.msra.mxu0 0.0
        %6941 = vmatprep.subr.mxu0 0.0
        %6942 = vmatpush1.msra.mxu0 0.0
        %6943 = vmatprep.subr.mxu0 0.0
        %6944 = vmatpush1.msra.mxu0 0.0
        %6945 = vmatprep.subr.mxu0 0.0
        %6946 = vmatpush1.msra.mxu0 0.0
        %6947 = vmatprep.subr.mxu0 0.0
        %6948 = vmatpush1.msra.mxu0 0.0
        %6949 = vmatprep.subr.mxu0 0.0
        %6950 = vmatpush1.msra.mxu0 0.0
        %6951 = vmatprep.subr.mxu0 0.0
        %6952 = vmatpush1.msra.mxu0 0.0
        %6953 = vmatprep.subr.mxu0 0.0
        %6954 = vmatpush1.msra.mxu0 0.0
        %6955 = vmatprep.subr.mxu0 0.0
        %6956 = vmatpush1.msra.mxu0 0.0
        %6957 = vmatprep.subr.mxu0 0.0
        %6958 = vmatpush1.msra.mxu0 0.0
        %6959 = vmatprep.subr.mxu0 0.0
        %6960 = vmatpush1.msra.mxu0 0.0
        %6961 = vmatprep.mubr.f32.mxu0 0.0
        %6962 = vmatmul.mubr.f32.gmra.mrb[0].mxu0 %v6895
        %v6963 = vpop.f32.mrb[0].mxu0
        %v6964 = vadd.f32 0.0, %v6963
        %v6965 = vpop.f32.mrb[0].mxu0
        %6966 = vdwg.mxu0
        %v6968 = vsel %vm5282, %v6880, 0
        %6970 = vmatprep.subr.mxu0 0.0
        %6971 = vmatpush1.msra.mxu0 %v6881
        %6972 = vmatprep.subr.mxu0 0.0
        %6973 = vmatpush1.msra.mxu0 %v6882
        %6974 = vmatprep.subr.mxu0 0.0
        %6975 = vmatpush1.msra.mxu0 %v6883
        %6976 = vmatprep.subr.mxu0 0.0
        %6977 = vmatpush1.msra.mxu0 %v6884
        %6978 = vmatprep.subr.mxu0 0.0
        %6979 = vmatpush1.msra.mxu0 0.0
        %6980 = vmatprep.subr.mxu0 0.0
        %6981 = vmatpush1.msra.mxu0 0.0
        %6982 = vmatprep.subr.mxu0 0.0
        %6983 = vmatpush1.msra.mxu0 0.0
        %6984 = vmatprep.subr.mxu0 0.0
        %6985 = vmatpush1.msra.mxu0 0.0
        %6986 = vmatprep.subr.mxu0 0.0
        %6987 = vmatpush1.msra.mxu0 0.0
        %6988 = vmatprep.subr.mxu0 0.0
        %6989 = vmatpush1.msra.mxu0 0.0
        %6990 = vmatprep.subr.mxu0 0.0
        %6991 = vmatpush1.msra.mxu0 0.0
        %6992 = vmatprep.subr.mxu0 0.0
        %6993 = vmatpush1.msra.mxu0 0.0
        %6994 = vmatprep.subr.mxu0 0.0
        %6995 = vmatpush1.msra.mxu0 0.0
        %6996 = vmatprep.subr.mxu0 0.0
        %6997 = vmatpush1.msra.mxu0 0.0
        %6998 = vmatprep.subr.mxu0 0.0
        %6999 = vmatpush1.msra.mxu0 0.0
        %7000 = vmatprep.subr.mxu0 0.0
        %7001 = vmatpush1.msra.mxu0 0.0
        %7002 = vmatprep.subr.mxu0 0.0
        %7003 = vmatpush1.msra.mxu0 0.0
        %7004 = vmatprep.subr.mxu0 0.0
        %7005 = vmatpush1.msra.mxu0 0.0
        %7006 = vmatprep.subr.mxu0 0.0
        %7007 = vmatpush1.msra.mxu0 0.0
        %7008 = vmatprep.subr.mxu0 0.0
        %7009 = vmatpush1.msra.mxu0 0.0
        %7010 = vmatprep.subr.mxu0 0.0
        %7011 = vmatpush1.msra.mxu0 0.0
        %7012 = vmatprep.subr.mxu0 0.0
        %7013 = vmatpush1.msra.mxu0 0.0
        %7014 = vmatprep.subr.mxu0 0.0
        %7015 = vmatpush1.msra.mxu0 0.0
        %7016 = vmatprep.subr.mxu0 0.0
        %7017 = vmatpush1.msra.mxu0 0.0
        %7018 = vmatprep.subr.mxu0 0.0
        %7019 = vmatpush1.msra.mxu0 0.0
        %7020 = vmatprep.subr.mxu0 0.0
        %7021 = vmatpush1.msra.mxu0 0.0
        %7022 = vmatprep.subr.mxu0 0.0
        %7023 = vmatpush1.msra.mxu0 0.0
        %7024 = vmatprep.subr.mxu0 0.0
        %7025 = vmatpush1.msra.mxu0 0.0
        %7026 = vmatprep.subr.mxu0 0.0
        %7027 = vmatpush1.msra.mxu0 0.0
        %7028 = vmatprep.subr.mxu0 0.0
        %7029 = vmatpush1.msra.mxu0 0.0
        %7030 = vmatprep.subr.mxu0 0.0
        %7031 = vmatpush1.msra.mxu0 0.0
        %7032 = vmatprep.subr.mxu0 0.0
        %7033 = vmatpush1.msra.mxu0 0.0
        %7034 = vmatprep.mubr.f32.mxu0 0.0
        %7035 = vmatmul.mubr.f32.gmra.mrb[0].mxu0 %v6968
        %v7036 = vpop.f32.mrb[0].mxu0
        %v7037 = vadd.f32 %v6964, %v7036
        %v7038 = vpop.f32.mrb[0].mxu0
        %7039 = vdwg.mxu0
        %s7040 = scalar_lea.vmem [#allocation4], 4
        %v7041 = vld [vmem:[%s7040] ss:$50 sm:$0xff]
        %s7042 = scalar_lea.vmem [#allocation4], 5
        %v7043 = vld [vmem:[%s7042] ss:$50 sm:$0xff]
        %v7044 = vmax.f32 %v7041, %v7043
        %v7045 = vld [vmem:[%s5 + $0x40] sm:$0xff]
        %v7046 = vld [vmem:[%s5 + $0x48] sm:$0xff]
        %v7047 = vld [vmem:[%s5 + $0x50] sm:$0xff]
        %v7048 = vld [vmem:[%s5 + $0x58] sm:$0xff]
        %v7050 = vsel %vm5282, %v7044, 0
        %7052 = vmatprep.subr.mxu0 0.0
        %7053 = vmatpush1.msra.mxu0 %v7045
        %7054 = vmatprep.subr.mxu0 0.0
        %7055 = vmatpush1.msra.mxu0 %v7046
        %7056 = vmatprep.subr.mxu0 0.0
        %7057 = vmatpush1.msra.mxu0 %v7047
        %7058 = vmatprep.subr.mxu0 0.0
        %7059 = vmatpush1.msra.mxu0 %v7048
        %7060 = vmatprep.subr.mxu0 0.0
        %7061 = vmatpush1.msra.mxu0 0.0
        %7062 = vmatprep.subr.mxu0 0.0
        %7063 = vmatpush1.msra.mxu0 0.0
        %7064 = vmatprep.subr.mxu0 0.0
        %7065 = vmatpush1.msra.mxu0 0.0
        %7066 = vmatprep.subr.mxu0 0.0
        %7067 = vmatpush1.msra.mxu0 0.0
        %7068 = vmatprep.subr.mxu0 0.0
        %7069 = vmatpush1.msra.mxu0 0.0
        %7070 = vmatprep.subr.mxu0 0.0
        %7071 = vmatpush1.msra.mxu0 0.0
        %7072 = vmatprep.subr.mxu0 0.0
        %7073 = vmatpush1.msra.mxu0 0.0
        %7074 = vmatprep.subr.mxu0 0.0
        %7075 = vmatpush1.msra.mxu0 0.0
        %7076 = vmatprep.subr.mxu0 0.0
        %7077 = vmatpush1.msra.mxu0 0.0
        %7078 = vmatprep.subr.mxu0 0.0
        %7079 = vmatpush1.msra.mxu0 0.0
        %7080 = vmatprep.subr.mxu0 0.0
        %7081 = vmatpush1.msra.mxu0 0.0
        %7082 = vmatprep.subr.mxu0 0.0
        %7083 = vmatpush1.msra.mxu0 0.0
        %7084 = vmatprep.subr.mxu0 0.0
        %7085 = vmatpush1.msra.mxu0 0.0
        %7086 = vmatprep.subr.mxu0 0.0
        %7087 = vmatpush1.msra.mxu0 0.0
        %7088 = vmatprep.subr.mxu0 0.0
        %7089 = vmatpush1.msra.mxu0 0.0
        %7090 = vmatprep.subr.mxu0 0.0
        %7091 = vmatpush1.msra.mxu0 0.0
        %7092 = vmatprep.subr.mxu0 0.0
        %7093 = vmatpush1.msra.mxu0 0.0
        %7094 = vmatprep.subr.mxu0 0.0
        %7095 = vmatpush1.msra.mxu0 0.0
        %7096 = vmatprep.subr.mxu0 0.0
        %7097 = vmatpush1.msra.mxu0 0.0
        %7098 = vmatprep.subr.mxu0 0.0
        %7099 = vmatpush1.msra.mxu0 0.0
        %7100 = vmatprep.subr.mxu0 0.0
        %7101 = vmatpush1.msra.mxu0 0.0
        %7102 = vmatprep.subr.mxu0 0.0
        %7103 = vmatpush1.msra.mxu0 0.0
        %7104 = vmatprep.subr.mxu0 0.0
        %7105 = vmatpush1.msra.mxu0 0.0
        %7106 = vmatprep.subr.mxu0 0.0
        %7107 = vmatpush1.msra.mxu0 0.0
        %7108 = vmatprep.subr.mxu0 0.0
        %7109 = vmatpush1.msra.mxu0 0.0
        %7110 = vmatprep.subr.mxu0 0.0
        %7111 = vmatpush1.msra.mxu0 0.0
        %7112 = vmatprep.subr.mxu0 0.0
        %7113 = vmatpush1.msra.mxu0 0.0
        %7114 = vmatprep.subr.mxu0 0.0
        %7115 = vmatpush1.msra.mxu0 0.0
        %7116 = vmatprep.mubr.f32.mxu0 0.0
        %7117 = vmatmul.mubr.f32.gmra.mrb[0].mxu0 %v7050
        %v7118 = vpop.f32.mrb[0].mxu0
        %v7119 = vadd.f32 0.0, %v7118
        %v7120 = vpop.f32.mrb[0].mxu0
        %7121 = vdwg.mxu0
        %v7122 = vadd.f32 %v7037, %v7119
        %s7123 = scalar_lea.vmem [#allocation4], 6
        %v7124 = vld [vmem:[%s7123] ss:$50 sm:$0xff]
        %s7125 = scalar_lea.vmem [#allocation4], 7
        %v7126 = vld [vmem:[%s7125] ss:$50 sm:$0xff]
        %v7127 = vmax.f32 %v7124, %v7126
        %v7128 = vld [vmem:[%s5 + $0x60] sm:$0xff]
        %v7129 = vld [vmem:[%s5 + $0x68] sm:$0xff]
        %v7130 = vld [vmem:[%s5 + $0x70] sm:$0xff]
        %v7131 = vld [vmem:[%s5 + $0x78] sm:$0xff]
        %v7133 = vsel %vm5282, %v7127, 0
        %7135 = vmatprep.subr.mxu0 0.0
        %7136 = vmatpush1.msra.mxu0 %v7128
        %7137 = vmatprep.subr.mxu0 0.0
        %7138 = vmatpush1.msra.mxu0 %v7129
        %7139 = vmatprep.subr.mxu0 0.0
        %7140 = vmatpush1.msra.mxu0 %v7130
        %7141 = vmatprep.subr.mxu0 0.0
        %7142 = vmatpush1.msra.mxu0 %v7131
        %7143 = vmatprep.subr.mxu0 0.0
        %7144 = vmatpush1.msra.mxu0 0.0
        %7145 = vmatprep.subr.mxu0 0.0
        %7146 = vmatpush1.msra.mxu0 0.0
        %7147 = vmatprep.subr.mxu0 0.0
        %7148 = vmatpush1.msra.mxu0 0.0
        %7149 = vmatprep.subr.mxu0 0.0
        %7150 = vmatpush1.msra.mxu0 0.0
        %7151 = vmatprep.subr.mxu0 0.0
        %7152 = vmatpush1.msra.mxu0 0.0
        %7153 = vmatprep.subr.mxu0 0.0
        %7154 = vmatpush1.msra.mxu0 0.0
        %7155 = vmatprep.subr.mxu0 0.0
        %7156 = vmatpush1.msra.mxu0 0.0
        %7157 = vmatprep.subr.mxu0 0.0
        %7158 = vmatpush1.msra.mxu0 0.0
        %7159 = vmatprep.subr.mxu0 0.0
        %7160 = vmatpush1.msra.mxu0 0.0
        %7161 = vmatprep.subr.mxu0 0.0
        %7162 = vmatpush1.msra.mxu0 0.0
        %7163 = vmatprep.subr.mxu0 0.0
        %7164 = vmatpush1.msra.mxu0 0.0
        %7165 = vmatprep.subr.mxu0 0.0
        %7166 = vmatpush1.msra.mxu0 0.0
        %7167 = vmatprep.subr.mxu0 0.0
        %7168 = vmatpush1.msra.mxu0 0.0
        %7169 = vmatprep.subr.mxu0 0.0
        %7170 = vmatpush1.msra.mxu0 0.0
        %7171 = vmatprep.subr.mxu0 0.0
        %7172 = vmatpush1.msra.mxu0 0.0
        %7173 = vmatprep.subr.mxu0 0.0
        %7174 = vmatpush1.msra.mxu0 0.0
        %7175 = vmatprep.subr.mxu0 0.0
        %7176 = vmatpush1.msra.mxu0 0.0
        %7177 = vmatprep.subr.mxu0 0.0
        %7178 = vmatpush1.msra.mxu0 0.0
        %7179 = vmatprep.subr.mxu0 0.0
        %7180 = vmatpush1.msra.mxu0 0.0
        %7181 = vmatprep.subr.mxu0 0.0
        %7182 = vmatpush1.msra.mxu0 0.0
        %7183 = vmatprep.subr.mxu0 0.0
        %7184 = vmatpush1.msra.mxu0 0.0
        %7185 = vmatprep.subr.mxu0 0.0
        %7186 = vmatpush1.msra.mxu0 0.0
        %7187 = vmatprep.subr.mxu0 0.0
        %7188 = vmatpush1.msra.mxu0 0.0
        %7189 = vmatprep.subr.mxu0 0.0
        %7190 = vmatpush1.msra.mxu0 0.0
        %7191 = vmatprep.subr.mxu0 0.0
        %7192 = vmatpush1.msra.mxu0 0.0
        %7193 = vmatprep.subr.mxu0 0.0
        %7194 = vmatpush1.msra.mxu0 0.0
        %7195 = vmatprep.subr.mxu0 0.0
        %7196 = vmatpush1.msra.mxu0 0.0
        %7197 = vmatprep.subr.mxu0 0.0
        %7198 = vmatpush1.msra.mxu0 0.0
        %7199 = vmatprep.mubr.f32.mxu0 0.0
        %7200 = vmatmul.mubr.f32.gmra.mrb[0].mxu0 %v7133
        %v7201 = vpop.f32.mrb[0].mxu0
        %v7202 = vadd.f32 0.0, %v7201
        %v7203 = vpop.f32.mrb[0].mxu0
        %7204 = vdwg.mxu0
        %v7205 = vadd.f32 %v7122, %v7202
        %s7206 = scalar_lea.vmem [#allocation4], 8
        %v7207 = vld [vmem:[%s7206] ss:$50 sm:$0xff]
        %s7208 = scalar_lea.vmem [#allocation4], 9
        %v7209 = vld [vmem:[%s7208] ss:$50 sm:$0xff]
        %v7210 = vmax.f32 %v7207, %v7209
        %v7211 = vld [vmem:[%s5 + $0x80] sm:$0xff]
        %v7212 = vld [vmem:[%s5 + $0x88] sm:$0xff]
        %v7213 = vld [vmem:[%s5 + $0x90] sm:$0xff]
        %v7214 = vld [vmem:[%s5 + $0x98] sm:$0xff]
        %v7216 = vsel %vm5282, %v7210, 0
        %7218 = vmatprep.subr.mxu0 0.0
        %7219 = vmatpush1.msra.mxu0 %v7211
        %7220 = vmatprep.subr.mxu0 0.0
        %7221 = vmatpush1.msra.mxu0 %v7212
        %7222 = vmatprep.subr.mxu0 0.0
        %7223 = vmatpush1.msra.mxu0 %v7213
        %7224 = vmatprep.subr.mxu0 0.0
        %7225 = vmatpush1.msra.mxu0 %v7214
        %7226 = vmatprep.subr.mxu0 0.0
        %7227 = vmatpush1.msra.mxu0 0.0
        %7228 = vmatprep.subr.mxu0 0.0
        %7229 = vmatpush1.msra.mxu0 0.0
        %7230 = vmatprep.subr.mxu0 0.0
        %7231 = vmatpush1.msra.mxu0 0.0
        %7232 = vmatprep.subr.mxu0 0.0
        %7233 = vmatpush1.msra.mxu0 0.0
        %7234 = vmatprep.subr.mxu0 0.0
        %7235 = vmatpush1.msra.mxu0 0.0
        %7236 = vmatprep.subr.mxu0 0.0
        %7237 = vmatpush1.msra.mxu0 0.0
        %7238 = vmatprep.subr.mxu0 0.0
        %7239 = vmatpush1.msra.mxu0 0.0
        %7240 = vmatprep.subr.mxu0 0.0
        %7241 = vmatpush1.msra.mxu0 0.0
        %7242 = vmatprep.subr.mxu0 0.0
        %7243 = vmatpush1.msra.mxu0 0.0
        %7244 = vmatprep.subr.mxu0 0.0
        %7245 = vmatpush1.msra.mxu0 0.0
        %7246 = vmatprep.subr.mxu0 0.0
        %7247 = vmatpush1.msra.mxu0 0.0
        %7248 = vmatprep.subr.mxu0 0.0
        %7249 = vmatpush1.msra.mxu0 0.0
        %7250 = vmatprep.subr.mxu0 0.0
        %7251 = vmatpush1.msra.mxu0 0.0
        %7252 = vmatprep.subr.mxu0 0.0
        %7253 = vmatpush1.msra.mxu0 0.0
        %7254 = vmatprep.subr.mxu0 0.0
        %7255 = vmatpush1.msra.mxu0 0.0
        %7256 = vmatprep.subr.mxu0 0.0
        %7257 = vmatpush1.msra.mxu0 0.0
        %7258 = vmatprep.subr.mxu0 0.0
        %7259 = vmatpush1.msra.mxu0 0.0
        %7260 = vmatprep.subr.mxu0 0.0
        %7261 = vmatpush1.msra.mxu0 0.0
        %7262 = vmatprep.subr.mxu0 0.0
        %7263 = vmatpush1.msra.mxu0 0.0
        %7264 = vmatprep.subr.mxu0 0.0
        %7265 = vmatpush1.msra.mxu0 0.0
        %7266 = vmatprep.subr.mxu0 0.0
        %7267 = vmatpush1.msra.mxu0 0.0
        %7268 = vmatprep.subr.mxu0 0.0
        %7269 = vmatpush1.msra.mxu0 0.0
        %7270 = vmatprep.subr.mxu0 0.0
        %7271 = vmatpush1.msra.mxu0 0.0
        %7272 = vmatprep.subr.mxu0 0.0
        %7273 = vmatpush1.msra.mxu0 0.0
        %7274 = vmatprep.subr.mxu0 0.0
        %7275 = vmatpush1.msra.mxu0 0.0
        %7276 = vmatprep.subr.mxu0 0.0
        %7277 = vmatpush1.msra.mxu0 0.0
        %7278 = vmatprep.subr.mxu0 0.0
        %7279 = vmatpush1.msra.mxu0 0.0
        %7280 = vmatprep.subr.mxu0 0.0
        %7281 = vmatpush1.msra.mxu0 0.0
        %7282 = vmatprep.mubr.f32.mxu0 0.0
        %7283 = vmatmul.mubr.f32.gmra.mrb[0].mxu0 %v7216
        %v7284 = vpop.f32.mrb[0].mxu0
        %v7285 = vadd.f32 0.0, %v7284
        %v7286 = vpop.f32.mrb[0].mxu0
        %7287 = vdwg.mxu0
        %v7288 = vadd.f32 %v7205, %v7285
        %s7289 = scalar_lea.vmem [#allocation4], 10
        %v7290 = vld [vmem:[%s7289] ss:$50 sm:$0xff]
        %s7291 = scalar_lea.vmem [#allocation4], 11
        %v7292 = vld [vmem:[%s7291] ss:$50 sm:$0xff]
        %v7293 = vmax.f32 %v7290, %v7292
        %v7294 = vld [vmem:[%s5 + $0xa0] sm:$0xff]
        %v7295 = vld [vmem:[%s5 + $0xa8] sm:$0xff]
        %v7296 = vld [vmem:[%s5 + $0xb0] sm:$0xff]
        %v7297 = vld [vmem:[%s5 + $0xb8] sm:$0xff]
        %v7299 = vsel %vm5282, %v7293, 0
        %7301 = vmatprep.subr.mxu0 0.0
        %7302 = vmatpush1.msra.mxu0 %v7294
        %7303 = vmatprep.subr.mxu0 0.0
        %7304 = vmatpush1.msra.mxu0 %v7295
        %7305 = vmatprep.subr.mxu0 0.0
        %7306 = vmatpush1.msra.mxu0 %v7296
        %7307 = vmatprep.subr.mxu0 0.0
        %7308 = vmatpush1.msra.mxu0 %v7297
        %7309 = vmatprep.subr.mxu0 0.0
        %7310 = vmatpush1.msra.mxu0 0.0
        %7311 = vmatprep.subr.mxu0 0.0
        %7312 = vmatpush1.msra.mxu0 0.0
        %7313 = vmatprep.subr.mxu0 0.0
        %7314 = vmatpush1.msra.mxu0 0.0
        %7315 = vmatprep.subr.mxu0 0.0
        %7316 = vmatpush1.msra.mxu0 0.0
        %7317 = vmatprep.subr.mxu0 0.0
        %7318 = vmatpush1.msra.mxu0 0.0
        %7319 = vmatprep.subr.mxu0 0.0
        %7320 = vmatpush1.msra.mxu0 0.0
        %7321 = vmatprep.subr.mxu0 0.0
        %7322 = vmatpush1.msra.mxu0 0.0
        %7323 = vmatprep.subr.mxu0 0.0
        %7324 = vmatpush1.msra.mxu0 0.0
        %7325 = vmatprep.subr.mxu0 0.0
        %7326 = vmatpush1.msra.mxu0 0.0
        %7327 = vmatprep.subr.mxu0 0.0
        %7328 = vmatpush1.msra.mxu0 0.0
        %7329 = vmatprep.subr.mxu0 0.0
        %7330 = vmatpush1.msra.mxu0 0.0
        %7331 = vmatprep.subr.mxu0 0.0
        %7332 = vmatpush1.msra.mxu0 0.0
        %7333 = vmatprep.subr.mxu0 0.0
        %7334 = vmatpush1.msra.mxu0 0.0
        %7335 = vmatprep.subr.mxu0 0.0
        %7336 = vmatpush1.msra.mxu0 0.0
        %7337 = vmatprep.subr.mxu0 0.0
        %7338 = vmatpush1.msra.mxu0 0.0
        %7339 = vmatprep.subr.mxu0 0.0
        %7340 = vmatpush1.msra.mxu0 0.0
        %7341 = vmatprep.subr.mxu0 0.0
        %7342 = vmatpush1.msra.mxu0 0.0
        %7343 = vmatprep.subr.mxu0 0.0
        %7344 = vmatpush1.msra.mxu0 0.0
        %7345 = vmatprep.subr.mxu0 0.0
        %7346 = vmatpush1.msra.mxu0 0.0
        %7347 = vmatprep.subr.mxu0 0.0
        %7348 = vmatpush1.msra.mxu0 0.0
        %7349 = vmatprep.subr.mxu0 0.0
        %7350 = vmatpush1.msra.mxu0 0.0
        %7351 = vmatprep.subr.mxu0 0.0
        %7352 = vmatpush1.msra.mxu0 0.0
        %7353 = vmatprep.subr.mxu0 0.0
        %7354 = vmatpush1.msra.mxu0 0.0
        %7355 = vmatprep.subr.mxu0 0.0
        %7356 = vmatpush1.msra.mxu0 0.0
        %7357 = vmatprep.subr.mxu0 0.0
        %7358 = vmatpush1.msra.mxu0 0.0
        %7359 = vmatprep.subr.mxu0 0.0
        %7360 = vmatpush1.msra.mxu0 0.0
        %7361 = vmatprep.subr.mxu0 0.0
        %7362 = vmatpush1.msra.mxu0 0.0
        %7363 = vmatprep.subr.mxu0 0.0
        %7364 = vmatpush1.msra.mxu0 0.0
        %7365 = vmatprep.mubr.f32.mxu0 0.0
        %7366 = vmatmul.mubr.f32.gmra.mrb[0].mxu0 %v7299
        %v7367 = vpop.f32.mrb[0].mxu0
        %v7368 = vadd.f32 0.0, %v7367
        %v7369 = vpop.f32.mrb[0].mxu0
        %7370 = vdwg.mxu0
        %v7371 = vadd.f32 %v7288, %v7368
        %s7372 = scalar_lea.vmem [#allocation4], 12
        %v7373 = vld [vmem:[%s7372] ss:$50 sm:$0xff]
        %s7374 = scalar_lea.vmem [#allocation4], 13
        %v7375 = vld [vmem:[%s7374] ss:$50 sm:$0xff]
        %v7376 = vmax.f32 %v7373, %v7375
        %v7377 = vld [vmem:[%s5 + $0xc0] sm:$0xff]
        %v7378 = vld [vmem:[%s5 + $0xc8] sm:$0xff]
        %v7379 = vld [vmem:[%s5 + $0xd0] sm:$0xff]
        %v7380 = vld [vmem:[%s5 + $0xd8] sm:$0xff]
        %v7382 = vsel %vm5282, %v7376, 0
        %7384 = vmatprep.subr.mxu0 0.0
        %7385 = vmatpush1.msra.mxu0 %v7377
        %7386 = vmatprep.subr.mxu0 0.0
        %7387 = vmatpush1.msra.mxu0 %v7378
        %7388 = vmatprep.subr.mxu0 0.0
        %7389 = vmatpush1.msra.mxu0 %v7379
        %7390 = vmatprep.subr.mxu0 0.0
        %7391 = vmatpush1.msra.mxu0 %v7380
        %7392 = vmatprep.subr.mxu0 0.0
        %7393 = vmatpush1.msra.mxu0 0.0
        %7394 = vmatprep.subr.mxu0 0.0
        %7395 = vmatpush1.msra.mxu0 0.0
        %7396 = vmatprep.subr.mxu0 0.0
        %7397 = vmatpush1.msra.mxu0 0.0
        %7398 = vmatprep.subr.mxu0 0.0
        %7399 = vmatpush1.msra.mxu0 0.0
        %7400 = vmatprep.subr.mxu0 0.0
        %7401 = vmatpush1.msra.mxu0 0.0
        %7402 = vmatprep.subr.mxu0 0.0
        %7403 = vmatpush1.msra.mxu0 0.0
        %7404 = vmatprep.subr.mxu0 0.0
        %7405 = vmatpush1.msra.mxu0 0.0
        %7406 = vmatprep.subr.mxu0 0.0
        %7407 = vmatpush1.msra.mxu0 0.0
        %7408 = vmatprep.subr.mxu0 0.0
        %7409 = vmatpush1.msra.mxu0 0.0
        %7410 = vmatprep.subr.mxu0 0.0
        %7411 = vmatpush1.msra.mxu0 0.0
        %7412 = vmatprep.subr.mxu0 0.0
        %7413 = vmatpush1.msra.mxu0 0.0
        %7414 = vmatprep.subr.mxu0 0.0
        %7415 = vmatpush1.msra.mxu0 0.0
        %7416 = vmatprep.subr.mxu0 0.0
        %7417 = vmatpush1.msra.mxu0 0.0
        %7418 = vmatprep.subr.mxu0 0.0
        %7419 = vmatpush1.msra.mxu0 0.0
        %7420 = vmatprep.subr.mxu0 0.0
        %7421 = vmatpush1.msra.mxu0 0.0
        %7422 = vmatprep.subr.mxu0 0.0
        %7423 = vmatpush1.msra.mxu0 0.0
        %7424 = vmatprep.subr.mxu0 0.0
        %7425 = vmatpush1.msra.mxu0 0.0
        %7426 = vmatprep.subr.mxu0 0.0
        %7427 = vmatpush1.msra.mxu0 0.0
        %7428 = vmatprep.subr.mxu0 0.0
        %7429 = vmatpush1.msra.mxu0 0.0
        %7430 = vmatprep.subr.mxu0 0.0
        %7431 = vmatpush1.msra.mxu0 0.0
        %7432 = vmatprep.subr.mxu0 0.0
        %7433 = vmatpush1.msra.mxu0 0.0
        %7434 = vmatprep.subr.mxu0 0.0
        %7435 = vmatpush1.msra.mxu0 0.0
        %7436 = vmatprep.subr.mxu0 0.0
        %7437 = vmatpush1.msra.mxu0 0.0
        %7438 = vmatprep.subr.mxu0 0.0
        %7439 = vmatpush1.msra.mxu0 0.0
        %7440 = vmatprep.subr.mxu0 0.0
        %7441 = vmatpush1.msra.mxu0 0.0
        %7442 = vmatprep.subr.mxu0 0.0
        %7443 = vmatpush1.msra.mxu0 0.0
        %7444 = vmatprep.subr.mxu0 0.0
        %7445 = vmatpush1.msra.mxu0 0.0
        %7446 = vmatprep.subr.mxu0 0.0
        %7447 = vmatpush1.msra.mxu0 0.0
        %7448 = vmatprep.mubr.f32.mxu0 0.0
        %7449 = vmatmul.mubr.f32.gmra.mrb[0].mxu0 %v7382
        %v7450 = vpop.f32.mrb[0].mxu0
        %v7451 = vadd.f32 0.0, %v7450
        %v7452 = vpop.f32.mrb[0].mxu0
        %7453 = vdwg.mxu0
        %v7454 = vadd.f32 %v7371, %v7451
        %s7455 = scalar_lea.vmem [#allocation4], 14
        %v7456 = vld [vmem:[%s7455] ss:$50 sm:$0xff]
        %s7457 = scalar_lea.vmem [#allocation4], 15
        %v7458 = vld [vmem:[%s7457] ss:$50 sm:$0xff]
        %v7459 = vmax.f32 %v7456, %v7458
        %v7460 = vld [vmem:[%s5 + $0xe0] sm:$0xff]
        %v7461 = vld [vmem:[%s5 + $0xe8] sm:$0xff]
        %v7462 = vld [vmem:[%s5 + $0xf0] sm:$0xff]
        %v7463 = vld [vmem:[%s5 + $0xf8] sm:$0xff]
        %v7465 = vsel %vm5282, %v7459, 0
        %7467 = vmatprep.subr.mxu0 0.0
        %7468 = vmatpush1.msra.mxu0 %v7460
        %7469 = vmatprep.subr.mxu0 0.0
        %7470 = vmatpush1.msra.mxu0 %v7461
        %7471 = vmatprep.subr.mxu0 0.0
        %7472 = vmatpush1.msra.mxu0 %v7462
        %7473 = vmatprep.subr.mxu0 0.0
        %7474 = vmatpush1.msra.mxu0 %v7463
        %7475 = vmatprep.subr.mxu0 0.0
        %7476 = vmatpush1.msra.mxu0 0.0
        %7477 = vmatprep.subr.mxu0 0.0
        %7478 = vmatpush1.msra.mxu0 0.0
        %7479 = vmatprep.subr.mxu0 0.0
        %7480 = vmatpush1.msra.mxu0 0.0
        %7481 = vmatprep.subr.mxu0 0.0
        %7482 = vmatpush1.msra.mxu0 0.0
        %7483 = vmatprep.subr.mxu0 0.0
        %7484 = vmatpush1.msra.mxu0 0.0
        %7485 = vmatprep.subr.mxu0 0.0
        %7486 = vmatpush1.msra.mxu0 0.0
        %7487 = vmatprep.subr.mxu0 0.0
        %7488 = vmatpush1.msra.mxu0 0.0
        %7489 = vmatprep.subr.mxu0 0.0
        %7490 = vmatpush1.msra.mxu0 0.0
        %7491 = vmatprep.subr.mxu0 0.0
        %7492 = vmatpush1.msra.mxu0 0.0
        %7493 = vmatprep.subr.mxu0 0.0
        %7494 = vmatpush1.msra.mxu0 0.0
        %7495 = vmatprep.subr.mxu0 0.0
        %7496 = vmatpush1.msra.mxu0 0.0
        %7497 = vmatprep.subr.mxu0 0.0
        %7498 = vmatpush1.msra.mxu0 0.0
        %7499 = vmatprep.subr.mxu0 0.0
        %7500 = vmatpush1.msra.mxu0 0.0
        %7501 = vmatprep.subr.mxu0 0.0
        %7502 = vmatpush1.msra.mxu0 0.0
        %7503 = vmatprep.subr.mxu0 0.0
        %7504 = vmatpush1.msra.mxu0 0.0
        %7505 = vmatprep.subr.mxu0 0.0
        %7506 = vmatpush1.msra.mxu0 0.0
        %7507 = vmatprep.subr.mxu0 0.0
        %7508 = vmatpush1.msra.mxu0 0.0
        %7509 = vmatprep.subr.mxu0 0.0
        %7510 = vmatpush1.msra.mxu0 0.0
        %7511 = vmatprep.subr.mxu0 0.0
        %7512 = vmatpush1.msra.mxu0 0.0
        %7513 = vmatprep.subr.mxu0 0.0
        %7514 = vmatpush1.msra.mxu0 0.0
        %7515 = vmatprep.subr.mxu0 0.0
        %7516 = vmatpush1.msra.mxu0 0.0
        %7517 = vmatprep.subr.mxu0 0.0
        %7518 = vmatpush1.msra.mxu0 0.0
        %7519 = vmatprep.subr.mxu0 0.0
        %7520 = vmatpush1.msra.mxu0 0.0
        %7521 = vmatprep.subr.mxu0 0.0
        %7522 = vmatpush1.msra.mxu0 0.0
        %7523 = vmatprep.subr.mxu0 0.0
        %7524 = vmatpush1.msra.mxu0 0.0
        %7525 = vmatprep.subr.mxu0 0.0
        %7526 = vmatpush1.msra.mxu0 0.0
        %7527 = vmatprep.subr.mxu0 0.0
        %7528 = vmatpush1.msra.mxu0 0.0
        %7529 = vmatprep.subr.mxu0 0.0
        %7530 = vmatpush1.msra.mxu0 0.0
        %7531 = vmatprep.mubr.f32.mxu0 0.0
        %7532 = vmatmul.mubr.f32.gmra.mrb[0].mxu0 %v7465
        %v7533 = vpop.f32.mrb[0].mxu0
        %v7534 = vadd.f32 0.0, %v7533
        %v7535 = vpop.f32.mrb[0].mxu0
        %7536 = vdwg.mxu0
        %v7537 = vadd.f32 %v7454, %v7534
        %s7538 = scalar_lea.vmem [#allocation4], 16
        %v7539 = vld [vmem:[%s7538] ss:$50 sm:$0xff]
        %s7540 = scalar_lea.vmem [#allocation4], 17
        %v7541 = vld [vmem:[%s7540] ss:$50 sm:$0xff]
        %v7542 = vmax.f32 %v7539, %v7541
        %v7543 = vld [vmem:[%s5 + $0x100] sm:$0xff]
        %v7544 = vld [vmem:[%s5 + $0x108] sm:$0xff]
        %v7545 = vld [vmem:[%s5 + $0x110] sm:$0xff]
        %v7546 = vld [vmem:[%s5 + $0x118] sm:$0xff]
        %v7548 = vsel %vm5282, %v7542, 0
        %7550 = vmatprep.subr.mxu0 0.0
        %7551 = vmatpush1.msra.mxu0 %v7543
        %7552 = vmatprep.subr.mxu0 0.0
        %7553 = vmatpush1.msra.mxu0 %v7544
        %7554 = vmatprep.subr.mxu0 0.0
        %7555 = vmatpush1.msra.mxu0 %v7545
        %7556 = vmatprep.subr.mxu0 0.0
        %7557 = vmatpush1.msra.mxu0 %v7546
        %7558 = vmatprep.subr.mxu0 0.0
        %7559 = vmatpush1.msra.mxu0 0.0
        %7560 = vmatprep.subr.mxu0 0.0
        %7561 = vmatpush1.msra.mxu0 0.0
        %7562 = vmatprep.subr.mxu0 0.0
        %7563 = vmatpush1.msra.mxu0 0.0
        %7564 = vmatprep.subr.mxu0 0.0
        %7565 = vmatpush1.msra.mxu0 0.0
        %7566 = vmatprep.subr.mxu0 0.0
        %7567 = vmatpush1.msra.mxu0 0.0
        %7568 = vmatprep.subr.mxu0 0.0
        %7569 = vmatpush1.msra.mxu0 0.0
        %7570 = vmatprep.subr.mxu0 0.0
        %7571 = vmatpush1.msra.mxu0 0.0
        %7572 = vmatprep.subr.mxu0 0.0
        %7573 = vmatpush1.msra.mxu0 0.0
        %7574 = vmatprep.subr.mxu0 0.0
        %7575 = vmatpush1.msra.mxu0 0.0
        %7576 = vmatprep.subr.mxu0 0.0
        %7577 = vmatpush1.msra.mxu0 0.0
        %7578 = vmatprep.subr.mxu0 0.0
        %7579 = vmatpush1.msra.mxu0 0.0
        %7580 = vmatprep.subr.mxu0 0.0
        %7581 = vmatpush1.msra.mxu0 0.0
        %7582 = vmatprep.subr.mxu0 0.0
        %7583 = vmatpush1.msra.mxu0 0.0
        %7584 = vmatprep.subr.mxu0 0.0
        %7585 = vmatpush1.msra.mxu0 0.0
        %7586 = vmatprep.subr.mxu0 0.0
        %7587 = vmatpush1.msra.mxu0 0.0
        %7588 = vmatprep.subr.mxu0 0.0
        %7589 = vmatpush1.msra.mxu0 0.0
        %7590 = vmatprep.subr.mxu0 0.0
        %7591 = vmatpush1.msra.mxu0 0.0
        %7592 = vmatprep.subr.mxu0 0.0
        %7593 = vmatpush1.msra.mxu0 0.0
        %7594 = vmatprep.subr.mxu0 0.0
        %7595 = vmatpush1.msra.mxu0 0.0
        %7596 = vmatprep.subr.mxu0 0.0
        %7597 = vmatpush1.msra.mxu0 0.0
        %7598 = vmatprep.subr.mxu0 0.0
        %7599 = vmatpush1.msra.mxu0 0.0
        %7600 = vmatprep.subr.mxu0 0.0
        %7601 = vmatpush1.msra.mxu0 0.0
        %7602 = vmatprep.subr.mxu0 0.0
        %7603 = vmatpush1.msra.mxu0 0.0
        %7604 = vmatprep.subr.mxu0 0.0
        %7605 = vmatpush1.msra.mxu0 0.0
        %7606 = vmatprep.subr.mxu0 0.0
        %7607 = vmatpush1.msra.mxu0 0.0
        %7608 = vmatprep.subr.mxu0 0.0
        %7609 = vmatpush1.msra.mxu0 0.0
        %7610 = vmatprep.subr.mxu0 0.0
        %7611 = vmatpush1.msra.mxu0 0.0
        %7612 = vmatprep.subr.mxu0 0.0
        %7613 = vmatpush1.msra.mxu0 0.0
        %7614 = vmatprep.mubr.f32.mxu0 0.0
        %7615 = vmatmul.mubr.f32.gmra.mrb[0].mxu0 %v7548
        %v7616 = vpop.f32.mrb[0].mxu0
        %v7617 = vadd.f32 0.0, %v7616
        %v7618 = vpop.f32.mrb[0].mxu0
        %7619 = vdwg.mxu0
        %v7620 = vadd.f32 %v7537, %v7617
        %s7621 = scalar_lea.vmem [#allocation4], 18
        %v7622 = vld [vmem:[%s7621] ss:$50 sm:$0xff]
        %s7623 = scalar_lea.vmem [#allocation4], 19
        %v7624 = vld [vmem:[%s7623] ss:$50 sm:$0xff]
        %v7625 = vmax.f32 %v7622, %v7624
        %v7626 = vld [vmem:[%s5 + $0x120] sm:$0xff]
        %v7627 = vld [vmem:[%s5 + $0x128] sm:$0xff]
        %v7628 = vld [vmem:[%s5 + $0x130] sm:$0xff]
        %v7629 = vld [vmem:[%s5 + $0x138] sm:$0xff]
        %v7631 = vsel %vm5282, %v7625, 0
        %7633 = vmatprep.subr.mxu0 0.0
        %7634 = vmatpush1.msra.mxu0 %v7626
        %7635 = vmatprep.subr.mxu0 0.0
        %7636 = vmatpush1.msra.mxu0 %v7627
        %7637 = vmatprep.subr.mxu0 0.0
        %7638 = vmatpush1.msra.mxu0 %v7628
        %7639 = vmatprep.subr.mxu0 0.0
        %7640 = vmatpush1.msra.mxu0 %v7629
        %7641 = vmatprep.subr.mxu0 0.0
        %7642 = vmatpush1.msra.mxu0 0.0
        %7643 = vmatprep.subr.mxu0 0.0
        %7644 = vmatpush1.msra.mxu0 0.0
        %7645 = vmatprep.subr.mxu0 0.0
        %7646 = vmatpush1.msra.mxu0 0.0
        %7647 = vmatprep.subr.mxu0 0.0
        %7648 = vmatpush1.msra.mxu0 0.0
        %7649 = vmatprep.subr.mxu0 0.0
        %7650 = vmatpush1.msra.mxu0 0.0
        %7651 = vmatprep.subr.mxu0 0.0
        %7652 = vmatpush1.msra.mxu0 0.0
        %7653 = vmatprep.subr.mxu0 0.0
        %7654 = vmatpush1.msra.mxu0 0.0
        %7655 = vmatprep.subr.mxu0 0.0
        %7656 = vmatpush1.msra.mxu0 0.0
        %7657 = vmatprep.subr.mxu0 0.0
        %7658 = vmatpush1.msra.mxu0 0.0
        %7659 = vmatprep.subr.mxu0 0.0
        %7660 = vmatpush1.msra.mxu0 0.0
        %7661 = vmatprep.subr.mxu0 0.0
        %7662 = vmatpush1.msra.mxu0 0.0
        %7663 = vmatprep.subr.mxu0 0.0
        %7664 = vmatpush1.msra.mxu0 0.0
        %7665 = vmatprep.subr.mxu0 0.0
        %7666 = vmatpush1.msra.mxu0 0.0
        %7667 = vmatprep.subr.mxu0 0.0
        %7668 = vmatpush1.msra.mxu0 0.0
        %7669 = vmatprep.subr.mxu0 0.0
        %7670 = vmatpush1.msra.mxu0 0.0
        %7671 = vmatprep.subr.mxu0 0.0
        %7672 = vmatpush1.msra.mxu0 0.0
        %7673 = vmatprep.subr.mxu0 0.0
        %7674 = vmatpush1.msra.mxu0 0.0
        %7675 = vmatprep.subr.mxu0 0.0
        %7676 = vmatpush1.msra.mxu0 0.0
        %7677 = vmatprep.subr.mxu0 0.0
        %7678 = vmatpush1.msra.mxu0 0.0
        %7679 = vmatprep.subr.mxu0 0.0
        %7680 = vmatpush1.msra.mxu0 0.0
        %7681 = vmatprep.subr.mxu0 0.0
        %7682 = vmatpush1.msra.mxu0 0.0
        %7683 = vmatprep.subr.mxu0 0.0
        %7684 = vmatpush1.msra.mxu0 0.0
        %7685 = vmatprep.subr.mxu0 0.0
        %7686 = vmatpush1.msra.mxu0 0.0
        %7687 = vmatprep.subr.mxu0 0.0
        %7688 = vmatpush1.msra.mxu0 0.0
        %7689 = vmatprep.subr.mxu0 0.0
        %7690 = vmatpush1.msra.mxu0 0.0
        %7691 = vmatprep.subr.mxu0 0.0
        %7692 = vmatpush1.msra.mxu0 0.0
        %7693 = vmatprep.subr.mxu0 0.0
        %7694 = vmatpush1.msra.mxu0 0.0
        %7695 = vmatprep.subr.mxu0 0.0
        %7696 = vmatpush1.msra.mxu0 0.0
        %7697 = vmatprep.mubr.f32.mxu0 0.0
        %7698 = vmatmul.mubr.f32.gmra.mrb[0].mxu0 %v7631
        %v7699 = vpop.f32.mrb[0].mxu0
        %v7700 = vadd.f32 0.0, %v7699
        %v7701 = vpop.f32.mrb[0].mxu0
        %7702 = vdwg.mxu0
        %v7703 = vadd.f32 %v7620, %v7700
        %s7704 = scalar_lea.vmem [#allocation4], 20
        %v7705 = vld [vmem:[%s7704] ss:$50 sm:$0xff]
        %s7706 = scalar_lea.vmem [#allocation4], 21
        %v7707 = vld [vmem:[%s7706] ss:$50 sm:$0xff]
        %v7708 = vmax.f32 %v7705, %v7707
        %v7709 = vld [vmem:[%s5 + $0x140] sm:$0xff]
        %v7710 = vld [vmem:[%s5 + $0x148] sm:$0xff]
        %v7711 = vld [vmem:[%s5 + $0x150] sm:$0xff]
        %v7712 = vld [vmem:[%s5 + $0x158] sm:$0xff]
        %v7714 = vsel %vm5282, %v7708, 0
        %7716 = vmatprep.subr.mxu0 0.0
        %7717 = vmatpush1.msra.mxu0 %v7709
        %7718 = vmatprep.subr.mxu0 0.0
        %7719 = vmatpush1.msra.mxu0 %v7710
        %7720 = vmatprep.subr.mxu0 0.0
        %7721 = vmatpush1.msra.mxu0 %v7711
        %7722 = vmatprep.subr.mxu0 0.0
        %7723 = vmatpush1.msra.mxu0 %v7712
        %7724 = vmatprep.subr.mxu0 0.0
        %7725 = vmatpush1.msra.mxu0 0.0
        %7726 = vmatprep.subr.mxu0 0.0
        %7727 = vmatpush1.msra.mxu0 0.0
        %7728 = vmatprep.subr.mxu0 0.0
        %7729 = vmatpush1.msra.mxu0 0.0
        %7730 = vmatprep.subr.mxu0 0.0
        %7731 = vmatpush1.msra.mxu0 0.0
        %7732 = vmatprep.subr.mxu0 0.0
        %7733 = vmatpush1.msra.mxu0 0.0
        %7734 = vmatprep.subr.mxu0 0.0
        %7735 = vmatpush1.msra.mxu0 0.0
        %7736 = vmatprep.subr.mxu0 0.0
        %7737 = vmatpush1.msra.mxu0 0.0
        %7738 = vmatprep.subr.mxu0 0.0
        %7739 = vmatpush1.msra.mxu0 0.0
        %7740 = vmatprep.subr.mxu0 0.0
        %7741 = vmatpush1.msra.mxu0 0.0
        %7742 = vmatprep.subr.mxu0 0.0
        %7743 = vmatpush1.msra.mxu0 0.0
        %7744 = vmatprep.subr.mxu0 0.0
        %7745 = vmatpush1.msra.mxu0 0.0
        %7746 = vmatprep.subr.mxu0 0.0
        %7747 = vmatpush1.msra.mxu0 0.0
        %7748 = vmatprep.subr.mxu0 0.0
        %7749 = vmatpush1.msra.mxu0 0.0
        %7750 = vmatprep.subr.mxu0 0.0
        %7751 = vmatpush1.msra.mxu0 0.0
        %7752 = vmatprep.subr.mxu0 0.0
        %7753 = vmatpush1.msra.mxu0 0.0
        %7754 = vmatprep.subr.mxu0 0.0
        %7755 = vmatpush1.msra.mxu0 0.0
        %7756 = vmatprep.subr.mxu0 0.0
        %7757 = vmatpush1.msra.mxu0 0.0
        %7758 = vmatprep.subr.mxu0 0.0
        %7759 = vmatpush1.msra.mxu0 0.0
        %7760 = vmatprep.subr.mxu0 0.0
        %7761 = vmatpush1.msra.mxu0 0.0
        %7762 = vmatprep.subr.mxu0 0.0
        %7763 = vmatpush1.msra.mxu0 0.0
        %7764 = vmatprep.subr.mxu0 0.0
        %7765 = vmatpush1.msra.mxu0 0.0
        %7766 = vmatprep.subr.mxu0 0.0
        %7767 = vmatpush1.msra.mxu0 0.0
        %7768 = vmatprep.subr.mxu0 0.0
        %7769 = vmatpush1.msra.mxu0 0.0
        %7770 = vmatprep.subr.mxu0 0.0
        %7771 = vmatpush1.msra.mxu0 0.0
        %7772 = vmatprep.subr.mxu0 0.0
        %7773 = vmatpush1.msra.mxu0 0.0
        %7774 = vmatprep.subr.mxu0 0.0
        %7775 = vmatpush1.msra.mxu0 0.0
        %7776 = vmatprep.subr.mxu0 0.0
        %7777 = vmatpush1.msra.mxu0 0.0
        %7778 = vmatprep.subr.mxu0 0.0
        %7779 = vmatpush1.msra.mxu0 0.0
        %7780 = vmatprep.mubr.f32.mxu0 0.0
        %7781 = vmatmul.mubr.f32.gmra.mrb[0].mxu0 %v7714
        %v7782 = vpop.f32.mrb[0].mxu0
        %v7783 = vadd.f32 0.0, %v7782
        %v7784 = vpop.f32.mrb[0].mxu0
        %7785 = vdwg.mxu0
        %v7786 = vadd.f32 %v7703, %v7783
        %s7787 = scalar_lea.vmem [#allocation4], 22
        %v7788 = vld [vmem:[%s7787] ss:$50 sm:$0xff]
        %s7789 = scalar_lea.vmem [#allocation4], 23
        %v7790 = vld [vmem:[%s7789] ss:$50 sm:$0xff]
        %v7791 = vmax.f32 %v7788, %v7790
        %v7792 = vld [vmem:[%s5 + $0x160] sm:$0xff]
        %v7793 = vld [vmem:[%s5 + $0x168] sm:$0xff]
        %v7794 = vld [vmem:[%s5 + $0x170] sm:$0xff]
        %v7795 = vld [vmem:[%s5 + $0x178] sm:$0xff]
        %v7797 = vsel %vm5282, %v7791, 0
        %7799 = vmatprep.subr.mxu0 0.0
        %7800 = vmatpush1.msra.mxu0 %v7792
        %7801 = vmatprep.subr.mxu0 0.0
        %7802 = vmatpush1.msra.mxu0 %v7793
        %7803 = vmatprep.subr.mxu0 0.0
        %7804 = vmatpush1.msra.mxu0 %v7794
        %7805 = vmatprep.subr.mxu0 0.0
        %7806 = vmatpush1.msra.mxu0 %v7795
        %7807 = vmatprep.subr.mxu0 0.0
        %7808 = vmatpush1.msra.mxu0 0.0
        %7809 = vmatprep.subr.mxu0 0.0
        %7810 = vmatpush1.msra.mxu0 0.0
        %7811 = vmatprep.subr.mxu0 0.0
        %7812 = vmatpush1.msra.mxu0 0.0
        %7813 = vmatprep.subr.mxu0 0.0
        %7814 = vmatpush1.msra.mxu0 0.0
        %7815 = vmatprep.subr.mxu0 0.0
        %7816 = vmatpush1.msra.mxu0 0.0
        %7817 = vmatprep.subr.mxu0 0.0
        %7818 = vmatpush1.msra.mxu0 0.0
        %7819 = vmatprep.subr.mxu0 0.0
        %7820 = vmatpush1.msra.mxu0 0.0
        %7821 = vmatprep.subr.mxu0 0.0
        %7822 = vmatpush1.msra.mxu0 0.0
        %7823 = vmatprep.subr.mxu0 0.0
        %7824 = vmatpush1.msra.mxu0 0.0
        %7825 = vmatprep.subr.mxu0 0.0
        %7826 = vmatpush1.msra.mxu0 0.0
        %7827 = vmatprep.subr.mxu0 0.0
        %7828 = vmatpush1.msra.mxu0 0.0
        %7829 = vmatprep.subr.mxu0 0.0
        %7830 = vmatpush1.msra.mxu0 0.0
        %7831 = vmatprep.subr.mxu0 0.0
        %7832 = vmatpush1.msra.mxu0 0.0
        %7833 = vmatprep.subr.mxu0 0.0
        %7834 = vmatpush1.msra.mxu0 0.0
        %7835 = vmatprep.subr.mxu0 0.0
        %7836 = vmatpush1.msra.mxu0 0.0
        %7837 = vmatprep.subr.mxu0 0.0
        %7838 = vmatpush1.msra.mxu0 0.0
        %7839 = vmatprep.subr.mxu0 0.0
        %7840 = vmatpush1.msra.mxu0 0.0
        %7841 = vmatprep.subr.mxu0 0.0
        %7842 = vmatpush1.msra.mxu0 0.0
        %7843 = vmatprep.subr.mxu0 0.0
        %7844 = vmatpush1.msra.mxu0 0.0
        %7845 = vmatprep.subr.mxu0 0.0
        %7846 = vmatpush1.msra.mxu0 0.0
        %7847 = vmatprep.subr.mxu0 0.0
        %7848 = vmatpush1.msra.mxu0 0.0
        %7849 = vmatprep.subr.mxu0 0.0
        %7850 = vmatpush1.msra.mxu0 0.0
        %7851 = vmatprep.subr.mxu0 0.0
        %7852 = vmatpush1.msra.mxu0 0.0
        %7853 = vmatprep.subr.mxu0 0.0
        %7854 = vmatpush1.msra.mxu0 0.0
        %7855 = vmatprep.subr.mxu0 0.0
        %7856 = vmatpush1.msra.mxu0 0.0
        %7857 = vmatprep.subr.mxu0 0.0
        %7858 = vmatpush1.msra.mxu0 0.0
        %7859 = vmatprep.subr.mxu0 0.0
        %7860 = vmatpush1.msra.mxu0 0.0
        %7861 = vmatprep.subr.mxu0 0.0
        %7862 = vmatpush1.msra.mxu0 0.0
        %7863 = vmatprep.mubr.f32.mxu0 0.0
        %7864 = vmatmul.mubr.f32.gmra.mrb[0].mxu0 %v7797
        %v7865 = vpop.f32.mrb[0].mxu0
        %v7866 = vadd.f32 0.0, %v7865
        %v7867 = vpop.f32.mrb[0].mxu0
        %7868 = vdwg.mxu0
        %v7869 = vadd.f32 %v7786, %v7866
        %s7870 = scalar_lea.vmem [#allocation4], 24
        %v7871 = vld [vmem:[%s7870] ss:$50 sm:$0xff]
        %s7872 = scalar_lea.vmem [#allocation4], 25
        %v7873 = vld [vmem:[%s7872] ss:$50 sm:$0xff]
        %v7874 = vmax.f32 %v7871, %v7873
        %v7875 = vld [vmem:[%s5 + $0x180] sm:$0xff]
        %v7876 = vld [vmem:[%s5 + $0x188] sm:$0xff]
        %v7877 = vld [vmem:[%s5 + $0x190] sm:$0xff]
        %v7878 = vld [vmem:[%s5 + $0x198] sm:$0xff]
        %v7880 = vsel %vm5282, %v7874, 0
        %7882 = vmatprep.subr.mxu0 0.0
        %7883 = vmatpush1.msra.mxu0 %v7875
        %7884 = vmatprep.subr.mxu0 0.0
        %7885 = vmatpush1.msra.mxu0 %v7876
        %7886 = vmatprep.subr.mxu0 0.0
        %7887 = vmatpush1.msra.mxu0 %v7877
        %7888 = vmatprep.subr.mxu0 0.0
        %7889 = vmatpush1.msra.mxu0 %v7878
        %7890 = vmatprep.subr.mxu0 0.0
        %7891 = vmatpush1.msra.mxu0 0.0
        %7892 = vmatprep.subr.mxu0 0.0
        %7893 = vmatpush1.msra.mxu0 0.0
        %7894 = vmatprep.subr.mxu0 0.0
        %7895 = vmatpush1.msra.mxu0 0.0
        %7896 = vmatprep.subr.mxu0 0.0
        %7897 = vmatpush1.msra.mxu0 0.0
        %7898 = vmatprep.subr.mxu0 0.0
        %7899 = vmatpush1.msra.mxu0 0.0
        %7900 = vmatprep.subr.mxu0 0.0
        %7901 = vmatpush1.msra.mxu0 0.0
        %7902 = vmatprep.subr.mxu0 0.0
        %7903 = vmatpush1.msra.mxu0 0.0
        %7904 = vmatprep.subr.mxu0 0.0
        %7905 = vmatpush1.msra.mxu0 0.0
        %7906 = vmatprep.subr.mxu0 0.0
        %7907 = vmatpush1.msra.mxu0 0.0
        %7908 = vmatprep.subr.mxu0 0.0
        %7909 = vmatpush1.msra.mxu0 0.0
        %7910 = vmatprep.subr.mxu0 0.0
        %7911 = vmatpush1.msra.mxu0 0.0
        %7912 = vmatprep.subr.mxu0 0.0
        %7913 = vmatpush1.msra.mxu0 0.0
        %7914 = vmatprep.subr.mxu0 0.0
        %7915 = vmatpush1.msra.mxu0 0.0
        %7916 = vmatprep.subr.mxu0 0.0
        %7917 = vmatpush1.msra.mxu0 0.0
        %7918 = vmatprep.subr.mxu0 0.0
        %7919 = vmatpush1.msra.mxu0 0.0
        %7920 = vmatprep.subr.mxu0 0.0
        %7921 = vmatpush1.msra.mxu0 0.0
        %7922 = vmatprep.subr.mxu0 0.0
        %7923 = vmatpush1.msra.mxu0 0.0
        %7924 = vmatprep.subr.mxu0 0.0
        %7925 = vmatpush1.msra.mxu0 0.0
        %7926 = vmatprep.subr.mxu0 0.0
        %7927 = vmatpush1.msra.mxu0 0.0
        %7928 = vmatprep.subr.mxu0 0.0
        %7929 = vmatpush1.msra.mxu0 0.0
        %7930 = vmatprep.subr.mxu0 0.0
        %7931 = vmatpush1.msra.mxu0 0.0
        %7932 = vmatprep.subr.mxu0 0.0
        %7933 = vmatpush1.msra.mxu0 0.0
        %7934 = vmatprep.subr.mxu0 0.0
        %7935 = vmatpush1.msra.mxu0 0.0
        %7936 = vmatprep.subr.mxu0 0.0
        %7937 = vmatpush1.msra.mxu0 0.0
        %7938 = vmatprep.subr.mxu0 0.0
        %7939 = vmatpush1.msra.mxu0 0.0
        %7940 = vmatprep.subr.mxu0 0.0
        %7941 = vmatpush1.msra.mxu0 0.0
        %7942 = vmatprep.subr.mxu0 0.0
        %7943 = vmatpush1.msra.mxu0 0.0
        %7944 = vmatprep.subr.mxu0 0.0
        %7945 = vmatpush1.msra.mxu0 0.0
        %7946 = vmatprep.mubr.f32.mxu0 0.0
        %7947 = vmatmul.mubr.f32.gmra.mrb[0].mxu0 %v7880
        %v7948 = vpop.f32.mrb[0].mxu0
        %v7949 = vadd.f32 0.0, %v7948
        %v7950 = vpop.f32.mrb[0].mxu0
        %7951 = vdwg.mxu0
        %v7952 = vadd.f32 %v7869, %v7949
        %s7953 = scalar_lea.vmem [#allocation4], 26
        %v7954 = vld [vmem:[%s7953] ss:$50 sm:$0xff]
        %s7955 = scalar_lea.vmem [#allocation4], 27
        %v7956 = vld [vmem:[%s7955] ss:$50 sm:$0xff]
        %v7957 = vmax.f32 %v7954, %v7956
        %v7958 = vld [vmem:[%s5 + $0x1a0] sm:$0xff]
        %v7959 = vld [vmem:[%s5 + $0x1a8] sm:$0xff]
        %v7960 = vld [vmem:[%s5 + $0x1b0] sm:$0xff]
        %v7961 = vld [vmem:[%s5 + $0x1b8] sm:$0xff]
        %v7963 = vsel %vm5282, %v7957, 0
        %7965 = vmatprep.subr.mxu0 0.0
        %7966 = vmatpush1.msra.mxu0 %v7958
        %7967 = vmatprep.subr.mxu0 0.0
        %7968 = vmatpush1.msra.mxu0 %v7959
        %7969 = vmatprep.subr.mxu0 0.0
        %7970 = vmatpush1.msra.mxu0 %v7960
        %7971 = vmatprep.subr.mxu0 0.0
        %7972 = vmatpush1.msra.mxu0 %v7961
        %7973 = vmatprep.subr.mxu0 0.0
        %7974 = vmatpush1.msra.mxu0 0.0
        %7975 = vmatprep.subr.mxu0 0.0
        %7976 = vmatpush1.msra.mxu0 0.0
        %7977 = vmatprep.subr.mxu0 0.0
        %7978 = vmatpush1.msra.mxu0 0.0
        %7979 = vmatprep.subr.mxu0 0.0
        %7980 = vmatpush1.msra.mxu0 0.0
        %7981 = vmatprep.subr.mxu0 0.0
        %7982 = vmatpush1.msra.mxu0 0.0
        %7983 = vmatprep.subr.mxu0 0.0
        %7984 = vmatpush1.msra.mxu0 0.0
        %7985 = vmatprep.subr.mxu0 0.0
        %7986 = vmatpush1.msra.mxu0 0.0
        %7987 = vmatprep.subr.mxu0 0.0
        %7988 = vmatpush1.msra.mxu0 0.0
        %7989 = vmatprep.subr.mxu0 0.0
        %7990 = vmatpush1.msra.mxu0 0.0
        %7991 = vmatprep.subr.mxu0 0.0
        %7992 = vmatpush1.msra.mxu0 0.0
        %7993 = vmatprep.subr.mxu0 0.0
        %7994 = vmatpush1.msra.mxu0 0.0
        %7995 = vmatprep.subr.mxu0 0.0
        %7996 = vmatpush1.msra.mxu0 0.0
        %7997 = vmatprep.subr.mxu0 0.0
        %7998 = vmatpush1.msra.mxu0 0.0
        %7999 = vmatprep.subr.mxu0 0.0
        %8000 = vmatpush1.msra.mxu0 0.0
        %8001 = vmatprep.subr.mxu0 0.0
        %8002 = vmatpush1.msra.mxu0 0.0
        %8003 = vmatprep.subr.mxu0 0.0
        %8004 = vmatpush1.msra.mxu0 0.0
        %8005 = vmatprep.subr.mxu0 0.0
        %8006 = vmatpush1.msra.mxu0 0.0
        %8007 = vmatprep.subr.mxu0 0.0
        %8008 = vmatpush1.msra.mxu0 0.0
        %8009 = vmatprep.subr.mxu0 0.0
        %8010 = vmatpush1.msra.mxu0 0.0
        %8011 = vmatprep.subr.mxu0 0.0
        %8012 = vmatpush1.msra.mxu0 0.0
        %8013 = vmatprep.subr.mxu0 0.0
        %8014 = vmatpush1.msra.mxu0 0.0
        %8015 = vmatprep.subr.mxu0 0.0
        %8016 = vmatpush1.msra.mxu0 0.0
        %8017 = vmatprep.subr.mxu0 0.0
        %8018 = vmatpush1.msra.mxu0 0.0
        %8019 = vmatprep.subr.mxu0 0.0
        %8020 = vmatpush1.msra.mxu0 0.0
        %8021 = vmatprep.subr.mxu0 0.0
        %8022 = vmatpush1.msra.mxu0 0.0
        %8023 = vmatprep.subr.mxu0 0.0
        %8024 = vmatpush1.msra.mxu0 0.0
        %8025 = vmatprep.subr.mxu0 0.0
        %8026 = vmatpush1.msra.mxu0 0.0
        %8027 = vmatprep.subr.mxu0 0.0
        %8028 = vmatpush1.msra.mxu0 0.0
        %8029 = vmatprep.mubr.f32.mxu0 0.0
        %8030 = vmatmul.mubr.f32.gmra.mrb[0].mxu0 %v7963
        %v8031 = vpop.f32.mrb[0].mxu0
        %v8032 = vadd.f32 0.0, %v8031
        %v8033 = vpop.f32.mrb[0].mxu0
        %8034 = vdwg.mxu0
        %v8035 = vadd.f32 %v7952, %v8032
        %s8036 = scalar_lea.vmem [#allocation4], 28
        %v8037 = vld [vmem:[%s8036] ss:$50 sm:$0xff]
        %s8038 = scalar_lea.vmem [#allocation4], 29
        %v8039 = vld [vmem:[%s8038] ss:$50 sm:$0xff]
        %v8040 = vmax.f32 %v8037, %v8039
        %v8041 = vld [vmem:[%s5 + $0x1c0] sm:$0xff]
        %v8042 = vld [vmem:[%s5 + $0x1c8] sm:$0xff]
        %v8043 = vld [vmem:[%s5 + $0x1d0] sm:$0xff]
        %v8044 = vld [vmem:[%s5 + $0x1d8] sm:$0xff]
        %v8046 = vsel %vm5282, %v8040, 0
        %8048 = vmatprep.subr.mxu0 0.0
        %8049 = vmatpush1.msra.mxu0 %v8041
        %8050 = vmatprep.subr.mxu0 0.0
        %8051 = vmatpush1.msra.mxu0 %v8042
        %8052 = vmatprep.subr.mxu0 0.0
        %8053 = vmatpush1.msra.mxu0 %v8043
        %8054 = vmatprep.subr.mxu0 0.0
        %8055 = vmatpush1.msra.mxu0 %v8044
        %8056 = vmatprep.subr.mxu0 0.0
        %8057 = vmatpush1.msra.mxu0 0.0
        %8058 = vmatprep.subr.mxu0 0.0
        %8059 = vmatpush1.msra.mxu0 0.0
        %8060 = vmatprep.subr.mxu0 0.0
        %8061 = vmatpush1.msra.mxu0 0.0
        %8062 = vmatprep.subr.mxu0 0.0
        %8063 = vmatpush1.msra.mxu0 0.0
        %8064 = vmatprep.subr.mxu0 0.0
        %8065 = vmatpush1.msra.mxu0 0.0
        %8066 = vmatprep.subr.mxu0 0.0
        %8067 = vmatpush1.msra.mxu0 0.0
        %8068 = vmatprep.subr.mxu0 0.0
        %8069 = vmatpush1.msra.mxu0 0.0
        %8070 = vmatprep.subr.mxu0 0.0
        %8071 = vmatpush1.msra.mxu0 0.0
        %8072 = vmatprep.subr.mxu0 0.0
        %8073 = vmatpush1.msra.mxu0 0.0
        %8074 = vmatprep.subr.mxu0 0.0
        %8075 = vmatpush1.msra.mxu0 0.0
        %8076 = vmatprep.subr.mxu0 0.0
        %8077 = vmatpush1.msra.mxu0 0.0
        %8078 = vmatprep.subr.mxu0 0.0
        %8079 = vmatpush1.msra.mxu0 0.0
        %8080 = vmatprep.subr.mxu0 0.0
        %8081 = vmatpush1.msra.mxu0 0.0
        %8082 = vmatprep.subr.mxu0 0.0
        %8083 = vmatpush1.msra.mxu0 0.0
        %8084 = vmatprep.subr.mxu0 0.0
        %8085 = vmatpush1.msra.mxu0 0.0
        %8086 = vmatprep.subr.mxu0 0.0
        %8087 = vmatpush1.msra.mxu0 0.0
        %8088 = vmatprep.subr.mxu0 0.0
        %8089 = vmatpush1.msra.mxu0 0.0
        %8090 = vmatprep.subr.mxu0 0.0
        %8091 = vmatpush1.msra.mxu0 0.0
        %8092 = vmatprep.subr.mxu0 0.0
        %8093 = vmatpush1.msra.mxu0 0.0
        %8094 = vmatprep.subr.mxu0 0.0
        %8095 = vmatpush1.msra.mxu0 0.0
        %8096 = vmatprep.subr.mxu0 0.0
        %8097 = vmatpush1.msra.mxu0 0.0
        %8098 = vmatprep.subr.mxu0 0.0
        %8099 = vmatpush1.msra.mxu0 0.0
        %8100 = vmatprep.subr.mxu0 0.0
        %8101 = vmatpush1.msra.mxu0 0.0
        %8102 = vmatprep.subr.mxu0 0.0
        %8103 = vmatpush1.msra.mxu0 0.0
        %8104 = vmatprep.subr.mxu0 0.0
        %8105 = vmatpush1.msra.mxu0 0.0
        %8106 = vmatprep.subr.mxu0 0.0
        %8107 = vmatpush1.msra.mxu0 0.0
        %8108 = vmatprep.subr.mxu0 0.0
        %8109 = vmatpush1.msra.mxu0 0.0
        %8110 = vmatprep.subr.mxu0 0.0
        %8111 = vmatpush1.msra.mxu0 0.0
        %8112 = vmatprep.mubr.f32.mxu0 0.0
        %8113 = vmatmul.mubr.f32.gmra.mrb[0].mxu0 %v8046
        %v8114 = vpop.f32.mrb[0].mxu0
        %v8115 = vadd.f32 0.0, %v8114
        %v8116 = vpop.f32.mrb[0].mxu0
        %8117 = vdwg.mxu0
        %v8118 = vadd.f32 %v8035, %v8115
        %s8119 = scalar_lea.vmem [#allocation4], 30
        %v8120 = vld [vmem:[%s8119] ss:$50 sm:$0xff]
        %s8121 = scalar_lea.vmem [#allocation4], 31
        %v8122 = vld [vmem:[%s8121] ss:$50 sm:$0xff]
        %v8123 = vmax.f32 %v8120, %v8122
        %v8124 = vld [vmem:[%s5 + $0x1e0] sm:$0xff]
        %v8125 = vld [vmem:[%s5 + $0x1e8] sm:$0xff]
        %v8126 = vld [vmem:[%s5 + $0x1f0] sm:$0xff]
        %v8127 = vld [vmem:[%s5 + $0x1f8] sm:$0xff]
        %v8129 = vsel %vm5282, %v8123, 0
        %8131 = vmatprep.subr.mxu0 0.0
        %8132 = vmatpush1.msra.mxu0 %v8124
        %8133 = vmatprep.subr.mxu0 0.0
        %8134 = vmatpush1.msra.mxu0 %v8125
        %8135 = vmatprep.subr.mxu0 0.0
        %8136 = vmatpush1.msra.mxu0 %v8126
        %8137 = vmatprep.subr.mxu0 0.0
        %8138 = vmatpush1.msra.mxu0 %v8127
        %8139 = vmatprep.subr.mxu0 0.0
        %8140 = vmatpush1.msra.mxu0 0.0
        %8141 = vmatprep.subr.mxu0 0.0
        %8142 = vmatpush1.msra.mxu0 0.0
        %8143 = vmatprep.subr.mxu0 0.0
        %8144 = vmatpush1.msra.mxu0 0.0
        %8145 = vmatprep.subr.mxu0 0.0
        %8146 = vmatpush1.msra.mxu0 0.0
        %8147 = vmatprep.subr.mxu0 0.0
        %8148 = vmatpush1.msra.mxu0 0.0
        %8149 = vmatprep.subr.mxu0 0.0
        %8150 = vmatpush1.msra.mxu0 0.0
        %8151 = vmatprep.subr.mxu0 0.0
        %8152 = vmatpush1.msra.mxu0 0.0
        %8153 = vmatprep.subr.mxu0 0.0
        %8154 = vmatpush1.msra.mxu0 0.0
        %8155 = vmatprep.subr.mxu0 0.0
        %8156 = vmatpush1.msra.mxu0 0.0
        %8157 = vmatprep.subr.mxu0 0.0
        %8158 = vmatpush1.msra.mxu0 0.0
        %8159 = vmatprep.subr.mxu0 0.0
        %8160 = vmatpush1.msra.mxu0 0.0
        %8161 = vmatprep.subr.mxu0 0.0
        %8162 = vmatpush1.msra.mxu0 0.0
        %8163 = vmatprep.subr.mxu0 0.0
        %8164 = vmatpush1.msra.mxu0 0.0
        %8165 = vmatprep.subr.mxu0 0.0
        %8166 = vmatpush1.msra.mxu0 0.0
        %8167 = vmatprep.subr.mxu0 0.0
        %8168 = vmatpush1.msra.mxu0 0.0
        %8169 = vmatprep.subr.mxu0 0.0
        %8170 = vmatpush1.msra.mxu0 0.0
        %8171 = vmatprep.subr.mxu0 0.0
        %8172 = vmatpush1.msra.mxu0 0.0
        %8173 = vmatprep.subr.mxu0 0.0
        %8174 = vmatpush1.msra.mxu0 0.0
        %8175 = vmatprep.subr.mxu0 0.0
        %8176 = vmatpush1.msra.mxu0 0.0
        %8177 = vmatprep.subr.mxu0 0.0
        %8178 = vmatpush1.msra.mxu0 0.0
        %8179 = vmatprep.subr.mxu0 0.0
        %8180 = vmatpush1.msra.mxu0 0.0
        %8181 = vmatprep.subr.mxu0 0.0
        %8182 = vmatpush1.msra.mxu0 0.0
        %8183 = vmatprep.subr.mxu0 0.0
        %8184 = vmatpush1.msra.mxu0 0.0
        %8185 = vmatprep.subr.mxu0 0.0
        %8186 = vmatpush1.msra.mxu0 0.0
        %8187 = vmatprep.subr.mxu0 0.0
        %8188 = vmatpush1.msra.mxu0 0.0
        %8189 = vmatprep.subr.mxu0 0.0
        %8190 = vmatpush1.msra.mxu0 0.0
        %8191 = vmatprep.subr.mxu0 0.0
        %8192 = vmatpush1.msra.mxu0 0.0
        %8193 = vmatprep.subr.mxu0 0.0
        %8194 = vmatpush1.msra.mxu0 0.0
        %8195 = vmatprep.mubr.f32.mxu0 0.0
        %8196 = vmatmul.mubr.f32.gmra.mrb[0].mxu0 %v8129
        %v8197 = vpop.f32.mrb[0].mxu0
        %v8198 = vadd.f32 0.0, %v8197
        %v8199 = vpop.f32.mrb[0].mxu0
        %8200 = vdwg.mxu0
        %v8201 = vadd.f32 %v8118, %v8198
        %s8202 = scalar_lea.vmem [#allocation4], 32
        %v8203 = vld [vmem:[%s8202] ss:$50 sm:$0xff]
        %s8204 = scalar_lea.vmem [#allocation4], 33
        %v8205 = vld [vmem:[%s8204] ss:$50 sm:$0xff]
        %v8206 = vmax.f32 %v8203, %v8205
        %v8207 = vld [vmem:[%s5 + $0x200] sm:$0xff]
        %v8208 = vld [vmem:[%s5 + $0x208] sm:$0xff]
        %v8209 = vld [vmem:[%s5 + $0x210] sm:$0xff]
        %v8210 = vld [vmem:[%s5 + $0x218] sm:$0xff]
        %v8212 = vsel %vm5282, %v8206, 0
        %8214 = vmatprep.subr.mxu0 0.0
        %8215 = vmatpush1.msra.mxu0 %v8207
        %8216 = vmatprep.subr.mxu0 0.0
        %8217 = vmatpush1.msra.mxu0 %v8208
        %8218 = vmatprep.subr.mxu0 0.0
        %8219 = vmatpush1.msra.mxu0 %v8209
        %8220 = vmatprep.subr.mxu0 0.0
        %8221 = vmatpush1.msra.mxu0 %v8210
        %8222 = vmatprep.subr.mxu0 0.0
        %8223 = vmatpush1.msra.mxu0 0.0
        %8224 = vmatprep.subr.mxu0 0.0
        %8225 = vmatpush1.msra.mxu0 0.0
        %8226 = vmatprep.subr.mxu0 0.0
        %8227 = vmatpush1.msra.mxu0 0.0
        %8228 = vmatprep.subr.mxu0 0.0
        %8229 = vmatpush1.msra.mxu0 0.0
        %8230 = vmatprep.subr.mxu0 0.0
        %8231 = vmatpush1.msra.mxu0 0.0
        %8232 = vmatprep.subr.mxu0 0.0
        %8233 = vmatpush1.msra.mxu0 0.0
        %8234 = vmatprep.subr.mxu0 0.0
        %8235 = vmatpush1.msra.mxu0 0.0
        %8236 = vmatprep.subr.mxu0 0.0
        %8237 = vmatpush1.msra.mxu0 0.0
        %8238 = vmatprep.subr.mxu0 0.0
        %8239 = vmatpush1.msra.mxu0 0.0
        %8240 = vmatprep.subr.mxu0 0.0
        %8241 = vmatpush1.msra.mxu0 0.0
        %8242 = vmatprep.subr.mxu0 0.0
        %8243 = vmatpush1.msra.mxu0 0.0
        %8244 = vmatprep.subr.mxu0 0.0
        %8245 = vmatpush1.msra.mxu0 0.0
        %8246 = vmatprep.subr.mxu0 0.0
        %8247 = vmatpush1.msra.mxu0 0.0
        %8248 = vmatprep.subr.mxu0 0.0
        %8249 = vmatpush1.msra.mxu0 0.0
        %8250 = vmatprep.subr.mxu0 0.0
        %8251 = vmatpush1.msra.mxu0 0.0
        %8252 = vmatprep.subr.mxu0 0.0
        %8253 = vmatpush1.msra.mxu0 0.0
        %8254 = vmatprep.subr.mxu0 0.0
        %8255 = vmatpush1.msra.mxu0 0.0
        %8256 = vmatprep.subr.mxu0 0.0
        %8257 = vmatpush1.msra.mxu0 0.0
        %8258 = vmatprep.subr.mxu0 0.0
        %8259 = vmatpush1.msra.mxu0 0.0
        %8260 = vmatprep.subr.mxu0 0.0
        %8261 = vmatpush1.msra.mxu0 0.0
        %8262 = vmatprep.subr.mxu0 0.0
        %8263 = vmatpush1.msra.mxu0 0.0
        %8264 = vmatprep.subr.mxu0 0.0
        %8265 = vmatpush1.msra.mxu0 0.0
        %8266 = vmatprep.subr.mxu0 0.0
        %8267 = vmatpush1.msra.mxu0 0.0
        %8268 = vmatprep.subr.mxu0 0.0
        %8269 = vmatpush1.msra.mxu0 0.0
        %8270 = vmatprep.subr.mxu0 0.0
        %8271 = vmatpush1.msra.mxu0 0.0
        %8272 = vmatprep.subr.mxu0 0.0
        %8273 = vmatpush1.msra.mxu0 0.0
        %8274 = vmatprep.subr.mxu0 0.0
        %8275 = vmatpush1.msra.mxu0 0.0
        %8276 = vmatprep.subr.mxu0 0.0
        %8277 = vmatpush1.msra.mxu0 0.0
        %8278 = vmatprep.mubr.f32.mxu0 0.0
        %8279 = vmatmul.mubr.f32.gmra.mrb[0].mxu0 %v8212
        %v8280 = vpop.f32.mrb[0].mxu0
        %v8281 = vadd.f32 0.0, %v8280
        %v8282 = vpop.f32.mrb[0].mxu0
        %8283 = vdwg.mxu0
        %v8284 = vadd.f32 %v8201, %v8281
        %s8285 = scalar_lea.vmem [#allocation4], 34
        %v8286 = vld [vmem:[%s8285] ss:$50 sm:$0xff]
        %s8287 = scalar_lea.vmem [#allocation4], 35
        %v8288 = vld [vmem:[%s8287] ss:$50 sm:$0xff]
        %v8289 = vmax.f32 %v8286, %v8288
        %v8290 = vld [vmem:[%s5 + $0x220] sm:$0xff]
        %v8291 = vld [vmem:[%s5 + $0x228] sm:$0xff]
        %v8292 = vld [vmem:[%s5 + $0x230] sm:$0xff]
        %v8293 = vld [vmem:[%s5 + $0x238] sm:$0xff]
        %v8295 = vsel %vm5282, %v8289, 0
        %8297 = vmatprep.subr.mxu0 0.0
        %8298 = vmatpush1.msra.mxu0 %v8290
        %8299 = vmatprep.subr.mxu0 0.0
        %8300 = vmatpush1.msra.mxu0 %v8291
        %8301 = vmatprep.subr.mxu0 0.0
        %8302 = vmatpush1.msra.mxu0 %v8292
        %8303 = vmatprep.subr.mxu0 0.0
        %8304 = vmatpush1.msra.mxu0 %v8293
        %8305 = vmatprep.subr.mxu0 0.0
        %8306 = vmatpush1.msra.mxu0 0.0
        %8307 = vmatprep.subr.mxu0 0.0
        %8308 = vmatpush1.msra.mxu0 0.0
        %8309 = vmatprep.subr.mxu0 0.0
        %8310 = vmatpush1.msra.mxu0 0.0
        %8311 = vmatprep.subr.mxu0 0.0
        %8312 = vmatpush1.msra.mxu0 0.0
        %8313 = vmatprep.subr.mxu0 0.0
        %8314 = vmatpush1.msra.mxu0 0.0
        %8315 = vmatprep.subr.mxu0 0.0
        %8316 = vmatpush1.msra.mxu0 0.0
        %8317 = vmatprep.subr.mxu0 0.0
        %8318 = vmatpush1.msra.mxu0 0.0
        %8319 = vmatprep.subr.mxu0 0.0
        %8320 = vmatpush1.msra.mxu0 0.0
        %8321 = vmatprep.subr.mxu0 0.0
        %8322 = vmatpush1.msra.mxu0 0.0
        %8323 = vmatprep.subr.mxu0 0.0
        %8324 = vmatpush1.msra.mxu0 0.0
        %8325 = vmatprep.subr.mxu0 0.0
        %8326 = vmatpush1.msra.mxu0 0.0
        %8327 = vmatprep.subr.mxu0 0.0
        %8328 = vmatpush1.msra.mxu0 0.0
        %8329 = vmatprep.subr.mxu0 0.0
        %8330 = vmatpush1.msra.mxu0 0.0
        %8331 = vmatprep.subr.mxu0 0.0
        %8332 = vmatpush1.msra.mxu0 0.0
        %8333 = vmatprep.subr.mxu0 0.0
        %8334 = vmatpush1.msra.mxu0 0.0
        %8335 = vmatprep.subr.mxu0 0.0
        %8336 = vmatpush1.msra.mxu0 0.0
        %8337 = vmatprep.subr.mxu0 0.0
        %8338 = vmatpush1.msra.mxu0 0.0
        %8339 = vmatprep.subr.mxu0 0.0
        %8340 = vmatpush1.msra.mxu0 0.0
        %8341 = vmatprep.subr.mxu0 0.0
        %8342 = vmatpush1.msra.mxu0 0.0
        %8343 = vmatprep.subr.mxu0 0.0
        %8344 = vmatpush1.msra.mxu0 0.0
        %8345 = vmatprep.subr.mxu0 0.0
        %8346 = vmatpush1.msra.mxu0 0.0
        %8347 = vmatprep.subr.mxu0 0.0
        %8348 = vmatpush1.msra.mxu0 0.0
        %8349 = vmatprep.subr.mxu0 0.0
        %8350 = vmatpush1.msra.mxu0 0.0
        %8351 = vmatprep.subr.mxu0 0.0
        %8352 = vmatpush1.msra.mxu0 0.0
        %8353 = vmatprep.subr.mxu0 0.0
        %8354 = vmatpush1.msra.mxu0 0.0
        %8355 = vmatprep.subr.mxu0 0.0
        %8356 = vmatpush1.msra.mxu0 0.0
        %8357 = vmatprep.subr.mxu0 0.0
        %8358 = vmatpush1.msra.mxu0 0.0
        %8359 = vmatprep.subr.mxu0 0.0
        %8360 = vmatpush1.msra.mxu0 0.0
        %8361 = vmatprep.mubr.f32.mxu0 0.0
        %8362 = vmatmul.mubr.f32.gmra.mrb[0].mxu0 %v8295
        %v8363 = vpop.f32.mrb[0].mxu0
        %v8364 = vadd.f32 0.0, %v8363
        %v8365 = vpop.f32.mrb[0].mxu0
        %8366 = vdwg.mxu0
        %v8367 = vadd.f32 %v8284, %v8364
        %s8368 = scalar_lea.vmem [#allocation4], 36
        %v8369 = vld [vmem:[%s8368] ss:$50 sm:$0xff]
        %s8370 = scalar_lea.vmem [#allocation4], 37
        %v8371 = vld [vmem:[%s8370] ss:$50 sm:$0xff]
        %v8372 = vmax.f32 %v8369, %v8371
        %v8373 = vld [vmem:[%s5 + $0x240] sm:$0xff]
        %v8374 = vld [vmem:[%s5 + $0x248] sm:$0xff]
        %v8375 = vld [vmem:[%s5 + $0x250] sm:$0xff]
        %v8376 = vld [vmem:[%s5 + $0x258] sm:$0xff]
        %v8378 = vsel %vm5282, %v8372, 0
        %8380 = vmatprep.subr.mxu0 0.0
        %8381 = vmatpush1.msra.mxu0 %v8373
        %8382 = vmatprep.subr.mxu0 0.0
        %8383 = vmatpush1.msra.mxu0 %v8374
        %8384 = vmatprep.subr.mxu0 0.0
        %8385 = vmatpush1.msra.mxu0 %v8375
        %8386 = vmatprep.subr.mxu0 0.0
        %8387 = vmatpush1.msra.mxu0 %v8376
        %8388 = vmatprep.subr.mxu0 0.0
        %8389 = vmatpush1.msra.mxu0 0.0
        %8390 = vmatprep.subr.mxu0 0.0
        %8391 = vmatpush1.msra.mxu0 0.0
        %8392 = vmatprep.subr.mxu0 0.0
        %8393 = vmatpush1.msra.mxu0 0.0
        %8394 = vmatprep.subr.mxu0 0.0
        %8395 = vmatpush1.msra.mxu0 0.0
        %8396 = vmatprep.subr.mxu0 0.0
        %8397 = vmatpush1.msra.mxu0 0.0
        %8398 = vmatprep.subr.mxu0 0.0
        %8399 = vmatpush1.msra.mxu0 0.0
        %8400 = vmatprep.subr.mxu0 0.0
        %8401 = vmatpush1.msra.mxu0 0.0
        %8402 = vmatprep.subr.mxu0 0.0
        %8403 = vmatpush1.msra.mxu0 0.0
        %8404 = vmatprep.subr.mxu0 0.0
        %8405 = vmatpush1.msra.mxu0 0.0
        %8406 = vmatprep.subr.mxu0 0.0
        %8407 = vmatpush1.msra.mxu0 0.0
        %8408 = vmatprep.subr.mxu0 0.0
        %8409 = vmatpush1.msra.mxu0 0.0
        %8410 = vmatprep.subr.mxu0 0.0
        %8411 = vmatpush1.msra.mxu0 0.0
        %8412 = vmatprep.subr.mxu0 0.0
        %8413 = vmatpush1.msra.mxu0 0.0
        %8414 = vmatprep.subr.mxu0 0.0
        %8415 = vmatpush1.msra.mxu0 0.0
        %8416 = vmatprep.subr.mxu0 0.0
        %8417 = vmatpush1.msra.mxu0 0.0
        %8418 = vmatprep.subr.mxu0 0.0
        %8419 = vmatpush1.msra.mxu0 0.0
        %8420 = vmatprep.subr.mxu0 0.0
        %8421 = vmatpush1.msra.mxu0 0.0
        %8422 = vmatprep.subr.mxu0 0.0
        %8423 = vmatpush1.msra.mxu0 0.0
        %8424 = vmatprep.subr.mxu0 0.0
        %8425 = vmatpush1.msra.mxu0 0.0
        %8426 = vmatprep.subr.mxu0 0.0
        %8427 = vmatpush1.msra.mxu0 0.0
        %8428 = vmatprep.subr.mxu0 0.0
        %8429 = vmatpush1.msra.mxu0 0.0
        %8430 = vmatprep.subr.mxu0 0.0
        %8431 = vmatpush1.msra.mxu0 0.0
        %8432 = vmatprep.subr.mxu0 0.0
        %8433 = vmatpush1.msra.mxu0 0.0
        %8434 = vmatprep.subr.mxu0 0.0
        %8435 = vmatpush1.msra.mxu0 0.0
        %8436 = vmatprep.subr.mxu0 0.0
        %8437 = vmatpush1.msra.mxu0 0.0
        %8438 = vmatprep.subr.mxu0 0.0
        %8439 = vmatpush1.msra.mxu0 0.0
        %8440 = vmatprep.subr.mxu0 0.0
        %8441 = vmatpush1.msra.mxu0 0.0
        %8442 = vmatprep.subr.mxu0 0.0
        %8443 = vmatpush1.msra.mxu0 0.0
        %8444 = vmatprep.mubr.f32.mxu0 0.0
        %8445 = vmatmul.mubr.f32.gmra.mrb[0].mxu0 %v8378
        %v8446 = vpop.f32.mrb[0].mxu0
        %v8447 = vadd.f32 0.0, %v8446
        %v8448 = vpop.f32.mrb[0].mxu0
        %8449 = vdwg.mxu0
        %v8450 = vadd.f32 %v8367, %v8447
        %s8451 = scalar_lea.vmem [#allocation4], 38
        %v8452 = vld [vmem:[%s8451] ss:$50 sm:$0xff]
        %s8453 = scalar_lea.vmem [#allocation4], 39
        %v8454 = vld [vmem:[%s8453] ss:$50 sm:$0xff]
        %v8455 = vmax.f32 %v8452, %v8454
        %v8456 = vld [vmem:[%s5 + $0x260] sm:$0xff]
        %v8457 = vld [vmem:[%s5 + $0x268] sm:$0xff]
        %v8458 = vld [vmem:[%s5 + $0x270] sm:$0xff]
        %v8459 = vld [vmem:[%s5 + $0x278] sm:$0xff]
        %v8461 = vsel %vm5282, %v8455, 0
        %8463 = vmatprep.subr.mxu0 0.0
        %8464 = vmatpush1.msra.mxu0 %v8456
        %8465 = vmatprep.subr.mxu0 0.0
        %8466 = vmatpush1.msra.mxu0 %v8457
        %8467 = vmatprep.subr.mxu0 0.0
        %8468 = vmatpush1.msra.mxu0 %v8458
        %8469 = vmatprep.subr.mxu0 0.0
        %8470 = vmatpush1.msra.mxu0 %v8459
        %8471 = vmatprep.subr.mxu0 0.0
        %8472 = vmatpush1.msra.mxu0 0.0
        %8473 = vmatprep.subr.mxu0 0.0
        %8474 = vmatpush1.msra.mxu0 0.0
        %8475 = vmatprep.subr.mxu0 0.0
        %8476 = vmatpush1.msra.mxu0 0.0
        %8477 = vmatprep.subr.mxu0 0.0
        %8478 = vmatpush1.msra.mxu0 0.0
        %8479 = vmatprep.subr.mxu0 0.0
        %8480 = vmatpush1.msra.mxu0 0.0
        %8481 = vmatprep.subr.mxu0 0.0
        %8482 = vmatpush1.msra.mxu0 0.0
        %8483 = vmatprep.subr.mxu0 0.0
        %8484 = vmatpush1.msra.mxu0 0.0
        %8485 = vmatprep.subr.mxu0 0.0
        %8486 = vmatpush1.msra.mxu0 0.0
        %8487 = vmatprep.subr.mxu0 0.0
        %8488 = vmatpush1.msra.mxu0 0.0
        %8489 = vmatprep.subr.mxu0 0.0
        %8490 = vmatpush1.msra.mxu0 0.0
        %8491 = vmatprep.subr.mxu0 0.0
        %8492 = vmatpush1.msra.mxu0 0.0
        %8493 = vmatprep.subr.mxu0 0.0
        %8494 = vmatpush1.msra.mxu0 0.0
        %8495 = vmatprep.subr.mxu0 0.0
        %8496 = vmatpush1.msra.mxu0 0.0
        %8497 = vmatprep.subr.mxu0 0.0
        %8498 = vmatpush1.msra.mxu0 0.0
        %8499 = vmatprep.subr.mxu0 0.0
        %8500 = vmatpush1.msra.mxu0 0.0
        %8501 = vmatprep.subr.mxu0 0.0
        %8502 = vmatpush1.msra.mxu0 0.0
        %8503 = vmatprep.subr.mxu0 0.0
        %8504 = vmatpush1.msra.mxu0 0.0
        %8505 = vmatprep.subr.mxu0 0.0
        %8506 = vmatpush1.msra.mxu0 0.0
        %8507 = vmatprep.subr.mxu0 0.0
        %8508 = vmatpush1.msra.mxu0 0.0
        %8509 = vmatprep.subr.mxu0 0.0
        %8510 = vmatpush1.msra.mxu0 0.0
        %8511 = vmatprep.subr.mxu0 0.0
        %8512 = vmatpush1.msra.mxu0 0.0
        %8513 = vmatprep.subr.mxu0 0.0
        %8514 = vmatpush1.msra.mxu0 0.0
        %8515 = vmatprep.subr.mxu0 0.0
        %8516 = vmatpush1.msra.mxu0 0.0
        %8517 = vmatprep.subr.mxu0 0.0
        %8518 = vmatpush1.msra.mxu0 0.0
        %8519 = vmatprep.subr.mxu0 0.0
        %8520 = vmatpush1.msra.mxu0 0.0
        %8521 = vmatprep.subr.mxu0 0.0
        %8522 = vmatpush1.msra.mxu0 0.0
        %8523 = vmatprep.subr.mxu0 0.0
        %8524 = vmatpush1.msra.mxu0 0.0
        %8525 = vmatprep.subr.mxu0 0.0
        %8526 = vmatpush1.msra.mxu0 0.0
        %8527 = vmatprep.mubr.f32.mxu0 0.0
        %8528 = vmatmul.mubr.f32.gmra.mrb[0].mxu0 %v8461
        %v8529 = vpop.f32.mrb[0].mxu0
        %v8530 = vadd.f32 0.0, %v8529
        %v8531 = vpop.f32.mrb[0].mxu0
        %8532 = vdwg.mxu0
        %v8533 = vadd.f32 %v8450, %v8530
        %s8534 = scalar_lea.vmem [#allocation4], 40
        %v8535 = vld [vmem:[%s8534] ss:$50 sm:$0xff]
        %s8536 = scalar_lea.vmem [#allocation4], 41
        %v8537 = vld [vmem:[%s8536] ss:$50 sm:$0xff]
        %v8538 = vmax.f32 %v8535, %v8537
        %v8539 = vld [vmem:[%s5 + $0x280] sm:$0xff]
        %v8540 = vld [vmem:[%s5 + $0x288] sm:$0xff]
        %v8541 = vld [vmem:[%s5 + $0x290] sm:$0xff]
        %v8542 = vld [vmem:[%s5 + $0x298] sm:$0xff]
        %v8544 = vsel %vm5282, %v8538, 0
        %8546 = vmatprep.subr.mxu0 0.0
        %8547 = vmatpush1.msra.mxu0 %v8539
        %8548 = vmatprep.subr.mxu0 0.0
        %8549 = vmatpush1.msra.mxu0 %v8540
        %8550 = vmatprep.subr.mxu0 0.0
        %8551 = vmatpush1.msra.mxu0 %v8541
        %8552 = vmatprep.subr.mxu0 0.0
        %8553 = vmatpush1.msra.mxu0 %v8542
        %8554 = vmatprep.subr.mxu0 0.0
        %8555 = vmatpush1.msra.mxu0 0.0
        %8556 = vmatprep.subr.mxu0 0.0
        %8557 = vmatpush1.msra.mxu0 0.0
        %8558 = vmatprep.subr.mxu0 0.0
        %8559 = vmatpush1.msra.mxu0 0.0
        %8560 = vmatprep.subr.mxu0 0.0
        %8561 = vmatpush1.msra.mxu0 0.0
        %8562 = vmatprep.subr.mxu0 0.0
        %8563 = vmatpush1.msra.mxu0 0.0
        %8564 = vmatprep.subr.mxu0 0.0
        %8565 = vmatpush1.msra.mxu0 0.0
        %8566 = vmatprep.subr.mxu0 0.0
        %8567 = vmatpush1.msra.mxu0 0.0
        %8568 = vmatprep.subr.mxu0 0.0
        %8569 = vmatpush1.msra.mxu0 0.0
        %8570 = vmatprep.subr.mxu0 0.0
        %8571 = vmatpush1.msra.mxu0 0.0
        %8572 = vmatprep.subr.mxu0 0.0
        %8573 = vmatpush1.msra.mxu0 0.0
        %8574 = vmatprep.subr.mxu0 0.0
        %8575 = vmatpush1.msra.mxu0 0.0
        %8576 = vmatprep.subr.mxu0 0.0
        %8577 = vmatpush1.msra.mxu0 0.0
        %8578 = vmatprep.subr.mxu0 0.0
        %8579 = vmatpush1.msra.mxu0 0.0
        %8580 = vmatprep.subr.mxu0 0.0
        %8581 = vmatpush1.msra.mxu0 0.0
        %8582 = vmatprep.subr.mxu0 0.0
        %8583 = vmatpush1.msra.mxu0 0.0
        %8584 = vmatprep.subr.mxu0 0.0
        %8585 = vmatpush1.msra.mxu0 0.0
        %8586 = vmatprep.subr.mxu0 0.0
        %8587 = vmatpush1.msra.mxu0 0.0
        %8588 = vmatprep.subr.mxu0 0.0
        %8589 = vmatpush1.msra.mxu0 0.0
        %8590 = vmatprep.subr.mxu0 0.0
        %8591 = vmatpush1.msra.mxu0 0.0
        %8592 = vmatprep.subr.mxu0 0.0
        %8593 = vmatpush1.msra.mxu0 0.0
        %8594 = vmatprep.subr.mxu0 0.0
        %8595 = vmatpush1.msra.mxu0 0.0
        %8596 = vmatprep.subr.mxu0 0.0
        %8597 = vmatpush1.msra.mxu0 0.0
        %8598 = vmatprep.subr.mxu0 0.0
        %8599 = vmatpush1.msra.mxu0 0.0
        %8600 = vmatprep.subr.mxu0 0.0
        %8601 = vmatpush1.msra.mxu0 0.0
        %8602 = vmatprep.subr.mxu0 0.0
        %8603 = vmatpush1.msra.mxu0 0.0
        %8604 = vmatprep.subr.mxu0 0.0
        %8605 = vmatpush1.msra.mxu0 0.0
        %8606 = vmatprep.subr.mxu0 0.0
        %8607 = vmatpush1.msra.mxu0 0.0
        %8608 = vmatprep.subr.mxu0 0.0
        %8609 = vmatpush1.msra.mxu0 0.0
        %8610 = vmatprep.mubr.f32.mxu0 0.0
        %8611 = vmatmul.mubr.f32.gmra.mrb[0].mxu0 %v8544
        %v8612 = vpop.f32.mrb[0].mxu0
        %v8613 = vadd.f32 0.0, %v8612
        %v8614 = vpop.f32.mrb[0].mxu0
        %8615 = vdwg.mxu0
        %v8616 = vadd.f32 %v8533, %v8613
        %s8617 = scalar_lea.vmem [#allocation4], 42
        %v8618 = vld [vmem:[%s8617] ss:$50 sm:$0xff]
        %s8619 = scalar_lea.vmem [#allocation4], 43
        %v8620 = vld [vmem:[%s8619] ss:$50 sm:$0xff]
        %v8621 = vmax.f32 %v8618, %v8620
        %v8622 = vld [vmem:[%s5 + $0x2a0] sm:$0xff]
        %v8623 = vld [vmem:[%s5 + $0x2a8] sm:$0xff]
        %v8624 = vld [vmem:[%s5 + $0x2b0] sm:$0xff]
        %v8625 = vld [vmem:[%s5 + $0x2b8] sm:$0xff]
        %v8627 = vsel %vm5282, %v8621, 0
        %8629 = vmatprep.subr.mxu0 0.0
        %8630 = vmatpush1.msra.mxu0 %v8622
        %8631 = vmatprep.subr.mxu0 0.0
        %8632 = vmatpush1.msra.mxu0 %v8623
        %8633 = vmatprep.subr.mxu0 0.0
        %8634 = vmatpush1.msra.mxu0 %v8624
        %8635 = vmatprep.subr.mxu0 0.0
        %8636 = vmatpush1.msra.mxu0 %v8625
        %8637 = vmatprep.subr.mxu0 0.0
        %8638 = vmatpush1.msra.mxu0 0.0
        %8639 = vmatprep.subr.mxu0 0.0
        %8640 = vmatpush1.msra.mxu0 0.0
        %8641 = vmatprep.subr.mxu0 0.0
        %8642 = vmatpush1.msra.mxu0 0.0
        %8643 = vmatprep.subr.mxu0 0.0
        %8644 = vmatpush1.msra.mxu0 0.0
        %8645 = vmatprep.subr.mxu0 0.0
        %8646 = vmatpush1.msra.mxu0 0.0
        %8647 = vmatprep.subr.mxu0 0.0
        %8648 = vmatpush1.msra.mxu0 0.0
        %8649 = vmatprep.subr.mxu0 0.0
        %8650 = vmatpush1.msra.mxu0 0.0
        %8651 = vmatprep.subr.mxu0 0.0
        %8652 = vmatpush1.msra.mxu0 0.0
        %8653 = vmatprep.subr.mxu0 0.0
        %8654 = vmatpush1.msra.mxu0 0.0
        %8655 = vmatprep.subr.mxu0 0.0
        %8656 = vmatpush1.msra.mxu0 0.0
        %8657 = vmatprep.subr.mxu0 0.0
        %8658 = vmatpush1.msra.mxu0 0.0
        %8659 = vmatprep.subr.mxu0 0.0
        %8660 = vmatpush1.msra.mxu0 0.0
        %8661 = vmatprep.subr.mxu0 0.0
        %8662 = vmatpush1.msra.mxu0 0.0
        %8663 = vmatprep.subr.mxu0 0.0
        %8664 = vmatpush1.msra.mxu0 0.0
        %8665 = vmatprep.subr.mxu0 0.0
        %8666 = vmatpush1.msra.mxu0 0.0
        %8667 = vmatprep.subr.mxu0 0.0
        %8668 = vmatpush1.msra.mxu0 0.0
        %8669 = vmatprep.subr.mxu0 0.0
        %8670 = vmatpush1.msra.mxu0 0.0
        %8671 = vmatprep.subr.mxu0 0.0
        %8672 = vmatpush1.msra.mxu0 0.0
        %8673 = vmatprep.subr.mxu0 0.0
        %8674 = vmatpush1.msra.mxu0 0.0
        %8675 = vmatprep.subr.mxu0 0.0
        %8676 = vmatpush1.msra.mxu0 0.0
        %8677 = vmatprep.subr.mxu0 0.0
        %8678 = vmatpush1.msra.mxu0 0.0
        %8679 = vmatprep.subr.mxu0 0.0
        %8680 = vmatpush1.msra.mxu0 0.0
        %8681 = vmatprep.subr.mxu0 0.0
        %8682 = vmatpush1.msra.mxu0 0.0
        %8683 = vmatprep.subr.mxu0 0.0
        %8684 = vmatpush1.msra.mxu0 0.0
        %8685 = vmatprep.subr.mxu0 0.0
        %8686 = vmatpush1.msra.mxu0 0.0
        %8687 = vmatprep.subr.mxu0 0.0
        %8688 = vmatpush1.msra.mxu0 0.0
        %8689 = vmatprep.subr.mxu0 0.0
        %8690 = vmatpush1.msra.mxu0 0.0
        %8691 = vmatprep.subr.mxu0 0.0
        %8692 = vmatpush1.msra.mxu0 0.0
        %8693 = vmatprep.mubr.f32.mxu0 0.0
        %8694 = vmatmul.mubr.f32.gmra.mrb[0].mxu0 %v8627
        %v8695 = vpop.f32.mrb[0].mxu0
        %v8696 = vadd.f32 0.0, %v8695
        %v8697 = vpop.f32.mrb[0].mxu0
        %8698 = vdwg.mxu0
        %v8699 = vadd.f32 %v8616, %v8696
        %s8700 = scalar_lea.vmem [#allocation4], 44
        %v8701 = vld [vmem:[%s8700] ss:$50 sm:$0xff]
        %s8702 = scalar_lea.vmem [#allocation4], 45
        %v8703 = vld [vmem:[%s8702] ss:$50 sm:$0xff]
        %v8704 = vmax.f32 %v8701, %v8703
        %v8705 = vld [vmem:[%s5 + $0x2c0] sm:$0xff]
        %v8706 = vld [vmem:[%s5 + $0x2c8] sm:$0xff]
        %v8707 = vld [vmem:[%s5 + $0x2d0] sm:$0xff]
        %v8708 = vld [vmem:[%s5 + $0x2d8] sm:$0xff]
        %v8710 = vsel %vm5282, %v8704, 0
        %8712 = vmatprep.subr.mxu0 0.0
        %8713 = vmatpush1.msra.mxu0 %v8705
        %8714 = vmatprep.subr.mxu0 0.0
        %8715 = vmatpush1.msra.mxu0 %v8706
        %8716 = vmatprep.subr.mxu0 0.0
        %8717 = vmatpush1.msra.mxu0 %v8707
        %8718 = vmatprep.subr.mxu0 0.0
        %8719 = vmatpush1.msra.mxu0 %v8708
        %8720 = vmatprep.subr.mxu0 0.0
        %8721 = vmatpush1.msra.mxu0 0.0
        %8722 = vmatprep.subr.mxu0 0.0
        %8723 = vmatpush1.msra.mxu0 0.0
        %8724 = vmatprep.subr.mxu0 0.0
        %8725 = vmatpush1.msra.mxu0 0.0
        %8726 = vmatprep.subr.mxu0 0.0
        %8727 = vmatpush1.msra.mxu0 0.0
        %8728 = vmatprep.subr.mxu0 0.0
        %8729 = vmatpush1.msra.mxu0 0.0
        %8730 = vmatprep.subr.mxu0 0.0
        %8731 = vmatpush1.msra.mxu0 0.0
        %8732 = vmatprep.subr.mxu0 0.0
        %8733 = vmatpush1.msra.mxu0 0.0
        %8734 = vmatprep.subr.mxu0 0.0
        %8735 = vmatpush1.msra.mxu0 0.0
        %8736 = vmatprep.subr.mxu0 0.0
        %8737 = vmatpush1.msra.mxu0 0.0
        %8738 = vmatprep.subr.mxu0 0.0
        %8739 = vmatpush1.msra.mxu0 0.0
        %8740 = vmatprep.subr.mxu0 0.0
        %8741 = vmatpush1.msra.mxu0 0.0
        %8742 = vmatprep.subr.mxu0 0.0
        %8743 = vmatpush1.msra.mxu0 0.0
        %8744 = vmatprep.subr.mxu0 0.0
        %8745 = vmatpush1.msra.mxu0 0.0
        %8746 = vmatprep.subr.mxu0 0.0
        %8747 = vmatpush1.msra.mxu0 0.0
        %8748 = vmatprep.subr.mxu0 0.0
        %8749 = vmatpush1.msra.mxu0 0.0
        %8750 = vmatprep.subr.mxu0 0.0
        %8751 = vmatpush1.msra.mxu0 0.0
        %8752 = vmatprep.subr.mxu0 0.0
        %8753 = vmatpush1.msra.mxu0 0.0
        %8754 = vmatprep.subr.mxu0 0.0
        %8755 = vmatpush1.msra.mxu0 0.0
        %8756 = vmatprep.subr.mxu0 0.0
        %8757 = vmatpush1.msra.mxu0 0.0
        %8758 = vmatprep.subr.mxu0 0.0
        %8759 = vmatpush1.msra.mxu0 0.0
        %8760 = vmatprep.subr.mxu0 0.0
        %8761 = vmatpush1.msra.mxu0 0.0
        %8762 = vmatprep.subr.mxu0 0.0
        %8763 = vmatpush1.msra.mxu0 0.0
        %8764 = vmatprep.subr.mxu0 0.0
        %8765 = vmatpush1.msra.mxu0 0.0
        %8766 = vmatprep.subr.mxu0 0.0
        %8767 = vmatpush1.msra.mxu0 0.0
        %8768 = vmatprep.subr.mxu0 0.0
        %8769 = vmatpush1.msra.mxu0 0.0
        %8770 = vmatprep.subr.mxu0 0.0
        %8771 = vmatpush1.msra.mxu0 0.0
        %8772 = vmatprep.subr.mxu0 0.0
        %8773 = vmatpush1.msra.mxu0 0.0
        %8774 = vmatprep.subr.mxu0 0.0
        %8775 = vmatpush1.msra.mxu0 0.0
        %8776 = vmatprep.mubr.f32.mxu0 0.0
        %8777 = vmatmul.mubr.f32.gmra.mrb[0].mxu0 %v8710
        %v8778 = vpop.f32.mrb[0].mxu0
        %v8779 = vadd.f32 0.0, %v8778
        %v8780 = vpop.f32.mrb[0].mxu0
        %8781 = vdwg.mxu0
        %v8782 = vadd.f32 %v8699, %v8779
        %s8783 = scalar_lea.vmem [#allocation4], 46
        %v8784 = vld [vmem:[%s8783] ss:$50 sm:$0xff]
        %s8785 = scalar_lea.vmem [#allocation4], 47
        %v8786 = vld [vmem:[%s8785] ss:$50 sm:$0xff]
        %v8787 = vmax.f32 %v8784, %v8786
        %v8788 = vld [vmem:[%s5 + $0x2e0] sm:$0xff]
        %v8789 = vld [vmem:[%s5 + $0x2e8] sm:$0xff]
        %v8790 = vld [vmem:[%s5 + $0x2f0] sm:$0xff]
        %v8791 = vld [vmem:[%s5 + $0x2f8] sm:$0xff]
        %v8793 = vsel %vm5282, %v8787, 0
        %8795 = vmatprep.subr.mxu0 0.0
        %8796 = vmatpush1.msra.mxu0 %v8788
        %8797 = vmatprep.subr.mxu0 0.0
        %8798 = vmatpush1.msra.mxu0 %v8789
        %8799 = vmatprep.subr.mxu0 0.0
        %8800 = vmatpush1.msra.mxu0 %v8790
        %8801 = vmatprep.subr.mxu0 0.0
        %8802 = vmatpush1.msra.mxu0 %v8791
        %8803 = vmatprep.subr.mxu0 0.0
        %8804 = vmatpush1.msra.mxu0 0.0
        %8805 = vmatprep.subr.mxu0 0.0
        %8806 = vmatpush1.msra.mxu0 0.0
        %8807 = vmatprep.subr.mxu0 0.0
        %8808 = vmatpush1.msra.mxu0 0.0
        %8809 = vmatprep.subr.mxu0 0.0
        %8810 = vmatpush1.msra.mxu0 0.0
        %8811 = vmatprep.subr.mxu0 0.0
        %8812 = vmatpush1.msra.mxu0 0.0
        %8813 = vmatprep.subr.mxu0 0.0
        %8814 = vmatpush1.msra.mxu0 0.0
        %8815 = vmatprep.subr.mxu0 0.0
        %8816 = vmatpush1.msra.mxu0 0.0
        %8817 = vmatprep.subr.mxu0 0.0
        %8818 = vmatpush1.msra.mxu0 0.0
        %8819 = vmatprep.subr.mxu0 0.0
        %8820 = vmatpush1.msra.mxu0 0.0
        %8821 = vmatprep.subr.mxu0 0.0
        %8822 = vmatpush1.msra.mxu0 0.0
        %8823 = vmatprep.subr.mxu0 0.0
        %8824 = vmatpush1.msra.mxu0 0.0
        %8825 = vmatprep.subr.mxu0 0.0
        %8826 = vmatpush1.msra.mxu0 0.0
        %8827 = vmatprep.subr.mxu0 0.0
        %8828 = vmatpush1.msra.mxu0 0.0
        %8829 = vmatprep.subr.mxu0 0.0
        %8830 = vmatpush1.msra.mxu0 0.0
        %8831 = vmatprep.subr.mxu0 0.0
        %8832 = vmatpush1.msra.mxu0 0.0
        %8833 = vmatprep.subr.mxu0 0.0
        %8834 = vmatpush1.msra.mxu0 0.0
        %8835 = vmatprep.subr.mxu0 0.0
        %8836 = vmatpush1.msra.mxu0 0.0
        %8837 = vmatprep.subr.mxu0 0.0
        %8838 = vmatpush1.msra.mxu0 0.0
        %8839 = vmatprep.subr.mxu0 0.0
        %8840 = vmatpush1.msra.mxu0 0.0
        %8841 = vmatprep.subr.mxu0 0.0
        %8842 = vmatpush1.msra.mxu0 0.0
        %8843 = vmatprep.subr.mxu0 0.0
        %8844 = vmatpush1.msra.mxu0 0.0
        %8845 = vmatprep.subr.mxu0 0.0
        %8846 = vmatpush1.msra.mxu0 0.0
        %8847 = vmatprep.subr.mxu0 0.0
        %8848 = vmatpush1.msra.mxu0 0.0
        %8849 = vmatprep.subr.mxu0 0.0
        %8850 = vmatpush1.msra.mxu0 0.0
        %8851 = vmatprep.subr.mxu0 0.0
        %8852 = vmatpush1.msra.mxu0 0.0
        %8853 = vmatprep.subr.mxu0 0.0
        %8854 = vmatpush1.msra.mxu0 0.0
        %8855 = vmatprep.subr.mxu0 0.0
        %8856 = vmatpush1.msra.mxu0 0.0
        %8857 = vmatprep.subr.mxu0 0.0
        %8858 = vmatpush1.msra.mxu0 0.0
        %8859 = vmatprep.mubr.f32.mxu0 0.0
        %8860 = vmatmul.mubr.f32.gmra.mrb[0].mxu0 %v8793
        %v8861 = vpop.f32.mrb[0].mxu0
        %v8862 = vadd.f32 0.0, %v8861
        %v8863 = vpop.f32.mrb[0].mxu0
        %8864 = vdwg.mxu0
        %v8865 = vadd.f32 %v8782, %v8862
        %v8866 = vld [vmem:[%s6] sm:$0x1]
        %v8868 = vlaneseq
        %v8869 = vshrl.u32 %v8868, 7
        %v8870 = vsub.s32 0, %v8869
        %v8871 = vrot.slane %v8866, %v8870
        %v8873 = vadd.f32 %v8865, %v8871
        %v8874 = vmax.f32 %v8873, 0.0
        %v8875 = vld [vmem:[%s7] sm:$0xff]
        %v8876 = vld [vmem:[%s7 + $0x8] sm:$0xff]
        %v8877 = vld [vmem:[%s7 + $0x10] sm:$0xff]
        %v8878 = vld [vmem:[%s7 + $0x18] sm:$0xff]
        %v8879 = vld [vmem:[%s7 + $0x20] sm:$0xff]
        %v8880 = vld [vmem:[%s7 + $0x28] sm:$0xff]
        %v8881 = vld [vmem:[%s7 + $0x30] sm:$0xff]
        %v8882 = vld [vmem:[%s7 + $0x38] sm:$0xff]
        %v8883 = vld [vmem:[%s7 + $0x40] sm:$0xff]
        %v8884 = vld [vmem:[%s7 + $0x48] sm:$0xff]
        %v8885 = vld [vmem:[%s7 + $0x50] sm:$0xff]
        %v8886 = vld [vmem:[%s7 + $0x58] sm:$0xff]
        %v8887 = vld [vmem:[%s7 + $0x60] sm:$0xf]
        %v8888 = vld [vmem:[%s8] sm:$0x1]
        %v8890 = vlaneseq
        %v8891 = vshrl.u32 %v8890, 7
        %v8892 = vsub.s32 0, %v8891
        %v8893 = vrot.slane %v8888, %v8892
        %vm8895 = vcmask 818176
        %v8897 = vsel %vm8895, %v8874, 0
        %v8900 = vsel %vm743, %v8887, 0
        %8902 = vmatprep.subr.mxu0 0.0
        %8903 = vmatpush1.msra.mxu0 %v8875
        %8904 = vmatprep.subr.mxu0 0.0
        %8905 = vmatpush1.msra.mxu0 %v8876
        %8906 = vmatprep.subr.mxu0 0.0
        %8907 = vmatpush1.msra.mxu0 %v8877
        %8908 = vmatprep.subr.mxu0 0.0
        %8909 = vmatpush1.msra.mxu0 %v8878
        %8910 = vmatprep.subr.mxu0 0.0
        %8911 = vmatpush1.msra.mxu0 %v8879
        %8912 = vmatprep.subr.mxu0 0.0
        %8913 = vmatpush1.msra.mxu0 %v8880
        %8914 = vmatprep.subr.mxu0 0.0
        %8915 = vmatpush1.msra.mxu0 %v8881
        %8916 = vmatprep.subr.mxu0 0.0
        %8917 = vmatpush1.msra.mxu0 %v8882
        %8918 = vmatprep.subr.mxu0 0.0
        %8919 = vmatpush1.msra.mxu0 %v8883
        %8920 = vmatprep.subr.mxu0 0.0
        %8921 = vmatpush1.msra.mxu0 %v8884
        %8922 = vmatprep.subr.mxu0 0.0
        %8923 = vmatpush1.msra.mxu0 %v8885
        %8924 = vmatprep.subr.mxu0 0.0
        %8925 = vmatpush1.msra.mxu0 %v8886
        %8926 = vmatprep.subr.mxu0 0.0
        %8927 = vmatpush1.msra.mxu0 %v8900
        %8928 = vmatprep.subr.mxu0 0.0
        %8929 = vmatpush1.msra.mxu0 0.0
        %8930 = vmatprep.subr.mxu0 0.0
        %8931 = vmatpush1.msra.mxu0 0.0
        %8932 = vmatprep.subr.mxu0 0.0
        %8933 = vmatpush1.msra.mxu0 0.0
        %8934 = vmatprep.subr.mxu0 0.0
        %8935 = vmatpush1.msra.mxu0 0.0
        %8936 = vmatprep.subr.mxu0 0.0
        %8937 = vmatpush1.msra.mxu0 0.0
        %8938 = vmatprep.subr.mxu0 0.0
        %8939 = vmatpush1.msra.mxu0 0.0
        %8940 = vmatprep.subr.mxu0 0.0
        %8941 = vmatpush1.msra.mxu0 0.0
        %8942 = vmatprep.subr.mxu0 0.0
        %8943 = vmatpush1.msra.mxu0 0.0
        %8944 = vmatprep.subr.mxu0 0.0
        %8945 = vmatpush1.msra.mxu0 0.0
        %8946 = vmatprep.subr.mxu0 0.0
        %8947 = vmatpush1.msra.mxu0 0.0
        %8948 = vmatprep.subr.mxu0 0.0
        %8949 = vmatpush1.msra.mxu0 0.0
        %8950 = vmatprep.subr.mxu0 0.0
        %8951 = vmatpush1.msra.mxu0 0.0
        %8952 = vmatprep.subr.mxu0 0.0
        %8953 = vmatpush1.msra.mxu0 0.0
        %8954 = vmatprep.subr.mxu0 0.0
        %8955 = vmatpush1.msra.mxu0 0.0
        %8956 = vmatprep.subr.mxu0 0.0
        %8957 = vmatpush1.msra.mxu0 0.0
        %8958 = vmatprep.subr.mxu0 0.0
        %8959 = vmatpush1.msra.mxu0 0.0
        %8960 = vmatprep.subr.mxu0 0.0
        %8961 = vmatpush1.msra.mxu0 0.0
        %8962 = vmatprep.subr.mxu0 0.0
        %8963 = vmatpush1.msra.mxu0 0.0
        %8964 = vmatprep.subr.mxu0 0.0
        %8965 = vmatpush1.msra.mxu0 0.0
        %8966 = vmatprep.mubr.f32.mxu0 0.0
        %8967 = vmatmul.mubr.f32.gmra.mrb[0].mxu0 %v8897
        %v8968 = vpop.f32.mrb[0].mxu0
        %v8969 = vadd.f32 %v8893, %v8968
        %v8970 = vpop.f32.mrb[0].mxu0
        %8971 = vdwg.mxu0
        %vm8972 = vcmask 80896
        %8973 = vst.msk [vmem:[%s326] sm:$0xff] %vm8972, %v8969
        %s8974 = sand.u32 %s225, 1
        %s8975 = scalar_lea.sflag [#allocation6], %s8974
        %s8976 = sand.u32 %s225, 1
        %s8977 = smul.addr %s8976, 8
        %s8978 = scalar_lea.vmem [#allocation5], %s8977
        // Predicated region
        $region57: #{cnn_forward.1} parent=55 // pred_check
          %p8979 = pneg %p235
        $region58: #{cnn_forward.1} parent=55 // pred_check_branch
          %8981 = sbr.rel (%p8979) target = $region60
        $region59: #{cnn_forward.1} parent=55 // pred_region
          %s8983 = ssub.s32 128, 128
          %8984 = vsyncadd %s8975, %s8983
          %s8985 = smul.addr %s23, 128
          %s8986 = scalar_lea.hbm %s9, %s8985
          %s8988 = sshll.u32 %s8978, 4
          %s8989 = int_to_ptr.vmem [resolvable:$true] %s8988
          %8991 = dma.vmem_to_hbm [thread:$0]  %s8989, 128, %s8986, %s8975
        $region60: #{cnn_forward.1} parent=55 // pred_fallthru
          _
      $region56: #{cnn_forward.1} parent=5 // pred_fallthru
        _
      %p8992 = scmp.le.s32.totalorder 2, %s18
      // Predicated region
      $region61: #{cnn_forward.1} parent=5 // pred_check
        %p8993 = pneg %p8992
      $region62: #{cnn_forward.1} parent=5 // pred_check_branch
        %8995 = sbr.rel (%p8993) target = $region64
      $region63: #{cnn_forward.1} parent=5 // pred_region
        %s8996 = ssub.s32 %s18, 2
        // Predicated region
        $region65: #{cnn_forward.1} parent=63 // pred_check
          %p8997 = pneg %p241
        $region66: #{cnn_forward.1} parent=63 // pred_check_branch
          %8999 = sbr.rel (%p8997) target = $region68
        $region67: #{cnn_forward.1} parent=63 // pred_region
          %s9000 = sand.u32 %s226, 1
          %s9001 = scalar_lea.sflag [#allocation6], %s9000
          %s9002 = sand.u32 %s226, 1
          %s9003 = smul.addr %s9002, 8
          %s9004 = scalar_lea.vmem [#allocation5], %s9003
          %9005 = dma.done %s9001, 128
        $region68: #{cnn_forward.1} parent=63 // pred_fallthru
          _
      $region64: #{cnn_forward.1} parent=5 // pred_fallthru
        _
    $region6: #{cnn_forward.1} parent=1 // loop_footer
      %s22 = sadd.s32 1, %s18
    $region7: #{cnn_forward.1} parent=1 // loop_footer_branch
      %17 = sbr.rel target = $region3
    $region8: #{cnn_forward.1} parent=1 // loop_exit
      _
    %9006 = vsyncpa [#allocation6], 1
    %s9007 = scalar_lea.sflag [#allocation6], 1
    %9008 = vsyncpa %s9007, 1

</llo_original>
